<compile_context>
chip_gen: v5e
topology: v5e:2x2
jax: 0.10.0
libtpu: 0.0.40
codegen_flags: <defaults>
</compile_context>

<pallas_src>
import functools
import numpy as np

import jax
import jax.numpy as jnp
from jax import lax
from jax.experimental import pallas as pl
from jax.experimental.pallas import tpu as pltpu

D_MODEL = 128
NHEAD = 8
HEAD_DIM = D_MODEL // NHEAD
NUM_LAYERS = 2
GRU_HIDDEN = 64
D_FF = 2048          # PyTorch TransformerEncoderLayer default dim_feedforward
LN_EPS = 1e-5

_VMEM = pl.BlockSpec(memory_space=pltpu.MemorySpace.VMEM)


def _pick_block(n, target):
    """Largest divisor of n that is <= target (>=1)."""
    t = max(1, min(int(target), n))
    while n % t:
        t -= 1
    return t


def _ln(v, g, b, eps=LN_EPS):
    mu = jnp.mean(v, axis=-1, keepdims=True)
    c = v - mu
    var = jnp.mean(c * c, axis=-1, keepdims=True)
    return c * lax.rsqrt(var + eps) * g + b


# ---------------------- GRU + input-projection dual-stream kernel -------------------

def _gru_stream_kernel(x_ref, pe_ref, wih_ref, whh_ref, bi_ref, bhn_ref,
                       ng_ref, nb_ref, pw_ref, pb_ref, iw_ref, ib_ref, o_ref):
    # x_ref: (Bblk, S, I); o_ref: (2, Bblk, S, D)  [stream 0 = input-proj, 1 = GRU].
    Bblk, S, I = x_ref.shape
    H = whh_ref.shape[0]

    x_flat = x_ref[...].reshape(Bblk * S, I)
    xb = x_flat.astype(jnp.bfloat16)
    pe = pe_ref[...]                                             # (S, D)

    # ---- stream 0: input projection + positional encoding (fused, no extra kernel).
    xproj = (jnp.dot(xb, iw_ref[...], preferred_element_type=jnp.float32)
             + ib_ref[...])
    o_ref[0] = xproj.reshape(Bblk, S, D_MODEL) + pe[None]

    # ---- stream 1: GRU recurrence -> LayerNorm(H) -> projection(H->D) -> +PE.
    # Hoisted fused input projection for all 3 gates / all timesteps (one MXU pass).
    gi = (jnp.dot(xb, wih_ref[...], preferred_element_type=jnp.float32)
          + bi_ref[...])                                         # (Bblk*S, 3H)
    gi3 = gi.reshape(Bblk, S, 3 * H)

    whh = whh_ref[...]                                           # (H, 3H) bf16
    bhn = jnp.broadcast_to(bhn_ref[...], (Bblk, H))               # hoisted broadcast

    h = jnp.zeros((Bblk, H), jnp.float32)
    hs_list = []
    for t in range(S):                      # short static unroll (serial recurrence)
        gh = jnp.dot(h.astype(jnp.bfloat16), whh,
                     preferred_element_type=jnp.float32)          # (Bblk, 3H)
        git = gi3[:, t, :]
        r = jax.nn.sigmoid(git[:, :H] + gh[:, :H])
        z = jax.nn.sigmoid(git[:, H:2 * H] + gh[:, H:2 * H])
        n = jnp.tanh(git[:, 2 * H:] + r * (gh[:, 2 * H:] + bhn))
        h = (1.0 - z) * n + z * h
        hs_list.append(h)

    hs = jnp.stack(hs_list, axis=1).reshape(Bblk * S, H)          # (Bblk*S, H)
    normed = _ln(hs, ng_ref[...], nb_ref[...])
    gru_feat = (jnp.dot(normed.astype(jnp.bfloat16), pw_ref[...],
                        preferred_element_type=jnp.float32) + pb_ref[...])
    o_ref[1] = gru_feat.reshape(Bblk, S, D_MODEL) + pe[None]


def gru_dual_stream(x, pe, p):
    # x: (B, S, I) -> (2B, S, D) stacked streams [x_proj ; gru], PE already added.
    B, S, I = x.shape
    bblk = _pick_block(B, max(1, min(128, B // 2)))   # >=2 grid steps when B>=2 (v7x)
    n_b = B // bblk
    weights = [p['gru_wih'], p['gru_whh'], p['gru_bi'], p['gru_bhn'],
               p['gru_norm_g'], p['gru_norm_b'], p['gru_proj_w'], p['gru_proj_b'],
               p['inp_proj_w'], p['inp_proj_b']]

    def full_spec(a):
        nd = a.ndim
        return pl.BlockSpec(a.shape, lambda b, _nd=nd: (0,) * _nd)

    out = pl.pallas_call(
        _gru_stream_kernel,
        grid=(n_b,),
        out_shape=jax.ShapeDtypeStruct((2, B, S, D_MODEL), jnp.float32),
        in_specs=[pl.BlockSpec((bblk, S, I), lambda b: (b, 0, 0)),
                  pl.BlockSpec(pe.shape, lambda b: (0, 0))]
                 + [full_spec(a) for a in weights],
        out_specs=pl.BlockSpec((2, bblk, S, D_MODEL), lambda b: (0, b, 0, 0)),
        compiler_params=pltpu.CompilerParams(dimension_semantics=("parallel",)),
    )(x, pe, *weights)
    return out.reshape(2 * B, S, D_MODEL)


# --------------------------- fused encoder-stack kernel -----------------------------

def _encoder_stack_kernel(x_ref, wqkv_ref, bqkv_ref, wo_ref, bo_ref,
                          g1_ref, b1_ref, w1_ref, bb1_ref, w2_ref, bb2_ref,
                          g2_ref, b2_ref, pooled_ref, act_ref,
                          *, nhead, scale, eps):
    # One post-norm TransformerEncoderLayer per grid step; layer axis carried through
    # the VMEM act scratch.  Blocks: x/act (Bblk,S,D), pooled (Bblk,1,D).
    l = pl.program_id(1)
    n_layers = pl.num_programs(1)

    @pl.when(l == 0)
    def _():
        act_ref[...] = x_ref[...]

    x = act_ref[...]                                   # (Bblk, S, D) f32
    Bblk, S, D = x.shape
    hd = D // nhead
    R = Bblk * S
    x_flat = x.reshape(R, D)
    xb = x_flat.astype(jnp.bfloat16)

    # Fused lane-dense QKV projection: (R, D) x (D, 3D).
    qkv = (jnp.dot(xb, wqkv_ref[...], preferred_element_type=jnp.float32)
           + bqkv_ref[...])                            # (R, 3D)
    q = qkv[:, :D].reshape(Bblk, S, D)
    k = qkv[:, D:2 * D].reshape(Bblk, S, D)
    v = qkv[:, 2 * D:].reshape(Bblk, S, D)

    heads = []
    for h in range(nhead):
        sl = slice(h * hd, (h + 1) * hd)
        qh = q[:, :, sl].astype(jnp.bfloat16)
        kh = k[:, :, sl].astype(jnp.bfloat16)
        vh = v[:, :, sl].astype(jnp.bfloat16)
        s = jnp.einsum('bqd,bkd->bqk', qh, kh,
                       preferred_element_type=jnp.float32) * scale   # (Bblk, S, S)
        m = jnp.max(s, axis=-1, keepdims=True)
        pexp = jnp.exp(s - m)
        pexp = pexp * pl.reciprocal(jnp.sum(pexp, axis=-1, keepdims=True),
                                    approx=True)
        oh = jnp.einsum('bqk,bkd->bqd', pexp.astype(jnp.bfloat16), vh,
                        preferred_element_type=jnp.float32)           # (Bblk, S, hd)
        heads.append(oh)
    attn = jnp.concatenate(heads, axis=-1).reshape(R, D)
    attn = (jnp.dot(attn.astype(jnp.bfloat16), wo_ref[...],
                    preferred_element_type=jnp.float32) + bo_ref[...])

    h1 = _ln(x_flat + attn, g1_ref[...], b1_ref[...], eps)            # residual + LN1
    ff = (jnp.dot(h1.astype(jnp.bfloat16), w1_ref[...],
                  preferred_element_type=jnp.float32) + bb1_ref[...])
    ff = jnp.maximum(ff, 0.0)
    ff = (jnp.dot(ff.astype(jnp.bfloat16), w2_ref[...],
                  preferred_element_type=jnp.float32) + bb2_ref[...])
    y = _ln(h1 + ff, g2_ref[...], b2_ref[...], eps)                    # residual + LN2
    y3 = y.reshape(Bblk, S, D)

    act_ref[...] = y3

    @pl.when(l == n_layers - 1)
    def _():
        pooled_ref[...] = jnp.mean(y3, axis=1, keepdims=True)          # fused mean-pool


def encoder_stack(x, p):
    # x: (B2, S, D) -> pooled (B2, 1, D); all layers in one pallas_call.
    B2, S, D = x.shape
    L = p['enc_wqkv'].shape[0]
    bblk = _pick_block(B2, max(1, min(32, B2 // 2)))  # rows <= 256; >=2 steps (v7x)
    n_b = B2 // bblk

    w_names = ['enc_wqkv', 'enc_bqkv', 'enc_wo', 'enc_bo', 'enc_g1', 'enc_b1',
               'enc_w1', 'enc_bb1', 'enc_w2', 'enc_bb2', 'enc_g2', 'enc_b2']
    weights = [p[n] for n in w_names]

    def layer_spec(a):
        nd = a.ndim
        return pl.BlockSpec((None,) + a.shape[1:],
                            lambda b, l, _nd=nd: (l,) + (0,) * (_nd - 1))

    return pl.pallas_call(
        functools.partial(_encoder_stack_kernel, nhead=NHEAD,
                          scale=1.0 / float(np.sqrt(HEAD_DIM)), eps=LN_EPS),
        grid=(n_b, L),
        out_shape=jax.ShapeDtypeStruct((B2, 1, D), jnp.float32),
        in_specs=[pl.BlockSpec((bblk, S, D), lambda b, l: (b, 0, 0))]
                 + [layer_spec(a) for a in weights],
        out_specs=pl.BlockSpec((bblk, 1, D), lambda b, l: (b, 0, 0)),
        scratch_shapes=[pltpu.VMEM((bblk, S, D), jnp.float32)],
        compiler_params=pltpu.CompilerParams(
            dimension_semantics=("parallel", "arbitrary")),
    )(x, *weights)


# --------------------------------- fusion head ---------------------------------------

def _fusion_kernel(p_ref, w1a_ref, w1b_ref, b1_ref, w2_ref, b2_ref, o_ref):
    # p_ref: (2, B, D) pooled streams.  Concat folded in by splitting fus1 weight.
    p0 = p_ref[0].astype(jnp.bfloat16)      # transformer_pool (x_proj stream)
    p1 = p_ref[1].astype(jnp.bfloat16)      # gru_pool
    h = (jnp.dot(p0, w1a_ref[...], preferred_element_type=jnp.float32)
         + jnp.dot(p1, w1b_ref[...], preferred_element_type=jnp.float32)
         + b1_ref[...])
    h = jnp.maximum(h, 0.0)
    o_ref[...] = (jnp.dot(h.astype(jnp.bfloat16), w2_ref[...],
                          preferred_element_type=jnp.float32) + b2_ref[...])


def fusion_head(pooled, p):
    B = pooled.shape[1]
    out_dim = p['fus2_w'].shape[1]
    return pl.pallas_call(
        _fusion_kernel,
        out_shape=jax.ShapeDtypeStruct((B, out_dim), jnp.float32),
        in_specs=[_VMEM] * 6,
        out_specs=_VMEM,
    )(pooled, p['fus1_wa'], p['fus1_wb'], p['fus1_b'], p['fus2_w'], p['fus2_b'])


# --------------------------- model glue (plain JAX) ----------------------------------

def positional_encoding(seq_len, d_model):
    pos = np.arange(seq_len, dtype=np.float32)[:, None]
    div = np.exp(np.arange(0, d_model, 2, dtype=np.float32)
                 * (-np.log(10000.0) / d_model))
    pe = np.zeros((seq_len, d_model), np.float32)
    pe[:, 0::2] = np.sin(pos * div)
    pe[:, 1::2] = np.cos(pos * div)
    return jnp.asarray(pe)


def forward(x, params):
    B, S, I = x.shape
    pe = positional_encoding(S, D_MODEL)
    streams = gru_dual_stream(x, pe, params)          # (2B, S, D), PE already added
    pooled = encoder_stack(streams, params)           # (2B, 1, D)
    pooled = pooled.reshape(2, B, D_MODEL)            # [x_proj-stream ; gru-stream]
    return fusion_head(pooled, params)                # (B, out)


def init_params(key, input_size, output_size):
    keys = iter(jax.random.split(key, 32))

    def dense(shape, dtype=jnp.bfloat16):
        fan_in = shape[-2]
        w = jax.random.normal(next(keys), shape, jnp.float32) / np.sqrt(fan_in)
        return w.astype(dtype)

    H, D, L = GRU_HIDDEN, D_MODEL, NUM_LAYERS
    p = {
        # GRU weights fused per-site: (I, 3H) / (H, 3H), gate order [r, z, n].
        # gru_bi = b_ih + [b_hr, b_hz, 0] pre-combined; gru_bhn = b_hn (inside r*()).
        'gru_wih': dense((input_size, 3 * H)),
        'gru_whh': dense((H, 3 * H)),
        'gru_bi': jnp.zeros((1, 3 * H), jnp.float32),
        'gru_bhn': jnp.zeros((1, H), jnp.float32),
        'gru_norm_g': jnp.ones((1, H), jnp.float32),
        'gru_norm_b': jnp.zeros((1, H), jnp.float32),
        'gru_proj_w': dense((H, D)),
        'gru_proj_b': jnp.zeros((1, D), jnp.float32),
        'inp_proj_w': dense((input_size, D)),
        'inp_proj_b': jnp.zeros((1, D), jnp.float32),
        # Fusion head; first linear split into the two pooled-stream halves.
        'fus1_wa': dense((D, D)),
        'fus1_wb': dense((D, D)),
        'fus1_b': jnp.zeros((1, D), jnp.float32),
        'fus2_w': dense((D, output_size)),
        'fus2_b': jnp.zeros((1, output_size), jnp.float32),
        # Encoder stack: per-layer weights stacked on leading L axis; QKV fused (D,3D).
        'enc_wqkv': dense((L, D, 3 * D)),
        'enc_bqkv': jnp.zeros((L, 1, 3 * D), jnp.float32),
        'enc_wo': dense((L, D, D)),
        'enc_bo': jnp.zeros((L, 1, D), jnp.float32),
        'enc_g1': jnp.ones((L, 1, D), jnp.float32),
        'enc_b1': jnp.zeros((L, 1, D), jnp.float32),
        'enc_w1': dense((L, D, D_FF)),
        'enc_bb1': jnp.zeros((L, 1, D_FF), jnp.float32),
        'enc_w2': dense((L, D_FF, D)),
        'enc_bb2': jnp.zeros((L, 1, D), jnp.float32),
        'enc_g2': jnp.ones((L, 1, D), jnp.float32),
        'enc_b2': jnp.zeros((L, 1, D), jnp.float32),
    }
    return p


if __name__ == "__main__":
    batch, seq, input_size, output_size = 2, 8, 8, 4
    key = jax.random.PRNGKey(0)
    kx, kp = jax.random.split(key)
    x = jax.random.normal(kx, (batch, seq, input_size), jnp.float32)
    params = init_params(kp, input_size, output_size)

    out = jax.block_until_ready(jax.jit(forward)(x, params))
    assert out.shape == (batch, output_size)
    assert bool(jnp.all(jnp.isfinite(out)))
    print("KERNEL_OK")
</pallas_src>

<mosaic_0001>
module attributes {stable_mosaic.version = 11 : i64} {
  func.func @_encoder_stack_kernel(%arg0: i32, %arg1: i32, %arg2: memref<2x8x128xf32, #tpu.memory_space<vmem>>, %arg3: memref<1x128x384xbf16, #tpu.memory_space<vmem>>, %arg4: memref<1x1x384xf32, #tpu.memory_space<vmem>>, %arg5: memref<1x128x128xbf16, #tpu.memory_space<vmem>>, %arg6: memref<1x1x128xf32, #tpu.memory_space<vmem>>, %arg7: memref<1x1x128xf32, #tpu.memory_space<vmem>>, %arg8: memref<1x1x128xf32, #tpu.memory_space<vmem>>, %arg9: memref<1x128x2048xbf16, #tpu.memory_space<vmem>>, %arg10: memref<1x1x2048xf32, #tpu.memory_space<vmem>>, %arg11: memref<1x2048x128xbf16, #tpu.memory_space<vmem>>, %arg12: memref<1x1x128xf32, #tpu.memory_space<vmem>>, %arg13: memref<1x1x128xf32, #tpu.memory_space<vmem>>, %arg14: memref<1x1x128xf32, #tpu.memory_space<vmem>>, %arg15: memref<2x1x128xf32, #tpu.memory_space<vmem>>, %arg16: memref<2x8x128xf32, #tpu.memory_space<vmem>>) attributes {dimension_semantics = [#tpu.dimension_semantics<parallel>, #tpu.dimension_semantics<arbitrary>], iteration_bounds = array<i64: 2, 2>, scalar_prefetch = 0 : i64, scratch_operands = 1 : i64, tpu.core_type = #tpu.core_type<tc>, window_params = [{transform_indices = @transform_0, window_bounds = array<i64: 2, 8, 128>}, {transform_indices = @transform_1, window_bounds = array<i64: 1, 128, 384>}, {transform_indices = @transform_2, window_bounds = array<i64: 1, 1, 384>}, {transform_indices = @transform_3, window_bounds = array<i64: 1, 128, 128>}, {transform_indices = @transform_4, window_bounds = array<i64: 1, 1, 128>}, {transform_indices = @transform_5, window_bounds = array<i64: 1, 1, 128>}, {transform_indices = @transform_6, window_bounds = array<i64: 1, 1, 128>}, {transform_indices = @transform_7, window_bounds = array<i64: 1, 128, 2048>}, {transform_indices = @transform_8, window_bounds = array<i64: 1, 1, 2048>}, {transform_indices = @transform_9, window_bounds = array<i64: 1, 2048, 128>}, {transform_indices = @transform_10, window_bounds = array<i64: 1, 1, 128>}, {transform_indices = @transform_11, window_bounds = array<i64: 1, 1, 128>}, {transform_indices = @transform_12, window_bounds = array<i64: 1, 1, 128>}, {transform_indices = @transform_13, window_bounds = array<i64: 2, 1, 128>}]} {
    %c0_i32 = arith.constant 0 : i32
    %0 = arith.cmpi eq, %arg1, %c0_i32 : i32
    %1 = arith.extui %0 : i1 to i32
    %c0_i32_0 = arith.constant 0 : i32
    %2 = arith.cmpi ne, %1, %c0_i32_0 : i32
    scf.if %2 {
      %c0_97 = arith.constant 0 : index
      %c0_98 = arith.constant 0 : index
      %c0_99 = arith.constant 0 : index
      %270 = vector.load %arg2[%c0_97, %c0_98, %c0_99] : memref<2x8x128xf32, #tpu.memory_space<vmem>>, vector<2x8x128xf32>
      %c0_100 = arith.constant 0 : index
      %c0_101 = arith.constant 0 : index
      %c0_102 = arith.constant 0 : index
      %271 = vector.load %arg16[%c0_100, %c0_101, %c0_102] : memref<2x8x128xf32, #tpu.memory_space<vmem>>, vector<2x8x128xf32>
      tpu.vector_store %arg16[%c0_100, %c0_101, %c0_102], %270 {strides = array<i32>} : memref<2x8x128xf32, #tpu.memory_space<vmem>>, vector<2x8x128xf32>,
    } else {
    }
    %c0 = arith.constant 0 : index
    %c0_1 = arith.constant 0 : index
    %c0_2 = arith.constant 0 : index
    %3 = vector.load %arg16[%c0, %c0_1, %c0_2] : memref<2x8x128xf32, #tpu.memory_space<vmem>>, vector<2x8x128xf32>
    %4 = vector.shape_cast %3 : vector<2x8x128xf32> to vector<16x128xf32>
    %5 = arith.truncf %4 : vector<16x128xf32> to vector<16x128xbf16>
    %c0_3 = arith.constant 0 : index
    %c0_4 = arith.constant 0 : index
    %c0_5 = arith.constant 0 : index
    %6 = vector.load %arg3[%c0_3, %c0_4, %c0_5] : memref<1x128x384xbf16, #tpu.memory_space<vmem>>, vector<1x128x384xbf16>
    %7 = vector.shape_cast %6 : vector<1x128x384xbf16> to vector<128x384xbf16>
    %cst = arith.constant dense<0.000000e+00> : vector<16x384xf32>
    %8 = tpu.matmul %5, %7, %cst {dimension_numbers = #tpu.dot_dimension_numbers<[1], [0], [0], [1], [0, 0, 1, 1], [], []>} : vector<16x128xbf16>, vector<128x384xbf16>, vector<16x384xf32> -> vector<16x384xf32>
    %c0_6 = arith.constant 0 : index
    %c0_7 = arith.constant 0 : index
    %c0_8 = arith.constant 0 : index
    %9 = vector.load %arg4[%c0_6, %c0_7, %c0_8] : memref<1x1x384xf32, #tpu.memory_space<vmem>>, vector<1x1x384xf32>
    %10 = vector.shape_cast %9 : vector<1x1x384xf32> to vector<1x384xf32>
    %11 = vector.broadcast %10 : vector<1x384xf32> to vector<16x384xf32>
    %12 = arith.addf %8, %11 : vector<16x384xf32>
    %13 = vector.extract_strided_slice %12 {offsets = [0, 0], sizes = [16, 128], strides = [1, 1]} : vector<16x384xf32> to vector<16x128xf32>
    %14 = vector.shape_cast %13 : vector<16x128xf32> to vector<2x8x128xf32>
    %15 = vector.extract_strided_slice %12 {offsets = [0, 128], sizes = [16, 128], strides = [1, 1]} : vector<16x384xf32> to vector<16x128xf32>
    %16 = vector.shape_cast %15 : vector<16x128xf32> to vector<2x8x128xf32>
    %17 = vector.extract_strided_slice %12 {offsets = [0, 256], sizes = [16, 128], strides = [1, 1]} : vector<16x384xf32> to vector<16x128xf32>
    %18 = vector.shape_cast %17 : vector<16x128xf32> to vector<2x8x128xf32>
    %19 = vector.extract_strided_slice %14 {offsets = [0, 0, 0], sizes = [2, 8, 16], strides = [1, 1, 1]} : vector<2x8x128xf32> to vector<2x8x16xf32>
    %20 = arith.truncf %19 : vector<2x8x16xf32> to vector<2x8x16xbf16>
    %21 = vector.extract_strided_slice %16 {offsets = [0, 0, 0], sizes = [2, 8, 16], strides = [1, 1, 1]} : vector<2x8x128xf32> to vector<2x8x16xf32>
    %22 = arith.truncf %21 : vector<2x8x16xf32> to vector<2x8x16xbf16>
    %23 = vector.extract_strided_slice %18 {offsets = [0, 0, 0], sizes = [2, 8, 16], strides = [1, 1, 1]} : vector<2x8x128xf32> to vector<2x8x16xf32>
    %24 = arith.truncf %23 : vector<2x8x16xf32> to vector<2x8x16xbf16>
    "tpu.trace_start"() <{level = 10 : i32, message = "bqd,bkd->bqk"}> : () -> ()
    %cst_9 = arith.constant dense<0.000000e+00> : vector<2x8x8xf32>
    %25 = tpu.matmul %20, %22, %cst_9 {dimension_numbers = #tpu.dot_dimension_numbers<[2], [2], [1], [1], [0, 0, 0, 1, 1, 1], [0], [0]>} : vector<2x8x16xbf16>, vector<2x8x16xbf16>, vector<2x8x8xf32> -> vector<2x8x8xf32>
    "tpu.trace_stop"() : () -> ()
    %cst_10 = arith.constant 2.500000e-01 : f32
    %26 = vector.broadcast %cst_10 : f32 to vector<2x8x8xf32>
    %27 = arith.mulf %25, %26 : vector<2x8x8xf32>
    %cst_11 = arith.constant dense<0xFF800000> : vector<2x8xf32>
    %28 = vector.multi_reduction <maximumf>, %27, %cst_11 [2] : vector<2x8x8xf32> to vector<2x8xf32>
    %29 = vector.shape_cast %28 : vector<2x8xf32> to vector<2x8x1xf32>
    %30 = vector.broadcast %29 : vector<2x8x1xf32> to vector<2x8x8xf32>
    %31 = arith.subf %27, %30 : vector<2x8x8xf32>
    %32 = math.exp %31 : vector<2x8x8xf32>
    %cst_12 = arith.constant dense<0.000000e+00> : vector<2x8xf32>
    %33 = vector.multi_reduction <add>, %32, %cst_12 [2] : vector<2x8x8xf32> to vector<2x8xf32>
    %34 = vector.shape_cast %33 : vector<2x8xf32> to vector<2x8x1xf32>
    %35 = tpu.reciprocal %34 {approx = true} : vector<2x8x1xf32> -> vector<2x8x1xf32>
    %36 = vector.broadcast %35 : vector<2x8x1xf32> to vector<2x8x8xf32>
    %37 = arith.mulf %32, %36 : vector<2x8x8xf32>
    %38 = arith.truncf %37 : vector<2x8x8xf32> to vector<2x8x8xbf16>
    "tpu.trace_start"() <{level = 10 : i32, message = "bqk,bkd->bqd"}> : () -> ()
    %cst_13 = arith.constant dense<0.000000e+00> : vector<2x8x16xf32>
    %39 = tpu.matmul %38, %24, %cst_13 {dimension_numbers = #tpu.dot_dimension_numbers<[2], [1], [1], [2], [0, 0, 0, 1, 1, 2], [0], [0]>} : vector<2x8x8xbf16>, vector<2x8x16xbf16>, vector<2x8x16xf32> -> vector<2x8x16xf32>
    "tpu.trace_stop"() : () -> ()
    %40 = vector.extract_strided_slice %14 {offsets = [0, 0, 16], sizes = [2, 8, 16], strides = [1, 1, 1]} : vector<2x8x128xf32> to vector<2x8x16xf32>
    %41 = arith.truncf %40 : vector<2x8x16xf32> to vector<2x8x16xbf16>
    %42 = vector.extract_strided_slice %16 {offsets = [0, 0, 16], sizes = [2, 8, 16], strides = [1, 1, 1]} : vector<2x8x128xf32> to vector<2x8x16xf32>
    %43 = arith.truncf %42 : vector<2x8x16xf32> to vector<2x8x16xbf16>
    %44 = vector.extract_strided_slice %18 {offsets = [0, 0, 16], sizes = [2, 8, 16], strides = [1, 1, 1]} : vector<2x8x128xf32> to vector<2x8x16xf32>
    %45 = arith.truncf %44 : vector<2x8x16xf32> to vector<2x8x16xbf16>
    "tpu.trace_start"() <{level = 10 : i32, message = "bqd,bkd->bqk"}> : () -> ()
    %cst_14 = arith.constant dense<0.000000e+00> : vector<2x8x8xf32>
    %46 = tpu.matmul %41, %43, %cst_14 {dimension_numbers = #tpu.dot_dimension_numbers<[2], [2], [1], [1], [0, 0, 0, 1, 1, 1], [0], [0]>} : vector<2x8x16xbf16>, vector<2x8x16xbf16>, vector<2x8x8xf32> -> vector<2x8x8xf32>
    "tpu.trace_stop"() : () -> ()
    %cst_15 = arith.constant 2.500000e-01 : f32
    %47 = vector.broadcast %cst_15 : f32 to vector<2x8x8xf32>
    %48 = arith.mulf %46, %47 : vector<2x8x8xf32>
    %cst_16 = arith.constant dense<0xFF800000> : vector<2x8xf32>
    %49 = vector.multi_reduction <maximumf>, %48, %cst_16 [2] : vector<2x8x8xf32> to vector<2x8xf32>
    %50 = vector.shape_cast %49 : vector<2x8xf32> to vector<2x8x1xf32>
    %51 = vector.broadcast %50 : vector<2x8x1xf32> to vector<2x8x8xf32>
    %52 = arith.subf %48, %51 : vector<2x8x8xf32>
    %53 = math.exp %52 : vector<2x8x8xf32>
    %cst_17 = arith.constant dense<0.000000e+00> : vector<2x8xf32>
    %54 = vector.multi_reduction <add>, %53, %cst_17 [2] : vector<2x8x8xf32> to vector<2x8xf32>
    %55 = vector.shape_cast %54 : vector<2x8xf32> to vector<2x8x1xf32>
    %56 = tpu.reciprocal %55 {approx = true} : vector<2x8x1xf32> -> vector<2x8x1xf32>
    %57 = vector.broadcast %56 : vector<2x8x1xf32> to vector<2x8x8xf32>
    %58 = arith.mulf %53, %57 : vector<2x8x8xf32>
    %59 = arith.truncf %58 : vector<2x8x8xf32> to vector<2x8x8xbf16>
    "tpu.trace_start"() <{level = 10 : i32, message = "bqk,bkd->bqd"}> : () -> ()
    %cst_18 = arith.constant dense<0.000000e+00> : vector<2x8x16xf32>
    %60 = tpu.matmul %59, %45, %cst_18 {dimension_numbers = #tpu.dot_dimension_numbers<[2], [1], [1], [2], [0, 0, 0, 1, 1, 2], [0], [0]>} : vector<2x8x8xbf16>, vector<2x8x16xbf16>, vector<2x8x16xf32> -> vector<2x8x16xf32>
    "tpu.trace_stop"() : () -> ()
    %61 = vector.extract_strided_slice %14 {offsets = [0, 0, 32], sizes = [2, 8, 16], strides = [1, 1, 1]} : vector<2x8x128xf32> to vector<2x8x16xf32>
    %62 = arith.truncf %61 : vector<2x8x16xf32> to vector<2x8x16xbf16>
    %63 = vector.extract_strided_slice %16 {offsets = [0, 0, 32], sizes = [2, 8, 16], strides = [1, 1, 1]} : vector<2x8x128xf32> to vector<2x8x16xf32>
    %64 = arith.truncf %63 : vector<2x8x16xf32> to vector<2x8x16xbf16>
    %65 = vector.extract_strided_slice %18 {offsets = [0, 0, 32], sizes = [2, 8, 16], strides = [1, 1, 1]} : vector<2x8x128xf32> to vector<2x8x16xf32>
    %66 = arith.truncf %65 : vector<2x8x16xf32> to vector<2x8x16xbf16>
    "tpu.trace_start"() <{level = 10 : i32, message = "bqd,bkd->bqk"}> : () -> ()
    %cst_19 = arith.constant dense<0.000000e+00> : vector<2x8x8xf32>
    %67 = tpu.matmul %62, %64, %cst_19 {dimension_numbers = #tpu.dot_dimension_numbers<[2], [2], [1], [1], [0, 0, 0, 1, 1, 1], [0], [0]>} : vector<2x8x16xbf16>, vector<2x8x16xbf16>, vector<2x8x8xf32> -> vector<2x8x8xf32>
    "tpu.trace_stop"() : () -> ()
    %cst_20 = arith.constant 2.500000e-01 : f32
    %68 = vector.broadcast %cst_20 : f32 to vector<2x8x8xf32>
    %69 = arith.mulf %67, %68 : vector<2x8x8xf32>
    %cst_21 = arith.constant dense<0xFF800000> : vector<2x8xf32>
    %70 = vector.multi_reduction <maximumf>, %69, %cst_21 [2] : vector<2x8x8xf32> to vector<2x8xf32>
    %71 = vector.shape_cast %70 : vector<2x8xf32> to vector<2x8x1xf32>
    %72 = vector.broadcast %71 : vector<2x8x1xf32> to vector<2x8x8xf32>
    %73 = arith.subf %69, %72 : vector<2x8x8xf32>
    %74 = math.exp %73 : vector<2x8x8xf32>
    %cst_22 = arith.constant dense<0.000000e+00> : vector<2x8xf32>
    %75 = vector.multi_reduction <add>, %74, %cst_22 [2] : vector<2x8x8xf32> to vector<2x8xf32>
    %76 = vector.shape_cast %75 : vector<2x8xf32> to vector<2x8x1xf32>
    %77 = tpu.reciprocal %76 {approx = true} : vector<2x8x1xf32> -> vector<2x8x1xf32>
    %78 = vector.broadcast %77 : vector<2x8x1xf32> to vector<2x8x8xf32>
    %79 = arith.mulf %74, %78 : vector<2x8x8xf32>
    %80 = arith.truncf %79 : vector<2x8x8xf32> to vector<2x8x8xbf16>
    "tpu.trace_start"() <{level = 10 : i32, message = "bqk,bkd->bqd"}> : () -> ()
    %cst_23 = arith.constant dense<0.000000e+00> : vector<2x8x16xf32>
    %81 = tpu.matmul %80, %66, %cst_23 {dimension_numbers = #tpu.dot_dimension_numbers<[2], [1], [1], [2], [0, 0, 0, 1, 1, 2], [0], [0]>} : vector<2x8x8xbf16>, vector<2x8x16xbf16>, vector<2x8x16xf32> -> vector<2x8x16xf32>
    "tpu.trace_stop"() : () -> ()
    %82 = vector.extract_strided_slice %14 {offsets = [0, 0, 48], sizes = [2, 8, 16], strides = [1, 1, 1]} : vector<2x8x128xf32> to vector<2x8x16xf32>
    %83 = arith.truncf %82 : vector<2x8x16xf32> to vector<2x8x16xbf16>
    %84 = vector.extract_strided_slice %16 {offsets = [0, 0, 48], sizes = [2, 8, 16], strides = [1, 1, 1]} : vector<2x8x128xf32> to vector<2x8x16xf32>
    %85 = arith.truncf %84 : vector<2x8x16xf32> to vector<2x8x16xbf16>
    %86 = vector.extract_strided_slice %18 {offsets = [0, 0, 48], sizes = [2, 8, 16], strides = [1, 1, 1]} : vector<2x8x128xf32> to vector<2x8x16xf32>
    %87 = arith.truncf %86 : vector<2x8x16xf32> to vector<2x8x16xbf16>
    "tpu.trace_start"() <{level = 10 : i32, message = "bqd,bkd->bqk"}> : () -> ()
    %cst_24 = arith.constant dense<0.000000e+00> : vector<2x8x8xf32>
    %88 = tpu.matmul %83, %85, %cst_24 {dimension_numbers = #tpu.dot_dimension_numbers<[2], [2], [1], [1], [0, 0, 0, 1, 1, 1], [0], [0]>} : vector<2x8x16xbf16>, vector<2x8x16xbf16>, vector<2x8x8xf32> -> vector<2x8x8xf32>
    "tpu.trace_stop"() : () -> ()
    %cst_25 = arith.constant 2.500000e-01 : f32
    %89 = vector.broadcast %cst_25 : f32 to vector<2x8x8xf32>
    %90 = arith.mulf %88, %89 : vector<2x8x8xf32>
    %cst_26 = arith.constant dense<0xFF800000> : vector<2x8xf32>
    %91 = vector.multi_reduction <maximumf>, %90, %cst_26 [2] : vector<2x8x8xf32> to vector<2x8xf32>
    %92 = vector.shape_cast %91 : vector<2x8xf32> to vector<2x8x1xf32>
    %93 = vector.broadcast %92 : vector<2x8x1xf32> to vector<2x8x8xf32>
    %94 = arith.subf %90, %93 : vector<2x8x8xf32>
    %95 = math.exp %94 : vector<2x8x8xf32>
    %cst_27 = arith.constant dense<0.000000e+00> : vector<2x8xf32>
    %96 = vector.multi_reduction <add>, %95, %cst_27 [2] : vector<2x8x8xf32> to vector<2x8xf32>
    %97 = vector.shape_cast %96 : vector<2x8xf32> to vector<2x8x1xf32>
    %98 = tpu.reciprocal %97 {approx = true} : vector<2x8x1xf32> -> vector<2x8x1xf32>
    %99 = vector.broadcast %98 : vector<2x8x1xf32> to vector<2x8x8xf32>
    %100 = arith.mulf %95, %99 : vector<2x8x8xf32>
    %101 = arith.truncf %100 : vector<2x8x8xf32> to vector<2x8x8xbf16>
    "tpu.trace_start"() <{level = 10 : i32, message = "bqk,bkd->bqd"}> : () -> ()
    %cst_28 = arith.constant dense<0.000000e+00> : vector<2x8x16xf32>
    %102 = tpu.matmul %101, %87, %cst_28 {dimension_numbers = #tpu.dot_dimension_numbers<[2], [1], [1], [2], [0, 0, 0, 1, 1, 2], [0], [0]>} : vector<2x8x8xbf16>, vector<2x8x16xbf16>, vector<2x8x16xf32> -> vector<2x8x16xf32>
    "tpu.trace_stop"() : () -> ()
    %103 = vector.extract_strided_slice %14 {offsets = [0, 0, 64], sizes = [2, 8, 16], strides = [1, 1, 1]} : vector<2x8x128xf32> to vector<2x8x16xf32>
    %104 = arith.truncf %103 : vector<2x8x16xf32> to vector<2x8x16xbf16>
    %105 = vector.extract_strided_slice %16 {offsets = [0, 0, 64], sizes = [2, 8, 16], strides = [1, 1, 1]} : vector<2x8x128xf32> to vector<2x8x16xf32>
    %106 = arith.truncf %105 : vector<2x8x16xf32> to vector<2x8x16xbf16>
    %107 = vector.extract_strided_slice %18 {offsets = [0, 0, 64], sizes = [2, 8, 16], strides = [1, 1, 1]} : vector<2x8x128xf32> to vector<2x8x16xf32>
    %108 = arith.truncf %107 : vector<2x8x16xf32> to vector<2x8x16xbf16>
    "tpu.trace_start"() <{level = 10 : i32, message = "bqd,bkd->bqk"}> : () -> ()
    %cst_29 = arith.constant dense<0.000000e+00> : vector<2x8x8xf32>
    %109 = tpu.matmul %104, %106, %cst_29 {dimension_numbers = #tpu.dot_dimension_numbers<[2], [2], [1], [1], [0, 0, 0, 1, 1, 1], [0], [0]>} : vector<2x8x16xbf16>, vector<2x8x16xbf16>, vector<2x8x8xf32> -> vector<2x8x8xf32>
    "tpu.trace_stop"() : () -> ()
    %cst_30 = arith.constant 2.500000e-01 : f32
    %110 = vector.broadcast %cst_30 : f32 to vector<2x8x8xf32>
    %111 = arith.mulf %109, %110 : vector<2x8x8xf32>
    %cst_31 = arith.constant dense<0xFF800000> : vector<2x8xf32>
    %112 = vector.multi_reduction <maximumf>, %111, %cst_31 [2] : vector<2x8x8xf32> to vector<2x8xf32>
    %113 = vector.shape_cast %112 : vector<2x8xf32> to vector<2x8x1xf32>
    %114 = vector.broadcast %113 : vector<2x8x1xf32> to vector<2x8x8xf32>
    %115 = arith.subf %111, %114 : vector<2x8x8xf32>
    %116 = math.exp %115 : vector<2x8x8xf32>
    %cst_32 = arith.constant dense<0.000000e+00> : vector<2x8xf32>
    %117 = vector.multi_reduction <add>, %116, %cst_32 [2] : vector<2x8x8xf32> to vector<2x8xf32>
    %118 = vector.shape_cast %117 : vector<2x8xf32> to vector<2x8x1xf32>
    %119 = tpu.reciprocal %118 {approx = true} : vector<2x8x1xf32> -> vector<2x8x1xf32>
    %120 = vector.broadcast %119 : vector<2x8x1xf32> to vector<2x8x8xf32>
    %121 = arith.mulf %116, %120 : vector<2x8x8xf32>
    %122 = arith.truncf %121 : vector<2x8x8xf32> to vector<2x8x8xbf16>
    "tpu.trace_start"() <{level = 10 : i32, message = "bqk,bkd->bqd"}> : () -> ()
    %cst_33 = arith.constant dense<0.000000e+00> : vector<2x8x16xf32>
    %123 = tpu.matmul %122, %108, %cst_33 {dimension_numbers = #tpu.dot_dimension_numbers<[2], [1], [1], [2], [0, 0, 0, 1, 1, 2], [0], [0]>} : vector<2x8x8xbf16>, vector<2x8x16xbf16>, vector<2x8x16xf32> -> vector<2x8x16xf32>
    "tpu.trace_stop"() : () -> ()
    %124 = vector.extract_strided_slice %14 {offsets = [0, 0, 80], sizes = [2, 8, 16], strides = [1, 1, 1]} : vector<2x8x128xf32> to vector<2x8x16xf32>
    %125 = arith.truncf %124 : vector<2x8x16xf32> to vector<2x8x16xbf16>
    %126 = vector.extract_strided_slice %16 {offsets = [0, 0, 80], sizes = [2, 8, 16], strides = [1, 1, 1]} : vector<2x8x128xf32> to vector<2x8x16xf32>
    %127 = arith.truncf %126 : vector<2x8x16xf32> to vector<2x8x16xbf16>
    %128 = vector.extract_strided_slice %18 {offsets = [0, 0, 80], sizes = [2, 8, 16], strides = [1, 1, 1]} : vector<2x8x128xf32> to vector<2x8x16xf32>
    %129 = arith.truncf %128 : vector<2x8x16xf32> to vector<2x8x16xbf16>
    "tpu.trace_start"() <{level = 10 : i32, message = "bqd,bkd->bqk"}> : () -> ()
    %cst_34 = arith.constant dense<0.000000e+00> : vector<2x8x8xf32>
    %130 = tpu.matmul %125, %127, %cst_34 {dimension_numbers = #tpu.dot_dimension_numbers<[2], [2], [1], [1], [0, 0, 0, 1, 1, 1], [0], [0]>} : vector<2x8x16xbf16>, vector<2x8x16xbf16>, vector<2x8x8xf32> -> vector<2x8x8xf32>
    "tpu.trace_stop"() : () -> ()
    %cst_35 = arith.constant 2.500000e-01 : f32
    %131 = vector.broadcast %cst_35 : f32 to vector<2x8x8xf32>
    %132 = arith.mulf %130, %131 : vector<2x8x8xf32>
    %cst_36 = arith.constant dense<0xFF800000> : vector<2x8xf32>
    %133 = vector.multi_reduction <maximumf>, %132, %cst_36 [2] : vector<2x8x8xf32> to vector<2x8xf32>
    %134 = vector.shape_cast %133 : vector<2x8xf32> to vector<2x8x1xf32>
    %135 = vector.broadcast %134 : vector<2x8x1xf32> to vector<2x8x8xf32>
    %136 = arith.subf %132, %135 : vector<2x8x8xf32>
    %137 = math.exp %136 : vector<2x8x8xf32>
    %cst_37 = arith.constant dense<0.000000e+00> : vector<2x8xf32>
    %138 = vector.multi_reduction <add>, %137, %cst_37 [2] : vector<2x8x8xf32> to vector<2x8xf32>
    %139 = vector.shape_cast %138 : vector<2x8xf32> to vector<2x8x1xf32>
    %140 = tpu.reciprocal %139 {approx = true} : vector<2x8x1xf32> -> vector<2x8x1xf32>
    %141 = vector.broadcast %140 : vector<2x8x1xf32> to vector<2x8x8xf32>
    %142 = arith.mulf %137, %141 : vector<2x8x8xf32>
    %143 = arith.truncf %142 : vector<2x8x8xf32> to vector<2x8x8xbf16>
    "tpu.trace_start"() <{level = 10 : i32, message = "bqk,bkd->bqd"}> : () -> ()
    %cst_38 = arith.constant dense<0.000000e+00> : vector<2x8x16xf32>
    %144 = tpu.matmul %143, %129, %cst_38 {dimension_numbers = #tpu.dot_dimension_numbers<[2], [1], [1], [2], [0, 0, 0, 1, 1, 2], [0], [0]>} : vector<2x8x8xbf16>, vector<2x8x16xbf16>, vector<2x8x16xf32> -> vector<2x8x16xf32>
    "tpu.trace_stop"() : () -> ()
    %145 = vector.extract_strided_slice %14 {offsets = [0, 0, 96], sizes = [2, 8, 16], strides = [1, 1, 1]} : vector<2x8x128xf32> to vector<2x8x16xf32>
    %146 = arith.truncf %145 : vector<2x8x16xf32> to vector<2x8x16xbf16>
    %147 = vector.extract_strided_slice %16 {offsets = [0, 0, 96], sizes = [2, 8, 16], strides = [1, 1, 1]} : vector<2x8x128xf32> to vector<2x8x16xf32>
    %148 = arith.truncf %147 : vector<2x8x16xf32> to vector<2x8x16xbf16>
    %149 = vector.extract_strided_slice %18 {offsets = [0, 0, 96], sizes = [2, 8, 16], strides = [1, 1, 1]} : vector<2x8x128xf32> to vector<2x8x16xf32>
    %150 = arith.truncf %149 : vector<2x8x16xf32> to vector<2x8x16xbf16>
    "tpu.trace_start"() <{level = 10 : i32, message = "bqd,bkd->bqk"}> : () -> ()
    %cst_39 = arith.constant dense<0.000000e+00> : vector<2x8x8xf32>
    %151 = tpu.matmul %146, %148, %cst_39 {dimension_numbers = #tpu.dot_dimension_numbers<[2], [2], [1], [1], [0, 0, 0, 1, 1, 1], [0], [0]>} : vector<2x8x16xbf16>, vector<2x8x16xbf16>, vector<2x8x8xf32> -> vector<2x8x8xf32>
    "tpu.trace_stop"() : () -> ()
    %cst_40 = arith.constant 2.500000e-01 : f32
    %152 = vector.broadcast %cst_40 : f32 to vector<2x8x8xf32>
    %153 = arith.mulf %151, %152 : vector<2x8x8xf32>
    %cst_41 = arith.constant dense<0xFF800000> : vector<2x8xf32>
    %154 = vector.multi_reduction <maximumf>, %153, %cst_41 [2] : vector<2x8x8xf32> to vector<2x8xf32>
    %155 = vector.shape_cast %154 : vector<2x8xf32> to vector<2x8x1xf32>
    %156 = vector.broadcast %155 : vector<2x8x1xf32> to vector<2x8x8xf32>
    %157 = arith.subf %153, %156 : vector<2x8x8xf32>
    %158 = math.exp %157 : vector<2x8x8xf32>
    %cst_42 = arith.constant dense<0.000000e+00> : vector<2x8xf32>
    %159 = vector.multi_reduction <add>, %158, %cst_42 [2] : vector<2x8x8xf32> to vector<2x8xf32>
    %160 = vector.shape_cast %159 : vector<2x8xf32> to vector<2x8x1xf32>
    %161 = tpu.reciprocal %160 {approx = true} : vector<2x8x1xf32> -> vector<2x8x1xf32>
    %162 = vector.broadcast %161 : vector<2x8x1xf32> to vector<2x8x8xf32>
    %163 = arith.mulf %158, %162 : vector<2x8x8xf32>
    %164 = arith.truncf %163 : vector<2x8x8xf32> to vector<2x8x8xbf16>
    "tpu.trace_start"() <{level = 10 : i32, message = "bqk,bkd->bqd"}> : () -> ()
    %cst_43 = arith.constant dense<0.000000e+00> : vector<2x8x16xf32>
    %165 = tpu.matmul %164, %150, %cst_43 {dimension_numbers = #tpu.dot_dimension_numbers<[2], [1], [1], [2], [0, 0, 0, 1, 1, 2], [0], [0]>} : vector<2x8x8xbf16>, vector<2x8x16xbf16>, vector<2x8x16xf32> -> vector<2x8x16xf32>
    "tpu.trace_stop"() : () -> ()
    %166 = vector.extract_strided_slice %14 {offsets = [0, 0, 112], sizes = [2, 8, 16], strides = [1, 1, 1]} : vector<2x8x128xf32> to vector<2x8x16xf32>
    %167 = arith.truncf %166 : vector<2x8x16xf32> to vector<2x8x16xbf16>
    %168 = vector.extract_strided_slice %16 {offsets = [0, 0, 112], sizes = [2, 8, 16], strides = [1, 1, 1]} : vector<2x8x128xf32> to vector<2x8x16xf32>
    %169 = arith.truncf %168 : vector<2x8x16xf32> to vector<2x8x16xbf16>
    %170 = vector.extract_strided_slice %18 {offsets = [0, 0, 112], sizes = [2, 8, 16], strides = [1, 1, 1]} : vector<2x8x128xf32> to vector<2x8x16xf32>
    %171 = arith.truncf %170 : vector<2x8x16xf32> to vector<2x8x16xbf16>
    "tpu.trace_start"() <{level = 10 : i32, message = "bqd,bkd->bqk"}> : () -> ()
    %cst_44 = arith.constant dense<0.000000e+00> : vector<2x8x8xf32>
    %172 = tpu.matmul %167, %169, %cst_44 {dimension_numbers = #tpu.dot_dimension_numbers<[2], [2], [1], [1], [0, 0, 0, 1, 1, 1], [0], [0]>} : vector<2x8x16xbf16>, vector<2x8x16xbf16>, vector<2x8x8xf32> -> vector<2x8x8xf32>
    "tpu.trace_stop"() : () -> ()
    %cst_45 = arith.constant 2.500000e-01 : f32
    %173 = vector.broadcast %cst_45 : f32 to vector<2x8x8xf32>
    %174 = arith.mulf %172, %173 : vector<2x8x8xf32>
    %cst_46 = arith.constant dense<0xFF800000> : vector<2x8xf32>
    %175 = vector.multi_reduction <maximumf>, %174, %cst_46 [2] : vector<2x8x8xf32> to vector<2x8xf32>
    %176 = vector.shape_cast %175 : vector<2x8xf32> to vector<2x8x1xf32>
    %177 = vector.broadcast %176 : vector<2x8x1xf32> to vector<2x8x8xf32>
    %178 = arith.subf %174, %177 : vector<2x8x8xf32>
    %179 = math.exp %178 : vector<2x8x8xf32>
    %cst_47 = arith.constant dense<0.000000e+00> : vector<2x8xf32>
    %180 = vector.multi_reduction <add>, %179, %cst_47 [2] : vector<2x8x8xf32> to vector<2x8xf32>
    %181 = vector.shape_cast %180 : vector<2x8xf32> to vector<2x8x1xf32>
    %182 = tpu.reciprocal %181 {approx = true} : vector<2x8x1xf32> -> vector<2x8x1xf32>
    %183 = vector.broadcast %182 : vector<2x8x1xf32> to vector<2x8x8xf32>
    %184 = arith.mulf %179, %183 : vector<2x8x8xf32>
    %185 = arith.truncf %184 : vector<2x8x8xf32> to vector<2x8x8xbf16>
    "tpu.trace_start"() <{level = 10 : i32, message = "bqk,bkd->bqd"}> : () -> ()
    %cst_48 = arith.constant dense<0.000000e+00> : vector<2x8x16xf32>
    %186 = tpu.matmul %185, %171, %cst_48 {dimension_numbers = #tpu.dot_dimension_numbers<[2], [1], [1], [2], [0, 0, 0, 1, 1, 2], [0], [0]>} : vector<2x8x8xbf16>, vector<2x8x16xbf16>, vector<2x8x16xf32> -> vector<2x8x16xf32>
    "tpu.trace_stop"() : () -> ()
    %187 = tpu.concatenate %39, %60, %81, %102, %123, %144, %165, %186 in 2 : vector<2x8x16xf32>, vector<2x8x16xf32>, vector<2x8x16xf32>, vector<2x8x16xf32>, vector<2x8x16xf32>, vector<2x8x16xf32>, vector<2x8x16xf32>, vector<2x8x16xf32> -> vector<2x8x128xf32>
    %188 = vector.shape_cast %187 : vector<2x8x128xf32> to vector<16x128xf32>
    %189 = arith.truncf %188 : vector<16x128xf32> to vector<16x128xbf16>
    %c0_49 = arith.constant 0 : index
    %c0_50 = arith.constant 0 : index
    %c0_51 = arith.constant 0 : index
    %190 = vector.load %arg5[%c0_49, %c0_50, %c0_51] : memref<1x128x128xbf16, #tpu.memory_space<vmem>>, vector<1x128x128xbf16>
    %191 = vector.shape_cast %190 : vector<1x128x128xbf16> to vector<128x128xbf16>
    %cst_52 = arith.constant dense<0.000000e+00> : vector<16x128xf32>
    %192 = tpu.matmul %189, %191, %cst_52 {dimension_numbers = #tpu.dot_dimension_numbers<[1], [0], [0], [1], [0, 0, 1, 1], [], []>} : vector<16x128xbf16>, vector<128x128xbf16>, vector<16x128xf32> -> vector<16x128xf32>
    %c0_53 = arith.constant 0 : index
    %c0_54 = arith.constant 0 : index
    %c0_55 = arith.constant 0 : index
    %193 = vector.load %arg6[%c0_53, %c0_54, %c0_55] : memref<1x1x128xf32, #tpu.memory_space<vmem>>, vector<1x1x128xf32>
    %194 = vector.shape_cast %193 : vector<1x1x128xf32> to vector<1x128xf32>
    %195 = vector.broadcast %194 : vector<1x128xf32> to vector<16x128xf32>
    %196 = arith.addf %192, %195 : vector<16x128xf32>
    %197 = arith.addf %4, %196 : vector<16x128xf32>
    %c0_56 = arith.constant 0 : index
    %c0_57 = arith.constant 0 : index
    %c0_58 = arith.constant 0 : index
    %198 = vector.load %arg7[%c0_56, %c0_57, %c0_58] : memref<1x1x128xf32, #tpu.memory_space<vmem>>, vector<1x1x128xf32>
    %199 = vector.shape_cast %198 : vector<1x1x128xf32> to vector<1x128xf32>
    %c0_59 = arith.constant 0 : index
    %c0_60 = arith.constant 0 : index
    %c0_61 = arith.constant 0 : index
    %200 = vector.load %arg8[%c0_59, %c0_60, %c0_61] : memref<1x1x128xf32, #tpu.memory_space<vmem>>, vector<1x1x128xf32>
    %201 = vector.shape_cast %200 : vector<1x1x128xf32> to vector<1x128xf32>
    %cst_62 = arith.constant dense<0.000000e+00> : vector<16xf32>
    %202 = vector.multi_reduction <add>, %197, %cst_62 [1] : vector<16x128xf32> to vector<16xf32>
    %203 = vector.shape_cast %202 : vector<16xf32> to vector<16x1xf32>
    %cst_63 = arith.constant 1.280000e+02 : f32
    %204 = vector.broadcast %cst_63 : f32 to vector<16x1xf32>
    %205 = arith.divf %203, %204 : vector<16x1xf32>
    %206 = vector.broadcast %205 : vector<16x1xf32> to vector<16x128xf32>
    %207 = arith.subf %197, %206 : vector<16x128xf32>
    %208 = arith.mulf %207, %207 : vector<16x128xf32>
    %cst_64 = arith.constant dense<0.000000e+00> : vector<16xf32>
    %209 = vector.multi_reduction <add>, %208, %cst_64 [1] : vector<16x128xf32> to vector<16xf32>
    %210 = vector.shape_cast %209 : vector<16xf32> to vector<16x1xf32>
    %cst_65 = arith.constant 1.280000e+02 : f32
    %211 = vector.broadcast %cst_65 : f32 to vector<16x1xf32>
    %212 = arith.divf %210, %211 : vector<16x1xf32>
    %cst_66 = arith.constant 9.99999974E-6 : f32
    %213 = vector.broadcast %cst_66 : f32 to vector<16x1xf32>
    %214 = arith.addf %212, %213 : vector<16x1xf32>
    %215 = math.rsqrt %214 : vector<16x1xf32>
    %216 = vector.broadcast %215 : vector<16x1xf32> to vector<16x128xf32>
    %217 = arith.mulf %207, %216 : vector<16x128xf32>
    %218 = vector.broadcast %199 : vector<1x128xf32> to vector<16x128xf32>
    %219 = arith.mulf %217, %218 : vector<16x128xf32>
    %220 = vector.broadcast %201 : vector<1x128xf32> to vector<16x128xf32>
    %221 = arith.addf %219, %220 : vector<16x128xf32>
    %222 = arith.truncf %221 : vector<16x128xf32> to vector<16x128xbf16>
    %c0_67 = arith.constant 0 : index
    %c0_68 = arith.constant 0 : index
    %c0_69 = arith.constant 0 : index
    %223 = vector.load %arg9[%c0_67, %c0_68, %c0_69] : memref<1x128x2048xbf16, #tpu.memory_space<vmem>>, vector<1x128x2048xbf16>
    %224 = vector.shape_cast %223 : vector<1x128x2048xbf16> to vector<128x2048xbf16>
    %cst_70 = arith.constant dense<0.000000e+00> : vector<16x2048xf32>
    %225 = tpu.matmul %222, %224, %cst_70 {dimension_numbers = #tpu.dot_dimension_numbers<[1], [0], [0], [1], [0, 0, 1, 1], [], []>} : vector<16x128xbf16>, vector<128x2048xbf16>, vector<16x2048xf32> -> vector<16x2048xf32>
    %c0_71 = arith.constant 0 : index
    %c0_72 = arith.constant 0 : index
    %c0_73 = arith.constant 0 : index
    %226 = vector.load %arg10[%c0_71, %c0_72, %c0_73] : memref<1x1x2048xf32, #tpu.memory_space<vmem>>, vector<1x1x2048xf32>
    %227 = vector.shape_cast %226 : vector<1x1x2048xf32> to vector<1x2048xf32>
    %228 = vector.broadcast %227 : vector<1x2048xf32> to vector<16x2048xf32>
    %229 = arith.addf %225, %228 : vector<16x2048xf32>
    %cst_74 = arith.constant 0.000000e+00 : f32
    %230 = vector.broadcast %cst_74 : f32 to vector<16x2048xf32>
    %231 = arith.maximumf %229, %230 : vector<16x2048xf32>
    %232 = arith.truncf %231 : vector<16x2048xf32> to vector<16x2048xbf16>
    %c0_75 = arith.constant 0 : index
    %c0_76 = arith.constant 0 : index
    %c0_77 = arith.constant 0 : index
    %233 = vector.load %arg11[%c0_75, %c0_76, %c0_77] : memref<1x2048x128xbf16, #tpu.memory_space<vmem>>, vector<1x2048x128xbf16>
    %234 = vector.shape_cast %233 : vector<1x2048x128xbf16> to vector<2048x128xbf16>
    %cst_78 = arith.constant dense<0.000000e+00> : vector<16x128xf32>
    %235 = tpu.matmul %232, %234, %cst_78 {dimension_numbers = #tpu.dot_dimension_numbers<[1], [0], [0], [1], [0, 0, 1, 1], [], []>} : vector<16x2048xbf16>, vector<2048x128xbf16>, vector<16x128xf32> -> vector<16x128xf32>
    %c0_79 = arith.constant 0 : index
    %c0_80 = arith.constant 0 : index
    %c0_81 = arith.constant 0 : index
    %236 = vector.load %arg12[%c0_79, %c0_80, %c0_81] : memref<1x1x128xf32, #tpu.memory_space<vmem>>, vector<1x1x128xf32>
    %237 = vector.shape_cast %236 : vector<1x1x128xf32> to vector<1x128xf32>
    %238 = vector.broadcast %237 : vector<1x128xf32> to vector<16x128xf32>
    %239 = arith.addf %235, %238 : vector<16x128xf32>
    %240 = arith.addf %221, %239 : vector<16x128xf32>
    %c0_82 = arith.constant 0 : index
    %c0_83 = arith.constant 0 : index
    %c0_84 = arith.constant 0 : index
    %241 = vector.load %arg13[%c0_82, %c0_83, %c0_84] : memref<1x1x128xf32, #tpu.memory_space<vmem>>, vector<1x1x128xf32>
    %242 = vector.shape_cast %241 : vector<1x1x128xf32> to vector<1x128xf32>
    %c0_85 = arith.constant 0 : index
    %c0_86 = arith.constant 0 : index
    %c0_87 = arith.constant 0 : index
    %243 = vector.load %arg14[%c0_85, %c0_86, %c0_87] : memref<1x1x128xf32, #tpu.memory_space<vmem>>, vector<1x1x128xf32>
    %244 = vector.shape_cast %243 : vector<1x1x128xf32> to vector<1x128xf32>
    %cst_88 = arith.constant dense<0.000000e+00> : vector<16xf32>
    %245 = vector.multi_reduction <add>, %240, %cst_88 [1] : vector<16x128xf32> to vector<16xf32>
    %246 = vector.shape_cast %245 : vector<16xf32> to vector<16x1xf32>
    %cst_89 = arith.constant 1.280000e+02 : f32
    %247 = vector.broadcast %cst_89 : f32 to vector<16x1xf32>
    %248 = arith.divf %246, %247 : vector<16x1xf32>
    %249 = vector.broadcast %248 : vector<16x1xf32> to vector<16x128xf32>
    %250 = arith.subf %240, %249 : vector<16x128xf32>
    %251 = arith.mulf %250, %250 : vector<16x128xf32>
    %cst_90 = arith.constant dense<0.000000e+00> : vector<16xf32>
    %252 = vector.multi_reduction <add>, %251, %cst_90 [1] : vector<16x128xf32> to vector<16xf32>
    %253 = vector.shape_cast %252 : vector<16xf32> to vector<16x1xf32>
    %cst_91 = arith.constant 1.280000e+02 : f32
    %254 = vector.broadcast %cst_91 : f32 to vector<16x1xf32>
    %255 = arith.divf %253, %254 : vector<16x1xf32>
    %cst_92 = arith.constant 9.99999974E-6 : f32
    %256 = vector.broadcast %cst_92 : f32 to vector<16x1xf32>
    %257 = arith.addf %255, %256 : vector<16x1xf32>
    %258 = math.rsqrt %257 : vector<16x1xf32>
    %259 = vector.broadcast %258 : vector<16x1xf32> to vector<16x128xf32>
    %260 = arith.mulf %250, %259 : vector<16x128xf32>
    %261 = vector.broadcast %242 : vector<1x128xf32> to vector<16x128xf32>
    %262 = arith.mulf %260, %261 : vector<16x128xf32>
    %263 = vector.broadcast %244 : vector<1x128xf32> to vector<16x128xf32>
    %264 = arith.addf %262, %263 : vector<16x128xf32>
    %265 = vector.shape_cast %264 : vector<16x128xf32> to vector<2x8x128xf32>
    %c0_93 = arith.constant 0 : index
    %c0_94 = arith.constant 0 : index
    %c0_95 = arith.constant 0 : index
    %266 = vector.load %arg16[%c0_93, %c0_94, %c0_95] : memref<2x8x128xf32, #tpu.memory_space<vmem>>, vector<2x8x128xf32>
    tpu.vector_store %arg16[%c0_93, %c0_94, %c0_95], %265 {strides = array<i32>} : memref<2x8x128xf32, #tpu.memory_space<vmem>>, vector<2x8x128xf32>,
    %c1_i32 = arith.constant 1 : i32
    %267 = arith.cmpi eq, %arg1, %c1_i32 : i32
    %268 = arith.extui %267 : i1 to i32
    %c0_i32_96 = arith.constant 0 : i32
    %269 = arith.cmpi ne, %268, %c0_i32_96 : i32
    scf.if %269 {
      %cst_97 = arith.constant dense<0.000000e+00> : vector<2x128xf32>
      %270 = vector.multi_reduction <add>, %265, %cst_97 [1] : vector<2x8x128xf32> to vector<2x128xf32>
      %271 = vector.shape_cast %270 : vector<2x128xf32> to vector<2x1x128xf32>
      %cst_98 = arith.constant 8.000000e+00 : f32
      %272 = vector.broadcast %cst_98 : f32 to vector<2x1x128xf32>
      %273 = arith.divf %271, %272 : vector<2x1x128xf32>
      %c0_99 = arith.constant 0 : index
      %c0_100 = arith.constant 0 : index
      %c0_101 = arith.constant 0 : index
      %274 = vector.load %arg15[%c0_99, %c0_100, %c0_101] : memref<2x1x128xf32, #tpu.memory_space<vmem>>, vector<2x1x128xf32>
      tpu.vector_store %arg15[%c0_99, %c0_100, %c0_101], %273 {strides = array<i32>} : memref<2x1x128xf32, #tpu.memory_space<vmem>>, vector<2x1x128xf32>,
    } else {
    }
    return
  }
  func.func @transform_0(%arg0: i32, %arg1: i32) -> (i32, i32, i32) {
    %c0_i32 = arith.constant 0 : i32
    %c0_i32_0 = arith.constant 0 : i32
    %c0_i32_1 = arith.constant 0 : i32
    return %arg0, %c0_i32, %c0_i32_0 : i32, i32, i32
  }
  func.func @transform_1(%arg0: i32, %arg1: i32) -> (i32, i32, i32) {
    %c0_i32 = arith.constant 0 : i32
    %c0_i32_0 = arith.constant 0 : i32
    %c0_i32_1 = arith.constant 0 : i32
    return %arg1, %c0_i32, %c0_i32_0 : i32, i32, i32
  }
  func.func @transform_2(%arg0: i32, %arg1: i32) -> (i32, i32, i32) {
    %c0_i32 = arith.constant 0 : i32
    %c0_i32_0 = arith.constant 0 : i32
    %c0_i32_1 = arith.constant 0 : i32
    return %arg1, %c0_i32, %c0_i32_0 : i32, i32, i32
  }
  func.func @transform_3(%arg0: i32, %arg1: i32) -> (i32, i32, i32) {
    %c0_i32 = arith.constant 0 : i32
    %c0_i32_0 = arith.constant 0 : i32
    %c0_i32_1 = arith.constant 0 : i32
    return %arg1, %c0_i32, %c0_i32_0 : i32, i32, i32
  }
  func.func @transform_4(%arg0: i32, %arg1: i32) -> (i32, i32, i32) {
    %c0_i32 = arith.constant 0 : i32
    %c0_i32_0 = arith.constant 0 : i32
    %c0_i32_1 = arith.constant 0 : i32
    return %arg1, %c0_i32, %c0_i32_0 : i32, i32, i32
  }
  func.func @transform_5(%arg0: i32, %arg1: i32) -> (i32, i32, i32) {
    %c0_i32 = arith.constant 0 : i32
    %c0_i32_0 = arith.constant 0 : i32
    %c0_i32_1 = arith.constant 0 : i32
    return %arg1, %c0_i32, %c0_i32_0 : i32, i32, i32
  }
  func.func @transform_6(%arg0: i32, %arg1: i32) -> (i32, i32, i32) {
    %c0_i32 = arith.constant 0 : i32
    %c0_i32_0 = arith.constant 0 : i32
    %c0_i32_1 = arith.constant 0 : i32
    return %arg1, %c0_i32, %c0_i32_0 : i32, i32, i32
  }
  func.func @transform_7(%arg0: i32, %arg1: i32) -> (i32, i32, i32) {
    %c0_i32 = arith.constant 0 : i32
    %c0_i32_0 = arith.constant 0 : i32
    %c0_i32_1 = arith.constant 0 : i32
    return %arg1, %c0_i32, %c0_i32_0 : i32, i32, i32
  }
  func.func @transform_8(%arg0: i32, %arg1: i32) -> (i32, i32, i32) {
    %c0_i32 = arith.constant 0 : i32
    %c0_i32_0 = arith.constant 0 : i32
    %c0_i32_1 = arith.constant 0 : i32
    return %arg1, %c0_i32, %c0_i32_0 : i32, i32, i32
  }
  func.func @transform_9(%arg0: i32, %arg1: i32) -> (i32, i32, i32) {
    %c0_i32 = arith.constant 0 : i32
    %c0_i32_0 = arith.constant 0 : i32
    %c0_i32_1 = arith.constant 0 : i32
    return %arg1, %c0_i32, %c0_i32_0 : i32, i32, i32
  }
  func.func @transform_10(%arg0: i32, %arg1: i32) -> (i32, i32, i32) {
    %c0_i32 = arith.constant 0 : i32
    %c0_i32_0 = arith.constant 0 : i32
    %c0_i32_1 = arith.constant 0 : i32
    return %arg1, %c0_i32, %c0_i32_0 : i32, i32, i32
  }
  func.func @transform_11(%arg0: i32, %arg1: i32) -> (i32, i32, i32) {
    %c0_i32 = arith.constant 0 : i32
    %c0_i32_0 = arith.constant 0 : i32
    %c0_i32_1 = arith.constant 0 : i32
    return %arg1, %c0_i32, %c0_i32_0 : i32, i32, i32
  }
  func.func @transform_12(%arg0: i32, %arg1: i32) -> (i32, i32, i32) {
    %c0_i32 = arith.constant 0 : i32
    %c0_i32_0 = arith.constant 0 : i32
    %c0_i32_1 = arith.constant 0 : i32
    return %arg1, %c0_i32, %c0_i32_0 : i32, i32, i32
  }
  func.func @transform_13(%arg0: i32, %arg1: i32) -> (i32, i32, i32) {
    %c0_i32 = arith.constant 0 : i32
    %c0_i32_0 = arith.constant 0 : i32
    %c0_i32_1 = arith.constant 0 : i32
    return %arg0, %c0_i32, %c0_i32_0 : i32, i32, i32
  }
}

module attributes {stable_mosaic.version = 11 : i64} {
  func.func @_fusion_kernel(%arg0: memref<2x2x128xf32, #tpu.memory_space<vmem>>, %arg1: memref<128x128xbf16, #tpu.memory_space<vmem>>, %arg2: memref<128x128xbf16, #tpu.memory_space<vmem>>, %arg3: memref<1x128xf32, #tpu.memory_space<vmem>>, %arg4: memref<128x4xbf16, #tpu.memory_space<vmem>>, %arg5: memref<1x4xf32, #tpu.memory_space<vmem>>, %arg6: memref<2x4xf32, #tpu.memory_space<vmem>>) attributes {dimension_semantics = [], scalar_prefetch = 0 : i64, scratch_operands = 0 : i64, tpu.core_type = #tpu.core_type<tc>} {
    %c0 = arith.constant 0 : index
    %c0_0 = arith.constant 0 : index
    %c0_1 = arith.constant 0 : index
    %0 = vector.load %arg0[%c0, %c0_0, %c0_1] : memref<2x2x128xf32, #tpu.memory_space<vmem>>, vector<1x2x128xf32>
    %1 = vector.shape_cast %0 : vector<1x2x128xf32> to vector<2x128xf32>
    %2 = arith.truncf %1 : vector<2x128xf32> to vector<2x128xbf16>
    %c1 = arith.constant 1 : index
    %c0_2 = arith.constant 0 : index
    %c0_3 = arith.constant 0 : index
    %3 = vector.load %arg0[%c1, %c0_2, %c0_3] : memref<2x2x128xf32, #tpu.memory_space<vmem>>, vector<1x2x128xf32>
    %4 = vector.shape_cast %3 : vector<1x2x128xf32> to vector<2x128xf32>
    %5 = arith.truncf %4 : vector<2x128xf32> to vector<2x128xbf16>
    %c0_4 = arith.constant 0 : index
    %c0_5 = arith.constant 0 : index
    %6 = vector.load %arg1[%c0_4, %c0_5] : memref<128x128xbf16, #tpu.memory_space<vmem>>, vector<128x128xbf16>
    %cst = arith.constant dense<0.000000e+00> : vector<2x128xf32>
    %7 = tpu.matmul %2, %6, %cst {dimension_numbers = #tpu.dot_dimension_numbers<[1], [0], [0], [1], [0, 0, 1, 1], [], []>} : vector<2x128xbf16>, vector<128x128xbf16>, vector<2x128xf32> -> vector<2x128xf32>
    %c0_6 = arith.constant 0 : index
    %c0_7 = arith.constant 0 : index
    %8 = vector.load %arg2[%c0_6, %c0_7] : memref<128x128xbf16, #tpu.memory_space<vmem>>, vector<128x128xbf16>
    %cst_8 = arith.constant dense<0.000000e+00> : vector<2x128xf32>
    %9 = tpu.matmul %5, %8, %cst_8 {dimension_numbers = #tpu.dot_dimension_numbers<[1], [0], [0], [1], [0, 0, 1, 1], [], []>} : vector<2x128xbf16>, vector<128x128xbf16>, vector<2x128xf32> -> vector<2x128xf32>
    %10 = arith.addf %7, %9 : vector<2x128xf32>
    %c0_9 = arith.constant 0 : index
    %c0_10 = arith.constant 0 : index
    %11 = vector.load %arg3[%c0_9, %c0_10] : memref<1x128xf32, #tpu.memory_space<vmem>>, vector<1x128xf32>
    %12 = vector.broadcast %11 : vector<1x128xf32> to vector<2x128xf32>
    %13 = arith.addf %10, %12 : vector<2x128xf32>
    %cst_11 = arith.constant 0.000000e+00 : f32
    %14 = vector.broadcast %cst_11 : f32 to vector<2x128xf32>
    %15 = arith.maximumf %13, %14 : vector<2x128xf32>
    %16 = arith.truncf %15 : vector<2x128xf32> to vector<2x128xbf16>
    %c0_12 = arith.constant 0 : index
    %c0_13 = arith.constant 0 : index
    %17 = vector.load %arg4[%c0_12, %c0_13] : memref<128x4xbf16, #tpu.memory_space<vmem>>, vector<128x4xbf16>
    %cst_14 = arith.constant dense<0.000000e+00> : vector<2x4xf32>
    %18 = tpu.matmul %16, %17, %cst_14 {dimension_numbers = #tpu.dot_dimension_numbers<[1], [0], [0], [1], [0, 0, 1, 1], [], []>} : vector<2x128xbf16>, vector<128x4xbf16>, vector<2x4xf32> -> vector<2x4xf32>
    %c0_15 = arith.constant 0 : index
    %c0_16 = arith.constant 0 : index
    %19 = vector.load %arg5[%c0_15, %c0_16] : memref<1x4xf32, #tpu.memory_space<vmem>>, vector<1x4xf32>
    %20 = vector.broadcast %19 : vector<1x4xf32> to vector<2x4xf32>
    %21 = arith.addf %18, %20 : vector<2x4xf32>
    %c0_17 = arith.constant 0 : index
    %c0_18 = arith.constant 0 : index
    %22 = vector.load %arg6[%c0_17, %c0_18] : memref<2x4xf32, #tpu.memory_space<vmem>>, vector<2x4xf32>
    tpu.vector_store %arg6[%c0_17, %c0_18], %21 {strides = array<i32>} : memref<2x4xf32, #tpu.memory_space<vmem>>, vector<2x4xf32>,
    return
  }
}

module attributes {stable_mosaic.version = 11 : i64} {
  func.func @_gru_stream_kernel(%arg0: i32, %arg1: memref<1x8x8xf32, #tpu.memory_space<vmem>>, %arg2: memref<8x128xf32, #tpu.memory_space<vmem>>, %arg3: memref<8x192xbf16, #tpu.memory_space<vmem>>, %arg4: memref<64x192xbf16, #tpu.memory_space<vmem>>, %arg5: memref<1x192xf32, #tpu.memory_space<vmem>>, %arg6: memref<1x64xf32, #tpu.memory_space<vmem>>, %arg7: memref<1x64xf32, #tpu.memory_space<vmem>>, %arg8: memref<1x64xf32, #tpu.memory_space<vmem>>, %arg9: memref<64x128xbf16, #tpu.memory_space<vmem>>, %arg10: memref<1x128xf32, #tpu.memory_space<vmem>>, %arg11: memref<8x128xbf16, #tpu.memory_space<vmem>>, %arg12: memref<1x128xf32, #tpu.memory_space<vmem>>, %arg13: memref<2x1x8x128xf32, #tpu.memory_space<vmem>>) attributes {dimension_semantics = [#tpu.dimension_semantics<parallel>], iteration_bounds = array<i64: 2>, scalar_prefetch = 0 : i64, scratch_operands = 0 : i64, tpu.core_type = #tpu.core_type<tc>, window_params = [{transform_indices = @transform_0, window_bounds = array<i64: 1, 8, 8>}, {pipeline_mode = #tpu.pipeline_mode<synchronous>, transform_indices = @transform_1, window_bounds = array<i64: 8, 128>}, {pipeline_mode = #tpu.pipeline_mode<synchronous>, transform_indices = @transform_2, window_bounds = array<i64: 8, 192>}, {pipeline_mode = #tpu.pipeline_mode<synchronous>, transform_indices = @transform_3, window_bounds = array<i64: 64, 192>}, {pipeline_mode = #tpu.pipeline_mode<synchronous>, transform_indices = @transform_4, window_bounds = array<i64: 1, 192>}, {pipeline_mode = #tpu.pipeline_mode<synchronous>, transform_indices = @transform_5, window_bounds = array<i64: 1, 64>}, {pipeline_mode = #tpu.pipeline_mode<synchronous>, transform_indices = @transform_6, window_bounds = array<i64: 1, 64>}, {pipeline_mode = #tpu.pipeline_mode<synchronous>, transform_indices = @transform_7, window_bounds = array<i64: 1, 64>}, {pipeline_mode = #tpu.pipeline_mode<synchronous>, transform_indices = @transform_8, window_bounds = array<i64: 64, 128>}, {pipeline_mode = #tpu.pipeline_mode<synchronous>, transform_indices = @transform_9, window_bounds = array<i64: 1, 128>}, {pipeline_mode = #tpu.pipeline_mode<synchronous>, transform_indices = @transform_10, window_bounds = array<i64: 8, 128>}, {pipeline_mode = #tpu.pipeline_mode<synchronous>, transform_indices = @transform_11, window_bounds = array<i64: 1, 128>}, {transform_indices = @transform_12, window_bounds = array<i64: 2, 1, 8, 128>}]} {
    %c0 = arith.constant 0 : index
    %c0_0 = arith.constant 0 : index
    %c0_1 = arith.constant 0 : index
    %0 = vector.load %arg1[%c0, %c0_0, %c0_1] : memref<1x8x8xf32, #tpu.memory_space<vmem>>, vector<1x8x8xf32>
    %1 = vector.shape_cast %0 : vector<1x8x8xf32> to vector<8x8xf32>
    %2 = arith.truncf %1 : vector<8x8xf32> to vector<8x8xbf16>
    %c0_2 = arith.constant 0 : index
    %c0_3 = arith.constant 0 : index
    %3 = vector.load %arg2[%c0_2, %c0_3] : memref<8x128xf32, #tpu.memory_space<vmem>>, vector<8x128xf32>
    %c0_4 = arith.constant 0 : index
    %c0_5 = arith.constant 0 : index
    %4 = vector.load %arg11[%c0_4, %c0_5] : memref<8x128xbf16, #tpu.memory_space<vmem>>, vector<8x128xbf16>
    %cst = arith.constant dense<0.000000e+00> : vector<8x128xf32>
    %5 = tpu.matmul %2, %4, %cst {dimension_numbers = #tpu.dot_dimension_numbers<[1], [0], [0], [1], [0, 0, 1, 1], [], []>} : vector<8x8xbf16>, vector<8x128xbf16>, vector<8x128xf32> -> vector<8x128xf32>
    %c0_6 = arith.constant 0 : index
    %c0_7 = arith.constant 0 : index
    %6 = vector.load %arg12[%c0_6, %c0_7] : memref<1x128xf32, #tpu.memory_space<vmem>>, vector<1x128xf32>
    %7 = vector.broadcast %6 : vector<1x128xf32> to vector<8x128xf32>
    %8 = arith.addf %5, %7 : vector<8x128xf32>
    %9 = vector.shape_cast %8 : vector<8x128xf32> to vector<1x8x128xf32>
    %10 = vector.shape_cast %3 : vector<8x128xf32> to vector<1x8x128xf32>
    %11 = arith.addf %9, %10 : vector<1x8x128xf32>
    %c0_8 = arith.constant 0 : index
    %c0_9 = arith.constant 0 : index
    %c0_10 = arith.constant 0 : index
    %c0_11 = arith.constant 0 : index
    %12 = vector.load %arg13[%c0_8, %c0_9, %c0_10, %c0_11] : memref<2x1x8x128xf32, #tpu.memory_space<vmem>>, vector<1x1x8x128xf32>
    %13 = vector.shape_cast %12 : vector<1x1x8x128xf32> to vector<1x8x128xf32>
    %14 = vector.shape_cast %11 : vector<1x8x128xf32> to vector<1x1x8x128xf32>
    tpu.vector_store %arg13[%c0_8, %c0_9, %c0_10, %c0_11], %14 {strides = array<i32>} : memref<2x1x8x128xf32, #tpu.memory_space<vmem>>, vector<1x1x8x128xf32>,
    %c0_12 = arith.constant 0 : index
    %c0_13 = arith.constant 0 : index
    %15 = vector.load %arg3[%c0_12, %c0_13] : memref<8x192xbf16, #tpu.memory_space<vmem>>, vector<8x192xbf16>
    %cst_14 = arith.constant dense<0.000000e+00> : vector<8x192xf32>
    %16 = tpu.matmul %2, %15, %cst_14 {dimension_numbers = #tpu.dot_dimension_numbers<[1], [0], [0], [1], [0, 0, 1, 1], [], []>} : vector<8x8xbf16>, vector<8x192xbf16>, vector<8x192xf32> -> vector<8x192xf32>
    %c0_15 = arith.constant 0 : index
    %c0_16 = arith.constant 0 : index
    %17 = vector.load %arg5[%c0_15, %c0_16] : memref<1x192xf32, #tpu.memory_space<vmem>>, vector<1x192xf32>
    %18 = vector.broadcast %17 : vector<1x192xf32> to vector<8x192xf32>
    %19 = arith.addf %16, %18 : vector<8x192xf32>
    %20 = vector.shape_cast %19 : vector<8x192xf32> to vector<1x8x192xf32>
    %c0_17 = arith.constant 0 : index
    %c0_18 = arith.constant 0 : index
    %21 = vector.load %arg4[%c0_17, %c0_18] : memref<64x192xbf16, #tpu.memory_space<vmem>>, vector<64x192xbf16>
    %c0_19 = arith.constant 0 : index
    %c0_20 = arith.constant 0 : index
    %22 = vector.load %arg6[%c0_19, %c0_20] : memref<1x64xf32, #tpu.memory_space<vmem>>, vector<1x64xf32>
    %cst_21 = arith.constant 0.000000e+00 : f32
    %23 = vector.broadcast %cst_21 : f32 to vector<1x64xf32>
    %24 = arith.truncf %23 : vector<1x64xf32> to vector<1x64xbf16>
    %cst_22 = arith.constant dense<0.000000e+00> : vector<1x192xf32>
    %25 = tpu.matmul %24, %21, %cst_22 {dimension_numbers = #tpu.dot_dimension_numbers<[1], [0], [0], [1], [0, 0, 1, 1], [], []>} : vector<1x64xbf16>, vector<64x192xbf16>, vector<1x192xf32> -> vector<1x192xf32>
    %26 = vector.extract_strided_slice %20 {offsets = [0, 0, 0], sizes = [1, 1, 192], strides = [1, 1, 1]} : vector<1x8x192xf32> to vector<1x1x192xf32>
    %27 = vector.shape_cast %26 : vector<1x1x192xf32> to vector<1x192xf32>
    %28 = vector.extract_strided_slice %27 {offsets = [0, 0], sizes = [1, 64], strides = [1, 1]} : vector<1x192xf32> to vector<1x64xf32>
    %29 = vector.extract_strided_slice %25 {offsets = [0, 0], sizes = [1, 64], strides = [1, 1]} : vector<1x192xf32> to vector<1x64xf32>
    %30 = arith.addf %28, %29 : vector<1x64xf32>
    %31 = arith.negf %30 : vector<1x64xf32>
    %32 = math.exp %31 : vector<1x64xf32>
    %cst_23 = arith.constant 1.000000e+00 : f32
    %33 = vector.broadcast %cst_23 : f32 to vector<1x64xf32>
    %34 = arith.addf %33, %32 : vector<1x64xf32>
    %35 = arith.divf %33, %34 : vector<1x64xf32>
    %36 = vector.extract_strided_slice %27 {offsets = [0, 64], sizes = [1, 64], strides = [1, 1]} : vector<1x192xf32> to vector<1x64xf32>
    %37 = vector.extract_strided_slice %25 {offsets = [0, 64], sizes = [1, 64], strides = [1, 1]} : vector<1x192xf32> to vector<1x64xf32>
    %38 = arith.addf %36, %37 : vector<1x64xf32>
    %39 = arith.negf %38 : vector<1x64xf32>
    %40 = math.exp %39 : vector<1x64xf32>
    %cst_24 = arith.constant 1.000000e+00 : f32
    %41 = vector.broadcast %cst_24 : f32 to vector<1x64xf32>
    %42 = arith.addf %41, %40 : vector<1x64xf32>
    %43 = arith.divf %41, %42 : vector<1x64xf32>
    %44 = vector.extract_strided_slice %27 {offsets = [0, 128], sizes = [1, 64], strides = [1, 1]} : vector<1x192xf32> to vector<1x64xf32>
    %45 = vector.extract_strided_slice %25 {offsets = [0, 128], sizes = [1, 64], strides = [1, 1]} : vector<1x192xf32> to vector<1x64xf32>
    %46 = arith.addf %45, %22 : vector<1x64xf32>
    %47 = arith.mulf %35, %46 : vector<1x64xf32>
    %48 = arith.addf %44, %47 : vector<1x64xf32>
    %49 = math.tanh %48 : vector<1x64xf32>
    %cst_25 = arith.constant 1.000000e+00 : f32
    %50 = vector.broadcast %cst_25 : f32 to vector<1x64xf32>
    %51 = arith.subf %50, %43 : vector<1x64xf32>
    %52 = arith.mulf %51, %49 : vector<1x64xf32>
    %53 = arith.mulf %43, %23 : vector<1x64xf32>
    %54 = arith.addf %52, %53 : vector<1x64xf32>
    %55 = arith.truncf %54 : vector<1x64xf32> to vector<1x64xbf16>
    %cst_26 = arith.constant dense<0.000000e+00> : vector<1x192xf32>
    %56 = tpu.matmul %55, %21, %cst_26 {dimension_numbers = #tpu.dot_dimension_numbers<[1], [0], [0], [1], [0, 0, 1, 1], [], []>} : vector<1x64xbf16>, vector<64x192xbf16>, vector<1x192xf32> -> vector<1x192xf32>
    %57 = vector.extract_strided_slice %20 {offsets = [0, 1, 0], sizes = [1, 1, 192], strides = [1, 1, 1]} : vector<1x8x192xf32> to vector<1x1x192xf32>
    %58 = vector.shape_cast %57 : vector<1x1x192xf32> to vector<1x192xf32>
    %59 = vector.extract_strided_slice %58 {offsets = [0, 0], sizes = [1, 64], strides = [1, 1]} : vector<1x192xf32> to vector<1x64xf32>
    %60 = vector.extract_strided_slice %56 {offsets = [0, 0], sizes = [1, 64], strides = [1, 1]} : vector<1x192xf32> to vector<1x64xf32>
    %61 = arith.addf %59, %60 : vector<1x64xf32>
    %62 = arith.negf %61 : vector<1x64xf32>
    %63 = math.exp %62 : vector<1x64xf32>
    %cst_27 = arith.constant 1.000000e+00 : f32
    %64 = vector.broadcast %cst_27 : f32 to vector<1x64xf32>
    %65 = arith.addf %64, %63 : vector<1x64xf32>
    %66 = arith.divf %64, %65 : vector<1x64xf32>
    %67 = vector.extract_strided_slice %58 {offsets = [0, 64], sizes = [1, 64], strides = [1, 1]} : vector<1x192xf32> to vector<1x64xf32>
    %68 = vector.extract_strided_slice %56 {offsets = [0, 64], sizes = [1, 64], strides = [1, 1]} : vector<1x192xf32> to vector<1x64xf32>
    %69 = arith.addf %67, %68 : vector<1x64xf32>
    %70 = arith.negf %69 : vector<1x64xf32>
    %71 = math.exp %70 : vector<1x64xf32>
    %cst_28 = arith.constant 1.000000e+00 : f32
    %72 = vector.broadcast %cst_28 : f32 to vector<1x64xf32>
    %73 = arith.addf %72, %71 : vector<1x64xf32>
    %74 = arith.divf %72, %73 : vector<1x64xf32>
    %75 = vector.extract_strided_slice %58 {offsets = [0, 128], sizes = [1, 64], strides = [1, 1]} : vector<1x192xf32> to vector<1x64xf32>
    %76 = vector.extract_strided_slice %56 {offsets = [0, 128], sizes = [1, 64], strides = [1, 1]} : vector<1x192xf32> to vector<1x64xf32>
    %77 = arith.addf %76, %22 : vector<1x64xf32>
    %78 = arith.mulf %66, %77 : vector<1x64xf32>
    %79 = arith.addf %75, %78 : vector<1x64xf32>
    %80 = math.tanh %79 : vector<1x64xf32>
    %cst_29 = arith.constant 1.000000e+00 : f32
    %81 = vector.broadcast %cst_29 : f32 to vector<1x64xf32>
    %82 = arith.subf %81, %74 : vector<1x64xf32>
    %83 = arith.mulf %82, %80 : vector<1x64xf32>
    %84 = arith.mulf %74, %54 : vector<1x64xf32>
    %85 = arith.addf %83, %84 : vector<1x64xf32>
    %86 = arith.truncf %85 : vector<1x64xf32> to vector<1x64xbf16>
    %cst_30 = arith.constant dense<0.000000e+00> : vector<1x192xf32>
    %87 = tpu.matmul %86, %21, %cst_30 {dimension_numbers = #tpu.dot_dimension_numbers<[1], [0], [0], [1], [0, 0, 1, 1], [], []>} : vector<1x64xbf16>, vector<64x192xbf16>, vector<1x192xf32> -> vector<1x192xf32>
    %88 = vector.extract_strided_slice %20 {offsets = [0, 2, 0], sizes = [1, 1, 192], strides = [1, 1, 1]} : vector<1x8x192xf32> to vector<1x1x192xf32>
    %89 = vector.shape_cast %88 : vector<1x1x192xf32> to vector<1x192xf32>
    %90 = vector.extract_strided_slice %89 {offsets = [0, 0], sizes = [1, 64], strides = [1, 1]} : vector<1x192xf32> to vector<1x64xf32>
    %91 = vector.extract_strided_slice %87 {offsets = [0, 0], sizes = [1, 64], strides = [1, 1]} : vector<1x192xf32> to vector<1x64xf32>
    %92 = arith.addf %90, %91 : vector<1x64xf32>
    %93 = arith.negf %92 : vector<1x64xf32>
    %94 = math.exp %93 : vector<1x64xf32>
    %cst_31 = arith.constant 1.000000e+00 : f32
    %95 = vector.broadcast %cst_31 : f32 to vector<1x64xf32>
    %96 = arith.addf %95, %94 : vector<1x64xf32>
    %97 = arith.divf %95, %96 : vector<1x64xf32>
    %98 = vector.extract_strided_slice %89 {offsets = [0, 64], sizes = [1, 64], strides = [1, 1]} : vector<1x192xf32> to vector<1x64xf32>
    %99 = vector.extract_strided_slice %87 {offsets = [0, 64], sizes = [1, 64], strides = [1, 1]} : vector<1x192xf32> to vector<1x64xf32>
    %100 = arith.addf %98, %99 : vector<1x64xf32>
    %101 = arith.negf %100 : vector<1x64xf32>
    %102 = math.exp %101 : vector<1x64xf32>
    %cst_32 = arith.constant 1.000000e+00 : f32
    %103 = vector.broadcast %cst_32 : f32 to vector<1x64xf32>
    %104 = arith.addf %103, %102 : vector<1x64xf32>
    %105 = arith.divf %103, %104 : vector<1x64xf32>
    %106 = vector.extract_strided_slice %89 {offsets = [0, 128], sizes = [1, 64], strides = [1, 1]} : vector<1x192xf32> to vector<1x64xf32>
    %107 = vector.extract_strided_slice %87 {offsets = [0, 128], sizes = [1, 64], strides = [1, 1]} : vector<1x192xf32> to vector<1x64xf32>
    %108 = arith.addf %107, %22 : vector<1x64xf32>
    %109 = arith.mulf %97, %108 : vector<1x64xf32>
    %110 = arith.addf %106, %109 : vector<1x64xf32>
    %111 = math.tanh %110 : vector<1x64xf32>
    %cst_33 = arith.constant 1.000000e+00 : f32
    %112 = vector.broadcast %cst_33 : f32 to vector<1x64xf32>
    %113 = arith.subf %112, %105 : vector<1x64xf32>
    %114 = arith.mulf %113, %111 : vector<1x64xf32>
    %115 = arith.mulf %105, %85 : vector<1x64xf32>
    %116 = arith.addf %114, %115 : vector<1x64xf32>
    %117 = arith.truncf %116 : vector<1x64xf32> to vector<1x64xbf16>
    %cst_34 = arith.constant dense<0.000000e+00> : vector<1x192xf32>
    %118 = tpu.matmul %117, %21, %cst_34 {dimension_numbers = #tpu.dot_dimension_numbers<[1], [0], [0], [1], [0, 0, 1, 1], [], []>} : vector<1x64xbf16>, vector<64x192xbf16>, vector<1x192xf32> -> vector<1x192xf32>
    %119 = vector.extract_strided_slice %20 {offsets = [0, 3, 0], sizes = [1, 1, 192], strides = [1, 1, 1]} : vector<1x8x192xf32> to vector<1x1x192xf32>
    %120 = vector.shape_cast %119 : vector<1x1x192xf32> to vector<1x192xf32>
    %121 = vector.extract_strided_slice %120 {offsets = [0, 0], sizes = [1, 64], strides = [1, 1]} : vector<1x192xf32> to vector<1x64xf32>
    %122 = vector.extract_strided_slice %118 {offsets = [0, 0], sizes = [1, 64], strides = [1, 1]} : vector<1x192xf32> to vector<1x64xf32>
    %123 = arith.addf %121, %122 : vector<1x64xf32>
    %124 = arith.negf %123 : vector<1x64xf32>
    %125 = math.exp %124 : vector<1x64xf32>
    %cst_35 = arith.constant 1.000000e+00 : f32
    %126 = vector.broadcast %cst_35 : f32 to vector<1x64xf32>
    %127 = arith.addf %126, %125 : vector<1x64xf32>
    %128 = arith.divf %126, %127 : vector<1x64xf32>
    %129 = vector.extract_strided_slice %120 {offsets = [0, 64], sizes = [1, 64], strides = [1, 1]} : vector<1x192xf32> to vector<1x64xf32>
    %130 = vector.extract_strided_slice %118 {offsets = [0, 64], sizes = [1, 64], strides = [1, 1]} : vector<1x192xf32> to vector<1x64xf32>
    %131 = arith.addf %129, %130 : vector<1x64xf32>
    %132 = arith.negf %131 : vector<1x64xf32>
    %133 = math.exp %132 : vector<1x64xf32>
    %cst_36 = arith.constant 1.000000e+00 : f32
    %134 = vector.broadcast %cst_36 : f32 to vector<1x64xf32>
    %135 = arith.addf %134, %133 : vector<1x64xf32>
    %136 = arith.divf %134, %135 : vector<1x64xf32>
    %137 = vector.extract_strided_slice %120 {offsets = [0, 128], sizes = [1, 64], strides = [1, 1]} : vector<1x192xf32> to vector<1x64xf32>
    %138 = vector.extract_strided_slice %118 {offsets = [0, 128], sizes = [1, 64], strides = [1, 1]} : vector<1x192xf32> to vector<1x64xf32>
    %139 = arith.addf %138, %22 : vector<1x64xf32>
    %140 = arith.mulf %128, %139 : vector<1x64xf32>
    %141 = arith.addf %137, %140 : vector<1x64xf32>
    %142 = math.tanh %141 : vector<1x64xf32>
    %cst_37 = arith.constant 1.000000e+00 : f32
    %143 = vector.broadcast %cst_37 : f32 to vector<1x64xf32>
    %144 = arith.subf %143, %136 : vector<1x64xf32>
    %145 = arith.mulf %144, %142 : vector<1x64xf32>
    %146 = arith.mulf %136, %116 : vector<1x64xf32>
    %147 = arith.addf %145, %146 : vector<1x64xf32>
    %148 = arith.truncf %147 : vector<1x64xf32> to vector<1x64xbf16>
    %cst_38 = arith.constant dense<0.000000e+00> : vector<1x192xf32>
    %149 = tpu.matmul %148, %21, %cst_38 {dimension_numbers = #tpu.dot_dimension_numbers<[1], [0], [0], [1], [0, 0, 1, 1], [], []>} : vector<1x64xbf16>, vector<64x192xbf16>, vector<1x192xf32> -> vector<1x192xf32>
    %150 = vector.extract_strided_slice %20 {offsets = [0, 4, 0], sizes = [1, 1, 192], strides = [1, 1, 1]} : vector<1x8x192xf32> to vector<1x1x192xf32>
    %151 = vector.shape_cast %150 : vector<1x1x192xf32> to vector<1x192xf32>
    %152 = vector.extract_strided_slice %151 {offsets = [0, 0], sizes = [1, 64], strides = [1, 1]} : vector<1x192xf32> to vector<1x64xf32>
    %153 = vector.extract_strided_slice %149 {offsets = [0, 0], sizes = [1, 64], strides = [1, 1]} : vector<1x192xf32> to vector<1x64xf32>
    %154 = arith.addf %152, %153 : vector<1x64xf32>
    %155 = arith.negf %154 : vector<1x64xf32>
    %156 = math.exp %155 : vector<1x64xf32>
    %cst_39 = arith.constant 1.000000e+00 : f32
    %157 = vector.broadcast %cst_39 : f32 to vector<1x64xf32>
    %158 = arith.addf %157, %156 : vector<1x64xf32>
    %159 = arith.divf %157, %158 : vector<1x64xf32>
    %160 = vector.extract_strided_slice %151 {offsets = [0, 64], sizes = [1, 64], strides = [1, 1]} : vector<1x192xf32> to vector<1x64xf32>
    %161 = vector.extract_strided_slice %149 {offsets = [0, 64], sizes = [1, 64], strides = [1, 1]} : vector<1x192xf32> to vector<1x64xf32>
    %162 = arith.addf %160, %161 : vector<1x64xf32>
    %163 = arith.negf %162 : vector<1x64xf32>
    %164 = math.exp %163 : vector<1x64xf32>
    %cst_40 = arith.constant 1.000000e+00 : f32
    %165 = vector.broadcast %cst_40 : f32 to vector<1x64xf32>
    %166 = arith.addf %165, %164 : vector<1x64xf32>
    %167 = arith.divf %165, %166 : vector<1x64xf32>
    %168 = vector.extract_strided_slice %151 {offsets = [0, 128], sizes = [1, 64], strides = [1, 1]} : vector<1x192xf32> to vector<1x64xf32>
    %169 = vector.extract_strided_slice %149 {offsets = [0, 128], sizes = [1, 64], strides = [1, 1]} : vector<1x192xf32> to vector<1x64xf32>
    %170 = arith.addf %169, %22 : vector<1x64xf32>
    %171 = arith.mulf %159, %170 : vector<1x64xf32>
    %172 = arith.addf %168, %171 : vector<1x64xf32>
    %173 = math.tanh %172 : vector<1x64xf32>
    %cst_41 = arith.constant 1.000000e+00 : f32
    %174 = vector.broadcast %cst_41 : f32 to vector<1x64xf32>
    %175 = arith.subf %174, %167 : vector<1x64xf32>
    %176 = arith.mulf %175, %173 : vector<1x64xf32>
    %177 = arith.mulf %167, %147 : vector<1x64xf32>
    %178 = arith.addf %176, %177 : vector<1x64xf32>
    %179 = arith.truncf %178 : vector<1x64xf32> to vector<1x64xbf16>
    %cst_42 = arith.constant dense<0.000000e+00> : vector<1x192xf32>
    %180 = tpu.matmul %179, %21, %cst_42 {dimension_numbers = #tpu.dot_dimension_numbers<[1], [0], [0], [1], [0, 0, 1, 1], [], []>} : vector<1x64xbf16>, vector<64x192xbf16>, vector<1x192xf32> -> vector<1x192xf32>
    %181 = vector.extract_strided_slice %20 {offsets = [0, 5, 0], sizes = [1, 1, 192], strides = [1, 1, 1]} : vector<1x8x192xf32> to vector<1x1x192xf32>
    %182 = vector.shape_cast %181 : vector<1x1x192xf32> to vector<1x192xf32>
    %183 = vector.extract_strided_slice %182 {offsets = [0, 0], sizes = [1, 64], strides = [1, 1]} : vector<1x192xf32> to vector<1x64xf32>
    %184 = vector.extract_strided_slice %180 {offsets = [0, 0], sizes = [1, 64], strides = [1, 1]} : vector<1x192xf32> to vector<1x64xf32>
    %185 = arith.addf %183, %184 : vector<1x64xf32>
    %186 = arith.negf %185 : vector<1x64xf32>
    %187 = math.exp %186 : vector<1x64xf32>
    %cst_43 = arith.constant 1.000000e+00 : f32
    %188 = vector.broadcast %cst_43 : f32 to vector<1x64xf32>
    %189 = arith.addf %188, %187 : vector<1x64xf32>
    %190 = arith.divf %188, %189 : vector<1x64xf32>
    %191 = vector.extract_strided_slice %182 {offsets = [0, 64], sizes = [1, 64], strides = [1, 1]} : vector<1x192xf32> to vector<1x64xf32>
    %192 = vector.extract_strided_slice %180 {offsets = [0, 64], sizes = [1, 64], strides = [1, 1]} : vector<1x192xf32> to vector<1x64xf32>
    %193 = arith.addf %191, %192 : vector<1x64xf32>
    %194 = arith.negf %193 : vector<1x64xf32>
    %195 = math.exp %194 : vector<1x64xf32>
    %cst_44 = arith.constant 1.000000e+00 : f32
    %196 = vector.broadcast %cst_44 : f32 to vector<1x64xf32>
    %197 = arith.addf %196, %195 : vector<1x64xf32>
    %198 = arith.divf %196, %197 : vector<1x64xf32>
    %199 = vector.extract_strided_slice %182 {offsets = [0, 128], sizes = [1, 64], strides = [1, 1]} : vector<1x192xf32> to vector<1x64xf32>
    %200 = vector.extract_strided_slice %180 {offsets = [0, 128], sizes = [1, 64], strides = [1, 1]} : vector<1x192xf32> to vector<1x64xf32>
    %201 = arith.addf %200, %22 : vector<1x64xf32>
    %202 = arith.mulf %190, %201 : vector<1x64xf32>
    %203 = arith.addf %199, %202 : vector<1x64xf32>
    %204 = math.tanh %203 : vector<1x64xf32>
    %cst_45 = arith.constant 1.000000e+00 : f32
    %205 = vector.broadcast %cst_45 : f32 to vector<1x64xf32>
    %206 = arith.subf %205, %198 : vector<1x64xf32>
    %207 = arith.mulf %206, %204 : vector<1x64xf32>
    %208 = arith.mulf %198, %178 : vector<1x64xf32>
    %209 = arith.addf %207, %208 : vector<1x64xf32>
    %210 = arith.truncf %209 : vector<1x64xf32> to vector<1x64xbf16>
    %cst_46 = arith.constant dense<0.000000e+00> : vector<1x192xf32>
    %211 = tpu.matmul %210, %21, %cst_46 {dimension_numbers = #tpu.dot_dimension_numbers<[1], [0], [0], [1], [0, 0, 1, 1], [], []>} : vector<1x64xbf16>, vector<64x192xbf16>, vector<1x192xf32> -> vector<1x192xf32>
    %212 = vector.extract_strided_slice %20 {offsets = [0, 6, 0], sizes = [1, 1, 192], strides = [1, 1, 1]} : vector<1x8x192xf32> to vector<1x1x192xf32>
    %213 = vector.shape_cast %212 : vector<1x1x192xf32> to vector<1x192xf32>
    %214 = vector.extract_strided_slice %213 {offsets = [0, 0], sizes = [1, 64], strides = [1, 1]} : vector<1x192xf32> to vector<1x64xf32>
    %215 = vector.extract_strided_slice %211 {offsets = [0, 0], sizes = [1, 64], strides = [1, 1]} : vector<1x192xf32> to vector<1x64xf32>
    %216 = arith.addf %214, %215 : vector<1x64xf32>
    %217 = arith.negf %216 : vector<1x64xf32>
    %218 = math.exp %217 : vector<1x64xf32>
    %cst_47 = arith.constant 1.000000e+00 : f32
    %219 = vector.broadcast %cst_47 : f32 to vector<1x64xf32>
    %220 = arith.addf %219, %218 : vector<1x64xf32>
    %221 = arith.divf %219, %220 : vector<1x64xf32>
    %222 = vector.extract_strided_slice %213 {offsets = [0, 64], sizes = [1, 64], strides = [1, 1]} : vector<1x192xf32> to vector<1x64xf32>
    %223 = vector.extract_strided_slice %211 {offsets = [0, 64], sizes = [1, 64], strides = [1, 1]} : vector<1x192xf32> to vector<1x64xf32>
    %224 = arith.addf %222, %223 : vector<1x64xf32>
    %225 = arith.negf %224 : vector<1x64xf32>
    %226 = math.exp %225 : vector<1x64xf32>
    %cst_48 = arith.constant 1.000000e+00 : f32
    %227 = vector.broadcast %cst_48 : f32 to vector<1x64xf32>
    %228 = arith.addf %227, %226 : vector<1x64xf32>
    %229 = arith.divf %227, %228 : vector<1x64xf32>
    %230 = vector.extract_strided_slice %213 {offsets = [0, 128], sizes = [1, 64], strides = [1, 1]} : vector<1x192xf32> to vector<1x64xf32>
    %231 = vector.extract_strided_slice %211 {offsets = [0, 128], sizes = [1, 64], strides = [1, 1]} : vector<1x192xf32> to vector<1x64xf32>
    %232 = arith.addf %231, %22 : vector<1x64xf32>
    %233 = arith.mulf %221, %232 : vector<1x64xf32>
    %234 = arith.addf %230, %233 : vector<1x64xf32>
    %235 = math.tanh %234 : vector<1x64xf32>
    %cst_49 = arith.constant 1.000000e+00 : f32
    %236 = vector.broadcast %cst_49 : f32 to vector<1x64xf32>
    %237 = arith.subf %236, %229 : vector<1x64xf32>
    %238 = arith.mulf %237, %235 : vector<1x64xf32>
    %239 = arith.mulf %229, %209 : vector<1x64xf32>
    %240 = arith.addf %238, %239 : vector<1x64xf32>
    %241 = arith.truncf %240 : vector<1x64xf32> to vector<1x64xbf16>
    %cst_50 = arith.constant dense<0.000000e+00> : vector<1x192xf32>
    %242 = tpu.matmul %241, %21, %cst_50 {dimension_numbers = #tpu.dot_dimension_numbers<[1], [0], [0], [1], [0, 0, 1, 1], [], []>} : vector<1x64xbf16>, vector<64x192xbf16>, vector<1x192xf32> -> vector<1x192xf32>
    %243 = vector.extract_strided_slice %20 {offsets = [0, 7, 0], sizes = [1, 1, 192], strides = [1, 1, 1]} : vector<1x8x192xf32> to vector<1x1x192xf32>
    %244 = vector.shape_cast %243 : vector<1x1x192xf32> to vector<1x192xf32>
    %245 = vector.extract_strided_slice %244 {offsets = [0, 0], sizes = [1, 64], strides = [1, 1]} : vector<1x192xf32> to vector<1x64xf32>
    %246 = vector.extract_strided_slice %242 {offsets = [0, 0], sizes = [1, 64], strides = [1, 1]} : vector<1x192xf32> to vector<1x64xf32>
    %247 = arith.addf %245, %246 : vector<1x64xf32>
    %248 = arith.negf %247 : vector<1x64xf32>
    %249 = math.exp %248 : vector<1x64xf32>
    %cst_51 = arith.constant 1.000000e+00 : f32
    %250 = vector.broadcast %cst_51 : f32 to vector<1x64xf32>
    %251 = arith.addf %250, %249 : vector<1x64xf32>
    %252 = arith.divf %250, %251 : vector<1x64xf32>
    %253 = vector.extract_strided_slice %244 {offsets = [0, 64], sizes = [1, 64], strides = [1, 1]} : vector<1x192xf32> to vector<1x64xf32>
    %254 = vector.extract_strided_slice %242 {offsets = [0, 64], sizes = [1, 64], strides = [1, 1]} : vector<1x192xf32> to vector<1x64xf32>
    %255 = arith.addf %253, %254 : vector<1x64xf32>
    %256 = arith.negf %255 : vector<1x64xf32>
    %257 = math.exp %256 : vector<1x64xf32>
    %cst_52 = arith.constant 1.000000e+00 : f32
    %258 = vector.broadcast %cst_52 : f32 to vector<1x64xf32>
    %259 = arith.addf %258, %257 : vector<1x64xf32>
    %260 = arith.divf %258, %259 : vector<1x64xf32>
    %261 = vector.extract_strided_slice %244 {offsets = [0, 128], sizes = [1, 64], strides = [1, 1]} : vector<1x192xf32> to vector<1x64xf32>
    %262 = vector.extract_strided_slice %242 {offsets = [0, 128], sizes = [1, 64], strides = [1, 1]} : vector<1x192xf32> to vector<1x64xf32>
    %263 = arith.addf %262, %22 : vector<1x64xf32>
    %264 = arith.mulf %252, %263 : vector<1x64xf32>
    %265 = arith.addf %261, %264 : vector<1x64xf32>
    %266 = math.tanh %265 : vector<1x64xf32>
    %cst_53 = arith.constant 1.000000e+00 : f32
    %267 = vector.broadcast %cst_53 : f32 to vector<1x64xf32>
    %268 = arith.subf %267, %260 : vector<1x64xf32>
    %269 = arith.mulf %268, %266 : vector<1x64xf32>
    %270 = arith.mulf %260, %240 : vector<1x64xf32>
    %271 = arith.addf %269, %270 : vector<1x64xf32>
    %272 = vector.shape_cast %54 : vector<1x64xf32> to vector<1x1x64xf32>
    %273 = vector.shape_cast %85 : vector<1x64xf32> to vector<1x1x64xf32>
    %274 = vector.shape_cast %116 : vector<1x64xf32> to vector<1x1x64xf32>
    %275 = vector.shape_cast %147 : vector<1x64xf32> to vector<1x1x64xf32>
    %276 = vector.shape_cast %178 : vector<1x64xf32> to vector<1x1x64xf32>
    %277 = vector.shape_cast %209 : vector<1x64xf32> to vector<1x1x64xf32>
    %278 = vector.shape_cast %240 : vector<1x64xf32> to vector<1x1x64xf32>
    %279 = vector.shape_cast %271 : vector<1x64xf32> to vector<1x1x64xf32>
    %280 = tpu.concatenate %272, %273, %274, %275, %276, %277, %278, %279 in 1 : vector<1x1x64xf32>, vector<1x1x64xf32>, vector<1x1x64xf32>, vector<1x1x64xf32>, vector<1x1x64xf32>, vector<1x1x64xf32>, vector<1x1x64xf32>, vector<1x1x64xf32> -> vector<1x8x64xf32>
    %281 = vector.shape_cast %280 : vector<1x8x64xf32> to vector<8x64xf32>
    %c0_54 = arith.constant 0 : index
    %c0_55 = arith.constant 0 : index
    %282 = vector.load %arg7[%c0_54, %c0_55] : memref<1x64xf32, #tpu.memory_space<vmem>>, vector<1x64xf32>
    %c0_56 = arith.constant 0 : index
    %c0_57 = arith.constant 0 : index
    %283 = vector.load %arg8[%c0_56, %c0_57] : memref<1x64xf32, #tpu.memory_space<vmem>>, vector<1x64xf32>
    %cst_58 = arith.constant dense<0.000000e+00> : vector<8xf32>
    %284 = vector.multi_reduction <add>, %281, %cst_58 [1] : vector<8x64xf32> to vector<8xf32>
    %285 = vector.shape_cast %284 : vector<8xf32> to vector<8x1xf32>
    %cst_59 = arith.constant 6.400000e+01 : f32
    %286 = vector.broadcast %cst_59 : f32 to vector<8x1xf32>
    %287 = arith.divf %285, %286 : vector<8x1xf32>
    %288 = vector.broadcast %287 : vector<8x1xf32> to vector<8x64xf32>
    %289 = arith.subf %281, %288 : vector<8x64xf32>
    %290 = arith.mulf %289, %289 : vector<8x64xf32>
    %cst_60 = arith.constant dense<0.000000e+00> : vector<8xf32>
    %291 = vector.multi_reduction <add>, %290, %cst_60 [1] : vector<8x64xf32> to vector<8xf32>
    %292 = vector.shape_cast %291 : vector<8xf32> to vector<8x1xf32>
    %cst_61 = arith.constant 6.400000e+01 : f32
    %293 = vector.broadcast %cst_61 : f32 to vector<8x1xf32>
    %294 = arith.divf %292, %293 : vector<8x1xf32>
    %cst_62 = arith.constant 9.99999974E-6 : f32
    %295 = vector.broadcast %cst_62 : f32 to vector<8x1xf32>
    %296 = arith.addf %294, %295 : vector<8x1xf32>
    %297 = math.rsqrt %296 : vector<8x1xf32>
    %298 = vector.broadcast %297 : vector<8x1xf32> to vector<8x64xf32>
    %299 = arith.mulf %289, %298 : vector<8x64xf32>
    %300 = vector.broadcast %282 : vector<1x64xf32> to vector<8x64xf32>
    %301 = arith.mulf %299, %300 : vector<8x64xf32>
    %302 = vector.broadcast %283 : vector<1x64xf32> to vector<8x64xf32>
    %303 = arith.addf %301, %302 : vector<8x64xf32>
    %304 = arith.truncf %303 : vector<8x64xf32> to vector<8x64xbf16>
    %c0_63 = arith.constant 0 : index
    %c0_64 = arith.constant 0 : index
    %305 = vector.load %arg9[%c0_63, %c0_64] : memref<64x128xbf16, #tpu.memory_space<vmem>>, vector<64x128xbf16>
    %cst_65 = arith.constant dense<0.000000e+00> : vector<8x128xf32>
    %306 = tpu.matmul %304, %305, %cst_65 {dimension_numbers = #tpu.dot_dimension_numbers<[1], [0], [0], [1], [0, 0, 1, 1], [], []>} : vector<8x64xbf16>, vector<64x128xbf16>, vector<8x128xf32> -> vector<8x128xf32>
    %c0_66 = arith.constant 0 : index
    %c0_67 = arith.constant 0 : index
    %307 = vector.load %arg10[%c0_66, %c0_67] : memref<1x128xf32, #tpu.memory_space<vmem>>, vector<1x128xf32>
    %308 = vector.broadcast %307 : vector<1x128xf32> to vector<8x128xf32>
    %309 = arith.addf %306, %308 : vector<8x128xf32>
    %310 = vector.shape_cast %309 : vector<8x128xf32> to vector<1x8x128xf32>
    %311 = vector.shape_cast %3 : vector<8x128xf32> to vector<1x8x128xf32>
    %312 = arith.addf %310, %311 : vector<1x8x128xf32>
    %c1 = arith.constant 1 : index
    %c0_68 = arith.constant 0 : index
    %c0_69 = arith.constant 0 : index
    %c0_70 = arith.constant 0 : index
    %313 = vector.load %arg13[%c1, %c0_68, %c0_69, %c0_70] : memref<2x1x8x128xf32, #tpu.memory_space<vmem>>, vector<1x1x8x128xf32>
    %314 = vector.shape_cast %313 : vector<1x1x8x128xf32> to vector<1x8x128xf32>
    %315 = vector.shape_cast %312 : vector<1x8x128xf32> to vector<1x1x8x128xf32>
    tpu.vector_store %arg13[%c1, %c0_68, %c0_69, %c0_70], %315 {strides = array<i32>} : memref<2x1x8x128xf32, #tpu.memory_space<vmem>>, vector<1x1x8x128xf32>,
    return
  }
  func.func @transform_0(%arg0: i32) -> (i32, i32, i32) {
    %c0_i32 = arith.constant 0 : i32
    %c0_i32_0 = arith.constant 0 : i32
    %c0_i32_1 = arith.constant 0 : i32
    return %arg0, %c0_i32, %c0_i32_0 : i32, i32, i32
  }
  func.func @transform_1(%arg0: i32) -> (i32, i32) {
    %c0_i32 = arith.constant 0 : i32
    %c0_i32_0 = arith.constant 0 : i32
    %c0_i32_1 = arith.constant 0 : i32
    return %c0_i32, %c0_i32_0 : i32, i32
  }
  func.func @transform_2(%arg0: i32) -> (i32, i32) {
    %c0_i32 = arith.constant 0 : i32
    %c0_i32_0 = arith.constant 0 : i32
    %c0_i32_1 = arith.constant 0 : i32
    return %c0_i32, %c0_i32_0 : i32, i32
  }
  func.func @transform_3(%arg0: i32) -> (i32, i32) {
    %c0_i32 = arith.constant 0 : i32
    %c0_i32_0 = arith.constant 0 : i32
    %c0_i32_1 = arith.constant 0 : i32
    return %c0_i32, %c0_i32_0 : i32, i32
  }
  func.func @transform_4(%arg0: i32) -> (i32, i32) {
    %c0_i32 = arith.constant 0 : i32
    %c0_i32_0 = arith.constant 0 : i32
    %c0_i32_1 = arith.constant 0 : i32
    return %c0_i32, %c0_i32_0 : i32, i32
  }
  func.func @transform_5(%arg0: i32) -> (i32, i32) {
    %c0_i32 = arith.constant 0 : i32
    %c0_i32_0 = arith.constant 0 : i32
    %c0_i32_1 = arith.constant 0 : i32
    return %c0_i32, %c0_i32_0 : i32, i32
  }
  func.func @transform_6(%arg0: i32) -> (i32, i32) {
    %c0_i32 = arith.constant 0 : i32
    %c0_i32_0 = arith.constant 0 : i32
    %c0_i32_1 = arith.constant 0 : i32
    return %c0_i32, %c0_i32_0 : i32, i32
  }
  func.func @transform_7(%arg0: i32) -> (i32, i32) {
    %c0_i32 = arith.constant 0 : i32
    %c0_i32_0 = arith.constant 0 : i32
    %c0_i32_1 = arith.constant 0 : i32
    return %c0_i32, %c0_i32_0 : i32, i32
  }
  func.func @transform_8(%arg0: i32) -> (i32, i32) {
    %c0_i32 = arith.constant 0 : i32
    %c0_i32_0 = arith.constant 0 : i32
    %c0_i32_1 = arith.constant 0 : i32
    return %c0_i32, %c0_i32_0 : i32, i32
  }
  func.func @transform_9(%arg0: i32) -> (i32, i32) {
    %c0_i32 = arith.constant 0 : i32
    %c0_i32_0 = arith.constant 0 : i32
    %c0_i32_1 = arith.constant 0 : i32
    return %c0_i32, %c0_i32_0 : i32, i32
  }
  func.func @transform_10(%arg0: i32) -> (i32, i32) {
    %c0_i32 = arith.constant 0 : i32
    %c0_i32_0 = arith.constant 0 : i32
    %c0_i32_1 = arith.constant 0 : i32
    return %c0_i32, %c0_i32_0 : i32, i32
  }
  func.func @transform_11(%arg0: i32) -> (i32, i32) {
    %c0_i32 = arith.constant 0 : i32
    %c0_i32_0 = arith.constant 0 : i32
    %c0_i32_1 = arith.constant 0 : i32
    return %c0_i32, %c0_i32_0 : i32, i32
  }
  func.func @transform_12(%arg0: i32) -> (i32, i32, i32, i32) {
    %c0_i32 = arith.constant 0 : i32
    %c0_i32_0 = arith.constant 0 : i32
    %c0_i32_1 = arith.constant 0 : i32
    %c0_i32_2 = arith.constant 0 : i32
    return %c0_i32, %arg0, %c0_i32_0, %c0_i32_1 : i32, i32, i32, i32
  }
}

</mosaic_0001>

<llo_original>
// kernel: forward.5
$region0: #{forward.5}
  #allocation0 [shape = 'u32[]', space=smem, size = 0x4, offset = 0x4, fixed_abs, tag = 'smem constant byte address 0x4 - core index']
  #allocation1 [shape = 'u32[72,128]{1,0:T(1,128)}', space=vmem, size = 0x9000, scoped, tag = 'internal scratch']
  %s0 = inlined_call_operand.vmem [shape: f32[2,2,128], index: 0, kind: input, shape index: {}]
  %s1 = inlined_call_operand.vmem [shape: bf16[128,128], index: 1, kind: input, shape index: {}]
  %s2 = inlined_call_operand.hbm [shape: bf16[128,128], index: 2, kind: input, shape index: {}]
  %s3 = inlined_call_operand.vmem [shape: f32[1,128], index: 3, kind: input, shape index: {}]
  %s4 = inlined_call_operand.vmem [shape: bf16[128,4], index: 4, kind: input, shape index: {}]
  %s5 = inlined_call_operand.vmem [shape: f32[1,4], index: 5, kind: input, shape index: {}]
  %s6 = inlined_call_operand.hbm [shape: f32[2,4], index: 6, kind: output, shape index: {}]
  %s7 = sld [smem:[#allocation0]]
  $region38: #{forward.5} parent=0
    _
  %s9 = ssub.s32 1, %s7
  %s10 = scalar_select 0, %s9, %s7
  $region1: #{forward.5} parent=0
    #allocation2 [shape = 'u8[32768]{0}', space=vmem, size = 0x8000, scoped, tag = 'input window, operand 2, single buffered']
    #allocation3 [shape = 's32[1]{0}', space=sflag, size = 0x4, scoped, tag = 'scoped memory for forward.5']
    #allocation4 [shape = 's32[1]{0}', space=sflag, size = 0x4, scoped, tag = 'scoped memory for forward.5']
    #allocation5 [shape = 'u8[1024]{0}', space=vmem, size = 0x400, scoped, tag = 'output window, operand 0, single buffered']
    %11 = vsyncpa [#allocation3], 0
    %12 = vsyncpa [#allocation4], 0
    // Predicated region
    $region2: #{forward.5} parent=1 // pred_check
      _
    $region3: #{forward.5} parent=1 // pred_check_branch
      %14 = sbr.rel (0) target = $region5
    $region4: #{forward.5} parent=1 // pred_region
      _
    $region5: #{forward.5} parent=1 // pred_fallthru
      _
    // Predicated region
    $region6: #{forward.5} parent=1 // pred_check
      _
    $region7: #{forward.5} parent=1 // pred_check_branch
      %16 = sbr.rel (0) target = $region9
    $region8: #{forward.5} parent=1 // pred_region
      _
    $region9: #{forward.5} parent=1 // pred_fallthru
      _
    // Predicated region
    $region10: #{forward.5} parent=1 // pred_check
      _
    $region11: #{forward.5} parent=1 // pred_check_branch
      %18 = sbr.rel (0) target = $region13
    $region12: #{forward.5} parent=1 // pred_region
      %20 = vsyncadd [#allocation3], 0
      %s21 = sshll.u32 %s2, 4
      %s22 = int_to_ptr.hbm [resolvable:$true] %s21
      %s23 = sshll.u32 [#allocation2], 4
      %s24 = int_to_ptr.vmem [resolvable:$true] %s23
      %29 = dma.hbm_to_vmem [thread:$0]  %s22, 1024, %s24, [#allocation3], 64, 64, 4
    $region13: #{forward.5} parent=1 // pred_fallthru
      _
    // Predicated region
    $region14: #{forward.5} parent=1 // pred_check
      _
    $region15: #{forward.5} parent=1 // pred_check_branch
      %31 = sbr.rel (0) target = $region17
    $region16: #{forward.5} parent=1 // pred_region
      _
    $region17: #{forward.5} parent=1 // pred_fallthru
      _
    // Predicated region
    $region18: #{forward.5} parent=1 // pred_check
      _
    $region19: #{forward.5} parent=1 // pred_check_branch
      %33 = sbr.rel (0) target = $region21
    $region20: #{forward.5} parent=1 // pred_region
      _
    $region21: #{forward.5} parent=1 // pred_fallthru
      _
    // Predicated region
    $region22: #{forward.5} parent=1 // pred_check
      _
    $region23: #{forward.5} parent=1 // pred_check_branch
      %35 = sbr.rel (0) target = $region25
    $region24: #{forward.5} parent=1 // pred_region
      _
    $region25: #{forward.5} parent=1 // pred_fallthru
      _
    // Predicated region
    $region26: #{forward.5} parent=1 // pred_check
      _
    $region27: #{forward.5} parent=1 // pred_check_branch
      %37 = sbr.rel (0) target = $region29
    $region28: #{forward.5} parent=1 // pred_region
      %39 = dma.done [#allocation3], 1024
    $region29: #{forward.5} parent=1 // pred_fallthru
      _
    %v40 = vld [vmem:[%s0] sm:$0x3]
    %v41 = vpack.c.bf16 %v40, %v40
    %s42 = scalar_lea.vmem %s0, 2
    %v43 = vld [vmem:[%s42] sm:$0x3]
    %v44 = vpack.c.bf16 %v43, %v43
    %v45 = vld [vmem:[%s1] sm:$0xf]
    %v46 = vld [vmem:[%s1 + $0x4] sm:$0xf]
    %v47 = vld [vmem:[%s1 + $0x8] sm:$0xf]
    %v48 = vld [vmem:[%s1 + $0xc] sm:$0xf]
    %v49 = vld [vmem:[%s1 + $0x10] sm:$0xf]
    %v50 = vld [vmem:[%s1 + $0x14] sm:$0xf]
    %v51 = vld [vmem:[%s1 + $0x18] sm:$0xf]
    %v52 = vld [vmem:[%s1 + $0x1c] sm:$0xf]
    %v53 = vld [vmem:[%s1 + $0x20] sm:$0xf]
    %v54 = vld [vmem:[%s1 + $0x24] sm:$0xf]
    %v55 = vld [vmem:[%s1 + $0x28] sm:$0xf]
    %v56 = vld [vmem:[%s1 + $0x2c] sm:$0xf]
    %v57 = vld [vmem:[%s1 + $0x30] sm:$0xf]
    %v58 = vld [vmem:[%s1 + $0x34] sm:$0xf]
    %v59 = vld [vmem:[%s1 + $0x38] sm:$0xf]
    %v60 = vld [vmem:[%s1 + $0x3c] sm:$0xf]
    %v61 = vld [vmem:[#allocation2] sm:$0xf]
    %v62 = vld [vmem:[#allocation2 + $0x4] sm:$0xf]
    %v63 = vld [vmem:[#allocation2 + $0x8] sm:$0xf]
    %v64 = vld [vmem:[#allocation2 + $0xc] sm:$0xf]
    %v65 = vld [vmem:[#allocation2 + $0x10] sm:$0xf]
    %v66 = vld [vmem:[#allocation2 + $0x14] sm:$0xf]
    %v67 = vld [vmem:[#allocation2 + $0x18] sm:$0xf]
    %v68 = vld [vmem:[#allocation2 + $0x1c] sm:$0xf]
    %v69 = vld [vmem:[#allocation2 + $0x20] sm:$0xf]
    %v70 = vld [vmem:[#allocation2 + $0x24] sm:$0xf]
    %v71 = vld [vmem:[#allocation2 + $0x28] sm:$0xf]
    %v72 = vld [vmem:[#allocation2 + $0x2c] sm:$0xf]
    %v73 = vld [vmem:[#allocation2 + $0x30] sm:$0xf]
    %v74 = vld [vmem:[#allocation2 + $0x34] sm:$0xf]
    %v75 = vld [vmem:[#allocation2 + $0x38] sm:$0xf]
    %v76 = vld [vmem:[#allocation2 + $0x3c] sm:$0xf]
    %v93 = vunpack.c.l.b16 %v61
    %v94 = vunpack.c.l.b16 %v62
    %v95 = vunpack.c.l.b16 %v63
    %v96 = vunpack.c.l.b16 %v64
    %v97 = vunpack.c.l.b16 %v65
    %v98 = vunpack.c.l.b16 %v66
    %v99 = vunpack.c.l.b16 %v67
    %v100 = vunpack.c.l.b16 %v68
    %v101 = vunpack.c.l.b16 %v69
    %v102 = vunpack.c.l.b16 %v70
    %v103 = vunpack.c.l.b16 %v71
    %v104 = vunpack.c.l.b16 %v72
    %v105 = vunpack.c.l.b16 %v73
    %v106 = vunpack.c.l.b16 %v74
    %v107 = vunpack.c.l.b16 %v75
    %v108 = vunpack.c.l.b16 %v76
    %v109 = vpack.c.b16 %v94, %v93
    %v110 = vpack.c.b16 %v96, %v95
    %v111 = vpack.c.b16 %v98, %v97
    %v112 = vpack.c.b16 %v100, %v99
    %v113 = vpack.c.b16 %v102, %v101
    %v114 = vpack.c.b16 %v104, %v103
    %v115 = vpack.c.b16 %v106, %v105
    %v116 = vpack.c.b16 %v108, %v107
    %125 = vmatpush.bf16.msra.mxu0 %v116
    %126 = vmatpush.bf16.msra.mxu0 %v115
    %127 = vmatpush.bf16.msra.mxu0 %v114
    %128 = vmatpush.bf16.msra.mxu0 %v113
    %129 = vmatpush.bf16.msra.mxu0 %v112
    %130 = vmatpush.bf16.msra.mxu0 %v111
    %131 = vmatpush.bf16.msra.mxu0 %v110
    %132 = vmatpush.bf16.msra.mxu0 %v109
    %133 = vmatmul.bf16.gmra.mxu0 %v44
    %v134 = vpop.f32.mrf.mxu0
    %v135 = vadd.f32 0.0, %v134
    %v136 = vpop.f32.mrf.mxu0
    %137 = vdwg.mxu0
    %v154 = vunpack.c.l.b16 %v45
    %v155 = vunpack.c.l.b16 %v46
    %v156 = vunpack.c.l.b16 %v47
    %v157 = vunpack.c.l.b16 %v48
    %v158 = vunpack.c.l.b16 %v49
    %v159 = vunpack.c.l.b16 %v50
    %v160 = vunpack.c.l.b16 %v51
    %v161 = vunpack.c.l.b16 %v52
    %v162 = vunpack.c.l.b16 %v53
    %v163 = vunpack.c.l.b16 %v54
    %v164 = vunpack.c.l.b16 %v55
    %v165 = vunpack.c.l.b16 %v56
    %v166 = vunpack.c.l.b16 %v57
    %v167 = vunpack.c.l.b16 %v58
    %v168 = vunpack.c.l.b16 %v59
    %v169 = vunpack.c.l.b16 %v60
    %v170 = vpack.c.b16 %v155, %v154
    %v171 = vpack.c.b16 %v157, %v156
    %v172 = vpack.c.b16 %v159, %v158
    %v173 = vpack.c.b16 %v161, %v160
    %v174 = vpack.c.b16 %v163, %v162
    %v175 = vpack.c.b16 %v165, %v164
    %v176 = vpack.c.b16 %v167, %v166
    %v177 = vpack.c.b16 %v169, %v168
    %186 = vmatpush.bf16.msra.mxu0 %v177
    %187 = vmatpush.bf16.msra.mxu0 %v176
    %188 = vmatpush.bf16.msra.mxu0 %v175
    %189 = vmatpush.bf16.msra.mxu0 %v174
    %190 = vmatpush.bf16.msra.mxu0 %v173
    %191 = vmatpush.bf16.msra.mxu0 %v172
    %192 = vmatpush.bf16.msra.mxu0 %v171
    %193 = vmatpush.bf16.msra.mxu0 %v170
    %194 = vmatmul.bf16.gmra.mxu0 %v41
    %v195 = vpop.f32.mrf.mxu0
    %v196 = vadd.f32 %v135, %v195
    %v197 = vpop.f32.mrf.mxu0
    %198 = vdwg.mxu0
    %v199 = vld [vmem:[%s3] sm:$0x1]
    %v201 = vperm.slane %v199, 0
    %v203 = vadd.f32 %v196, %v201
    %v204 = vmax.f32 %v203, 0.0
    %v205 = vpack.c.bf16 %v204, %v204
    %v206 = vld [vmem:[%s4] sm:$0xf]
    %v207 = vld [vmem:[%s4 + $0x4] sm:$0xf]
    %v208 = vld [vmem:[%s4 + $0x8] sm:$0xf]
    %v209 = vld [vmem:[%s4 + $0xc] sm:$0xf]
    %v210 = vld [vmem:[%s4 + $0x10] sm:$0xf]
    %v211 = vld [vmem:[%s4 + $0x14] sm:$0xf]
    %v212 = vld [vmem:[%s4 + $0x18] sm:$0xf]
    %v213 = vld [vmem:[%s4 + $0x1c] sm:$0xf]
    %v214 = vld [vmem:[%s4 + $0x20] sm:$0xf]
    %v215 = vld [vmem:[%s4 + $0x24] sm:$0xf]
    %v216 = vld [vmem:[%s4 + $0x28] sm:$0xf]
    %v217 = vld [vmem:[%s4 + $0x2c] sm:$0xf]
    %v218 = vld [vmem:[%s4 + $0x30] sm:$0xf]
    %v219 = vld [vmem:[%s4 + $0x34] sm:$0xf]
    %v220 = vld [vmem:[%s4 + $0x38] sm:$0xf]
    %v221 = vld [vmem:[%s4 + $0x3c] sm:$0xf]
    %v222 = vld [vmem:[%s5] sm:$0x1]
    %v224 = vperm.slane %v222, 0
    %v242 = vunpack.c.l.b16 %v206
    %v243 = vunpack.c.l.b16 %v207
    %v244 = vunpack.c.l.b16 %v208
    %v245 = vunpack.c.l.b16 %v209
    %v246 = vunpack.c.l.b16 %v210
    %v247 = vunpack.c.l.b16 %v211
    %v248 = vunpack.c.l.b16 %v212
    %v249 = vunpack.c.l.b16 %v213
    %v250 = vunpack.c.l.b16 %v214
    %v251 = vunpack.c.l.b16 %v215
    %v252 = vunpack.c.l.b16 %v216
    %v253 = vunpack.c.l.b16 %v217
    %v254 = vunpack.c.l.b16 %v218
    %v255 = vunpack.c.l.b16 %v219
    %v256 = vunpack.c.l.b16 %v220
    %v257 = vunpack.c.l.b16 %v221
    %v258 = vpack.c.b16 %v243, %v242
    %v259 = vpack.c.b16 %v245, %v244
    %v260 = vpack.c.b16 %v247, %v246
    %v261 = vpack.c.b16 %v249, %v248
    %v262 = vpack.c.b16 %v251, %v250
    %v263 = vpack.c.b16 %v253, %v252
    %v264 = vpack.c.b16 %v255, %v254
    %v265 = vpack.c.b16 %v257, %v256
    %274 = vmatpush.bf16.msra.mxu0 %v265
    %275 = vmatpush.bf16.msra.mxu0 %v264
    %276 = vmatpush.bf16.msra.mxu0 %v263
    %277 = vmatpush.bf16.msra.mxu0 %v262
    %278 = vmatpush.bf16.msra.mxu0 %v261
    %279 = vmatpush.bf16.msra.mxu0 %v260
    %280 = vmatpush.bf16.msra.mxu0 %v259
    %281 = vmatpush.bf16.msra.mxu0 %v258
    %282 = vmatmul.bf16.gmra.mxu0 %v205
    %v283 = vpop.f32.mrf.mxu0
    %v284 = vadd.f32 %v224, %v283
    %v285 = vpop.f32.mrf.mxu0
    %286 = vdwg.mxu0
    %vm287 = vcmask 25600
    %288 = vst.msk [vmem:[#allocation5] sm:$0x3] %vm287, %v284
    // Predicated region
    $region30: #{forward.5} parent=1 // pred_check
      _
    $region31: #{forward.5} parent=1 // pred_check_branch
      %290 = sbr.rel (0) target = $region33
    $region32: #{forward.5} parent=1 // pred_region
      %292 = vsyncadd [#allocation4], 0
      %s294 = sshll.u32 [#allocation5], 4
      %s295 = int_to_ptr.vmem [resolvable:$true] %s294
      %s296 = sshll.u32 %s6, 4
      %s297 = int_to_ptr.hbm [resolvable:$true] %s296
      %299 = dma.vmem_to_hbm [thread:$0]  %s295, 32, %s297, [#allocation4]
    $region33: #{forward.5} parent=1 // pred_fallthru
      _
    // Predicated region
    $region34: #{forward.5} parent=1 // pred_check
      _
    $region35: #{forward.5} parent=1 // pred_check_branch
      %301 = sbr.rel (0) target = $region37
    $region36: #{forward.5} parent=1 // pred_region
      %303 = dma.done [#allocation4], 32
    $region37: #{forward.5} parent=1 // pred_fallthru
      _
    %304 = vsyncpa [#allocation3], 1
    %305 = vsyncpa [#allocation4], 1

// kernel: forward.3
$region0: #{forward.3}
  #allocation0 [shape = 'u32[]', space=smem, size = 0x4, offset = 0x4, fixed_abs, tag = 'smem constant byte address 0x4 - core index']
  #allocation1 [shape = 'u32[72,128]{1,0:T(1,128)}', space=vmem, size = 0x9000, scoped, tag = 'internal scratch']
  %s0 = inlined_call_operand.hbm [shape: f32[2,8,8], index: 0, kind: input, shape index: {}]
  %s1 = inlined_call_operand.vmem [shape: f32[8,128], index: 1, kind: input, shape index: {}]
  %s2 = inlined_call_operand.vmem [shape: bf16[8,192], index: 2, kind: input, shape index: {}]
  %s3 = inlined_call_operand.hbm [shape: bf16[64,192], index: 3, kind: input, shape index: {}]
  %s4 = inlined_call_operand.hbm [shape: f32[1,192], index: 4, kind: input, shape index: {}]
  %s5 = inlined_call_operand.hbm [shape: f32[1,64], index: 5, kind: input, shape index: {}]
  %s6 = inlined_call_operand.hbm [shape: f32[1,64], index: 6, kind: input, shape index: {}]
  %s7 = inlined_call_operand.hbm [shape: f32[1,64], index: 7, kind: input, shape index: {}]
  %s8 = inlined_call_operand.hbm [shape: bf16[64,128], index: 8, kind: input, shape index: {}]
  %s9 = inlined_call_operand.hbm [shape: f32[1,128], index: 9, kind: input, shape index: {}]
  %s10 = inlined_call_operand.vmem [shape: bf16[8,128], index: 10, kind: input, shape index: {}]
  %s11 = inlined_call_operand.vmem [shape: f32[1,128], index: 11, kind: input, shape index: {}]
  %s12 = inlined_call_operand.vmem [shape: f32[2,2,8,128], index: 12, kind: output, shape index: {}]
  %s13 = sld [smem:[#allocation0]]
  $region147: #{forward.3} parent=0
    _
  %s15 = ssub.s32 1, %s13
  %s16 = scalar_select 0, %s15, %s13
  $region1: #{forward.3} parent=0
    #allocation2 [shape = 'u8[8192]{0}', space=vmem, size = 0x2000, scoped, tag = 'input window, operand 0']
    #allocation3 [shape = 's32[2]{0}', space=sflag, size = 0x8, scoped, tag = 'scoped memory for forward.3']
    #allocation4 [shape = 'u8[32768]{0}', space=vmem, size = 0x8000, scoped, tag = 'input window, operand 3, single buffered']
    #allocation5 [shape = 's32[1]{0}', space=sflag, size = 0x4, scoped, tag = 'scoped memory for forward.3']
    #allocation6 [shape = 'u8[1024]{0}', space=vmem, size = 0x400, scoped, tag = 'input window, operand 4, single buffered']
    #allocation7 [shape = 'u8[512]{0}', space=vmem, size = 0x400, scoped, tag = 'input window, operand 5, single buffered']
    #allocation8 [shape = 's32[1]{0}', space=sflag, size = 0x4, scoped, tag = 'scoped memory for forward.3']
    #allocation9 [shape = 'u8[512]{0}', space=vmem, size = 0x400, scoped, tag = 'input window, operand 6, single buffered']
    #allocation10 [shape = 'u8[512]{0}', space=vmem, size = 0x400, scoped, tag = 'input window, operand 7, single buffered']
    #allocation11 [shape = 's32[1]{0}', space=sflag, size = 0x4, scoped, tag = 'scoped memory for forward.3']
    #allocation12 [shape = 'u8[16384]{0}', space=vmem, size = 0x4000, scoped, tag = 'input window, operand 8, single buffered']
    #allocation13 [shape = 'u8[512]{0}', space=vmem, size = 0x400, scoped, tag = 'input window, operand 9, single buffered']
    #allocation14 [shape = 's32[1]{0}', space=sflag, size = 0x4, scoped, tag = 'scoped memory for forward.3']
    #allocation15 [shape = 'u8[16384]{0}', space=vmem, size = 0x4000, scoped, tag = 'output window, operand 0']
    %17 = vsyncpa [#allocation3], 0
    %s18 = scalar_lea.sflag [#allocation3], 1
    %19 = vsyncpa %s18, 0
    %20 = vsyncpa [#allocation5], 0
    %21 = vsyncpa [#allocation8], 0
    %22 = vsyncpa [#allocation11], 0
    %23 = vsyncpa [#allocation14], 0
    loop: start=0, step=1, limit=4
    $region2: #{forward.3} parent=1 // loop_pre_header
      _
    $region3: #{forward.3} parent=1 // loop_header
      %s25 = sphi 0, %s29
      %p26 = scmp.ge.s32.totalorder %s25, 4
      %s35 = sphi 0, %s37
      %s38 = sphi 0, %s35
      %s39 = sphi 0, %s38
      %s55 = sphi 0, %s39
      %s59 = sphi 0, %s59
      %s61 = sphi 0, %s59
      %s62 = sphi 0, %s61
      %s76 = sphi 0, %s62
      %s80 = sphi 0, %s80
      %s82 = sphi 0, %s80
      %s83 = sphi 0, %s82
      %s97 = sphi 0, %s83
      %s101 = sphi 0, %s101
      %s103 = sphi 0, %s101
      %s104 = sphi 0, %s103
      %s118 = sphi 0, %s104
      %s122 = sphi 0, %s122
      %s124 = sphi 0, %s122
      %s125 = sphi 0, %s124
      %s139 = sphi 0, %s125
      %s143 = sphi 0, %s143
      %s145 = sphi 0, %s143
      %s146 = sphi 0, %s145
      %s160 = sphi 0, %s146
      %s164 = sphi 0, %s164
      %s166 = sphi 0, %s164
      %s167 = sphi 0, %s166
      %s181 = sphi 0, %s167
      %s185 = sphi 0, %s185
      %s187 = sphi 0, %s185
      %s188 = sphi 0, %s187
      %s202 = sphi 0, %s188
      %s206 = sphi 0, %s206
      %s208 = sphi 0, %s206
      %s209 = sphi 0, %s208
      %s223 = sphi 0, %s209
      %s227 = sphi 0, %s227
      %s229 = sphi 0, %s227
      %s230 = sphi 0, %s229
      %s244 = sphi 0, %s230
      %s248 = sphi 0, %s248
      %s250 = sphi 0, %s248
      %s251 = sphi 0, %s250
      %s265 = sphi 0, %s251
      %s269 = sphi 0, %s269
      %s271 = sphi 0, %s269
      %s272 = sphi 0, %s271
      %s286 = sphi 0, %s272
      %s292 = sphi 0, %s294
      %s295 = sphi 0, %s292
      %s296 = sphi 0, %s295
      %s312 = sphi 0, %s296
    $region4: #{forward.3} parent=1 // loop_header_branch
      %28 = sbr.rel (%p26) target = $region8
    $region5: #{forward.3} parent=1 // loop_body
      %s30 = ssub.s32 %s25, 1
      %s31 = ssub.s32 %s25, 2
      %s32 = sadd.s32 %s25, 1
      %s33 = ssub.s32 %s25, %s32
      %p34 = scmp.eq.s32.totalorder %s33, 0
      %s36 = sadd.s32 %s35, 1
      %s37 = scalar_select %p34, %s35, %s36
      %p40 = pneg %p34
      %p41 = scmp.eq.s32.totalorder %s25, 1
      %p42 = por %p40, %p41
      %p43 = scmp.ne.s32.totalorder %s35, %s38
      %p44 = scmp.eq.s32.totalorder %s25, 0
      %p45 = por %p43, %p44
      %p46 = scmp.ne.s32.totalorder %s35, %s38
      %p47 = scmp.eq.s32.totalorder %s30, 1
      %p48 = por %p46, %p47
      %p49 = scmp.ne.s32.totalorder %s38, %s39
      %p50 = scmp.eq.s32.totalorder %s30, 0
      %p51 = por %p49, %p50
      %p52 = scmp.ne.s32.totalorder %s38, %s39
      %p53 = scmp.eq.s32.totalorder %s31, 1
      %p54 = por %p52, %p53
      %p56 = scmp.ne.s32.totalorder %s39, %s55
      %p57 = scmp.eq.s32.totalorder %s31, 0
      %p58 = por %p56, %p57
      %s60 = sadd.s32 %s59, 1
      %p63 = scmp.eq.s32.totalorder %s25, 1
      %p64 = scmp.ne.s32.totalorder %s59, %s61
      %p65 = scmp.eq.s32.totalorder %s25, 0
      %p66 = por %p64, %p65
      %p67 = scmp.ne.s32.totalorder %s59, %s61
      %p68 = scmp.eq.s32.totalorder %s30, 1
      %p69 = por %p67, %p68
      %p70 = scmp.ne.s32.totalorder %s61, %s62
      %p71 = scmp.eq.s32.totalorder %s30, 0
      %p72 = por %p70, %p71
      %p73 = scmp.ne.s32.totalorder %s61, %s62
      %p74 = scmp.eq.s32.totalorder %s31, 1
      %p75 = por %p73, %p74
      %p77 = scmp.ne.s32.totalorder %s62, %s76
      %p78 = scmp.eq.s32.totalorder %s31, 0
      %p79 = por %p77, %p78
      %s81 = sadd.s32 %s80, 1
      %p84 = scmp.eq.s32.totalorder %s25, 1
      %p85 = scmp.ne.s32.totalorder %s80, %s82
      %p86 = scmp.eq.s32.totalorder %s25, 0
      %p87 = por %p85, %p86
      %p88 = scmp.ne.s32.totalorder %s80, %s82
      %p89 = scmp.eq.s32.totalorder %s30, 1
      %p90 = por %p88, %p89
      %p91 = scmp.ne.s32.totalorder %s82, %s83
      %p92 = scmp.eq.s32.totalorder %s30, 0
      %p93 = por %p91, %p92
      %p94 = scmp.ne.s32.totalorder %s82, %s83
      %p95 = scmp.eq.s32.totalorder %s31, 1
      %p96 = por %p94, %p95
      %p98 = scmp.ne.s32.totalorder %s83, %s97
      %p99 = scmp.eq.s32.totalorder %s31, 0
      %p100 = por %p98, %p99
      %s102 = sadd.s32 %s101, 1
      %p105 = scmp.eq.s32.totalorder %s25, 1
      %p106 = scmp.ne.s32.totalorder %s101, %s103
      %p107 = scmp.eq.s32.totalorder %s25, 0
      %p108 = por %p106, %p107
      %p109 = scmp.ne.s32.totalorder %s101, %s103
      %p110 = scmp.eq.s32.totalorder %s30, 1
      %p111 = por %p109, %p110
      %p112 = scmp.ne.s32.totalorder %s103, %s104
      %p113 = scmp.eq.s32.totalorder %s30, 0
      %p114 = por %p112, %p113
      %p115 = scmp.ne.s32.totalorder %s103, %s104
      %p116 = scmp.eq.s32.totalorder %s31, 1
      %p117 = por %p115, %p116
      %p119 = scmp.ne.s32.totalorder %s104, %s118
      %p120 = scmp.eq.s32.totalorder %s31, 0
      %p121 = por %p119, %p120
      %s123 = sadd.s32 %s122, 1
      %p126 = scmp.eq.s32.totalorder %s25, 1
      %p127 = scmp.ne.s32.totalorder %s122, %s124
      %p128 = scmp.eq.s32.totalorder %s25, 0
      %p129 = por %p127, %p128
      %p130 = scmp.ne.s32.totalorder %s122, %s124
      %p131 = scmp.eq.s32.totalorder %s30, 1
      %p132 = por %p130, %p131
      %p133 = scmp.ne.s32.totalorder %s124, %s125
      %p134 = scmp.eq.s32.totalorder %s30, 0
      %p135 = por %p133, %p134
      %p136 = scmp.ne.s32.totalorder %s124, %s125
      %p137 = scmp.eq.s32.totalorder %s31, 1
      %p138 = por %p136, %p137
      %p140 = scmp.ne.s32.totalorder %s125, %s139
      %p141 = scmp.eq.s32.totalorder %s31, 0
      %p142 = por %p140, %p141
      %s144 = sadd.s32 %s143, 1
      %p147 = scmp.eq.s32.totalorder %s25, 1
      %p148 = scmp.ne.s32.totalorder %s143, %s145
      %p149 = scmp.eq.s32.totalorder %s25, 0
      %p150 = por %p148, %p149
      %p151 = scmp.ne.s32.totalorder %s143, %s145
      %p152 = scmp.eq.s32.totalorder %s30, 1
      %p153 = por %p151, %p152
      %p154 = scmp.ne.s32.totalorder %s145, %s146
      %p155 = scmp.eq.s32.totalorder %s30, 0
      %p156 = por %p154, %p155
      %p157 = scmp.ne.s32.totalorder %s145, %s146
      %p158 = scmp.eq.s32.totalorder %s31, 1
      %p159 = por %p157, %p158
      %p161 = scmp.ne.s32.totalorder %s146, %s160
      %p162 = scmp.eq.s32.totalorder %s31, 0
      %p163 = por %p161, %p162
      %s165 = sadd.s32 %s164, 1
      %p168 = scmp.eq.s32.totalorder %s25, 1
      %p169 = scmp.ne.s32.totalorder %s164, %s166
      %p170 = scmp.eq.s32.totalorder %s25, 0
      %p171 = por %p169, %p170
      %p172 = scmp.ne.s32.totalorder %s164, %s166
      %p173 = scmp.eq.s32.totalorder %s30, 1
      %p174 = por %p172, %p173
      %p175 = scmp.ne.s32.totalorder %s166, %s167
      %p176 = scmp.eq.s32.totalorder %s30, 0
      %p177 = por %p175, %p176
      %p178 = scmp.ne.s32.totalorder %s166, %s167
      %p179 = scmp.eq.s32.totalorder %s31, 1
      %p180 = por %p178, %p179
      %p182 = scmp.ne.s32.totalorder %s167, %s181
      %p183 = scmp.eq.s32.totalorder %s31, 0
      %p184 = por %p182, %p183
      %s186 = sadd.s32 %s185, 1
      %p189 = scmp.eq.s32.totalorder %s25, 1
      %p190 = scmp.ne.s32.totalorder %s185, %s187
      %p191 = scmp.eq.s32.totalorder %s25, 0
      %p192 = por %p190, %p191
      %p193 = scmp.ne.s32.totalorder %s185, %s187
      %p194 = scmp.eq.s32.totalorder %s30, 1
      %p195 = por %p193, %p194
      %p196 = scmp.ne.s32.totalorder %s187, %s188
      %p197 = scmp.eq.s32.totalorder %s30, 0
      %p198 = por %p196, %p197
      %p199 = scmp.ne.s32.totalorder %s187, %s188
      %p200 = scmp.eq.s32.totalorder %s31, 1
      %p201 = por %p199, %p200
      %p203 = scmp.ne.s32.totalorder %s188, %s202
      %p204 = scmp.eq.s32.totalorder %s31, 0
      %p205 = por %p203, %p204
      %s207 = sadd.s32 %s206, 1
      %p210 = scmp.eq.s32.totalorder %s25, 1
      %p211 = scmp.ne.s32.totalorder %s206, %s208
      %p212 = scmp.eq.s32.totalorder %s25, 0
      %p213 = por %p211, %p212
      %p214 = scmp.ne.s32.totalorder %s206, %s208
      %p215 = scmp.eq.s32.totalorder %s30, 1
      %p216 = por %p214, %p215
      %p217 = scmp.ne.s32.totalorder %s208, %s209
      %p218 = scmp.eq.s32.totalorder %s30, 0
      %p219 = por %p217, %p218
      %p220 = scmp.ne.s32.totalorder %s208, %s209
      %p221 = scmp.eq.s32.totalorder %s31, 1
      %p222 = por %p220, %p221
      %p224 = scmp.ne.s32.totalorder %s209, %s223
      %p225 = scmp.eq.s32.totalorder %s31, 0
      %p226 = por %p224, %p225
      %s228 = sadd.s32 %s227, 1
      %p231 = scmp.eq.s32.totalorder %s25, 1
      %p232 = scmp.ne.s32.totalorder %s227, %s229
      %p233 = scmp.eq.s32.totalorder %s25, 0
      %p234 = por %p232, %p233
      %p235 = scmp.ne.s32.totalorder %s227, %s229
      %p236 = scmp.eq.s32.totalorder %s30, 1
      %p237 = por %p235, %p236
      %p238 = scmp.ne.s32.totalorder %s229, %s230
      %p239 = scmp.eq.s32.totalorder %s30, 0
      %p240 = por %p238, %p239
      %p241 = scmp.ne.s32.totalorder %s229, %s230
      %p242 = scmp.eq.s32.totalorder %s31, 1
      %p243 = por %p241, %p242
      %p245 = scmp.ne.s32.totalorder %s230, %s244
      %p246 = scmp.eq.s32.totalorder %s31, 0
      %p247 = por %p245, %p246
      %s249 = sadd.s32 %s248, 1
      %p252 = scmp.eq.s32.totalorder %s25, 1
      %p253 = scmp.ne.s32.totalorder %s248, %s250
      %p254 = scmp.eq.s32.totalorder %s25, 0
      %p255 = por %p253, %p254
      %p256 = scmp.ne.s32.totalorder %s248, %s250
      %p257 = scmp.eq.s32.totalorder %s30, 1
      %p258 = por %p256, %p257
      %p259 = scmp.ne.s32.totalorder %s250, %s251
      %p260 = scmp.eq.s32.totalorder %s30, 0
      %p261 = por %p259, %p260
      %p262 = scmp.ne.s32.totalorder %s250, %s251
      %p263 = scmp.eq.s32.totalorder %s31, 1
      %p264 = por %p262, %p263
      %p266 = scmp.ne.s32.totalorder %s251, %s265
      %p267 = scmp.eq.s32.totalorder %s31, 0
      %p268 = por %p266, %p267
      %s270 = sadd.s32 %s269, 1
      %p273 = scmp.eq.s32.totalorder %s25, 1
      %p274 = scmp.ne.s32.totalorder %s269, %s271
      %p275 = scmp.eq.s32.totalorder %s25, 0
      %p276 = por %p274, %p275
      %p277 = scmp.ne.s32.totalorder %s269, %s271
      %p278 = scmp.eq.s32.totalorder %s30, 1
      %p279 = por %p277, %p278
      %p280 = scmp.ne.s32.totalorder %s271, %s272
      %p281 = scmp.eq.s32.totalorder %s30, 0
      %p282 = por %p280, %p281
      %p283 = scmp.ne.s32.totalorder %s271, %s272
      %p284 = scmp.eq.s32.totalorder %s31, 1
      %p285 = por %p283, %p284
      %p287 = scmp.ne.s32.totalorder %s272, %s286
      %p288 = scmp.eq.s32.totalorder %s31, 0
      %p289 = por %p287, %p288
      %s290 = ssub.s32 %s25, %s32
      %p291 = scmp.eq.s32.totalorder %s290, 0
      %s293 = sadd.s32 %s292, 1
      %s294 = scalar_select %p291, %s292, %s293
      %p297 = pneg %p291
      %p298 = scmp.eq.s32.totalorder %s25, 1
      %p299 = por %p297, %p298
      %p300 = scmp.ne.s32.totalorder %s292, %s295
      %p301 = scmp.eq.s32.totalorder %s25, 0
      %p302 = por %p300, %p301
      %p303 = scmp.ne.s32.totalorder %s292, %s295
      %p304 = scmp.eq.s32.totalorder %s30, 1
      %p305 = por %p303, %p304
      %p306 = scmp.ne.s32.totalorder %s295, %s296
      %p307 = scmp.eq.s32.totalorder %s30, 0
      %p308 = por %p306, %p307
      %p309 = scmp.ne.s32.totalorder %s295, %s296
      %p310 = scmp.eq.s32.totalorder %s31, 1
      %p311 = por %p309, %p310
      %p313 = scmp.ne.s32.totalorder %s296, %s312
      %p314 = scmp.eq.s32.totalorder %s31, 0
      %p315 = por %p313, %p314
      %p316 = scmp.le.s32.totalorder 1, %s25
      %p317 = scmp.lt.s32.totalorder %s25, 3
      %p318 = pnand %p316, %p317
      %p319 = pneg %p318
      // Predicated region
      $region9: #{forward.3} parent=5 // pred_check
        _
      $region10: #{forward.3} parent=5 // pred_check_branch
        %321 = sbr.rel (%p318) target = $region12
      $region11: #{forward.3} parent=5 // pred_region
        %s322 = ssub.s32 %s25, 1
        // Predicated region
        $region13: #{forward.3} parent=11 // pred_check
          %p323 = pneg %p72
        $region14: #{forward.3} parent=11 // pred_check_branch
          %325 = sbr.rel (%p323) target = $region16
        $region15: #{forward.3} parent=11 // pred_region
          _
        $region16: #{forward.3} parent=11 // pred_fallthru
          _
        // Predicated region
        $region17: #{forward.3} parent=11 // pred_check
          %p326 = pneg %p93
        $region18: #{forward.3} parent=11 // pred_check_branch
          %328 = sbr.rel (%p326) target = $region20
        $region19: #{forward.3} parent=11 // pred_region
          _
        $region20: #{forward.3} parent=11 // pred_fallthru
          _
        // Predicated region
        $region21: #{forward.3} parent=11 // pred_check
          %p329 = pneg %p114
        $region22: #{forward.3} parent=11 // pred_check_branch
          %331 = sbr.rel (%p329) target = $region24
        $region23: #{forward.3} parent=11 // pred_region
          %333 = vsyncadd [#allocation5], 0
          %s334 = sshll.u32 %s3, 4
          %s335 = int_to_ptr.hbm [resolvable:$true] %s334
          %s336 = sshll.u32 [#allocation4], 4
          %s337 = int_to_ptr.vmem [resolvable:$true] %s336
          %342 = dma.hbm_to_vmem [thread:$0]  %s335, 1024, %s337, [#allocation5], 128, 128, 8
        $region24: #{forward.3} parent=11 // pred_fallthru
          _
        // Predicated region
        $region25: #{forward.3} parent=11 // pred_check
          %p343 = pneg %p135
        $region26: #{forward.3} parent=11 // pred_check_branch
          %345 = sbr.rel (%p343) target = $region28
        $region27: #{forward.3} parent=11 // pred_region
          %347 = vsyncadd [#allocation5], 0
          %s349 = sshll.u32 %s4, 4
          %s350 = int_to_ptr.hbm [resolvable:$true] %s349
          %s351 = sshll.u32 [#allocation6], 4
          %s352 = int_to_ptr.vmem [resolvable:$true] %s351
          %354 = dma.hbm_to_vmem [thread:$0]  %s350, 32, %s352, [#allocation5]
        $region28: #{forward.3} parent=11 // pred_fallthru
          _
        // Predicated region
        $region29: #{forward.3} parent=11 // pred_check
          %p355 = pneg %p156
        $region30: #{forward.3} parent=11 // pred_check_branch
          %357 = sbr.rel (%p355) target = $region32
        $region31: #{forward.3} parent=11 // pred_region
          %359 = vsyncadd [#allocation8], 0
          %s361 = sshll.u32 %s5, 4
          %s362 = int_to_ptr.hbm [resolvable:$true] %s361
          %s363 = sshll.u32 [#allocation7], 4
          %s364 = int_to_ptr.vmem [resolvable:$true] %s363
          %366 = dma.hbm_to_vmem [thread:$0]  %s362, 16, %s364, [#allocation8]
        $region32: #{forward.3} parent=11 // pred_fallthru
          _
        // Predicated region
        $region33: #{forward.3} parent=11 // pred_check
          %p367 = pneg %p177
        $region34: #{forward.3} parent=11 // pred_check_branch
          %369 = sbr.rel (%p367) target = $region36
        $region35: #{forward.3} parent=11 // pred_region
          %371 = vsyncadd [#allocation8], 0
          %s373 = sshll.u32 %s6, 4
          %s374 = int_to_ptr.hbm [resolvable:$true] %s373
          %s375 = sshll.u32 [#allocation9], 4
          %s376 = int_to_ptr.vmem [resolvable:$true] %s375
          %378 = dma.hbm_to_vmem [thread:$0]  %s374, 16, %s376, [#allocation8]
        $region36: #{forward.3} parent=11 // pred_fallthru
          _
        // Predicated region
        $region37: #{forward.3} parent=11 // pred_check
          %p379 = pneg %p198
        $region38: #{forward.3} parent=11 // pred_check_branch
          %381 = sbr.rel (%p379) target = $region40
        $region39: #{forward.3} parent=11 // pred_region
          %383 = vsyncadd [#allocation11], 0
          %s385 = sshll.u32 %s7, 4
          %s386 = int_to_ptr.hbm [resolvable:$true] %s385
          %s387 = sshll.u32 [#allocation10], 4
          %s388 = int_to_ptr.vmem [resolvable:$true] %s387
          %390 = dma.hbm_to_vmem [thread:$0]  %s386, 16, %s388, [#allocation11]
        $region40: #{forward.3} parent=11 // pred_fallthru
          _
        // Predicated region
        $region41: #{forward.3} parent=11 // pred_check
          %p391 = pneg %p219
        $region42: #{forward.3} parent=11 // pred_check_branch
          %393 = sbr.rel (%p391) target = $region44
        $region43: #{forward.3} parent=11 // pred_region
          %395 = vsyncadd [#allocation11], 0
          %s396 = sshll.u32 %s8, 4
          %s397 = int_to_ptr.hbm [resolvable:$true] %s396
          %s398 = sshll.u32 [#allocation12], 4
          %s399 = int_to_ptr.vmem [resolvable:$true] %s398
          %404 = dma.hbm_to_vmem [thread:$0]  %s397, 512, %s399, [#allocation11], 64, 64, 4
        $region44: #{forward.3} parent=11 // pred_fallthru
          _
        // Predicated region
        $region45: #{forward.3} parent=11 // pred_check
          %p405 = pneg %p240
        $region46: #{forward.3} parent=11 // pred_check_branch
          %407 = sbr.rel (%p405) target = $region48
        $region47: #{forward.3} parent=11 // pred_region
          %409 = vsyncadd [#allocation14], 0
          %s411 = sshll.u32 %s9, 4
          %s412 = int_to_ptr.hbm [resolvable:$true] %s411
          %s413 = sshll.u32 [#allocation13], 4
          %s414 = int_to_ptr.vmem [resolvable:$true] %s413
          %416 = dma.hbm_to_vmem [thread:$0]  %s412, 16, %s414, [#allocation14]
        $region48: #{forward.3} parent=11 // pred_fallthru
          _
        // Predicated region
        $region49: #{forward.3} parent=11 // pred_check
          %p417 = pneg %p261
        $region50: #{forward.3} parent=11 // pred_check_branch
          %419 = sbr.rel (%p417) target = $region52
        $region51: #{forward.3} parent=11 // pred_region
          _
        $region52: #{forward.3} parent=11 // pred_fallthru
          _
        // Predicated region
        $region53: #{forward.3} parent=11 // pred_check
          %p420 = pneg %p282
        $region54: #{forward.3} parent=11 // pred_check_branch
          %422 = sbr.rel (%p420) target = $region56
        $region55: #{forward.3} parent=11 // pred_region
          _
        $region56: #{forward.3} parent=11 // pred_fallthru
          _
      $region12: #{forward.3} parent=5 // pred_fallthru
        _
      %p423 = scmp.lt.s32.totalorder %s25, 2
      // Predicated region
      $region57: #{forward.3} parent=5 // pred_check
        %p424 = pneg %p423
      $region58: #{forward.3} parent=5 // pred_check_branch
        %426 = sbr.rel (%p424) target = $region60
      $region59: #{forward.3} parent=5 // pred_region
        // Predicated region
        $region61: #{forward.3} parent=59 // pred_check
          %p427 = pneg %p45
        $region62: #{forward.3} parent=59 // pred_check_branch
          %429 = sbr.rel (%p427) target = $region64
        $region63: #{forward.3} parent=59 // pred_region
          %s430 = sand.u32 %s35, 1
          %s431 = scalar_lea.sflag [#allocation3], %s430
          %s432 = sand.u32 %s35, 1
          %s433 = smul.addr %s432, 8
          %s434 = scalar_lea.vmem [#allocation2], %s433
          %436 = vsyncadd %s431, 0
          %s437 = smul.addr %s25, 8
          %s438 = scalar_lea.hbm %s0, %s437
          %s440 = sshll.u32 %s438, 4
          %s441 = int_to_ptr.hbm [resolvable:$true] %s440
          %s442 = sshll.u32 %s434, 4
          %s443 = int_to_ptr.vmem [resolvable:$true] %s442
          %445 = dma.hbm_to_vmem [thread:$0]  %s441, 128, %s443, %s431
        $region64: #{forward.3} parent=59 // pred_fallthru
          _
      $region60: #{forward.3} parent=5 // pred_fallthru
        _
      %p446 = scmp.le.s32.totalorder 1, %s25
      %p447 = scmp.lt.s32.totalorder %s25, 3
      %p448 = pnand %p446, %p447
      %p449 = pneg %p448
      // Predicated region
      $region65: #{forward.3} parent=5 // pred_check
        _
      $region66: #{forward.3} parent=5 // pred_check_branch
        %451 = sbr.rel (%p448) target = $region68
      $region67: #{forward.3} parent=5 // pred_region
        %s452 = ssub.s32 %s25, 1
        %s453 = sand.u32 %s38, 1
        %s454 = scalar_lea.sflag [#allocation3], %s453
        %s455 = sand.u32 %s38, 1
        %s456 = smul.addr %s455, 8
        %s457 = scalar_lea.vmem [#allocation2], %s456
        // Predicated region
        $region69: #{forward.3} parent=67 // pred_check
          %p458 = pneg %p51
        $region70: #{forward.3} parent=67 // pred_check_branch
          %460 = sbr.rel (%p458) target = $region72
        $region71: #{forward.3} parent=67 // pred_region
          %462 = dma.done %s454, 128
        $region72: #{forward.3} parent=67 // pred_fallthru
          _
        // Predicated region
        $region73: #{forward.3} parent=67 // pred_check
          %p463 = pneg %p114
        $region74: #{forward.3} parent=67 // pred_check_branch
          %465 = sbr.rel (%p463) target = $region76
        $region75: #{forward.3} parent=67 // pred_region
          %467 = dma.done [#allocation5], 1024
        $region76: #{forward.3} parent=67 // pred_fallthru
          _
        // Predicated region
        $region77: #{forward.3} parent=67 // pred_check
          %p468 = pneg %p135
        $region78: #{forward.3} parent=67 // pred_check_branch
          %470 = sbr.rel (%p468) target = $region80
        $region79: #{forward.3} parent=67 // pred_region
          %472 = dma.done [#allocation5], 32
        $region80: #{forward.3} parent=67 // pred_fallthru
          _
        // Predicated region
        $region81: #{forward.3} parent=67 // pred_check
          %p473 = pneg %p156
        $region82: #{forward.3} parent=67 // pred_check_branch
          %475 = sbr.rel (%p473) target = $region84
        $region83: #{forward.3} parent=67 // pred_region
          %477 = dma.done [#allocation8], 16
        $region84: #{forward.3} parent=67 // pred_fallthru
          _
        // Predicated region
        $region85: #{forward.3} parent=67 // pred_check
          %p478 = pneg %p177
        $region86: #{forward.3} parent=67 // pred_check_branch
          %480 = sbr.rel (%p478) target = $region88
        $region87: #{forward.3} parent=67 // pred_region
          %482 = dma.done [#allocation8], 16
        $region88: #{forward.3} parent=67 // pred_fallthru
          _
        // Predicated region
        $region89: #{forward.3} parent=67 // pred_check
          %p483 = pneg %p198
        $region90: #{forward.3} parent=67 // pred_check_branch
          %485 = sbr.rel (%p483) target = $region92
        $region91: #{forward.3} parent=67 // pred_region
          %487 = dma.done [#allocation11], 16
        $region92: #{forward.3} parent=67 // pred_fallthru
          _
        // Predicated region
        $region93: #{forward.3} parent=67 // pred_check
          %p488 = pneg %p219
        $region94: #{forward.3} parent=67 // pred_check_branch
          %490 = sbr.rel (%p488) target = $region96
        $region95: #{forward.3} parent=67 // pred_region
          %492 = dma.done [#allocation11], 512
        $region96: #{forward.3} parent=67 // pred_fallthru
          _
        // Predicated region
        $region97: #{forward.3} parent=67 // pred_check
          %p493 = pneg %p240
        $region98: #{forward.3} parent=67 // pred_check_branch
          %495 = sbr.rel (%p493) target = $region100
        $region99: #{forward.3} parent=67 // pred_region
          %497 = dma.done [#allocation14], 16
        $region100: #{forward.3} parent=67 // pred_fallthru
          _
        %s498 = sand.u32 %s38, 1
        %s499 = scalar_lea.sflag [#allocation3], %s498
        %s500 = sand.u32 %s38, 1
        %s501 = smul.addr %s500, 8
        %s502 = scalar_lea.vmem [#allocation2], %s501
        %p503 = pneg %p51
        %p504 = pneg %p48
        %p505 = pneg %p72
        %p506 = pneg %p69
        %p507 = pneg %p93
        %p508 = pneg %p90
        %p509 = pneg %p114
        %p510 = pneg %p111
        %p511 = pneg %p135
        %p512 = pneg %p132
        %p513 = pneg %p156
        %p514 = pneg %p153
        %p515 = pneg %p177
        %p516 = pneg %p174
        %p517 = pneg %p198
        %p518 = pneg %p195
        %p519 = pneg %p219
        %p520 = pneg %p216
        %p521 = pneg %p240
        %p522 = pneg %p237
        %p523 = pneg %p261
        %p524 = pneg %p258
        %p525 = pneg %p282
        %p526 = pneg %p279
        %p527 = pneg %p308
        %p528 = pneg %p305
        %s529 = sand.u32 %s295, 1
        %s530 = sand.u32 %s295, 1
        %s531 = smul.addr %s530, 16
        %s532 = scalar_lea.vmem [#allocation15], %s531
        %v534 = vld [vmem:[%s457] sm:$0xff]
        %v535 = vpack.c.bf16 %v534, %v534
        %v536 = vld [vmem:[%s1] sm:$0xff]
        %v537 = vld [vmem:[%s10] sm:$0xf]
        %v538 = vld [vmem:[%s11] sm:$0x1]
        %v540 = vperm.slane %v538, 0
        %vm542 = vcmask 64512
        %v544 = vsel %vm542, %v535, 0
        %vm546 = vcmask 1043456
        %v548 = vsel %vm546, %v537, 0
        %550 = vmatpush.bf16.msra.mxu0 0
        %551 = vmatpush.bf16.msra.mxu0 0
        %552 = vmatpush.bf16.msra.mxu0 0
        %553 = vmatpush.bf16.msra.mxu0 0
        %554 = vmatpush.bf16.msra.mxu0 0
        %555 = vmatpush.bf16.msra.mxu0 0
        %556 = vmatpush.bf16.msra.mxu0 0
        %557 = vmatpush.bf16.msra.mxu0 %v548
        %558 = vmatmul.bf16.gmra.mxu0 %v544
        %v559 = vpop.f32.mrf.mxu0
        %v560 = vadd.f32 %v540, %v559
        %v561 = vpop.f32.mrf.mxu0
        %562 = vdwg.mxu0
        %v563 = vadd.f32 %v560, %v536
        %564 = vst [vmem:[%s532] sm:$0xff] %v563
        %v565 = vld [vmem:[%s2] sm:$0xff]
        %v566 = vld [vmem:[#allocation6] sm:$0x3]
        %v568 = vperm.slane %v566, 0
        %v569 = vperm.slane %v566, 1
        %v573 = vunpack.c.l.b16 %v565
        %v574 = vunpack.c.h.b16 %v565
        %v575 = vpack.c.b16 %v573, %v573
        %v576 = vpack.c.b16 %v574, %v574
        %v578 = vsel %vm546, %v575, 0
        %v581 = vsel %vm546, %v576, 0
        %583 = vmatpush.bf16.msra.mxu0 0
        %584 = vmatpush.bf16.msra.mxu0 0
        %585 = vmatpush.bf16.msra.mxu0 0
        %586 = vmatpush.bf16.msra.mxu0 0
        %587 = vmatpush.bf16.msra.mxu0 0
        %588 = vmatpush.bf16.msra.mxu0 0
        %589 = vmatpush.bf16.msra.mxu0 0
        %590 = vmatpush.bf16.msra.mxu0 %v578
        %591 = vmatmul.bf16.gmra.mxu0 %v544
        %v592 = vpop.f32.mrf.mxu0
        %v593 = vadd.f32 %v568, %v592
        %v594 = vpop.f32.mrf.mxu0
        %595 = vdwg.mxu0
        %596 = vmatpush.bf16.msra.mxu0 0
        %597 = vmatpush.bf16.msra.mxu0 0
        %598 = vmatpush.bf16.msra.mxu0 0
        %599 = vmatpush.bf16.msra.mxu0 0
        %600 = vmatpush.bf16.msra.mxu0 0
        %601 = vmatpush.bf16.msra.mxu0 0
        %602 = vmatpush.bf16.msra.mxu0 0
        %603 = vmatpush.bf16.msra.mxu0 %v581
        %604 = vmatmul.bf16.gmra.mxu0 %v544
        %v605 = vpop.f32.mrf.mxu0
        %v606 = vadd.f32 %v569, %v605
        %v607 = vpop.f32.mrf.mxu0
        %608 = vdwg.mxu0
        %v609 = vld [vmem:[#allocation4] sm:$0xff]
        %v610 = vld [vmem:[#allocation4 + $0x8] sm:$0xff]
        %v611 = vld [vmem:[#allocation4 + $0x10] sm:$0xff]
        %v612 = vld [vmem:[#allocation4 + $0x18] sm:$0xff]
        %v613 = vld [vmem:[#allocation4 + $0x20] sm:$0xff]
        %v614 = vld [vmem:[#allocation4 + $0x28] sm:$0xff]
        %v615 = vld [vmem:[#allocation4 + $0x30] sm:$0xff]
        %v616 = vld [vmem:[#allocation4 + $0x38] sm:$0xff]
        %v617 = vld [vmem:[#allocation7] sm:$0x1]
        %v626 = vunpack.c.l.b16 %v609
        %v627 = vunpack.c.h.b16 %v609
        %v628 = vunpack.c.l.b16 %v610
        %v629 = vunpack.c.h.b16 %v610
        %v630 = vunpack.c.l.b16 %v611
        %v631 = vunpack.c.h.b16 %v611
        %v632 = vunpack.c.l.b16 %v612
        %v633 = vunpack.c.h.b16 %v612
        %v634 = vunpack.c.l.b16 %v613
        %v635 = vunpack.c.h.b16 %v613
        %v636 = vunpack.c.l.b16 %v614
        %v637 = vunpack.c.h.b16 %v614
        %v638 = vunpack.c.l.b16 %v615
        %v639 = vunpack.c.h.b16 %v615
        %v640 = vunpack.c.l.b16 %v616
        %v641 = vunpack.c.h.b16 %v616
        %v642 = vpack.c.b16 %v628, %v626
        %v643 = vpack.c.b16 %v629, %v627
        %v644 = vpack.c.b16 %v632, %v630
        %v645 = vpack.c.b16 %v633, %v631
        %v646 = vpack.c.b16 %v636, %v634
        %v647 = vpack.c.b16 %v637, %v635
        %v648 = vpack.c.b16 %v640, %v638
        %v649 = vpack.c.b16 %v641, %v639
        %vm658 = vcmask 523264
        %v660 = vsel %vm658, 0, 0
        %662 = vmatpush.bf16.msra.mxu0 0
        %663 = vmatpush.bf16.msra.mxu0 0
        %664 = vmatpush.bf16.msra.mxu0 0
        %665 = vmatpush.bf16.msra.mxu0 0
        %666 = vmatpush.bf16.msra.mxu0 %v648
        %667 = vmatpush.bf16.msra.mxu0 %v646
        %668 = vmatpush.bf16.msra.mxu0 %v644
        %669 = vmatpush.bf16.msra.mxu0 %v642
        %670 = vmatmul.bf16.gmra.mxu0 %v660
        %v671 = vpop.f32.mrf.mxu0
        %v672 = vadd.f32 0.0, %v671
        %v673 = vpop.f32.mrf.mxu0
        %674 = vdwg.mxu0
        %675 = vmatpush.bf16.msra.mxu0 0
        %676 = vmatpush.bf16.msra.mxu0 0
        %677 = vmatpush.bf16.msra.mxu0 0
        %678 = vmatpush.bf16.msra.mxu0 0
        %679 = vmatpush.bf16.msra.mxu0 %v649
        %680 = vmatpush.bf16.msra.mxu0 %v647
        %681 = vmatpush.bf16.msra.mxu0 %v645
        %682 = vmatpush.bf16.msra.mxu0 %v643
        %683 = vmatmul.bf16.gmra.mxu0 %v660
        %v684 = vpop.f32.mrf.mxu0
        %v685 = vadd.f32 0.0, %v684
        %v686 = vpop.f32.mrf.mxu0
        %687 = vdwg.mxu0
        %v688 = vadd.f32 %v593, %v672
        %v689 = vxor.u32 %v688, 2147483648
        %v690 = vmul.f32 %v689, 1.442695
        %v691 = vpow.pop %v690
        %v692 = vadd.f32 %v691, 1.0
        %v693 = vrcp.pop %v692
        %v694 = vmul.f32 %v692, %v693
        %v695 = vsub.f32 1.0, %v694
        %v696 = vmul.f32 %v693, %v695
        %v697 = vadd.f32 %v693, %v696
        %vm698 = vweird.f32 %v692
        %vm699 = vweird.f32 %v693
        %vm700 = vmor %vm698, %vm699
        %v701 = vsel %vm700, %v693, %v697
        %v702 = vand.u32 2147483647, %v692
        %vm703 = vcmp.eq.f32.partialorder %v702, 8.507059e+37
        %v704 = vand.u32 %v692, 2147483648
        %v705 = vor.u32 1.1754944e-38, %v704
        %v706 = vsel %vm703, %v705, %v701
        %v707 = vmul.f32 1.0, %v706
        %v708 = vadd.f32 %v685, %v617
        %v709 = vmul.f32 %v707, %v708
        %v710 = vadd.f32 %v606, %v709
        %v711 = vtanh.pop %v710
        %v712 = vsub.f32 1.0, %v707
        %714 = vrot.lane.b32.xlu0 %v711, 64
        %v715 = vpop.permute.xlu0 %714
        %v717 = vmul.f32 %v712, %v715
        %v718 = vmul.f32 %v707, 0.0
        %v719 = vadd.f32 %v717, %v718
        %v720 = vpack.c.bf16 %v719, %v719
        %722 = vrot.lane.b32.xlu0 %v720, 64
        %v723 = vpop.permute.xlu0 %722
        %v725 = vsel %vm658, %v723, 0
        %727 = vmatpush.bf16.msra.mxu0 0
        %728 = vmatpush.bf16.msra.mxu0 0
        %729 = vmatpush.bf16.msra.mxu0 0
        %730 = vmatpush.bf16.msra.mxu0 0
        %731 = vmatpush.bf16.msra.mxu0 %v648
        %732 = vmatpush.bf16.msra.mxu0 %v646
        %733 = vmatpush.bf16.msra.mxu0 %v644
        %734 = vmatpush.bf16.msra.mxu0 %v642
        %735 = vmatmul.bf16.gmra.mxu0 %v725
        %v736 = vpop.f32.mrf.mxu0
        %v737 = vadd.f32 0.0, %v736
        %v738 = vpop.f32.mrf.mxu0
        %739 = vdwg.mxu0
        %740 = vmatpush.bf16.msra.mxu0 0
        %741 = vmatpush.bf16.msra.mxu0 0
        %742 = vmatpush.bf16.msra.mxu0 0
        %743 = vmatpush.bf16.msra.mxu0 0
        %744 = vmatpush.bf16.msra.mxu0 %v649
        %745 = vmatpush.bf16.msra.mxu0 %v647
        %746 = vmatpush.bf16.msra.mxu0 %v645
        %747 = vmatpush.bf16.msra.mxu0 %v643
        %748 = vmatmul.bf16.gmra.mxu0 %v725
        %v749 = vpop.f32.mrf.mxu0
        %v750 = vadd.f32 0.0, %v749
        %v751 = vpop.f32.mrf.mxu0
        %752 = vdwg.mxu0
        %v754 = vrot.slane %v737, 7
        %v756 = vadd.f32 %v593, %v754
        %v757 = vxor.u32 %v756, 2147483648
        %v758 = vmul.f32 %v757, 1.442695
        %v759 = vpow.pop %v758
        %v760 = vadd.f32 %v759, 1.0
        %v761 = vrcp.pop %v760
        %v762 = vmul.f32 %v760, %v761
        %v763 = vsub.f32 1.0, %v762
        %v764 = vmul.f32 %v761, %v763
        %v765 = vadd.f32 %v761, %v764
        %vm766 = vweird.f32 %v760
        %vm767 = vweird.f32 %v761
        %vm768 = vmor %vm766, %vm767
        %v769 = vsel %vm768, %v761, %v765
        %v770 = vand.u32 2147483647, %v760
        %vm771 = vcmp.eq.f32.partialorder %v770, 8.507059e+37
        %v772 = vand.u32 %v760, 2147483648
        %v773 = vor.u32 1.1754944e-38, %v772
        %v774 = vsel %vm771, %v773, %v769
        %v775 = vmul.f32 1.0, %v774
        %v776 = vadd.f32 %v750, %v617
        %v778 = vrot.slane %v776, 7
        %v780 = vmul.f32 %v775, %v778
        %v781 = vadd.f32 %v606, %v780
        %v782 = vtanh.pop %v781
        %v783 = vsub.f32 1.0, %v775
        %785 = vrot.lane.b32.xlu0 %v782, 64
        %v786 = vpop.permute.xlu0 %785
        %v788 = vmul.f32 %v783, %v786
        %v790 = vrot.slane %v719, 7
        %v792 = vmul.f32 %v775, %v790
        %v793 = vadd.f32 %v788, %v792
        %v794 = vpack.c.bf16 %v793, %v793
        %v796 = vshrl.u32 %v794, 16
        %798 = vrot.lane.b32.xlu0 %v796, 64
        %v799 = vpop.permute.xlu0 %798
        %v801 = vsel %vm658, %v799, 0
        %803 = vmatpush.bf16.msra.mxu0 0
        %804 = vmatpush.bf16.msra.mxu0 0
        %805 = vmatpush.bf16.msra.mxu0 0
        %806 = vmatpush.bf16.msra.mxu0 0
        %807 = vmatpush.bf16.msra.mxu0 %v648
        %808 = vmatpush.bf16.msra.mxu0 %v646
        %809 = vmatpush.bf16.msra.mxu0 %v644
        %810 = vmatpush.bf16.msra.mxu0 %v642
        %811 = vmatmul.bf16.gmra.mxu0 %v801
        %v812 = vpop.f32.mrf.mxu0
        %v813 = vadd.f32 0.0, %v812
        %v814 = vpop.f32.mrf.mxu0
        %815 = vdwg.mxu0
        %816 = vmatpush.bf16.msra.mxu0 0
        %817 = vmatpush.bf16.msra.mxu0 0
        %818 = vmatpush.bf16.msra.mxu0 0
        %819 = vmatpush.bf16.msra.mxu0 0
        %820 = vmatpush.bf16.msra.mxu0 %v649
        %821 = vmatpush.bf16.msra.mxu0 %v647
        %822 = vmatpush.bf16.msra.mxu0 %v645
        %823 = vmatpush.bf16.msra.mxu0 %v643
        %824 = vmatmul.bf16.gmra.mxu0 %v801
        %v825 = vpop.f32.mrf.mxu0
        %v826 = vadd.f32 0.0, %v825
        %v827 = vpop.f32.mrf.mxu0
        %828 = vdwg.mxu0
        %v830 = vrot.slane %v813, 6
        %v832 = vadd.f32 %v593, %v830
        %v833 = vxor.u32 %v832, 2147483648
        %v834 = vmul.f32 %v833, 1.442695
        %v835 = vpow.pop %v834
        %v836 = vadd.f32 %v835, 1.0
        %v837 = vrcp.pop %v836
        %v838 = vmul.f32 %v836, %v837
        %v839 = vsub.f32 1.0, %v838
        %v840 = vmul.f32 %v837, %v839
        %v841 = vadd.f32 %v837, %v840
        %vm842 = vweird.f32 %v836
        %vm843 = vweird.f32 %v837
        %vm844 = vmor %vm842, %vm843
        %v845 = vsel %vm844, %v837, %v841
        %v846 = vand.u32 2147483647, %v836
        %vm847 = vcmp.eq.f32.partialorder %v846, 8.507059e+37
        %v848 = vand.u32 %v836, 2147483648
        %v849 = vor.u32 1.1754944e-38, %v848
        %v850 = vsel %vm847, %v849, %v845
        %v851 = vmul.f32 1.0, %v850
        %v852 = vadd.f32 %v826, %v617
        %v854 = vrot.slane %v852, 6
        %v856 = vmul.f32 %v851, %v854
        %v857 = vadd.f32 %v606, %v856
        %v858 = vtanh.pop %v857
        %v859 = vsub.f32 1.0, %v851
        %861 = vrot.lane.b32.xlu0 %v858, 64
        %v862 = vpop.permute.xlu0 %861
        %v864 = vmul.f32 %v859, %v862
        %v866 = vrot.slane %v793, 7
        %v868 = vmul.f32 %v851, %v866
        %v869 = vadd.f32 %v864, %v868
        %v870 = vpack.c.bf16 %v869, %v869
        %v872 = vrot.slane %v870, 1
        %873 = vrot.lane.b32.xlu0 %v872, 64
        %v874 = vpop.permute.xlu0 %873
        %v876 = vsel %vm658, %v874, 0
        %878 = vmatpush.bf16.msra.mxu0 0
        %879 = vmatpush.bf16.msra.mxu0 0
        %880 = vmatpush.bf16.msra.mxu0 0
        %881 = vmatpush.bf16.msra.mxu0 0
        %882 = vmatpush.bf16.msra.mxu0 %v648
        %883 = vmatpush.bf16.msra.mxu0 %v646
        %884 = vmatpush.bf16.msra.mxu0 %v644
        %885 = vmatpush.bf16.msra.mxu0 %v642
        %886 = vmatmul.bf16.gmra.mxu0 %v876
        %v887 = vpop.f32.mrf.mxu0
        %v888 = vadd.f32 0.0, %v887
        %v889 = vpop.f32.mrf.mxu0
        %890 = vdwg.mxu0
        %891 = vmatpush.bf16.msra.mxu0 0
        %892 = vmatpush.bf16.msra.mxu0 0
        %893 = vmatpush.bf16.msra.mxu0 0
        %894 = vmatpush.bf16.msra.mxu0 0
        %895 = vmatpush.bf16.msra.mxu0 %v649
        %896 = vmatpush.bf16.msra.mxu0 %v647
        %897 = vmatpush.bf16.msra.mxu0 %v645
        %898 = vmatpush.bf16.msra.mxu0 %v643
        %899 = vmatmul.bf16.gmra.mxu0 %v876
        %v900 = vpop.f32.mrf.mxu0
        %v901 = vadd.f32 0.0, %v900
        %v902 = vpop.f32.mrf.mxu0
        %903 = vdwg.mxu0
        %v905 = vrot.slane %v888, 5
        %v907 = vadd.f32 %v593, %v905
        %v908 = vxor.u32 %v907, 2147483648
        %v909 = vmul.f32 %v908, 1.442695
        %v910 = vpow.pop %v909
        %v911 = vadd.f32 %v910, 1.0
        %v912 = vrcp.pop %v911
        %v913 = vmul.f32 %v911, %v912
        %v914 = vsub.f32 1.0, %v913
        %v915 = vmul.f32 %v912, %v914
        %v916 = vadd.f32 %v912, %v915
        %vm917 = vweird.f32 %v911
        %vm918 = vweird.f32 %v912
        %vm919 = vmor %vm917, %vm918
        %v920 = vsel %vm919, %v912, %v916
        %v921 = vand.u32 2147483647, %v911
        %vm922 = vcmp.eq.f32.partialorder %v921, 8.507059e+37
        %v923 = vand.u32 %v911, 2147483648
        %v924 = vor.u32 1.1754944e-38, %v923
        %v925 = vsel %vm922, %v924, %v920
        %v926 = vmul.f32 1.0, %v925
        %v927 = vadd.f32 %v901, %v617
        %v929 = vrot.slane %v927, 5
        %v931 = vmul.f32 %v926, %v929
        %v932 = vadd.f32 %v606, %v931
        %v933 = vtanh.pop %v932
        %v934 = vsub.f32 1.0, %v926
        %936 = vrot.lane.b32.xlu0 %v933, 64
        %v937 = vpop.permute.xlu0 %936
        %v939 = vmul.f32 %v934, %v937
        %v941 = vrot.slane %v869, 7
        %v943 = vmul.f32 %v926, %v941
        %v944 = vadd.f32 %v939, %v943
        %v945 = vpack.c.bf16 %v944, %v944
        %v947 = vshrl.u32 %v945, 16
        %v949 = vrot.slane %v947, 1
        %950 = vrot.lane.b32.xlu0 %v949, 64
        %v951 = vpop.permute.xlu0 %950
        %v953 = vsel %vm658, %v951, 0
        %955 = vmatpush.bf16.msra.mxu0 0
        %956 = vmatpush.bf16.msra.mxu0 0
        %957 = vmatpush.bf16.msra.mxu0 0
        %958 = vmatpush.bf16.msra.mxu0 0
        %959 = vmatpush.bf16.msra.mxu0 %v648
        %960 = vmatpush.bf16.msra.mxu0 %v646
        %961 = vmatpush.bf16.msra.mxu0 %v644
        %962 = vmatpush.bf16.msra.mxu0 %v642
        %963 = vmatmul.bf16.gmra.mxu0 %v953
        %v964 = vpop.f32.mrf.mxu0
        %v965 = vadd.f32 0.0, %v964
        %v966 = vpop.f32.mrf.mxu0
        %967 = vdwg.mxu0
        %968 = vmatpush.bf16.msra.mxu0 0
        %969 = vmatpush.bf16.msra.mxu0 0
        %970 = vmatpush.bf16.msra.mxu0 0
        %971 = vmatpush.bf16.msra.mxu0 0
        %972 = vmatpush.bf16.msra.mxu0 %v649
        %973 = vmatpush.bf16.msra.mxu0 %v647
        %974 = vmatpush.bf16.msra.mxu0 %v645
        %975 = vmatpush.bf16.msra.mxu0 %v643
        %976 = vmatmul.bf16.gmra.mxu0 %v953
        %v977 = vpop.f32.mrf.mxu0
        %v978 = vadd.f32 0.0, %v977
        %v979 = vpop.f32.mrf.mxu0
        %980 = vdwg.mxu0
        %v982 = vrot.slane %v965, 4
        %v984 = vadd.f32 %v593, %v982
        %v985 = vxor.u32 %v984, 2147483648
        %v986 = vmul.f32 %v985, 1.442695
        %v987 = vpow.pop %v986
        %v988 = vadd.f32 %v987, 1.0
        %v989 = vrcp.pop %v988
        %v990 = vmul.f32 %v988, %v989
        %v991 = vsub.f32 1.0, %v990
        %v992 = vmul.f32 %v989, %v991
        %v993 = vadd.f32 %v989, %v992
        %vm994 = vweird.f32 %v988
        %vm995 = vweird.f32 %v989
        %vm996 = vmor %vm994, %vm995
        %v997 = vsel %vm996, %v989, %v993
        %v998 = vand.u32 2147483647, %v988
        %vm999 = vcmp.eq.f32.partialorder %v998, 8.507059e+37
        %v1000 = vand.u32 %v988, 2147483648
        %v1001 = vor.u32 1.1754944e-38, %v1000
        %v1002 = vsel %vm999, %v1001, %v997
        %v1003 = vmul.f32 1.0, %v1002
        %v1004 = vadd.f32 %v978, %v617
        %v1006 = vrot.slane %v1004, 4
        %v1008 = vmul.f32 %v1003, %v1006
        %v1009 = vadd.f32 %v606, %v1008
        %v1010 = vtanh.pop %v1009
        %v1011 = vsub.f32 1.0, %v1003
        %1013 = vrot.lane.b32.xlu0 %v1010, 64
        %v1014 = vpop.permute.xlu0 %1013
        %v1016 = vmul.f32 %v1011, %v1014
        %v1018 = vrot.slane %v944, 7
        %v1020 = vmul.f32 %v1003, %v1018
        %v1021 = vadd.f32 %v1016, %v1020
        %v1022 = vpack.c.bf16 %v1021, %v1021
        %v1024 = vrot.slane %v1022, 2
        %1025 = vrot.lane.b32.xlu0 %v1024, 64
        %v1026 = vpop.permute.xlu0 %1025
        %v1028 = vsel %vm658, %v1026, 0
        %1030 = vmatpush.bf16.msra.mxu0 0
        %1031 = vmatpush.bf16.msra.mxu0 0
        %1032 = vmatpush.bf16.msra.mxu0 0
        %1033 = vmatpush.bf16.msra.mxu0 0
        %1034 = vmatpush.bf16.msra.mxu0 %v648
        %1035 = vmatpush.bf16.msra.mxu0 %v646
        %1036 = vmatpush.bf16.msra.mxu0 %v644
        %1037 = vmatpush.bf16.msra.mxu0 %v642
        %1038 = vmatmul.bf16.gmra.mxu0 %v1028
        %v1039 = vpop.f32.mrf.mxu0
        %v1040 = vadd.f32 0.0, %v1039
        %v1041 = vpop.f32.mrf.mxu0
        %1042 = vdwg.mxu0
        %1043 = vmatpush.bf16.msra.mxu0 0
        %1044 = vmatpush.bf16.msra.mxu0 0
        %1045 = vmatpush.bf16.msra.mxu0 0
        %1046 = vmatpush.bf16.msra.mxu0 0
        %1047 = vmatpush.bf16.msra.mxu0 %v649
        %1048 = vmatpush.bf16.msra.mxu0 %v647
        %1049 = vmatpush.bf16.msra.mxu0 %v645
        %1050 = vmatpush.bf16.msra.mxu0 %v643
        %1051 = vmatmul.bf16.gmra.mxu0 %v1028
        %v1052 = vpop.f32.mrf.mxu0
        %v1053 = vadd.f32 0.0, %v1052
        %v1054 = vpop.f32.mrf.mxu0
        %1055 = vdwg.mxu0
        %v1057 = vrot.slane %v1040, 3
        %v1059 = vadd.f32 %v593, %v1057
        %v1060 = vxor.u32 %v1059, 2147483648
        %v1061 = vmul.f32 %v1060, 1.442695
        %v1062 = vpow.pop %v1061
        %v1063 = vadd.f32 %v1062, 1.0
        %v1064 = vrcp.pop %v1063
        %v1065 = vmul.f32 %v1063, %v1064
        %v1066 = vsub.f32 1.0, %v1065
        %v1067 = vmul.f32 %v1064, %v1066
        %v1068 = vadd.f32 %v1064, %v1067
        %vm1069 = vweird.f32 %v1063
        %vm1070 = vweird.f32 %v1064
        %vm1071 = vmor %vm1069, %vm1070
        %v1072 = vsel %vm1071, %v1064, %v1068
        %v1073 = vand.u32 2147483647, %v1063
        %vm1074 = vcmp.eq.f32.partialorder %v1073, 8.507059e+37
        %v1075 = vand.u32 %v1063, 2147483648
        %v1076 = vor.u32 1.1754944e-38, %v1075
        %v1077 = vsel %vm1074, %v1076, %v1072
        %v1078 = vmul.f32 1.0, %v1077
        %v1079 = vadd.f32 %v1053, %v617
        %v1081 = vrot.slane %v1079, 3
        %v1083 = vmul.f32 %v1078, %v1081
        %v1084 = vadd.f32 %v606, %v1083
        %v1085 = vtanh.pop %v1084
        %v1086 = vsub.f32 1.0, %v1078
        %1088 = vrot.lane.b32.xlu0 %v1085, 64
        %v1089 = vpop.permute.xlu0 %1088
        %v1091 = vmul.f32 %v1086, %v1089
        %v1093 = vrot.slane %v1021, 7
        %v1095 = vmul.f32 %v1078, %v1093
        %v1096 = vadd.f32 %v1091, %v1095
        %v1097 = vpack.c.bf16 %v1096, %v1096
        %v1099 = vshrl.u32 %v1097, 16
        %v1101 = vrot.slane %v1099, 2
        %1102 = vrot.lane.b32.xlu0 %v1101, 64
        %v1103 = vpop.permute.xlu0 %1102
        %v1105 = vsel %vm658, %v1103, 0
        %1107 = vmatpush.bf16.msra.mxu0 0
        %1108 = vmatpush.bf16.msra.mxu0 0
        %1109 = vmatpush.bf16.msra.mxu0 0
        %1110 = vmatpush.bf16.msra.mxu0 0
        %1111 = vmatpush.bf16.msra.mxu0 %v648
        %1112 = vmatpush.bf16.msra.mxu0 %v646
        %1113 = vmatpush.bf16.msra.mxu0 %v644
        %1114 = vmatpush.bf16.msra.mxu0 %v642
        %1115 = vmatmul.bf16.gmra.mxu0 %v1105
        %v1116 = vpop.f32.mrf.mxu0
        %v1117 = vadd.f32 0.0, %v1116
        %v1118 = vpop.f32.mrf.mxu0
        %1119 = vdwg.mxu0
        %1120 = vmatpush.bf16.msra.mxu0 0
        %1121 = vmatpush.bf16.msra.mxu0 0
        %1122 = vmatpush.bf16.msra.mxu0 0
        %1123 = vmatpush.bf16.msra.mxu0 0
        %1124 = vmatpush.bf16.msra.mxu0 %v649
        %1125 = vmatpush.bf16.msra.mxu0 %v647
        %1126 = vmatpush.bf16.msra.mxu0 %v645
        %1127 = vmatpush.bf16.msra.mxu0 %v643
        %1128 = vmatmul.bf16.gmra.mxu0 %v1105
        %v1129 = vpop.f32.mrf.mxu0
        %v1130 = vadd.f32 0.0, %v1129
        %v1131 = vpop.f32.mrf.mxu0
        %1132 = vdwg.mxu0
        %v1134 = vrot.slane %v1117, 2
        %v1136 = vadd.f32 %v593, %v1134
        %v1137 = vxor.u32 %v1136, 2147483648
        %v1138 = vmul.f32 %v1137, 1.442695
        %v1139 = vpow.pop %v1138
        %v1140 = vadd.f32 %v1139, 1.0
        %v1141 = vrcp.pop %v1140
        %v1142 = vmul.f32 %v1140, %v1141
        %v1143 = vsub.f32 1.0, %v1142
        %v1144 = vmul.f32 %v1141, %v1143
        %v1145 = vadd.f32 %v1141, %v1144
        %vm1146 = vweird.f32 %v1140
        %vm1147 = vweird.f32 %v1141
        %vm1148 = vmor %vm1146, %vm1147
        %v1149 = vsel %vm1148, %v1141, %v1145
        %v1150 = vand.u32 2147483647, %v1140
        %vm1151 = vcmp.eq.f32.partialorder %v1150, 8.507059e+37
        %v1152 = vand.u32 %v1140, 2147483648
        %v1153 = vor.u32 1.1754944e-38, %v1152
        %v1154 = vsel %vm1151, %v1153, %v1149
        %v1155 = vmul.f32 1.0, %v1154
        %v1156 = vadd.f32 %v1130, %v617
        %v1158 = vrot.slane %v1156, 2
        %v1160 = vmul.f32 %v1155, %v1158
        %v1161 = vadd.f32 %v606, %v1160
        %v1162 = vtanh.pop %v1161
        %v1163 = vsub.f32 1.0, %v1155
        %1165 = vrot.lane.b32.xlu0 %v1162, 64
        %v1166 = vpop.permute.xlu0 %1165
        %v1168 = vmul.f32 %v1163, %v1166
        %v1170 = vrot.slane %v1096, 7
        %v1172 = vmul.f32 %v1155, %v1170
        %v1173 = vadd.f32 %v1168, %v1172
        %v1174 = vpack.c.bf16 %v1173, %v1173
        %v1176 = vrot.slane %v1174, 3
        %1177 = vrot.lane.b32.xlu0 %v1176, 64
        %v1178 = vpop.permute.xlu0 %1177
        %v1180 = vsel %vm658, %v1178, 0
        %1182 = vmatpush.bf16.msra.mxu0 0
        %1183 = vmatpush.bf16.msra.mxu0 0
        %1184 = vmatpush.bf16.msra.mxu0 0
        %1185 = vmatpush.bf16.msra.mxu0 0
        %1186 = vmatpush.bf16.msra.mxu0 %v648
        %1187 = vmatpush.bf16.msra.mxu0 %v646
        %1188 = vmatpush.bf16.msra.mxu0 %v644
        %1189 = vmatpush.bf16.msra.mxu0 %v642
        %1190 = vmatmul.bf16.gmra.mxu0 %v1180
        %v1191 = vpop.f32.mrf.mxu0
        %v1192 = vadd.f32 0.0, %v1191
        %v1193 = vpop.f32.mrf.mxu0
        %1194 = vdwg.mxu0
        %1195 = vmatpush.bf16.msra.mxu0 0
        %1196 = vmatpush.bf16.msra.mxu0 0
        %1197 = vmatpush.bf16.msra.mxu0 0
        %1198 = vmatpush.bf16.msra.mxu0 0
        %1199 = vmatpush.bf16.msra.mxu0 %v649
        %1200 = vmatpush.bf16.msra.mxu0 %v647
        %1201 = vmatpush.bf16.msra.mxu0 %v645
        %1202 = vmatpush.bf16.msra.mxu0 %v643
        %1203 = vmatmul.bf16.gmra.mxu0 %v1180
        %v1204 = vpop.f32.mrf.mxu0
        %v1205 = vadd.f32 0.0, %v1204
        %v1206 = vpop.f32.mrf.mxu0
        %1207 = vdwg.mxu0
        %v1209 = vrot.slane %v1192, 1
        %v1211 = vadd.f32 %v593, %v1209
        %v1212 = vxor.u32 %v1211, 2147483648
        %v1213 = vmul.f32 %v1212, 1.442695
        %v1214 = vpow.pop %v1213
        %v1215 = vadd.f32 %v1214, 1.0
        %v1216 = vrcp.pop %v1215
        %v1217 = vmul.f32 %v1215, %v1216
        %v1218 = vsub.f32 1.0, %v1217
        %v1219 = vmul.f32 %v1216, %v1218
        %v1220 = vadd.f32 %v1216, %v1219
        %vm1221 = vweird.f32 %v1215
        %vm1222 = vweird.f32 %v1216
        %vm1223 = vmor %vm1221, %vm1222
        %v1224 = vsel %vm1223, %v1216, %v1220
        %v1225 = vand.u32 2147483647, %v1215
        %vm1226 = vcmp.eq.f32.partialorder %v1225, 8.507059e+37
        %v1227 = vand.u32 %v1215, 2147483648
        %v1228 = vor.u32 1.1754944e-38, %v1227
        %v1229 = vsel %vm1226, %v1228, %v1224
        %v1230 = vmul.f32 1.0, %v1229
        %v1231 = vadd.f32 %v1205, %v617
        %v1233 = vrot.slane %v1231, 1
        %v1235 = vmul.f32 %v1230, %v1233
        %v1236 = vadd.f32 %v606, %v1235
        %v1237 = vtanh.pop %v1236
        %v1238 = vsub.f32 1.0, %v1230
        %1240 = vrot.lane.b32.xlu0 %v1237, 64
        %v1241 = vpop.permute.xlu0 %1240
        %v1243 = vmul.f32 %v1238, %v1241
        %v1245 = vrot.slane %v1173, 7
        %v1247 = vmul.f32 %v1230, %v1245
        %v1248 = vadd.f32 %v1243, %v1247
        %vm1249 = vcmask 1040384
        %v1250 = vsel %vm1249, %v719, %v793
        %vm1251 = vcmask 1041408
        %v1252 = vsel %vm1251, %v1250, %v869
        %vm1253 = vcmask 1042432
        %v1254 = vsel %vm1253, %v1252, %v944
        %v1255 = vsel %vm546, %v1254, %v1021
        %vm1256 = vcmask 1044480
        %v1257 = vsel %vm1256, %v1255, %v1096
        %vm1258 = vcmask 1045504
        %v1259 = vsel %vm1258, %v1257, %v1173
        %vm1260 = vcmask 1046528
        %v1261 = vsel %vm1260, %v1259, %v1248
        %v1262 = vld [vmem:[#allocation9] sm:$0x1]
        %v1263 = vld [vmem:[#allocation10] sm:$0x1]
        %1265 = vrot.lane.b32.xlu0 %v1261, 64
        %v1266 = vpop.permute.xlu0 %1265
        %v1268 = vsel %vm658, %v1266, 0.0
        %1269 = vadd.xlane.f32.xlu0 %v1268
        %v1270 = vpop.xlane.xlu0 %1269
        %v1271 = vrcp.pop 64.0
        %v1272 = vmul.f32 64.0, %v1271
        %v1273 = vsub.f32 1.0, %v1272
        %v1274 = vmul.f32 %v1271, %v1273
        %v1275 = vadd.f32 %v1271, %v1274
        %vm1276 = vweird.f32 %v1271
        %v1277 = vsel %vm1276, %v1271, %v1275
        %v1278 = vmul.f32 %v1270, %v1277
        %v1279 = vsub.f32 %v1261, %v1278
        %v1280 = vmul.f32 %v1279, %v1279
        %1282 = vrot.lane.b32.xlu0 %v1280, 64
        %v1283 = vpop.permute.xlu0 %1282
        %v1285 = vsel %vm658, %v1283, 0.0
        %1286 = vadd.xlane.f32.xlu0 %v1285
        %v1287 = vpop.xlane.xlu0 %1286
        %v1288 = vmul.f32 %v1287, %v1277
        %v1289 = vadd.f32 %v1288, 1e-05
        %v1290 = vrsqrt.pop %v1289
        %v1291 = vmul.f32 %v1290, %v1289
        %v1292 = vmul.f32 %v1291, %v1290
        %v1293 = vmul.f32 0.5, %v1292
        %v1294 = vsub.f32 1.5, %v1293
        %v1295 = vmul.f32 %v1290, %v1294
        %vm1296 = vweird.f32 %v1289
        %vm1297 = vweird.f32 %v1290
        %vm1298 = vmor %vm1296, %vm1297
        %v1299 = vsel %vm1298, %v1290, %v1295
        %v1300 = vmul.f32 %v1279, %v1299
        %v1302 = vperm.slane %v1262, 0
        %1303 = vrot.lane.b32.xlu0 %v1302, 64
        %v1304 = vpop.permute.xlu0 %1303
        %v1306 = vmul.f32 %v1300, %v1304
        %v1308 = vperm.slane %v1263, 0
        %1309 = vrot.lane.b32.xlu0 %v1308, 64
        %v1310 = vpop.permute.xlu0 %1309
        %v1312 = vadd.f32 %v1306, %v1310
        %v1313 = vpack.c.bf16 %v1312, %v1312
        %v1314 = vld [vmem:[#allocation12] sm:$0xf]
        %v1315 = vld [vmem:[#allocation12 + $0x4] sm:$0xf]
        %v1316 = vld [vmem:[#allocation12 + $0x8] sm:$0xf]
        %v1317 = vld [vmem:[#allocation12 + $0xc] sm:$0xf]
        %v1318 = vld [vmem:[#allocation12 + $0x10] sm:$0xf]
        %v1319 = vld [vmem:[#allocation12 + $0x14] sm:$0xf]
        %v1320 = vld [vmem:[#allocation12 + $0x18] sm:$0xf]
        %v1321 = vld [vmem:[#allocation12 + $0x1c] sm:$0xf]
        %v1322 = vld [vmem:[#allocation13] sm:$0x1]
        %v1324 = vperm.slane %v1322, 0
        %1327 = vrot.lane.b32.xlu0 %v1313, 64
        %v1328 = vpop.permute.xlu0 %1327
        %v1337 = vunpack.c.l.b16 %v1314
        %v1338 = vunpack.c.l.b16 %v1315
        %v1339 = vunpack.c.l.b16 %v1316
        %v1340 = vunpack.c.l.b16 %v1317
        %v1341 = vunpack.c.l.b16 %v1318
        %v1342 = vunpack.c.l.b16 %v1319
        %v1343 = vunpack.c.l.b16 %v1320
        %v1344 = vunpack.c.l.b16 %v1321
        %v1345 = vpack.c.b16 %v1338, %v1337
        %v1346 = vpack.c.b16 %v1340, %v1339
        %v1347 = vpack.c.b16 %v1342, %v1341
        %v1348 = vpack.c.b16 %v1344, %v1343
        %v1354 = vsel %vm658, %v1328, 0
        %1356 = vmatpush.bf16.msra.mxu0 0
        %1357 = vmatpush.bf16.msra.mxu0 0
        %1358 = vmatpush.bf16.msra.mxu0 0
        %1359 = vmatpush.bf16.msra.mxu0 0
        %1360 = vmatpush.bf16.msra.mxu0 %v1348
        %1361 = vmatpush.bf16.msra.mxu0 %v1347
        %1362 = vmatpush.bf16.msra.mxu0 %v1346
        %1363 = vmatpush.bf16.msra.mxu0 %v1345
        %1364 = vmatmul.bf16.gmra.mxu0 %v1354
        %v1365 = vpop.f32.mrf.mxu0
        %v1366 = vadd.f32 %v1324, %v1365
        %v1367 = vpop.f32.mrf.mxu0
        %1368 = vdwg.mxu0
        %v1369 = vadd.f32 %v1366, %v536
        %s1370 = scalar_lea.vmem %s532, 8 [#allocation15]
        %1371 = vst [vmem:[%s1370] sm:$0xff] %v1369
        %s1372 = sand.u32 %s295, 1
        %s1373 = sand.u32 %s295, 1
        %s1374 = smul.addr %s1373, 16
        %s1375 = scalar_lea.vmem [#allocation15], %s1374
        // Predicated region
        $region101: #{forward.3} parent=67 // pred_check
          %p1376 = pneg %p305
        $region102: #{forward.3} parent=67 // pred_check_branch
          %1378 = sbr.rel (%p1376) target = $region104
        $region103: #{forward.3} parent=67 // pred_region
          %s1379 = smul.addr %s30, 8
          %s1380 = scalar_lea.vmem %s12, %s1379
          // Predicated region
          $region105: #{forward.3} parent=103 // pred_check
            _
          $region106: #{forward.3} parent=103 // pred_check_branch
            %1382 = sbr.rel (0) target = $region108
          $region107: #{forward.3} parent=103 // pred_region
            // Predicated region
            $region109: #{forward.3} parent=107 // pred_check
              _
            $region110: #{forward.3} parent=107 // pred_check_branch
              %1384 = sbr.rel (0) target = $region112
            $region111: #{forward.3} parent=107 // pred_region
              // Predicated region
              $region124: #{forward.3} parent=111 // pred_check
                _
              $region125: #{forward.3} parent=111 // pred_check_branch
                %1402 = sbr.rel (0) target = $region127
              $region126: #{forward.3} parent=111 // pred_region
                loop: start=0, step=1, limit=1
                $region128: #{forward.3} parent=126 // loop_pre_header
                  _
                $region129: #{forward.3} parent=126 // loop_header
                  %s1404 = sphi 0, %s1408
                  %p1405 = scmp.ge.s32.totalorder %s1404, 1
                  %s1409 = sphi %s1375, %s1375
                  %s1410 = sphi %s1380, %s1380
                $region130: #{forward.3} parent=126 // loop_header_branch
                  %1407 = sbr.rel (%p1405) target = $region134
                $region131: #{forward.3} parent=126 // loop_body
                  %v1411 = vld [vmem:[%s1409] sm:$0xff]
                  %1412 = vst [vmem:[%s1410] sm:$0xff] %v1411
                  %v1413 = vld [vmem:[%s1409 + $0x8] sm:$0xff]
                  %1414 = vst [vmem:[%s1410 + $0x10] sm:$0xff] %v1413
                $region132: #{forward.3} parent=126 // loop_footer
                  %s1408 = sadd.s32 1, %s1404
                $region133: #{forward.3} parent=126 // loop_footer_branch
                  %1403 = sbr.rel target = $region129
                $region134: #{forward.3} parent=126 // loop_exit
                  _
              $region127: #{forward.3} parent=111 // pred_fallthru
                _
              // Predicated region
              $region135: #{forward.3} parent=111 // pred_check
                _
              $region136: #{forward.3} parent=111 // pred_check_branch
                %1416 = sbr.rel target = $region138
              $region137: #{forward.3} parent=111 // pred_region
                _
              $region138: #{forward.3} parent=111 // pred_fallthru
                _
            $region112: #{forward.3} parent=107 // pred_fallthru
              _
            // Predicated region
            $region113: #{forward.3} parent=107 // pred_check
              _
            $region114: #{forward.3} parent=107 // pred_check_branch
              %1386 = sbr.rel target = $region116
            $region115: #{forward.3} parent=107 // pred_region
              %s1388 = ssub.s32 256, 1
              loop: start=0, step=1, limit=1
              $region117: #{forward.3} parent=115 // loop_pre_header
                _
              $region118: #{forward.3} parent=115 // loop_header
                %s1390 = sphi 0, %s1394
                %p1391 = scmp.ge.s32.totalorder %s1390, 1
                %s1395 = sphi %s1375, %s1375
                %s1396 = sphi %s1380, %s1380
              $region119: #{forward.3} parent=115 // loop_header_branch
                %1393 = sbr.rel (%p1391) target = $region123
              $region120: #{forward.3} parent=115 // loop_body
                %v1397 = vld [vmem:[%s1395] sm:%s1388]
                %1398 = vst [vmem:[%s1396] sm:%s1388] %v1397
                %v1399 = vld [vmem:[%s1395 + $0x8] sm:%s1388]
                %1400 = vst [vmem:[%s1396 + $0x10] sm:%s1388] %v1399
              $region121: #{forward.3} parent=115 // loop_footer
                %s1394 = sadd.s32 1, %s1390
              $region122: #{forward.3} parent=115 // loop_footer_branch
                %1389 = sbr.rel target = $region118
              $region123: #{forward.3} parent=115 // loop_exit
                _
            $region116: #{forward.3} parent=107 // pred_fallthru
              _
          $region108: #{forward.3} parent=103 // pred_fallthru
            _
          %1417 = vnop
        $region104: #{forward.3} parent=67 // pred_fallthru
          _
      $region68: #{forward.3} parent=5 // pred_fallthru
        _
      %p1418 = scmp.le.s32.totalorder 2, %s25
      // Predicated region
      $region139: #{forward.3} parent=5 // pred_check
        %p1419 = pneg %p1418
      $region140: #{forward.3} parent=5 // pred_check_branch
        %1421 = sbr.rel (%p1419) target = $region142
      $region141: #{forward.3} parent=5 // pred_region
        %s1422 = ssub.s32 %s25, 2
        // Predicated region
        $region143: #{forward.3} parent=141 // pred_check
          %p1423 = pneg %p311
        $region144: #{forward.3} parent=141 // pred_check_branch
          %1425 = sbr.rel (%p1423) target = $region146
        $region145: #{forward.3} parent=141 // pred_region
          %s1426 = sand.u32 %s296, 1
          %s1427 = sand.u32 %s296, 1
          %s1428 = smul.addr %s1427, 16
          %s1429 = scalar_lea.vmem [#allocation15], %s1428
        $region146: #{forward.3} parent=141 // pred_fallthru
          _
      $region142: #{forward.3} parent=5 // pred_fallthru
        _
    $region6: #{forward.3} parent=1 // loop_footer
      %s29 = sadd.s32 1, %s25
    $region7: #{forward.3} parent=1 // loop_footer_branch
      %24 = sbr.rel target = $region3
    $region8: #{forward.3} parent=1 // loop_exit
      _
    %1430 = vsyncpa [#allocation3], 1
    %s1431 = scalar_lea.sflag [#allocation3], 1
    %1432 = vsyncpa %s1431, 1
    %1433 = vsyncpa [#allocation5], 1
    %1434 = vsyncpa [#allocation8], 1
    %1435 = vsyncpa [#allocation11], 1
    %1436 = vsyncpa [#allocation14], 1

// kernel: forward.4
$region0: #{forward.4}
  #allocation0 [shape = 'u32[]', space=smem, size = 0x4, offset = 0x4, fixed_abs, tag = 'smem constant byte address 0x4 - core index']
  #allocation1 [shape = 'u32[72,128]{1,0:T(1,128)}', space=vmem, size = 0x9000, scoped, tag = 'internal scratch']
  #allocation2 [shape = 'f32[2,8,128]{2,1,0:T(8,128)}', space=vmem, size = 0x2000, scoped, tag = 'scratch operand']
  %s0 = inlined_call_operand.vmem [shape: f32[4,8,128], index: 0, kind: input, shape index: {}]
  %s1 = inlined_call_operand.hbm [shape: bf16[2,128,384], index: 1, kind: input, shape index: {}]
  %s2 = inlined_call_operand.hbm [shape: f32[2,1,384], index: 2, kind: input, shape index: {}]
  %s3 = inlined_call_operand.hbm [shape: bf16[2,128,128], index: 3, kind: input, shape index: {}]
  %s4 = inlined_call_operand.vmem [shape: f32[2,1,128], index: 4, kind: input, shape index: {}]
  %s5 = inlined_call_operand.hbm [shape: f32[2,1,128], index: 5, kind: input, shape index: {}]
  %s6 = inlined_call_operand.hbm [shape: f32[2,1,128], index: 6, kind: input, shape index: {}]
  %s7 = inlined_call_operand.hbm [shape: bf16[2,128,2048], index: 7, kind: input, shape index: {}]
  %s8 = inlined_call_operand.hbm [shape: f32[2,1,2048], index: 8, kind: input, shape index: {}]
  %s9 = inlined_call_operand.hbm [shape: bf16[2,2048,128], index: 9, kind: input, shape index: {}]
  %s10 = inlined_call_operand.hbm [shape: f32[2,1,128], index: 10, kind: input, shape index: {}]
  %s11 = inlined_call_operand.hbm [shape: f32[2,1,128], index: 11, kind: input, shape index: {}]
  %s12 = inlined_call_operand.hbm [shape: f32[2,1,128], index: 12, kind: input, shape index: {}]
  %s13 = inlined_call_operand.vmem [shape: f32[4,1,128], index: 13, kind: output, shape index: {}]
  %s14 = sld [smem:[#allocation0]]
  $region137: #{forward.4} parent=0
    _
  %s16 = ssub.s32 1, %s14
  %s17 = scalar_select 0, %s16, %s14
  $region1: #{forward.4} parent=0
    #allocation3 [shape = 'u8[196608]{0}', space=vmem, size = 0x30000, scoped, tag = 'input window, operand 1']
    #allocation4 [shape = 's32[2]{0}', space=sflag, size = 0x8, scoped, tag = 'scoped memory for forward.4']
    #allocation5 [shape = 'u8[3072]{0}', space=vmem, size = 0xc00, scoped, tag = 'input window, operand 2']
    #allocation6 [shape = 's32[2]{0}', space=sflag, size = 0x8, scoped, tag = 'scoped memory for forward.4']
    #allocation7 [shape = 'u8[65536]{0}', space=vmem, size = 0x10000, scoped, tag = 'input window, operand 3']
    #allocation8 [shape = 'u8[1024]{0}', space=vmem, size = 0x400, scoped, tag = 'input window, operand 5']
    #allocation9 [shape = 's32[2]{0}', space=sflag, size = 0x8, scoped, tag = 'scoped memory for forward.4']
    #allocation10 [shape = 'u8[1024]{0}', space=vmem, size = 0x400, scoped, tag = 'input window, operand 6']
    #allocation11 [shape = 'u8[1048576]{0}', space=vmem, size = 0x100000, scoped, tag = 'input window, operand 7']
    #allocation12 [shape = 's32[2]{0}', space=sflag, size = 0x8, scoped, tag = 'scoped memory for forward.4']
    #allocation13 [shape = 'u8[16384]{0}', space=vmem, size = 0x4000, scoped, tag = 'input window, operand 8']
    #allocation14 [shape = 'u8[1048576]{0}', space=vmem, size = 0x100000, scoped, tag = 'input window, operand 9']
    #allocation15 [shape = 's32[2]{0}', space=sflag, size = 0x8, scoped, tag = 'scoped memory for forward.4']
    #allocation16 [shape = 'u8[1024]{0}', space=vmem, size = 0x400, scoped, tag = 'input window, operand 10']
    #allocation17 [shape = 'u8[1024]{0}', space=vmem, size = 0x400, scoped, tag = 'input window, operand 11']
    #allocation18 [shape = 's32[2]{0}', space=sflag, size = 0x8, scoped, tag = 'scoped memory for forward.4']
    #allocation19 [shape = 'u8[1024]{0}', space=vmem, size = 0x400, scoped, tag = 'input window, operand 12']
    %18 = vsyncpa [#allocation4], 0
    %s19 = scalar_lea.sflag [#allocation4], 1
    %20 = vsyncpa %s19, 0
    %21 = vsyncpa [#allocation6], 0
    %s22 = scalar_lea.sflag [#allocation6], 1
    %23 = vsyncpa %s22, 0
    %24 = vsyncpa [#allocation9], 0
    %s25 = scalar_lea.sflag [#allocation9], 1
    %26 = vsyncpa %s25, 0
    %27 = vsyncpa [#allocation12], 0
    %s28 = scalar_lea.sflag [#allocation12], 1
    %29 = vsyncpa %s28, 0
    %30 = vsyncpa [#allocation15], 0
    %s31 = scalar_lea.sflag [#allocation15], 1
    %32 = vsyncpa %s31, 0
    %33 = vsyncpa [#allocation18], 0
    %s34 = scalar_lea.sflag [#allocation18], 1
    %35 = vsyncpa %s34, 0
    loop: start=0, step=1, limit=6
    $region2: #{forward.4} parent=1 // loop_pre_header
      _
    $region3: #{forward.4} parent=1 // loop_header
      %s37 = sphi 0, %s41
      %p38 = scmp.ge.s32.totalorder %s37, 6
      %s44 = sphi 0, %s56
      %s45 = sphi 0, %s52
      %s46 = sphi 0, %s44
      %s47 = sphi 0, %s45
      %s48 = sphi 0, %s46
      %s49 = sphi 0, %s47
      %s59 = sphi 0, %s61
      %s62 = sphi 0, %s59
      %s63 = sphi 0, %s62
      %s79 = sphi 0, %s63
      %s85 = sphi 0, %s87
      %s88 = sphi 0, %s85
      %s89 = sphi 0, %s88
      %s105 = sphi 0, %s89
      %s111 = sphi 0, %s113
      %s114 = sphi 0, %s111
      %s115 = sphi 0, %s114
      %s131 = sphi 0, %s115
      %s137 = sphi 0, %s139
      %s140 = sphi 0, %s137
      %s141 = sphi 0, %s140
      %s157 = sphi 0, %s141
      %s163 = sphi 0, %s165
      %s166 = sphi 0, %s163
      %s167 = sphi 0, %s166
      %s183 = sphi 0, %s167
      %s189 = sphi 0, %s191
      %s192 = sphi 0, %s189
      %s193 = sphi 0, %s192
      %s209 = sphi 0, %s193
      %s215 = sphi 0, %s217
      %s218 = sphi 0, %s215
      %s219 = sphi 0, %s218
      %s235 = sphi 0, %s219
      %s241 = sphi 0, %s243
      %s244 = sphi 0, %s241
      %s245 = sphi 0, %s244
      %s261 = sphi 0, %s245
      %s267 = sphi 0, %s269
      %s270 = sphi 0, %s267
      %s271 = sphi 0, %s270
      %s287 = sphi 0, %s271
      %s293 = sphi 0, %s295
      %s296 = sphi 0, %s293
      %s297 = sphi 0, %s296
      %s313 = sphi 0, %s297
      %s319 = sphi 0, %s321
      %s322 = sphi 0, %s319
      %s323 = sphi 0, %s322
      %s339 = sphi 0, %s323
      %s345 = sphi 0, %s347
      %s348 = sphi 0, %s345
      %s349 = sphi 0, %s348
      %s365 = sphi 0, %s349
      %s371 = sphi 0, %s373
      %s374 = sphi 0, %s371
      %s375 = sphi 0, %s374
      %s391 = sphi 0, %s375
      %s397 = sphi 0, %s399
      %s400 = sphi 0, %s397
      %s401 = sphi 0, %s400
      %s417 = sphi 0, %s401
    $region4: #{forward.4} parent=1 // loop_header_branch
      %40 = sbr.rel (%p38) target = $region8
    $region5: #{forward.4} parent=1 // loop_body
      %s42 = ssub.s32 %s37, 1
      %s43 = ssub.s32 %s37, 2
      %s50 = sadd.s32 1, %s45
      %p51 = scmp.ge.s32.totalorder %s50, 2
      %s52 = scalar_select %p51, 0, %s50
      %s53 = sadd.s32 1, %s44
      %s54 = scalar_select %p51, %s53, %s44
      %p55 = scmp.ge.s32.totalorder %s54, 2
      %s56 = scalar_select %p55, 0, %s54
      %s57 = ssub.s32 %s44, %s56
      %p58 = scmp.eq.s32.totalorder %s57, 0
      %s60 = sadd.s32 %s59, 1
      %s61 = scalar_select %p58, %s59, %s60
      %p64 = pneg %p58
      %p65 = scmp.eq.s32.totalorder %s37, 3
      %p66 = por %p64, %p65
      %p67 = scmp.ne.s32.totalorder %s59, %s62
      %p68 = scmp.eq.s32.totalorder %s37, 0
      %p69 = por %p67, %p68
      %p70 = scmp.ne.s32.totalorder %s59, %s62
      %p71 = scmp.eq.s32.totalorder %s42, 3
      %p72 = por %p70, %p71
      %p73 = scmp.ne.s32.totalorder %s62, %s63
      %p74 = scmp.eq.s32.totalorder %s42, 0
      %p75 = por %p73, %p74
      %p76 = scmp.ne.s32.totalorder %s62, %s63
      %p77 = scmp.eq.s32.totalorder %s43, 3
      %p78 = por %p76, %p77
      %p80 = scmp.ne.s32.totalorder %s63, %s79
      %p81 = scmp.eq.s32.totalorder %s43, 0
      %p82 = por %p80, %p81
      %s83 = ssub.s32 %s45, %s52
      %p84 = scmp.eq.s32.totalorder %s83, 0
      %s86 = sadd.s32 %s85, 1
      %s87 = scalar_select %p84, %s85, %s86
      %p90 = pneg %p84
      %p91 = scmp.eq.s32.totalorder %s37, 3
      %p92 = por %p90, %p91
      %p93 = scmp.ne.s32.totalorder %s85, %s88
      %p94 = scmp.eq.s32.totalorder %s37, 0
      %p95 = por %p93, %p94
      %p96 = scmp.ne.s32.totalorder %s85, %s88
      %p97 = scmp.eq.s32.totalorder %s42, 3
      %p98 = por %p96, %p97
      %p99 = scmp.ne.s32.totalorder %s88, %s89
      %p100 = scmp.eq.s32.totalorder %s42, 0
      %p101 = por %p99, %p100
      %p102 = scmp.ne.s32.totalorder %s88, %s89
      %p103 = scmp.eq.s32.totalorder %s43, 3
      %p104 = por %p102, %p103
      %p106 = scmp.ne.s32.totalorder %s89, %s105
      %p107 = scmp.eq.s32.totalorder %s43, 0
      %p108 = por %p106, %p107
      %s109 = ssub.s32 %s45, %s52
      %p110 = scmp.eq.s32.totalorder %s109, 0
      %s112 = sadd.s32 %s111, 1
      %s113 = scalar_select %p110, %s111, %s112
      %p116 = pneg %p110
      %p117 = scmp.eq.s32.totalorder %s37, 3
      %p118 = por %p116, %p117
      %p119 = scmp.ne.s32.totalorder %s111, %s114
      %p120 = scmp.eq.s32.totalorder %s37, 0
      %p121 = por %p119, %p120
      %p122 = scmp.ne.s32.totalorder %s111, %s114
      %p123 = scmp.eq.s32.totalorder %s42, 3
      %p124 = por %p122, %p123
      %p125 = scmp.ne.s32.totalorder %s114, %s115
      %p126 = scmp.eq.s32.totalorder %s42, 0
      %p127 = por %p125, %p126
      %p128 = scmp.ne.s32.totalorder %s114, %s115
      %p129 = scmp.eq.s32.totalorder %s43, 3
      %p130 = por %p128, %p129
      %p132 = scmp.ne.s32.totalorder %s115, %s131
      %p133 = scmp.eq.s32.totalorder %s43, 0
      %p134 = por %p132, %p133
      %s135 = ssub.s32 %s45, %s52
      %p136 = scmp.eq.s32.totalorder %s135, 0
      %s138 = sadd.s32 %s137, 1
      %s139 = scalar_select %p136, %s137, %s138
      %p142 = pneg %p136
      %p143 = scmp.eq.s32.totalorder %s37, 3
      %p144 = por %p142, %p143
      %p145 = scmp.ne.s32.totalorder %s137, %s140
      %p146 = scmp.eq.s32.totalorder %s37, 0
      %p147 = por %p145, %p146
      %p148 = scmp.ne.s32.totalorder %s137, %s140
      %p149 = scmp.eq.s32.totalorder %s42, 3
      %p150 = por %p148, %p149
      %p151 = scmp.ne.s32.totalorder %s140, %s141
      %p152 = scmp.eq.s32.totalorder %s42, 0
      %p153 = por %p151, %p152
      %p154 = scmp.ne.s32.totalorder %s140, %s141
      %p155 = scmp.eq.s32.totalorder %s43, 3
      %p156 = por %p154, %p155
      %p158 = scmp.ne.s32.totalorder %s141, %s157
      %p159 = scmp.eq.s32.totalorder %s43, 0
      %p160 = por %p158, %p159
      %s161 = ssub.s32 %s45, %s52
      %p162 = scmp.eq.s32.totalorder %s161, 0
      %s164 = sadd.s32 %s163, 1
      %s165 = scalar_select %p162, %s163, %s164
      %p168 = pneg %p162
      %p169 = scmp.eq.s32.totalorder %s37, 3
      %p170 = por %p168, %p169
      %p171 = scmp.ne.s32.totalorder %s163, %s166
      %p172 = scmp.eq.s32.totalorder %s37, 0
      %p173 = por %p171, %p172
      %p174 = scmp.ne.s32.totalorder %s163, %s166
      %p175 = scmp.eq.s32.totalorder %s42, 3
      %p176 = por %p174, %p175
      %p177 = scmp.ne.s32.totalorder %s166, %s167
      %p178 = scmp.eq.s32.totalorder %s42, 0
      %p179 = por %p177, %p178
      %p180 = scmp.ne.s32.totalorder %s166, %s167
      %p181 = scmp.eq.s32.totalorder %s43, 3
      %p182 = por %p180, %p181
      %p184 = scmp.ne.s32.totalorder %s167, %s183
      %p185 = scmp.eq.s32.totalorder %s43, 0
      %p186 = por %p184, %p185
      %s187 = ssub.s32 %s45, %s52
      %p188 = scmp.eq.s32.totalorder %s187, 0
      %s190 = sadd.s32 %s189, 1
      %s191 = scalar_select %p188, %s189, %s190
      %p194 = pneg %p188
      %p195 = scmp.eq.s32.totalorder %s37, 3
      %p196 = por %p194, %p195
      %p197 = scmp.ne.s32.totalorder %s189, %s192
      %p198 = scmp.eq.s32.totalorder %s37, 0
      %p199 = por %p197, %p198
      %p200 = scmp.ne.s32.totalorder %s189, %s192
      %p201 = scmp.eq.s32.totalorder %s42, 3
      %p202 = por %p200, %p201
      %p203 = scmp.ne.s32.totalorder %s192, %s193
      %p204 = scmp.eq.s32.totalorder %s42, 0
      %p205 = por %p203, %p204
      %p206 = scmp.ne.s32.totalorder %s192, %s193
      %p207 = scmp.eq.s32.totalorder %s43, 3
      %p208 = por %p206, %p207
      %p210 = scmp.ne.s32.totalorder %s193, %s209
      %p211 = scmp.eq.s32.totalorder %s43, 0
      %p212 = por %p210, %p211
      %s213 = ssub.s32 %s45, %s52
      %p214 = scmp.eq.s32.totalorder %s213, 0
      %s216 = sadd.s32 %s215, 1
      %s217 = scalar_select %p214, %s215, %s216
      %p220 = pneg %p214
      %p221 = scmp.eq.s32.totalorder %s37, 3
      %p222 = por %p220, %p221
      %p223 = scmp.ne.s32.totalorder %s215, %s218
      %p224 = scmp.eq.s32.totalorder %s37, 0
      %p225 = por %p223, %p224
      %p226 = scmp.ne.s32.totalorder %s215, %s218
      %p227 = scmp.eq.s32.totalorder %s42, 3
      %p228 = por %p226, %p227
      %p229 = scmp.ne.s32.totalorder %s218, %s219
      %p230 = scmp.eq.s32.totalorder %s42, 0
      %p231 = por %p229, %p230
      %p232 = scmp.ne.s32.totalorder %s218, %s219
      %p233 = scmp.eq.s32.totalorder %s43, 3
      %p234 = por %p232, %p233
      %p236 = scmp.ne.s32.totalorder %s219, %s235
      %p237 = scmp.eq.s32.totalorder %s43, 0
      %p238 = por %p236, %p237
      %s239 = ssub.s32 %s45, %s52
      %p240 = scmp.eq.s32.totalorder %s239, 0
      %s242 = sadd.s32 %s241, 1
      %s243 = scalar_select %p240, %s241, %s242
      %p246 = pneg %p240
      %p247 = scmp.eq.s32.totalorder %s37, 3
      %p248 = por %p246, %p247
      %p249 = scmp.ne.s32.totalorder %s241, %s244
      %p250 = scmp.eq.s32.totalorder %s37, 0
      %p251 = por %p249, %p250
      %p252 = scmp.ne.s32.totalorder %s241, %s244
      %p253 = scmp.eq.s32.totalorder %s42, 3
      %p254 = por %p252, %p253
      %p255 = scmp.ne.s32.totalorder %s244, %s245
      %p256 = scmp.eq.s32.totalorder %s42, 0
      %p257 = por %p255, %p256
      %p258 = scmp.ne.s32.totalorder %s244, %s245
      %p259 = scmp.eq.s32.totalorder %s43, 3
      %p260 = por %p258, %p259
      %p262 = scmp.ne.s32.totalorder %s245, %s261
      %p263 = scmp.eq.s32.totalorder %s43, 0
      %p264 = por %p262, %p263
      %s265 = ssub.s32 %s45, %s52
      %p266 = scmp.eq.s32.totalorder %s265, 0
      %s268 = sadd.s32 %s267, 1
      %s269 = scalar_select %p266, %s267, %s268
      %p272 = pneg %p266
      %p273 = scmp.eq.s32.totalorder %s37, 3
      %p274 = por %p272, %p273
      %p275 = scmp.ne.s32.totalorder %s267, %s270
      %p276 = scmp.eq.s32.totalorder %s37, 0
      %p277 = por %p275, %p276
      %p278 = scmp.ne.s32.totalorder %s267, %s270
      %p279 = scmp.eq.s32.totalorder %s42, 3
      %p280 = por %p278, %p279
      %p281 = scmp.ne.s32.totalorder %s270, %s271
      %p282 = scmp.eq.s32.totalorder %s42, 0
      %p283 = por %p281, %p282
      %p284 = scmp.ne.s32.totalorder %s270, %s271
      %p285 = scmp.eq.s32.totalorder %s43, 3
      %p286 = por %p284, %p285
      %p288 = scmp.ne.s32.totalorder %s271, %s287
      %p289 = scmp.eq.s32.totalorder %s43, 0
      %p290 = por %p288, %p289
      %s291 = ssub.s32 %s45, %s52
      %p292 = scmp.eq.s32.totalorder %s291, 0
      %s294 = sadd.s32 %s293, 1
      %s295 = scalar_select %p292, %s293, %s294
      %p298 = pneg %p292
      %p299 = scmp.eq.s32.totalorder %s37, 3
      %p300 = por %p298, %p299
      %p301 = scmp.ne.s32.totalorder %s293, %s296
      %p302 = scmp.eq.s32.totalorder %s37, 0
      %p303 = por %p301, %p302
      %p304 = scmp.ne.s32.totalorder %s293, %s296
      %p305 = scmp.eq.s32.totalorder %s42, 3
      %p306 = por %p304, %p305
      %p307 = scmp.ne.s32.totalorder %s296, %s297
      %p308 = scmp.eq.s32.totalorder %s42, 0
      %p309 = por %p307, %p308
      %p310 = scmp.ne.s32.totalorder %s296, %s297
      %p311 = scmp.eq.s32.totalorder %s43, 3
      %p312 = por %p310, %p311
      %p314 = scmp.ne.s32.totalorder %s297, %s313
      %p315 = scmp.eq.s32.totalorder %s43, 0
      %p316 = por %p314, %p315
      %s317 = ssub.s32 %s45, %s52
      %p318 = scmp.eq.s32.totalorder %s317, 0
      %s320 = sadd.s32 %s319, 1
      %s321 = scalar_select %p318, %s319, %s320
      %p324 = pneg %p318
      %p325 = scmp.eq.s32.totalorder %s37, 3
      %p326 = por %p324, %p325
      %p327 = scmp.ne.s32.totalorder %s319, %s322
      %p328 = scmp.eq.s32.totalorder %s37, 0
      %p329 = por %p327, %p328
      %p330 = scmp.ne.s32.totalorder %s319, %s322
      %p331 = scmp.eq.s32.totalorder %s42, 3
      %p332 = por %p330, %p331
      %p333 = scmp.ne.s32.totalorder %s322, %s323
      %p334 = scmp.eq.s32.totalorder %s42, 0
      %p335 = por %p333, %p334
      %p336 = scmp.ne.s32.totalorder %s322, %s323
      %p337 = scmp.eq.s32.totalorder %s43, 3
      %p338 = por %p336, %p337
      %p340 = scmp.ne.s32.totalorder %s323, %s339
      %p341 = scmp.eq.s32.totalorder %s43, 0
      %p342 = por %p340, %p341
      %s343 = ssub.s32 %s45, %s52
      %p344 = scmp.eq.s32.totalorder %s343, 0
      %s346 = sadd.s32 %s345, 1
      %s347 = scalar_select %p344, %s345, %s346
      %p350 = pneg %p344
      %p351 = scmp.eq.s32.totalorder %s37, 3
      %p352 = por %p350, %p351
      %p353 = scmp.ne.s32.totalorder %s345, %s348
      %p354 = scmp.eq.s32.totalorder %s37, 0
      %p355 = por %p353, %p354
      %p356 = scmp.ne.s32.totalorder %s345, %s348
      %p357 = scmp.eq.s32.totalorder %s42, 3
      %p358 = por %p356, %p357
      %p359 = scmp.ne.s32.totalorder %s348, %s349
      %p360 = scmp.eq.s32.totalorder %s42, 0
      %p361 = por %p359, %p360
      %p362 = scmp.ne.s32.totalorder %s348, %s349
      %p363 = scmp.eq.s32.totalorder %s43, 3
      %p364 = por %p362, %p363
      %p366 = scmp.ne.s32.totalorder %s349, %s365
      %p367 = scmp.eq.s32.totalorder %s43, 0
      %p368 = por %p366, %p367
      %s369 = ssub.s32 %s45, %s52
      %p370 = scmp.eq.s32.totalorder %s369, 0
      %s372 = sadd.s32 %s371, 1
      %s373 = scalar_select %p370, %s371, %s372
      %p376 = pneg %p370
      %p377 = scmp.eq.s32.totalorder %s37, 3
      %p378 = por %p376, %p377
      %p379 = scmp.ne.s32.totalorder %s371, %s374
      %p380 = scmp.eq.s32.totalorder %s37, 0
      %p381 = por %p379, %p380
      %p382 = scmp.ne.s32.totalorder %s371, %s374
      %p383 = scmp.eq.s32.totalorder %s42, 3
      %p384 = por %p382, %p383
      %p385 = scmp.ne.s32.totalorder %s374, %s375
      %p386 = scmp.eq.s32.totalorder %s42, 0
      %p387 = por %p385, %p386
      %p388 = scmp.ne.s32.totalorder %s374, %s375
      %p389 = scmp.eq.s32.totalorder %s43, 3
      %p390 = por %p388, %p389
      %p392 = scmp.ne.s32.totalorder %s375, %s391
      %p393 = scmp.eq.s32.totalorder %s43, 0
      %p394 = por %p392, %p393
      %s395 = ssub.s32 %s44, %s56
      %p396 = scmp.eq.s32.totalorder %s395, 0
      %s398 = sadd.s32 %s397, 1
      %s399 = scalar_select %p396, %s397, %s398
      %p402 = pneg %p396
      %p403 = scmp.eq.s32.totalorder %s37, 3
      %p404 = por %p402, %p403
      %p405 = scmp.ne.s32.totalorder %s397, %s400
      %p406 = scmp.eq.s32.totalorder %s37, 0
      %p407 = por %p405, %p406
      %p408 = scmp.ne.s32.totalorder %s397, %s400
      %p409 = scmp.eq.s32.totalorder %s42, 3
      %p410 = por %p408, %p409
      %p411 = scmp.ne.s32.totalorder %s400, %s401
      %p412 = scmp.eq.s32.totalorder %s42, 0
      %p413 = por %p411, %p412
      %p414 = scmp.ne.s32.totalorder %s400, %s401
      %p415 = scmp.eq.s32.totalorder %s43, 3
      %p416 = por %p414, %p415
      %p418 = scmp.ne.s32.totalorder %s401, %s417
      %p419 = scmp.eq.s32.totalorder %s43, 0
      %p420 = por %p418, %p419
      %p421 = scmp.le.s32.totalorder 1, %s37
      %p422 = scmp.lt.s32.totalorder %s37, 5
      %p423 = pnand %p421, %p422
      %p424 = pneg %p423
      // Predicated region
      $region9: #{forward.4} parent=5 // pred_check
        _
      $region10: #{forward.4} parent=5 // pred_check_branch
        %426 = sbr.rel (%p423) target = $region12
      $region11: #{forward.4} parent=5 // pred_region
        %s427 = ssub.s32 %s37, 1
      $region12: #{forward.4} parent=5 // pred_fallthru
        _
      %p428 = scmp.lt.s32.totalorder %s37, 4
      // Predicated region
      $region13: #{forward.4} parent=5 // pred_check
        %p429 = pneg %p428
      $region14: #{forward.4} parent=5 // pred_check_branch
        %431 = sbr.rel (%p429) target = $region16
      $region15: #{forward.4} parent=5 // pred_region
        // Predicated region
        $region17: #{forward.4} parent=15 // pred_check
          %p432 = pneg %p69
        $region18: #{forward.4} parent=15 // pred_check_branch
          %434 = sbr.rel (%p432) target = $region20
        $region19: #{forward.4} parent=15 // pred_region
          %s435 = smul.u32 2, %s44
          %p436 = scmp.lt.s32.totalorder %s435, 3
          %s437 = scalar_select %p436, %s435, 3
          %s438 = smul.addr %s437, 8
          %s439 = scalar_lea.vmem %s0, %s438
          %s440 = smul.u32 2, %s44
        $region20: #{forward.4} parent=15 // pred_fallthru
          _
        // Predicated region
        $region21: #{forward.4} parent=15 // pred_check
          %p441 = pneg %p95
        $region22: #{forward.4} parent=15 // pred_check_branch
          %443 = sbr.rel (%p441) target = $region24
        $region23: #{forward.4} parent=15 // pred_region
          %s444 = sand.u32 %s85, 1
          %s445 = scalar_lea.sflag [#allocation4], %s444
          %s446 = sand.u32 %s85, 1
          %s447 = smul.addr %s446, 192
          %s448 = scalar_lea.vmem [#allocation3], %s447
          %450 = vsyncadd %s445, 0
          %s451 = smul.addr %s45, 48
          %s452 = smul.addr %s451, 4
          %s453 = scalar_lea.hbm %s1, %s452
          %s454 = sshll.u32 %s453, 4
          %s455 = int_to_ptr.hbm [resolvable:$true] %s454
          %s456 = sshll.u32 %s448, 4
          %s457 = int_to_ptr.vmem [resolvable:$true] %s456
          %462 = dma.hbm_to_vmem [thread:$0]  %s455, 3072, %s457, %s445, 192, 192, 12
        $region24: #{forward.4} parent=15 // pred_fallthru
          _
        // Predicated region
        $region25: #{forward.4} parent=15 // pred_check
          %p463 = pneg %p121
        $region26: #{forward.4} parent=15 // pred_check_branch
          %465 = sbr.rel (%p463) target = $region28
        $region27: #{forward.4} parent=15 // pred_region
          %s466 = sand.u32 %s37, 1
          %s467 = scalar_lea.sflag [#allocation6], %s466
          %s468 = sand.u32 %s111, 1
          %s469 = smul.addr %s468, 3
          %s470 = scalar_lea.vmem [#allocation5], %s469
          %472 = vsyncadd %s467, 0
          %s473 = smul.addr %s45, 3
          %s474 = scalar_lea.hbm %s2, %s473
          %s476 = sshll.u32 %s474, 4
          %s477 = int_to_ptr.hbm [resolvable:$true] %s476
          %s478 = sshll.u32 %s470, 4
          %s479 = int_to_ptr.vmem [resolvable:$true] %s478
          %481 = dma.hbm_to_vmem [thread:$0]  %s477, 48, %s479, %s467
        $region28: #{forward.4} parent=15 // pred_fallthru
          _
        // Predicated region
        $region29: #{forward.4} parent=15 // pred_check
          %p482 = pneg %p147
        $region30: #{forward.4} parent=15 // pred_check_branch
          %484 = sbr.rel (%p482) target = $region32
        $region31: #{forward.4} parent=15 // pred_region
          %s485 = sand.u32 %s37, 1
          %s486 = scalar_lea.sflag [#allocation6], %s485
          %s487 = sand.u32 %s137, 1
          %s488 = smul.addr %s487, 64
          %s489 = scalar_lea.vmem [#allocation7], %s488
          %491 = vsyncadd %s486, 0
          %s492 = smul.addr %s45, 16
          %s493 = smul.addr %s492, 4
          %s494 = scalar_lea.hbm %s3, %s493
          %s495 = sshll.u32 %s494, 4
          %s496 = int_to_ptr.hbm [resolvable:$true] %s495
          %s497 = sshll.u32 %s489, 4
          %s498 = int_to_ptr.vmem [resolvable:$true] %s497
          %503 = dma.hbm_to_vmem [thread:$0]  %s496, 1024, %s498, %s486, 64, 64, 4
        $region32: #{forward.4} parent=15 // pred_fallthru
          _
        // Predicated region
        $region33: #{forward.4} parent=15 // pred_check
          %p504 = pneg %p173
        $region34: #{forward.4} parent=15 // pred_check_branch
          %506 = sbr.rel (%p504) target = $region36
        $region35: #{forward.4} parent=15 // pred_region
          %p507 = scmp.lt.s32.totalorder %s45, 1
          %s508 = scalar_select %p507, %s45, 1
          %s509 = scalar_lea.vmem %s4, %s508
        $region36: #{forward.4} parent=15 // pred_fallthru
          _
        // Predicated region
        $region37: #{forward.4} parent=15 // pred_check
          %p510 = pneg %p199
        $region38: #{forward.4} parent=15 // pred_check_branch
          %512 = sbr.rel (%p510) target = $region40
        $region39: #{forward.4} parent=15 // pred_region
          %s513 = sand.u32 %s37, 1
          %s514 = scalar_lea.sflag [#allocation9], %s513
          %s515 = sand.u32 %s189, 1
          %s516 = scalar_lea.vmem [#allocation8], %s515
          %518 = vsyncadd %s514, 0
          %s519 = scalar_lea.hbm %s5, %s45
          %s521 = sshll.u32 %s519, 4
          %s522 = int_to_ptr.hbm [resolvable:$true] %s521
          %s523 = sshll.u32 %s516, 4
          %s524 = int_to_ptr.vmem [resolvable:$true] %s523
          %526 = dma.hbm_to_vmem [thread:$0]  %s522, 16, %s524, %s514
        $region40: #{forward.4} parent=15 // pred_fallthru
          _
        // Predicated region
        $region41: #{forward.4} parent=15 // pred_check
          %p527 = pneg %p225
        $region42: #{forward.4} parent=15 // pred_check_branch
          %529 = sbr.rel (%p527) target = $region44
        $region43: #{forward.4} parent=15 // pred_region
          %s530 = sand.u32 %s37, 1
          %s531 = scalar_lea.sflag [#allocation9], %s530
          %s532 = sand.u32 %s215, 1
          %s533 = scalar_lea.vmem [#allocation10], %s532
          %535 = vsyncadd %s531, 0
          %s536 = scalar_lea.hbm %s6, %s45
          %s538 = sshll.u32 %s536, 4
          %s539 = int_to_ptr.hbm [resolvable:$true] %s538
          %s540 = sshll.u32 %s533, 4
          %s541 = int_to_ptr.vmem [resolvable:$true] %s540
          %543 = dma.hbm_to_vmem [thread:$0]  %s539, 16, %s541, %s531
        $region44: #{forward.4} parent=15 // pred_fallthru
          _
        // Predicated region
        $region45: #{forward.4} parent=15 // pred_check
          %p544 = pneg %p251
        $region46: #{forward.4} parent=15 // pred_check_branch
          %546 = sbr.rel (%p544) target = $region48
        $region47: #{forward.4} parent=15 // pred_region
          %s547 = sand.u32 %s37, 1
          %s548 = scalar_lea.sflag [#allocation12], %s547
          %s549 = sand.u32 %s241, 1
          %s550 = smul.addr %s549, 1024
          %s551 = scalar_lea.vmem [#allocation11], %s550
          %553 = vsyncadd %s548, 0
          %s554 = smul.addr %s45, 256
          %s555 = smul.addr %s554, 4
          %s556 = scalar_lea.hbm %s7, %s555
          %s557 = sshll.u32 %s556, 4
          %s558 = int_to_ptr.hbm [resolvable:$true] %s557
          %s559 = sshll.u32 %s551, 4
          %s560 = int_to_ptr.vmem [resolvable:$true] %s559
          %565 = dma.hbm_to_vmem [thread:$0]  %s558, 16384, %s560, %s548, 1024, 1024, 64
        $region48: #{forward.4} parent=15 // pred_fallthru
          _
        // Predicated region
        $region49: #{forward.4} parent=15 // pred_check
          %p566 = pneg %p277
        $region50: #{forward.4} parent=15 // pred_check_branch
          %568 = sbr.rel (%p566) target = $region52
        $region51: #{forward.4} parent=15 // pred_region
          %s569 = sand.u32 %s37, 1
          %s570 = scalar_lea.sflag [#allocation12], %s569
          %s571 = sand.u32 %s267, 1
          %s572 = smul.addr %s571, 16
          %s573 = scalar_lea.vmem [#allocation13], %s572
          %575 = vsyncadd %s570, 0
          %s576 = smul.addr %s45, 16
          %s577 = scalar_lea.hbm %s8, %s576
          %s579 = sshll.u32 %s577, 4
          %s580 = int_to_ptr.hbm [resolvable:$true] %s579
          %s581 = sshll.u32 %s573, 4
          %s582 = int_to_ptr.vmem [resolvable:$true] %s581
          %584 = dma.hbm_to_vmem [thread:$0]  %s580, 256, %s582, %s570
        $region52: #{forward.4} parent=15 // pred_fallthru
          _
        // Predicated region
        $region53: #{forward.4} parent=15 // pred_check
          %p585 = pneg %p303
        $region54: #{forward.4} parent=15 // pred_check_branch
          %587 = sbr.rel (%p585) target = $region56
        $region55: #{forward.4} parent=15 // pred_region
          %s588 = sand.u32 %s37, 1
          %s589 = scalar_lea.sflag [#allocation15], %s588
          %s590 = sand.u32 %s293, 1
          %s591 = smul.addr %s590, 1024
          %s592 = scalar_lea.vmem [#allocation14], %s591
          %594 = vsyncadd %s589, 0
          %s595 = smul.addr %s45, 256
          %s596 = smul.addr %s595, 4
          %s597 = scalar_lea.hbm %s9, %s596
          %s598 = sshll.u32 %s597, 4
          %s599 = int_to_ptr.hbm [resolvable:$true] %s598
          %s600 = sshll.u32 %s592, 4
          %s601 = int_to_ptr.vmem [resolvable:$true] %s600
          %606 = dma.hbm_to_vmem [thread:$0]  %s599, 16384, %s601, %s589, 64, 64, 4
        $region56: #{forward.4} parent=15 // pred_fallthru
          _
        // Predicated region
        $region57: #{forward.4} parent=15 // pred_check
          %p607 = pneg %p329
        $region58: #{forward.4} parent=15 // pred_check_branch
          %609 = sbr.rel (%p607) target = $region60
        $region59: #{forward.4} parent=15 // pred_region
          %s610 = sand.u32 %s37, 1
          %s611 = scalar_lea.sflag [#allocation15], %s610
          %s612 = sand.u32 %s319, 1
          %s613 = scalar_lea.vmem [#allocation16], %s612
          %615 = vsyncadd %s611, 0
          %s616 = scalar_lea.hbm %s10, %s45
          %s618 = sshll.u32 %s616, 4
          %s619 = int_to_ptr.hbm [resolvable:$true] %s618
          %s620 = sshll.u32 %s613, 4
          %s621 = int_to_ptr.vmem [resolvable:$true] %s620
          %623 = dma.hbm_to_vmem [thread:$0]  %s619, 16, %s621, %s611
        $region60: #{forward.4} parent=15 // pred_fallthru
          _
        // Predicated region
        $region61: #{forward.4} parent=15 // pred_check
          %p624 = pneg %p355
        $region62: #{forward.4} parent=15 // pred_check_branch
          %626 = sbr.rel (%p624) target = $region64
        $region63: #{forward.4} parent=15 // pred_region
          %s627 = sand.u32 %s37, 1
          %s628 = scalar_lea.sflag [#allocation18], %s627
          %s629 = sand.u32 %s345, 1
          %s630 = scalar_lea.vmem [#allocation17], %s629
          %632 = vsyncadd %s628, 0
          %s633 = scalar_lea.hbm %s11, %s45
          %s635 = sshll.u32 %s633, 4
          %s636 = int_to_ptr.hbm [resolvable:$true] %s635
          %s637 = sshll.u32 %s630, 4
          %s638 = int_to_ptr.vmem [resolvable:$true] %s637
          %640 = dma.hbm_to_vmem [thread:$0]  %s636, 16, %s638, %s628
        $region64: #{forward.4} parent=15 // pred_fallthru
          _
        // Predicated region
        $region65: #{forward.4} parent=15 // pred_check
          %p641 = pneg %p381
        $region66: #{forward.4} parent=15 // pred_check_branch
          %643 = sbr.rel (%p641) target = $region68
        $region67: #{forward.4} parent=15 // pred_region
          %s644 = sand.u32 %s37, 1
          %s645 = scalar_lea.sflag [#allocation18], %s644
          %s646 = sand.u32 %s371, 1
          %s647 = scalar_lea.vmem [#allocation19], %s646
          %649 = vsyncadd %s645, 0
          %s650 = scalar_lea.hbm %s12, %s45
          %s652 = sshll.u32 %s650, 4
          %s653 = int_to_ptr.hbm [resolvable:$true] %s652
          %s654 = sshll.u32 %s647, 4
          %s655 = int_to_ptr.vmem [resolvable:$true] %s654
          %657 = dma.hbm_to_vmem [thread:$0]  %s653, 16, %s655, %s645
        $region68: #{forward.4} parent=15 // pred_fallthru
          _
      $region16: #{forward.4} parent=5 // pred_fallthru
        _
      %p658 = scmp.le.s32.totalorder 1, %s37
      %p659 = scmp.lt.s32.totalorder %s37, 5
      %p660 = pnand %p658, %p659
      %p661 = pneg %p660
      // Predicated region
      $region69: #{forward.4} parent=5 // pred_check
        _
      $region70: #{forward.4} parent=5 // pred_check_branch
        %663 = sbr.rel (%p660) target = $region72
      $region71: #{forward.4} parent=5 // pred_region
        %s664 = ssub.s32 %s37, 1
        %s665 = sand.u32 %s88, 1
        %s666 = scalar_lea.sflag [#allocation4], %s665
        %s667 = sand.u32 %s88, 1
        %s668 = smul.addr %s667, 192
        %s669 = scalar_lea.vmem [#allocation3], %s668
        // Predicated region
        $region73: #{forward.4} parent=71 // pred_check
          %p670 = pneg %p101
        $region74: #{forward.4} parent=71 // pred_check_branch
          %672 = sbr.rel (%p670) target = $region76
        $region75: #{forward.4} parent=71 // pred_region
          %674 = dma.done %s666, 3072
        $region76: #{forward.4} parent=71 // pred_fallthru
          _
        %s675 = sand.u32 %s42, 1
        %s676 = scalar_lea.sflag [#allocation6], %s675
        %s677 = sand.u32 %s114, 1
        %s678 = smul.addr %s677, 3
        %s679 = scalar_lea.vmem [#allocation5], %s678
        // Predicated region
        $region77: #{forward.4} parent=71 // pred_check
          %p680 = pneg %p127
        $region78: #{forward.4} parent=71 // pred_check_branch
          %682 = sbr.rel (%p680) target = $region80
        $region79: #{forward.4} parent=71 // pred_region
          %684 = dma.done %s676, 48
        $region80: #{forward.4} parent=71 // pred_fallthru
          _
        %s685 = sand.u32 %s42, 1
        %s686 = scalar_lea.sflag [#allocation6], %s685
        %s687 = sand.u32 %s140, 1
        %s688 = smul.addr %s687, 64
        %s689 = scalar_lea.vmem [#allocation7], %s688
        // Predicated region
        $region81: #{forward.4} parent=71 // pred_check
          %p690 = pneg %p153
        $region82: #{forward.4} parent=71 // pred_check_branch
          %692 = sbr.rel (%p690) target = $region84
        $region83: #{forward.4} parent=71 // pred_region
          %694 = dma.done %s686, 1024
        $region84: #{forward.4} parent=71 // pred_fallthru
          _
        %s695 = sand.u32 %s42, 1
        %s696 = scalar_lea.sflag [#allocation9], %s695
        %s697 = sand.u32 %s192, 1
        %s698 = scalar_lea.vmem [#allocation8], %s697
        // Predicated region
        $region85: #{forward.4} parent=71 // pred_check
          %p699 = pneg %p205
        $region86: #{forward.4} parent=71 // pred_check_branch
          %701 = sbr.rel (%p699) target = $region88
        $region87: #{forward.4} parent=71 // pred_region
          %703 = dma.done %s696, 16
        $region88: #{forward.4} parent=71 // pred_fallthru
          _
        %s704 = sand.u32 %s42, 1
        %s705 = scalar_lea.sflag [#allocation9], %s704
        %s706 = sand.u32 %s218, 1
        %s707 = scalar_lea.vmem [#allocation10], %s706
        // Predicated region
        $region89: #{forward.4} parent=71 // pred_check
          %p708 = pneg %p231
        $region90: #{forward.4} parent=71 // pred_check_branch
          %710 = sbr.rel (%p708) target = $region92
        $region91: #{forward.4} parent=71 // pred_region
          %712 = dma.done %s705, 16
        $region92: #{forward.4} parent=71 // pred_fallthru
          _
        %s713 = sand.u32 %s42, 1
        %s714 = scalar_lea.sflag [#allocation12], %s713
        %s715 = sand.u32 %s244, 1
        %s716 = smul.addr %s715, 1024
        %s717 = scalar_lea.vmem [#allocation11], %s716
        // Predicated region
        $region93: #{forward.4} parent=71 // pred_check
          %p718 = pneg %p257
        $region94: #{forward.4} parent=71 // pred_check_branch
          %720 = sbr.rel (%p718) target = $region96
        $region95: #{forward.4} parent=71 // pred_region
          %722 = dma.done %s714, 16384
        $region96: #{forward.4} parent=71 // pred_fallthru
          _
        %s723 = sand.u32 %s42, 1
        %s724 = scalar_lea.sflag [#allocation12], %s723
        %s725 = sand.u32 %s270, 1
        %s726 = smul.addr %s725, 16
        %s727 = scalar_lea.vmem [#allocation13], %s726
        // Predicated region
        $region97: #{forward.4} parent=71 // pred_check
          %p728 = pneg %p283
        $region98: #{forward.4} parent=71 // pred_check_branch
          %730 = sbr.rel (%p728) target = $region100
        $region99: #{forward.4} parent=71 // pred_region
          %732 = dma.done %s724, 256
        $region100: #{forward.4} parent=71 // pred_fallthru
          _
        %s733 = sand.u32 %s42, 1
        %s734 = scalar_lea.sflag [#allocation15], %s733
        %s735 = sand.u32 %s296, 1
        %s736 = smul.addr %s735, 1024
        %s737 = scalar_lea.vmem [#allocation14], %s736
        // Predicated region
        $region101: #{forward.4} parent=71 // pred_check
          %p738 = pneg %p309
        $region102: #{forward.4} parent=71 // pred_check_branch
          %740 = sbr.rel (%p738) target = $region104
        $region103: #{forward.4} parent=71 // pred_region
          %742 = dma.done %s734, 16384
        $region104: #{forward.4} parent=71 // pred_fallthru
          _
        %s743 = sand.u32 %s42, 1
        %s744 = scalar_lea.sflag [#allocation15], %s743
        %s745 = sand.u32 %s322, 1
        %s746 = scalar_lea.vmem [#allocation16], %s745
        // Predicated region
        $region105: #{forward.4} parent=71 // pred_check
          %p747 = pneg %p335
        $region106: #{forward.4} parent=71 // pred_check_branch
          %749 = sbr.rel (%p747) target = $region108
        $region107: #{forward.4} parent=71 // pred_region
          %751 = dma.done %s744, 16
        $region108: #{forward.4} parent=71 // pred_fallthru
          _
        %s752 = sand.u32 %s42, 1
        %s753 = scalar_lea.sflag [#allocation18], %s752
        %s754 = sand.u32 %s348, 1
        %s755 = scalar_lea.vmem [#allocation17], %s754
        // Predicated region
        $region109: #{forward.4} parent=71 // pred_check
          %p756 = pneg %p361
        $region110: #{forward.4} parent=71 // pred_check_branch
          %758 = sbr.rel (%p756) target = $region112
        $region111: #{forward.4} parent=71 // pred_region
          %760 = dma.done %s753, 16
        $region112: #{forward.4} parent=71 // pred_fallthru
          _
        %s761 = sand.u32 %s42, 1
        %s762 = scalar_lea.sflag [#allocation18], %s761
        %s763 = sand.u32 %s374, 1
        %s764 = scalar_lea.vmem [#allocation19], %s763
        // Predicated region
        $region113: #{forward.4} parent=71 // pred_check
          %p765 = pneg %p387
        $region114: #{forward.4} parent=71 // pred_check_branch
          %767 = sbr.rel (%p765) target = $region116
        $region115: #{forward.4} parent=71 // pred_region
          %769 = dma.done %s762, 16
        $region116: #{forward.4} parent=71 // pred_fallthru
          _
        %s770 = smul.u32 2, %s46
        %p771 = scmp.lt.s32.totalorder %s770, 3
        %s772 = scalar_select %p771, %s770, 3
        %s773 = smul.addr %s772, 8
        %s774 = scalar_lea.vmem %s0, %s773
        %p775 = pneg %p75
        %p776 = pneg %p72
        %s777 = sand.u32 %s88, 1
        %s778 = scalar_lea.sflag [#allocation4], %s777
        %s779 = sand.u32 %s88, 1
        %s780 = smul.addr %s779, 192
        %s781 = scalar_lea.vmem [#allocation3], %s780
        %p782 = pneg %p101
        %p783 = pneg %p98
        %s784 = sand.u32 %s42, 1
        %s785 = scalar_lea.sflag [#allocation6], %s784
        %s786 = sand.u32 %s114, 1
        %s787 = smul.addr %s786, 3
        %s788 = scalar_lea.vmem [#allocation5], %s787
        %p789 = pneg %p127
        %p790 = pneg %p124
        %s791 = sand.u32 %s42, 1
        %s792 = scalar_lea.sflag [#allocation6], %s791
        %s793 = sand.u32 %s140, 1
        %s794 = smul.addr %s793, 64
        %s795 = scalar_lea.vmem [#allocation7], %s794
        %p796 = pneg %p153
        %p797 = pneg %p150
        %p798 = scmp.lt.s32.totalorder %s47, 1
        %s799 = scalar_select %p798, %s47, 1
        %s800 = scalar_lea.vmem %s4, %s799
        %p801 = pneg %p179
        %p802 = pneg %p176
        %s803 = sand.u32 %s42, 1
        %s804 = scalar_lea.sflag [#allocation9], %s803
        %s805 = sand.u32 %s192, 1
        %s806 = scalar_lea.vmem [#allocation8], %s805
        %p807 = pneg %p205
        %p808 = pneg %p202
        %s809 = sand.u32 %s42, 1
        %s810 = scalar_lea.sflag [#allocation9], %s809
        %s811 = sand.u32 %s218, 1
        %s812 = scalar_lea.vmem [#allocation10], %s811
        %p813 = pneg %p231
        %p814 = pneg %p228
        %s815 = sand.u32 %s42, 1
        %s816 = scalar_lea.sflag [#allocation12], %s815
        %s817 = sand.u32 %s244, 1
        %s818 = smul.addr %s817, 1024
        %s819 = scalar_lea.vmem [#allocation11], %s818
        %p820 = pneg %p257
        %p821 = pneg %p254
        %s822 = sand.u32 %s42, 1
        %s823 = scalar_lea.sflag [#allocation12], %s822
        %s824 = sand.u32 %s270, 1
        %s825 = smul.addr %s824, 16
        %s826 = scalar_lea.vmem [#allocation13], %s825
        %p827 = pneg %p283
        %p828 = pneg %p280
        %s829 = sand.u32 %s42, 1
        %s830 = scalar_lea.sflag [#allocation15], %s829
        %s831 = sand.u32 %s296, 1
        %s832 = smul.addr %s831, 1024
        %s833 = scalar_lea.vmem [#allocation14], %s832
        %p834 = pneg %p309
        %p835 = pneg %p306
        %s836 = sand.u32 %s42, 1
        %s837 = scalar_lea.sflag [#allocation15], %s836
        %s838 = sand.u32 %s322, 1
        %s839 = scalar_lea.vmem [#allocation16], %s838
        %p840 = pneg %p335
        %p841 = pneg %p332
        %s842 = sand.u32 %s42, 1
        %s843 = scalar_lea.sflag [#allocation18], %s842
        %s844 = sand.u32 %s348, 1
        %s845 = scalar_lea.vmem [#allocation17], %s844
        %p846 = pneg %p361
        %p847 = pneg %p358
        %s848 = sand.u32 %s42, 1
        %s849 = scalar_lea.sflag [#allocation18], %s848
        %s850 = sand.u32 %s374, 1
        %s851 = scalar_lea.vmem [#allocation19], %s850
        %p852 = pneg %p387
        %p853 = pneg %p384
        %p854 = pneg %p413
        %p855 = pneg %p410
        %s856 = smul.u32 2, %s46
        %p857 = scmp.lt.s32.totalorder %s856, 3
        %s858 = scalar_select %p857, %s856, 3
        %s859 = scalar_lea.vmem %s13, %s858
        %s860 = smul.u32 2, %s46
        %p861 = scmp.lt.s32.totalorder %s860, 3
        %s862 = scalar_select %p861, %s860, 3
        %s863 = smul.addr %s862, 8
        %s864 = scalar_lea.vmem %s0, %s863
        %s865 = smul.u32 2, %s46
        %p866 = scmp.lt.s32.totalorder %s47, 1
        %s867 = scalar_select %p866, %s47, 1
        %s868 = scalar_lea.vmem %s4, %s867
        %s869 = smul.u32 2, %s46
        %p870 = scmp.lt.s32.totalorder %s869, 3
        %s871 = scalar_select %p870, %s869, 3
        %s872 = scalar_lea.vmem %s13, %s871
        %s873 = smul.u32 2, %s46
        %p875 = scmp.eq.s32.totalorder %s47, 0
        // Predicated region
        $region117: #{forward.4} parent=71 // pred_check
          %p876 = pneg %p875
        $region118: #{forward.4} parent=71 // pred_check_branch
          %878 = sbr.rel (%p876) target = $region120
        $region119: #{forward.4} parent=71 // pred_region
          %v879 = vld [vmem:[%s864] sm:$0xff]
          %v880 = vld [vmem:[%s864 + $0x8] sm:$0xff]
          %881 = vst [vmem:[#allocation2] sm:$0xff] %v879
          %882 = vst [vmem:[#allocation2 + $0x8] sm:$0xff] %v880
        $region120: #{forward.4} parent=71 // pred_fallthru
          _
        %v883 = vld [vmem:[#allocation2] sm:$0xff]
        %v884 = vld [vmem:[#allocation2 + $0x8] sm:$0xff]
        %v885 = vpack.c.bf16 %v884, %v883
        %v886 = vld [vmem:[%s669] sm:$0xff]
        %v887 = vld [vmem:[%s669 + $0x8] sm:$0xf]
        %v888 = vld [vmem:[%s669 + $0xc] sm:$0xff]
        %v889 = vld [vmem:[%s669 + $0x14] sm:$0xf]
        %v890 = vld [vmem:[%s669 + $0x18] sm:$0xff]
        %v891 = vld [vmem:[%s669 + $0x20] sm:$0xf]
        %v892 = vld [vmem:[%s669 + $0x24] sm:$0xff]
        %v893 = vld [vmem:[%s669 + $0x2c] sm:$0xf]
        %v894 = vld [vmem:[%s669 + $0x30] sm:$0xff]
        %v895 = vld [vmem:[%s669 + $0x38] sm:$0xf]
        %v896 = vld [vmem:[%s669 + $0x3c] sm:$0xff]
        %v897 = vld [vmem:[%s669 + $0x44] sm:$0xf]
        %v898 = vld [vmem:[%s669 + $0x48] sm:$0xff]
        %v899 = vld [vmem:[%s669 + $0x50] sm:$0xf]
        %v900 = vld [vmem:[%s669 + $0x54] sm:$0xff]
        %v901 = vld [vmem:[%s669 + $0x5c] sm:$0xf]
        %v902 = vld [vmem:[%s669 + $0x60] sm:$0xff]
        %v903 = vld [vmem:[%s669 + $0x68] sm:$0xf]
        %v904 = vld [vmem:[%s669 + $0x6c] sm:$0xff]
        %v905 = vld [vmem:[%s669 + $0x74] sm:$0xf]
        %v906 = vld [vmem:[%s669 + $0x78] sm:$0xff]
        %v907 = vld [vmem:[%s669 + $0x80] sm:$0xf]
        %v908 = vld [vmem:[%s669 + $0x84] sm:$0xff]
        %v909 = vld [vmem:[%s669 + $0x8c] sm:$0xf]
        %v910 = vld [vmem:[%s669 + $0x90] sm:$0xff]
        %v911 = vld [vmem:[%s669 + $0x98] sm:$0xf]
        %v912 = vld [vmem:[%s669 + $0x9c] sm:$0xff]
        %v913 = vld [vmem:[%s669 + $0xa4] sm:$0xf]
        %v914 = vld [vmem:[%s669 + $0xa8] sm:$0xff]
        %v915 = vld [vmem:[%s669 + $0xb0] sm:$0xf]
        %v916 = vld [vmem:[%s669 + $0xb4] sm:$0xff]
        %v917 = vld [vmem:[%s669 + $0xbc] sm:$0xf]
        %v918 = vld [vmem:[%s679] sm:$0x7]
        %v920 = vperm.slane %v918, 0
        %v921 = vperm.slane %v918, 1
        %v922 = vperm.slane %v918, 2
        %v958 = vunpack.c.l.b16 %v886
        %v959 = vunpack.c.h.b16 %v886
        %v960 = vunpack.c.l.b16 %v887
        %v961 = vunpack.c.l.b16 %v888
        %v962 = vunpack.c.h.b16 %v888
        %v963 = vunpack.c.l.b16 %v889
        %v964 = vunpack.c.l.b16 %v890
        %v965 = vunpack.c.h.b16 %v890
        %v966 = vunpack.c.l.b16 %v891
        %v967 = vunpack.c.l.b16 %v892
        %v968 = vunpack.c.h.b16 %v892
        %v969 = vunpack.c.l.b16 %v893
        %v970 = vunpack.c.l.b16 %v894
        %v971 = vunpack.c.h.b16 %v894
        %v972 = vunpack.c.l.b16 %v895
        %v973 = vunpack.c.l.b16 %v896
        %v974 = vunpack.c.h.b16 %v896
        %v975 = vunpack.c.l.b16 %v897
        %v976 = vunpack.c.l.b16 %v898
        %v977 = vunpack.c.h.b16 %v898
        %v978 = vunpack.c.l.b16 %v899
        %v979 = vunpack.c.l.b16 %v900
        %v980 = vunpack.c.h.b16 %v900
        %v981 = vunpack.c.l.b16 %v901
        %v982 = vunpack.c.l.b16 %v902
        %v983 = vunpack.c.h.b16 %v902
        %v984 = vunpack.c.l.b16 %v903
        %v985 = vunpack.c.l.b16 %v904
        %v986 = vunpack.c.h.b16 %v904
        %v987 = vunpack.c.l.b16 %v905
        %v988 = vunpack.c.l.b16 %v906
        %v989 = vunpack.c.h.b16 %v906
        %v990 = vunpack.c.l.b16 %v907
        %v991 = vunpack.c.l.b16 %v908
        %v992 = vunpack.c.h.b16 %v908
        %v993 = vunpack.c.l.b16 %v909
        %v994 = vunpack.c.l.b16 %v910
        %v995 = vunpack.c.h.b16 %v910
        %v996 = vunpack.c.l.b16 %v911
        %v997 = vunpack.c.l.b16 %v912
        %v998 = vunpack.c.h.b16 %v912
        %v999 = vunpack.c.l.b16 %v913
        %v1000 = vunpack.c.l.b16 %v914
        %v1001 = vunpack.c.h.b16 %v914
        %v1002 = vunpack.c.l.b16 %v915
        %v1003 = vunpack.c.l.b16 %v916
        %v1004 = vunpack.c.h.b16 %v916
        %v1005 = vunpack.c.l.b16 %v917
        %v1006 = vpack.c.b16 %v961, %v958
        %v1007 = vpack.c.b16 %v962, %v959
        %v1008 = vpack.c.b16 %v963, %v960
        %v1009 = vpack.c.b16 %v967, %v964
        %v1010 = vpack.c.b16 %v968, %v965
        %v1011 = vpack.c.b16 %v969, %v966
        %v1012 = vpack.c.b16 %v973, %v970
        %v1013 = vpack.c.b16 %v974, %v971
        %v1014 = vpack.c.b16 %v975, %v972
        %v1015 = vpack.c.b16 %v979, %v976
        %v1016 = vpack.c.b16 %v980, %v977
        %v1017 = vpack.c.b16 %v981, %v978
        %v1018 = vpack.c.b16 %v985, %v982
        %v1019 = vpack.c.b16 %v986, %v983
        %v1020 = vpack.c.b16 %v987, %v984
        %v1021 = vpack.c.b16 %v991, %v988
        %v1022 = vpack.c.b16 %v992, %v989
        %v1023 = vpack.c.b16 %v993, %v990
        %v1024 = vpack.c.b16 %v997, %v994
        %v1025 = vpack.c.b16 %v998, %v995
        %v1026 = vpack.c.b16 %v999, %v996
        %v1027 = vpack.c.b16 %v1003, %v1000
        %v1028 = vpack.c.b16 %v1004, %v1001
        %v1029 = vpack.c.b16 %v1005, %v1002
        %1054 = vmatpush.bf16.msra.mxu0 %v1027
        %1055 = vmatpush.bf16.msra.mxu0 %v1024
        %1056 = vmatpush.bf16.msra.mxu0 %v1021
        %1057 = vmatpush.bf16.msra.mxu0 %v1018
        %1058 = vmatpush.bf16.msra.mxu0 %v1015
        %1059 = vmatpush.bf16.msra.mxu0 %v1012
        %1060 = vmatpush.bf16.msra.mxu0 %v1009
        %1061 = vmatpush.bf16.msra.mxu0 %v1006
        %1062 = vmatmul.bf16.gmra.mxu0 %v885
        %v1063 = vpop.f32.mrf.mxu0
        %v1064 = vadd.f32 %v920, %v1063
        %v1065 = vpop.f32.mrf.mxu0
        %v1066 = vadd.f32 %v920, %v1065
        %1067 = vdwg.mxu0
        %1068 = vmatpush.bf16.msra.mxu0 %v1028
        %1069 = vmatpush.bf16.msra.mxu0 %v1025
        %1070 = vmatpush.bf16.msra.mxu0 %v1022
        %1071 = vmatpush.bf16.msra.mxu0 %v1019
        %1072 = vmatpush.bf16.msra.mxu0 %v1016
        %1073 = vmatpush.bf16.msra.mxu0 %v1013
        %1074 = vmatpush.bf16.msra.mxu0 %v1010
        %1075 = vmatpush.bf16.msra.mxu0 %v1007
        %1076 = vmatmul.bf16.gmra.mxu0 %v885
        %v1077 = vpop.f32.mrf.mxu0
        %v1078 = vadd.f32 %v921, %v1077
        %v1079 = vpop.f32.mrf.mxu0
        %v1080 = vadd.f32 %v921, %v1079
        %1081 = vdwg.mxu0
        %1082 = vmatpush.bf16.msra.mxu0 %v1029
        %1083 = vmatpush.bf16.msra.mxu0 %v1026
        %1084 = vmatpush.bf16.msra.mxu0 %v1023
        %1085 = vmatpush.bf16.msra.mxu0 %v1020
        %1086 = vmatpush.bf16.msra.mxu0 %v1017
        %1087 = vmatpush.bf16.msra.mxu0 %v1014
        %1088 = vmatpush.bf16.msra.mxu0 %v1011
        %1089 = vmatpush.bf16.msra.mxu0 %v1008
        %1090 = vmatmul.bf16.gmra.mxu0 %v885
        %v1091 = vpop.f32.mrf.mxu0
        %v1092 = vadd.f32 %v922, %v1091
        %v1093 = vpop.f32.mrf.mxu0
        %v1094 = vadd.f32 %v922, %v1093
        %1095 = vdwg.mxu0
        %v1096 = vpack.c.bf16 %v1064, %v1064
        %v1097 = vpack.c.bf16 %v1066, %v1066
        %v1098 = vpack.c.bf16 %v1078, %v1078
        %v1099 = vpack.c.bf16 %v1080, %v1080
        %v1100 = vpack.c.bf16 %v1092, %v1092
        %v1101 = vpack.c.bf16 %v1094, %v1094
        %vm1102 = vcmask 130048
        %v1104 = vsel %vm1102, %v1096, 0
        %v1107 = vsel %vm1102, %v1098, 0
        %1109 = vmatpush.bf16.xpose.msra.mxu0 0
        %1110 = vmatpush.bf16.xpose.msra.mxu0 0
        %1111 = vmatpush.bf16.xpose.msra.mxu0 0
        %1112 = vmatpush.bf16.xpose.msra.mxu0 0
        %1113 = vmatpush.bf16.xpose.msra.mxu0 0
        %1114 = vmatpush.bf16.xpose.msra.mxu0 0
        %1115 = vmatpush.bf16.xpose.msra.mxu0 0
        %1116 = vmatpush.bf16.xpose.msra.mxu0 %v1107
        %1117 = vmatmul.bf16.gmra.mxu0 %v1104
        %v1118 = vpop.f32.mrf.mxu0
        %v1119 = vadd.f32 0.0, %v1118
        %v1120 = vpop.f32.mrf.mxu0
        %1121 = vdwg.mxu0
        %v1123 = vsel %vm1102, %v1097, 0
        %v1126 = vsel %vm1102, %v1099, 0
        %1128 = vmatpush.bf16.xpose.msra.mxu0 0
        %1129 = vmatpush.bf16.xpose.msra.mxu0 0
        %1130 = vmatpush.bf16.xpose.msra.mxu0 0
        %1131 = vmatpush.bf16.xpose.msra.mxu0 0
        %1132 = vmatpush.bf16.xpose.msra.mxu0 0
        %1133 = vmatpush.bf16.xpose.msra.mxu0 0
        %1134 = vmatpush.bf16.xpose.msra.mxu0 0
        %1135 = vmatpush.bf16.xpose.msra.mxu0 %v1126
        %1136 = vmatmul.bf16.gmra.mxu0 %v1123
        %v1137 = vpop.f32.mrf.mxu0
        %v1138 = vadd.f32 0.0, %v1137
        %v1139 = vpop.f32.mrf.mxu0
        %1140 = vdwg.mxu0
        %v1141 = vmul.f32 %v1119, 0.25
        %v1142 = vmul.f32 %v1138, 0.25
        %vm1143 = vcmask 64512
        %v1144 = vsel %vm1143, %v1141, -inf
        %1145 = vmax.xlane.f32.xlu0 %v1144
        %v1146 = vpop.xlane.xlu0 %1145
        %v1147 = vsel %vm1143, %v1142, -inf
        %1148 = vmax.xlane.f32.xlu0 %v1147
        %v1149 = vpop.xlane.xlu0 %1148
        %v1150 = vsub.f32 %v1141, %v1146
        %v1151 = vsub.f32 %v1142, %v1149
        %v1152 = vmul.f32 %v1150, 1.442695
        %v1153 = vpow.pop %v1152
        %v1154 = vmul.f32 %v1151, 1.442695
        %v1155 = vpow.pop %v1154
        %v1156 = vsel %vm1143, %v1153, 0.0
        %1157 = vadd.xlane.f32.xlu0 %v1156
        %v1158 = vpop.xlane.xlu0 %1157
        %v1159 = vsel %vm1143, %v1155, 0.0
        %1160 = vadd.xlane.f32.xlu0 %v1159
        %v1161 = vpop.xlane.xlu0 %1160
        %v1162 = vrcp.pop %v1158
        %v1163 = vrcp.pop %v1161
        %v1164 = vmul.f32 %v1153, %v1162
        %v1165 = vmul.f32 %v1155, %v1163
        %v1166 = vpack.c.bf16 %v1164, %v1164
        %v1167 = vpack.c.bf16 %v1165, %v1165
        %v1169 = vsel %vm1143, %v1166, 0
        %vm1171 = vcmask 1043456
        %v1173 = vsel %vm1171, %v1100, 0
        %1175 = vmatpush.bf16.msra.mxu0 0
        %1176 = vmatpush.bf16.msra.mxu0 0
        %1177 = vmatpush.bf16.msra.mxu0 0
        %1178 = vmatpush.bf16.msra.mxu0 0
        %1179 = vmatpush.bf16.msra.mxu0 0
        %1180 = vmatpush.bf16.msra.mxu0 0
        %1181 = vmatpush.bf16.msra.mxu0 0
        %1182 = vmatpush.bf16.msra.mxu0 %v1173
        %1183 = vmatmul.bf16.gmra.mxu0 %v1169
        %v1184 = vpop.f32.mrf.mxu0
        %v1185 = vadd.f32 0.0, %v1184
        %v1186 = vpop.f32.mrf.mxu0
        %1187 = vdwg.mxu0
        %v1189 = vsel %vm1143, %v1167, 0
        %v1192 = vsel %vm1171, %v1101, 0
        %1194 = vmatpush.bf16.msra.mxu0 0
        %1195 = vmatpush.bf16.msra.mxu0 0
        %1196 = vmatpush.bf16.msra.mxu0 0
        %1197 = vmatpush.bf16.msra.mxu0 0
        %1198 = vmatpush.bf16.msra.mxu0 0
        %1199 = vmatpush.bf16.msra.mxu0 0
        %1200 = vmatpush.bf16.msra.mxu0 0
        %1201 = vmatpush.bf16.msra.mxu0 %v1192
        %1202 = vmatmul.bf16.gmra.mxu0 %v1189
        %v1203 = vpop.f32.mrf.mxu0
        %v1204 = vadd.f32 0.0, %v1203
        %v1205 = vpop.f32.mrf.mxu0
        %1206 = vdwg.mxu0
        %v1208 = vunpack.c.l.b16 %v1096
        %v1209 = vpack.c.b16 %v1208, %v1208
        %1210 = vrot.lane.b32.xlu0 %v1209, 112
        %v1211 = vpop.permute.xlu0 %1210
        %v1213 = vunpack.c.l.b16 %v1098
        %v1214 = vpack.c.b16 %v1213, %v1213
        %1215 = vrot.lane.b32.xlu0 %v1214, 112
        %v1216 = vpop.permute.xlu0 %1215
        %v1218 = vsel %vm1102, %v1211, 0
        %v1221 = vsel %vm1102, %v1216, 0
        %1223 = vmatpush.bf16.xpose.msra.mxu0 0
        %1224 = vmatpush.bf16.xpose.msra.mxu0 0
        %1225 = vmatpush.bf16.xpose.msra.mxu0 0
        %1226 = vmatpush.bf16.xpose.msra.mxu0 0
        %1227 = vmatpush.bf16.xpose.msra.mxu0 0
        %1228 = vmatpush.bf16.xpose.msra.mxu0 0
        %1229 = vmatpush.bf16.xpose.msra.mxu0 0
        %1230 = vmatpush.bf16.xpose.msra.mxu0 %v1221
        %1231 = vmatmul.bf16.gmra.mxu0 %v1218
        %v1232 = vpop.f32.mrf.mxu0
        %v1233 = vadd.f32 0.0, %v1232
        %v1234 = vpop.f32.mrf.mxu0
        %1235 = vdwg.mxu0
        %v1237 = vunpack.c.l.b16 %v1097
        %v1238 = vpack.c.b16 %v1237, %v1237
        %1239 = vrot.lane.b32.xlu0 %v1238, 112
        %v1240 = vpop.permute.xlu0 %1239
        %v1242 = vunpack.c.l.b16 %v1099
        %v1243 = vpack.c.b16 %v1242, %v1242
        %1244 = vrot.lane.b32.xlu0 %v1243, 112
        %v1245 = vpop.permute.xlu0 %1244
        %v1247 = vsel %vm1102, %v1240, 0
        %v1250 = vsel %vm1102, %v1245, 0
        %1252 = vmatpush.bf16.xpose.msra.mxu0 0
        %1253 = vmatpush.bf16.xpose.msra.mxu0 0
        %1254 = vmatpush.bf16.xpose.msra.mxu0 0
        %1255 = vmatpush.bf16.xpose.msra.mxu0 0
        %1256 = vmatpush.bf16.xpose.msra.mxu0 0
        %1257 = vmatpush.bf16.xpose.msra.mxu0 0
        %1258 = vmatpush.bf16.xpose.msra.mxu0 0
        %1259 = vmatpush.bf16.xpose.msra.mxu0 %v1250
        %1260 = vmatmul.bf16.gmra.mxu0 %v1247
        %v1261 = vpop.f32.mrf.mxu0
        %v1262 = vadd.f32 0.0, %v1261
        %v1263 = vpop.f32.mrf.mxu0
        %1264 = vdwg.mxu0
        %v1265 = vmul.f32 %v1233, 0.25
        %v1266 = vmul.f32 %v1262, 0.25
        %v1267 = vsel %vm1143, %v1265, -inf
        %1268 = vmax.xlane.f32.xlu0 %v1267
        %v1269 = vpop.xlane.xlu0 %1268
        %v1270 = vsel %vm1143, %v1266, -inf
        %1271 = vmax.xlane.f32.xlu0 %v1270
        %v1272 = vpop.xlane.xlu0 %1271
        %v1273 = vsub.f32 %v1265, %v1269
        %v1274 = vsub.f32 %v1266, %v1272
        %v1275 = vmul.f32 %v1273, 1.442695
        %v1276 = vpow.pop %v1275
        %v1277 = vmul.f32 %v1274, 1.442695
        %v1278 = vpow.pop %v1277
        %v1279 = vsel %vm1143, %v1276, 0.0
        %1280 = vadd.xlane.f32.xlu0 %v1279
        %v1281 = vpop.xlane.xlu0 %1280
        %v1282 = vsel %vm1143, %v1278, 0.0
        %1283 = vadd.xlane.f32.xlu0 %v1282
        %v1284 = vpop.xlane.xlu0 %1283
        %v1285 = vrcp.pop %v1281
        %v1286 = vrcp.pop %v1284
        %v1287 = vmul.f32 %v1276, %v1285
        %v1288 = vmul.f32 %v1278, %v1286
        %v1289 = vpack.c.bf16 %v1287, %v1287
        %v1290 = vpack.c.bf16 %v1288, %v1288
        %v1292 = vunpack.c.l.b16 %v1100
        %v1293 = vpack.c.b16 %v1292, %v1292
        %1294 = vrot.lane.b32.xlu0 %v1293, 112
        %v1295 = vpop.permute.xlu0 %1294
        %v1297 = vsel %vm1143, %v1289, 0
        %v1300 = vsel %vm1171, %v1295, 0
        %1302 = vmatpush.bf16.msra.mxu0 0
        %1303 = vmatpush.bf16.msra.mxu0 0
        %1304 = vmatpush.bf16.msra.mxu0 0
        %1305 = vmatpush.bf16.msra.mxu0 0
        %1306 = vmatpush.bf16.msra.mxu0 0
        %1307 = vmatpush.bf16.msra.mxu0 0
        %1308 = vmatpush.bf16.msra.mxu0 0
        %1309 = vmatpush.bf16.msra.mxu0 %v1300
        %1310 = vmatmul.bf16.gmra.mxu0 %v1297
        %v1311 = vpop.f32.mrf.mxu0
        %v1312 = vadd.f32 0.0, %v1311
        %v1313 = vpop.f32.mrf.mxu0
        %1314 = vdwg.mxu0
        %v1316 = vunpack.c.l.b16 %v1101
        %v1317 = vpack.c.b16 %v1316, %v1316
        %1318 = vrot.lane.b32.xlu0 %v1317, 112
        %v1319 = vpop.permute.xlu0 %1318
        %v1321 = vsel %vm1143, %v1290, 0
        %v1324 = vsel %vm1171, %v1319, 0
        %1326 = vmatpush.bf16.msra.mxu0 0
        %1327 = vmatpush.bf16.msra.mxu0 0
        %1328 = vmatpush.bf16.msra.mxu0 0
        %1329 = vmatpush.bf16.msra.mxu0 0
        %1330 = vmatpush.bf16.msra.mxu0 0
        %1331 = vmatpush.bf16.msra.mxu0 0
        %1332 = vmatpush.bf16.msra.mxu0 0
        %1333 = vmatpush.bf16.msra.mxu0 %v1324
        %1334 = vmatmul.bf16.gmra.mxu0 %v1321
        %v1335 = vpop.f32.mrf.mxu0
        %v1336 = vadd.f32 0.0, %v1335
        %v1337 = vpop.f32.mrf.mxu0
        %1338 = vdwg.mxu0
        %1339 = vrot.lane.b32.xlu0 %v1209, 96
        %v1340 = vpop.permute.xlu0 %1339
        %1341 = vrot.lane.b32.xlu0 %v1214, 96
        %v1342 = vpop.permute.xlu0 %1341
        %v1344 = vsel %vm1102, %v1340, 0
        %v1347 = vsel %vm1102, %v1342, 0
        %1349 = vmatpush.bf16.xpose.msra.mxu0 0
        %1350 = vmatpush.bf16.xpose.msra.mxu0 0
        %1351 = vmatpush.bf16.xpose.msra.mxu0 0
        %1352 = vmatpush.bf16.xpose.msra.mxu0 0
        %1353 = vmatpush.bf16.xpose.msra.mxu0 0
        %1354 = vmatpush.bf16.xpose.msra.mxu0 0
        %1355 = vmatpush.bf16.xpose.msra.mxu0 0
        %1356 = vmatpush.bf16.xpose.msra.mxu0 %v1347
        %1357 = vmatmul.bf16.gmra.mxu0 %v1344
        %v1358 = vpop.f32.mrf.mxu0
        %v1359 = vadd.f32 0.0, %v1358
        %v1360 = vpop.f32.mrf.mxu0
        %1361 = vdwg.mxu0
        %1362 = vrot.lane.b32.xlu0 %v1238, 96
        %v1363 = vpop.permute.xlu0 %1362
        %1364 = vrot.lane.b32.xlu0 %v1243, 96
        %v1365 = vpop.permute.xlu0 %1364
        %v1367 = vsel %vm1102, %v1363, 0
        %v1370 = vsel %vm1102, %v1365, 0
        %1372 = vmatpush.bf16.xpose.msra.mxu0 0
        %1373 = vmatpush.bf16.xpose.msra.mxu0 0
        %1374 = vmatpush.bf16.xpose.msra.mxu0 0
        %1375 = vmatpush.bf16.xpose.msra.mxu0 0
        %1376 = vmatpush.bf16.xpose.msra.mxu0 0
        %1377 = vmatpush.bf16.xpose.msra.mxu0 0
        %1378 = vmatpush.bf16.xpose.msra.mxu0 0
        %1379 = vmatpush.bf16.xpose.msra.mxu0 %v1370
        %1380 = vmatmul.bf16.gmra.mxu0 %v1367
        %v1381 = vpop.f32.mrf.mxu0
        %v1382 = vadd.f32 0.0, %v1381
        %v1383 = vpop.f32.mrf.mxu0
        %1384 = vdwg.mxu0
        %v1385 = vmul.f32 %v1359, 0.25
        %v1386 = vmul.f32 %v1382, 0.25
        %v1387 = vsel %vm1143, %v1385, -inf
        %1388 = vmax.xlane.f32.xlu0 %v1387
        %v1389 = vpop.xlane.xlu0 %1388
        %v1390 = vsel %vm1143, %v1386, -inf
        %1391 = vmax.xlane.f32.xlu0 %v1390
        %v1392 = vpop.xlane.xlu0 %1391
        %v1393 = vsub.f32 %v1385, %v1389
        %v1394 = vsub.f32 %v1386, %v1392
        %v1395 = vmul.f32 %v1393, 1.442695
        %v1396 = vpow.pop %v1395
        %v1397 = vmul.f32 %v1394, 1.442695
        %v1398 = vpow.pop %v1397
        %v1399 = vsel %vm1143, %v1396, 0.0
        %1400 = vadd.xlane.f32.xlu0 %v1399
        %v1401 = vpop.xlane.xlu0 %1400
        %v1402 = vsel %vm1143, %v1398, 0.0
        %1403 = vadd.xlane.f32.xlu0 %v1402
        %v1404 = vpop.xlane.xlu0 %1403
        %v1405 = vrcp.pop %v1401
        %v1406 = vrcp.pop %v1404
        %v1407 = vmul.f32 %v1396, %v1405
        %v1408 = vmul.f32 %v1398, %v1406
        %v1409 = vpack.c.bf16 %v1407, %v1407
        %v1410 = vpack.c.bf16 %v1408, %v1408
        %1411 = vrot.lane.b32.xlu0 %v1293, 96
        %v1412 = vpop.permute.xlu0 %1411
        %v1414 = vsel %vm1143, %v1409, 0
        %v1417 = vsel %vm1171, %v1412, 0
        %1419 = vmatpush.bf16.msra.mxu0 0
        %1420 = vmatpush.bf16.msra.mxu0 0
        %1421 = vmatpush.bf16.msra.mxu0 0
        %1422 = vmatpush.bf16.msra.mxu0 0
        %1423 = vmatpush.bf16.msra.mxu0 0
        %1424 = vmatpush.bf16.msra.mxu0 0
        %1425 = vmatpush.bf16.msra.mxu0 0
        %1426 = vmatpush.bf16.msra.mxu0 %v1417
        %1427 = vmatmul.bf16.gmra.mxu0 %v1414
        %v1428 = vpop.f32.mrf.mxu0
        %v1429 = vadd.f32 0.0, %v1428
        %v1430 = vpop.f32.mrf.mxu0
        %1431 = vdwg.mxu0
        %1432 = vrot.lane.b32.xlu0 %v1317, 96
        %v1433 = vpop.permute.xlu0 %1432
        %v1435 = vsel %vm1143, %v1410, 0
        %v1438 = vsel %vm1171, %v1433, 0
        %1440 = vmatpush.bf16.msra.mxu0 0
        %1441 = vmatpush.bf16.msra.mxu0 0
        %1442 = vmatpush.bf16.msra.mxu0 0
        %1443 = vmatpush.bf16.msra.mxu0 0
        %1444 = vmatpush.bf16.msra.mxu0 0
        %1445 = vmatpush.bf16.msra.mxu0 0
        %1446 = vmatpush.bf16.msra.mxu0 0
        %1447 = vmatpush.bf16.msra.mxu0 %v1438
        %1448 = vmatmul.bf16.gmra.mxu0 %v1435
        %v1449 = vpop.f32.mrf.mxu0
        %v1450 = vadd.f32 0.0, %v1449
        %v1451 = vpop.f32.mrf.mxu0
        %1452 = vdwg.mxu0
        %1453 = vrot.lane.b32.xlu0 %v1209, 80
        %v1454 = vpop.permute.xlu0 %1453
        %1455 = vrot.lane.b32.xlu0 %v1214, 80
        %v1456 = vpop.permute.xlu0 %1455
        %v1458 = vsel %vm1102, %v1454, 0
        %v1461 = vsel %vm1102, %v1456, 0
        %1463 = vmatpush.bf16.xpose.msra.mxu0 0
        %1464 = vmatpush.bf16.xpose.msra.mxu0 0
        %1465 = vmatpush.bf16.xpose.msra.mxu0 0
        %1466 = vmatpush.bf16.xpose.msra.mxu0 0
        %1467 = vmatpush.bf16.xpose.msra.mxu0 0
        %1468 = vmatpush.bf16.xpose.msra.mxu0 0
        %1469 = vmatpush.bf16.xpose.msra.mxu0 0
        %1470 = vmatpush.bf16.xpose.msra.mxu0 %v1461
        %1471 = vmatmul.bf16.gmra.mxu0 %v1458
        %v1472 = vpop.f32.mrf.mxu0
        %v1473 = vadd.f32 0.0, %v1472
        %v1474 = vpop.f32.mrf.mxu0
        %1475 = vdwg.mxu0
        %1476 = vrot.lane.b32.xlu0 %v1238, 80
        %v1477 = vpop.permute.xlu0 %1476
        %1478 = vrot.lane.b32.xlu0 %v1243, 80
        %v1479 = vpop.permute.xlu0 %1478
        %v1481 = vsel %vm1102, %v1477, 0
        %v1484 = vsel %vm1102, %v1479, 0
        %1486 = vmatpush.bf16.xpose.msra.mxu0 0
        %1487 = vmatpush.bf16.xpose.msra.mxu0 0
        %1488 = vmatpush.bf16.xpose.msra.mxu0 0
        %1489 = vmatpush.bf16.xpose.msra.mxu0 0
        %1490 = vmatpush.bf16.xpose.msra.mxu0 0
        %1491 = vmatpush.bf16.xpose.msra.mxu0 0
        %1492 = vmatpush.bf16.xpose.msra.mxu0 0
        %1493 = vmatpush.bf16.xpose.msra.mxu0 %v1484
        %1494 = vmatmul.bf16.gmra.mxu0 %v1481
        %v1495 = vpop.f32.mrf.mxu0
        %v1496 = vadd.f32 0.0, %v1495
        %v1497 = vpop.f32.mrf.mxu0
        %1498 = vdwg.mxu0
        %v1499 = vmul.f32 %v1473, 0.25
        %v1500 = vmul.f32 %v1496, 0.25
        %v1501 = vsel %vm1143, %v1499, -inf
        %1502 = vmax.xlane.f32.xlu0 %v1501
        %v1503 = vpop.xlane.xlu0 %1502
        %v1504 = vsel %vm1143, %v1500, -inf
        %1505 = vmax.xlane.f32.xlu0 %v1504
        %v1506 = vpop.xlane.xlu0 %1505
        %v1507 = vsub.f32 %v1499, %v1503
        %v1508 = vsub.f32 %v1500, %v1506
        %v1509 = vmul.f32 %v1507, 1.442695
        %v1510 = vpow.pop %v1509
        %v1511 = vmul.f32 %v1508, 1.442695
        %v1512 = vpow.pop %v1511
        %v1513 = vsel %vm1143, %v1510, 0.0
        %1514 = vadd.xlane.f32.xlu0 %v1513
        %v1515 = vpop.xlane.xlu0 %1514
        %v1516 = vsel %vm1143, %v1512, 0.0
        %1517 = vadd.xlane.f32.xlu0 %v1516
        %v1518 = vpop.xlane.xlu0 %1517
        %v1519 = vrcp.pop %v1515
        %v1520 = vrcp.pop %v1518
        %v1521 = vmul.f32 %v1510, %v1519
        %v1522 = vmul.f32 %v1512, %v1520
        %v1523 = vpack.c.bf16 %v1521, %v1521
        %v1524 = vpack.c.bf16 %v1522, %v1522
        %1525 = vrot.lane.b32.xlu0 %v1293, 80
        %v1526 = vpop.permute.xlu0 %1525
        %v1528 = vsel %vm1143, %v1523, 0
        %v1531 = vsel %vm1171, %v1526, 0
        %1533 = vmatpush.bf16.msra.mxu0 0
        %1534 = vmatpush.bf16.msra.mxu0 0
        %1535 = vmatpush.bf16.msra.mxu0 0
        %1536 = vmatpush.bf16.msra.mxu0 0
        %1537 = vmatpush.bf16.msra.mxu0 0
        %1538 = vmatpush.bf16.msra.mxu0 0
        %1539 = vmatpush.bf16.msra.mxu0 0
        %1540 = vmatpush.bf16.msra.mxu0 %v1531
        %1541 = vmatmul.bf16.gmra.mxu0 %v1528
        %v1542 = vpop.f32.mrf.mxu0
        %v1543 = vadd.f32 0.0, %v1542
        %v1544 = vpop.f32.mrf.mxu0
        %1545 = vdwg.mxu0
        %1546 = vrot.lane.b32.xlu0 %v1317, 80
        %v1547 = vpop.permute.xlu0 %1546
        %v1549 = vsel %vm1143, %v1524, 0
        %v1552 = vsel %vm1171, %v1547, 0
        %1554 = vmatpush.bf16.msra.mxu0 0
        %1555 = vmatpush.bf16.msra.mxu0 0
        %1556 = vmatpush.bf16.msra.mxu0 0
        %1557 = vmatpush.bf16.msra.mxu0 0
        %1558 = vmatpush.bf16.msra.mxu0 0
        %1559 = vmatpush.bf16.msra.mxu0 0
        %1560 = vmatpush.bf16.msra.mxu0 0
        %1561 = vmatpush.bf16.msra.mxu0 %v1552
        %1562 = vmatmul.bf16.gmra.mxu0 %v1549
        %v1563 = vpop.f32.mrf.mxu0
        %v1564 = vadd.f32 0.0, %v1563
        %v1565 = vpop.f32.mrf.mxu0
        %1566 = vdwg.mxu0
        %1567 = vrot.lane.b32.xlu0 %v1209, 64
        %v1568 = vpop.permute.xlu0 %1567
        %1569 = vrot.lane.b32.xlu0 %v1214, 64
        %v1570 = vpop.permute.xlu0 %1569
        %v1572 = vsel %vm1102, %v1568, 0
        %v1575 = vsel %vm1102, %v1570, 0
        %1577 = vmatpush.bf16.xpose.msra.mxu0 0
        %1578 = vmatpush.bf16.xpose.msra.mxu0 0
        %1579 = vmatpush.bf16.xpose.msra.mxu0 0
        %1580 = vmatpush.bf16.xpose.msra.mxu0 0
        %1581 = vmatpush.bf16.xpose.msra.mxu0 0
        %1582 = vmatpush.bf16.xpose.msra.mxu0 0
        %1583 = vmatpush.bf16.xpose.msra.mxu0 0
        %1584 = vmatpush.bf16.xpose.msra.mxu0 %v1575
        %1585 = vmatmul.bf16.gmra.mxu0 %v1572
        %v1586 = vpop.f32.mrf.mxu0
        %v1587 = vadd.f32 0.0, %v1586
        %v1588 = vpop.f32.mrf.mxu0
        %1589 = vdwg.mxu0
        %1590 = vrot.lane.b32.xlu0 %v1238, 64
        %v1591 = vpop.permute.xlu0 %1590
        %1592 = vrot.lane.b32.xlu0 %v1243, 64
        %v1593 = vpop.permute.xlu0 %1592
        %v1595 = vsel %vm1102, %v1591, 0
        %v1598 = vsel %vm1102, %v1593, 0
        %1600 = vmatpush.bf16.xpose.msra.mxu0 0
        %1601 = vmatpush.bf16.xpose.msra.mxu0 0
        %1602 = vmatpush.bf16.xpose.msra.mxu0 0
        %1603 = vmatpush.bf16.xpose.msra.mxu0 0
        %1604 = vmatpush.bf16.xpose.msra.mxu0 0
        %1605 = vmatpush.bf16.xpose.msra.mxu0 0
        %1606 = vmatpush.bf16.xpose.msra.mxu0 0
        %1607 = vmatpush.bf16.xpose.msra.mxu0 %v1598
        %1608 = vmatmul.bf16.gmra.mxu0 %v1595
        %v1609 = vpop.f32.mrf.mxu0
        %v1610 = vadd.f32 0.0, %v1609
        %v1611 = vpop.f32.mrf.mxu0
        %1612 = vdwg.mxu0
        %v1613 = vmul.f32 %v1587, 0.25
        %v1614 = vmul.f32 %v1610, 0.25
        %v1615 = vsel %vm1143, %v1613, -inf
        %1616 = vmax.xlane.f32.xlu0 %v1615
        %v1617 = vpop.xlane.xlu0 %1616
        %v1618 = vsel %vm1143, %v1614, -inf
        %1619 = vmax.xlane.f32.xlu0 %v1618
        %v1620 = vpop.xlane.xlu0 %1619
        %v1621 = vsub.f32 %v1613, %v1617
        %v1622 = vsub.f32 %v1614, %v1620
        %v1623 = vmul.f32 %v1621, 1.442695
        %v1624 = vpow.pop %v1623
        %v1625 = vmul.f32 %v1622, 1.442695
        %v1626 = vpow.pop %v1625
        %v1627 = vsel %vm1143, %v1624, 0.0
        %1628 = vadd.xlane.f32.xlu0 %v1627
        %v1629 = vpop.xlane.xlu0 %1628
        %v1630 = vsel %vm1143, %v1626, 0.0
        %1631 = vadd.xlane.f32.xlu0 %v1630
        %v1632 = vpop.xlane.xlu0 %1631
        %v1633 = vrcp.pop %v1629
        %v1634 = vrcp.pop %v1632
        %v1635 = vmul.f32 %v1624, %v1633
        %v1636 = vmul.f32 %v1626, %v1634
        %v1637 = vpack.c.bf16 %v1635, %v1635
        %v1638 = vpack.c.bf16 %v1636, %v1636
        %1639 = vrot.lane.b32.xlu0 %v1293, 64
        %v1640 = vpop.permute.xlu0 %1639
        %v1642 = vsel %vm1143, %v1637, 0
        %v1645 = vsel %vm1171, %v1640, 0
        %1647 = vmatpush.bf16.msra.mxu0 0
        %1648 = vmatpush.bf16.msra.mxu0 0
        %1649 = vmatpush.bf16.msra.mxu0 0
        %1650 = vmatpush.bf16.msra.mxu0 0
        %1651 = vmatpush.bf16.msra.mxu0 0
        %1652 = vmatpush.bf16.msra.mxu0 0
        %1653 = vmatpush.bf16.msra.mxu0 0
        %1654 = vmatpush.bf16.msra.mxu0 %v1645
        %1655 = vmatmul.bf16.gmra.mxu0 %v1642
        %v1656 = vpop.f32.mrf.mxu0
        %v1657 = vadd.f32 0.0, %v1656
        %v1658 = vpop.f32.mrf.mxu0
        %1659 = vdwg.mxu0
        %1660 = vrot.lane.b32.xlu0 %v1317, 64
        %v1661 = vpop.permute.xlu0 %1660
        %v1663 = vsel %vm1143, %v1638, 0
        %v1666 = vsel %vm1171, %v1661, 0
        %1668 = vmatpush.bf16.msra.mxu0 0
        %1669 = vmatpush.bf16.msra.mxu0 0
        %1670 = vmatpush.bf16.msra.mxu0 0
        %1671 = vmatpush.bf16.msra.mxu0 0
        %1672 = vmatpush.bf16.msra.mxu0 0
        %1673 = vmatpush.bf16.msra.mxu0 0
        %1674 = vmatpush.bf16.msra.mxu0 0
        %1675 = vmatpush.bf16.msra.mxu0 %v1666
        %1676 = vmatmul.bf16.gmra.mxu0 %v1663
        %v1677 = vpop.f32.mrf.mxu0
        %v1678 = vadd.f32 0.0, %v1677
        %v1679 = vpop.f32.mrf.mxu0
        %1680 = vdwg.mxu0
        %1681 = vrot.lane.b32.xlu0 %v1209, 48
        %v1682 = vpop.permute.xlu0 %1681
        %1683 = vrot.lane.b32.xlu0 %v1214, 48
        %v1684 = vpop.permute.xlu0 %1683
        %v1686 = vsel %vm1102, %v1682, 0
        %v1689 = vsel %vm1102, %v1684, 0
        %1691 = vmatpush.bf16.xpose.msra.mxu0 0
        %1692 = vmatpush.bf16.xpose.msra.mxu0 0
        %1693 = vmatpush.bf16.xpose.msra.mxu0 0
        %1694 = vmatpush.bf16.xpose.msra.mxu0 0
        %1695 = vmatpush.bf16.xpose.msra.mxu0 0
        %1696 = vmatpush.bf16.xpose.msra.mxu0 0
        %1697 = vmatpush.bf16.xpose.msra.mxu0 0
        %1698 = vmatpush.bf16.xpose.msra.mxu0 %v1689
        %1699 = vmatmul.bf16.gmra.mxu0 %v1686
        %v1700 = vpop.f32.mrf.mxu0
        %v1701 = vadd.f32 0.0, %v1700
        %v1702 = vpop.f32.mrf.mxu0
        %1703 = vdwg.mxu0
        %1704 = vrot.lane.b32.xlu0 %v1238, 48
        %v1705 = vpop.permute.xlu0 %1704
        %1706 = vrot.lane.b32.xlu0 %v1243, 48
        %v1707 = vpop.permute.xlu0 %1706
        %v1709 = vsel %vm1102, %v1705, 0
        %v1712 = vsel %vm1102, %v1707, 0
        %1714 = vmatpush.bf16.xpose.msra.mxu0 0
        %1715 = vmatpush.bf16.xpose.msra.mxu0 0
        %1716 = vmatpush.bf16.xpose.msra.mxu0 0
        %1717 = vmatpush.bf16.xpose.msra.mxu0 0
        %1718 = vmatpush.bf16.xpose.msra.mxu0 0
        %1719 = vmatpush.bf16.xpose.msra.mxu0 0
        %1720 = vmatpush.bf16.xpose.msra.mxu0 0
        %1721 = vmatpush.bf16.xpose.msra.mxu0 %v1712
        %1722 = vmatmul.bf16.gmra.mxu0 %v1709
        %v1723 = vpop.f32.mrf.mxu0
        %v1724 = vadd.f32 0.0, %v1723
        %v1725 = vpop.f32.mrf.mxu0
        %1726 = vdwg.mxu0
        %v1727 = vmul.f32 %v1701, 0.25
        %v1728 = vmul.f32 %v1724, 0.25
        %v1729 = vsel %vm1143, %v1727, -inf
        %1730 = vmax.xlane.f32.xlu0 %v1729
        %v1731 = vpop.xlane.xlu0 %1730
        %v1732 = vsel %vm1143, %v1728, -inf
        %1733 = vmax.xlane.f32.xlu0 %v1732
        %v1734 = vpop.xlane.xlu0 %1733
        %v1735 = vsub.f32 %v1727, %v1731
        %v1736 = vsub.f32 %v1728, %v1734
        %v1737 = vmul.f32 %v1735, 1.442695
        %v1738 = vpow.pop %v1737
        %v1739 = vmul.f32 %v1736, 1.442695
        %v1740 = vpow.pop %v1739
        %v1741 = vsel %vm1143, %v1738, 0.0
        %1742 = vadd.xlane.f32.xlu0 %v1741
        %v1743 = vpop.xlane.xlu0 %1742
        %v1744 = vsel %vm1143, %v1740, 0.0
        %1745 = vadd.xlane.f32.xlu0 %v1744
        %v1746 = vpop.xlane.xlu0 %1745
        %v1747 = vrcp.pop %v1743
        %v1748 = vrcp.pop %v1746
        %v1749 = vmul.f32 %v1738, %v1747
        %v1750 = vmul.f32 %v1740, %v1748
        %v1751 = vpack.c.bf16 %v1749, %v1749
        %v1752 = vpack.c.bf16 %v1750, %v1750
        %1753 = vrot.lane.b32.xlu0 %v1293, 48
        %v1754 = vpop.permute.xlu0 %1753
        %v1756 = vsel %vm1143, %v1751, 0
        %v1759 = vsel %vm1171, %v1754, 0
        %1761 = vmatpush.bf16.msra.mxu0 0
        %1762 = vmatpush.bf16.msra.mxu0 0
        %1763 = vmatpush.bf16.msra.mxu0 0
        %1764 = vmatpush.bf16.msra.mxu0 0
        %1765 = vmatpush.bf16.msra.mxu0 0
        %1766 = vmatpush.bf16.msra.mxu0 0
        %1767 = vmatpush.bf16.msra.mxu0 0
        %1768 = vmatpush.bf16.msra.mxu0 %v1759
        %1769 = vmatmul.bf16.gmra.mxu0 %v1756
        %v1770 = vpop.f32.mrf.mxu0
        %v1771 = vadd.f32 0.0, %v1770
        %v1772 = vpop.f32.mrf.mxu0
        %1773 = vdwg.mxu0
        %1774 = vrot.lane.b32.xlu0 %v1317, 48
        %v1775 = vpop.permute.xlu0 %1774
        %v1777 = vsel %vm1143, %v1752, 0
        %v1780 = vsel %vm1171, %v1775, 0
        %1782 = vmatpush.bf16.msra.mxu0 0
        %1783 = vmatpush.bf16.msra.mxu0 0
        %1784 = vmatpush.bf16.msra.mxu0 0
        %1785 = vmatpush.bf16.msra.mxu0 0
        %1786 = vmatpush.bf16.msra.mxu0 0
        %1787 = vmatpush.bf16.msra.mxu0 0
        %1788 = vmatpush.bf16.msra.mxu0 0
        %1789 = vmatpush.bf16.msra.mxu0 %v1780
        %1790 = vmatmul.bf16.gmra.mxu0 %v1777
        %v1791 = vpop.f32.mrf.mxu0
        %v1792 = vadd.f32 0.0, %v1791
        %v1793 = vpop.f32.mrf.mxu0
        %1794 = vdwg.mxu0
        %1795 = vrot.lane.b32.xlu0 %v1209, 32
        %v1796 = vpop.permute.xlu0 %1795
        %1797 = vrot.lane.b32.xlu0 %v1214, 32
        %v1798 = vpop.permute.xlu0 %1797
        %v1800 = vsel %vm1102, %v1796, 0
        %v1803 = vsel %vm1102, %v1798, 0
        %1805 = vmatpush.bf16.xpose.msra.mxu0 0
        %1806 = vmatpush.bf16.xpose.msra.mxu0 0
        %1807 = vmatpush.bf16.xpose.msra.mxu0 0
        %1808 = vmatpush.bf16.xpose.msra.mxu0 0
        %1809 = vmatpush.bf16.xpose.msra.mxu0 0
        %1810 = vmatpush.bf16.xpose.msra.mxu0 0
        %1811 = vmatpush.bf16.xpose.msra.mxu0 0
        %1812 = vmatpush.bf16.xpose.msra.mxu0 %v1803
        %1813 = vmatmul.bf16.gmra.mxu0 %v1800
        %v1814 = vpop.f32.mrf.mxu0
        %v1815 = vadd.f32 0.0, %v1814
        %v1816 = vpop.f32.mrf.mxu0
        %1817 = vdwg.mxu0
        %1818 = vrot.lane.b32.xlu0 %v1238, 32
        %v1819 = vpop.permute.xlu0 %1818
        %1820 = vrot.lane.b32.xlu0 %v1243, 32
        %v1821 = vpop.permute.xlu0 %1820
        %v1823 = vsel %vm1102, %v1819, 0
        %v1826 = vsel %vm1102, %v1821, 0
        %1828 = vmatpush.bf16.xpose.msra.mxu0 0
        %1829 = vmatpush.bf16.xpose.msra.mxu0 0
        %1830 = vmatpush.bf16.xpose.msra.mxu0 0
        %1831 = vmatpush.bf16.xpose.msra.mxu0 0
        %1832 = vmatpush.bf16.xpose.msra.mxu0 0
        %1833 = vmatpush.bf16.xpose.msra.mxu0 0
        %1834 = vmatpush.bf16.xpose.msra.mxu0 0
        %1835 = vmatpush.bf16.xpose.msra.mxu0 %v1826
        %1836 = vmatmul.bf16.gmra.mxu0 %v1823
        %v1837 = vpop.f32.mrf.mxu0
        %v1838 = vadd.f32 0.0, %v1837
        %v1839 = vpop.f32.mrf.mxu0
        %1840 = vdwg.mxu0
        %v1841 = vmul.f32 %v1815, 0.25
        %v1842 = vmul.f32 %v1838, 0.25
        %v1843 = vsel %vm1143, %v1841, -inf
        %1844 = vmax.xlane.f32.xlu0 %v1843
        %v1845 = vpop.xlane.xlu0 %1844
        %v1846 = vsel %vm1143, %v1842, -inf
        %1847 = vmax.xlane.f32.xlu0 %v1846
        %v1848 = vpop.xlane.xlu0 %1847
        %v1849 = vsub.f32 %v1841, %v1845
        %v1850 = vsub.f32 %v1842, %v1848
        %v1851 = vmul.f32 %v1849, 1.442695
        %v1852 = vpow.pop %v1851
        %v1853 = vmul.f32 %v1850, 1.442695
        %v1854 = vpow.pop %v1853
        %v1855 = vsel %vm1143, %v1852, 0.0
        %1856 = vadd.xlane.f32.xlu0 %v1855
        %v1857 = vpop.xlane.xlu0 %1856
        %v1858 = vsel %vm1143, %v1854, 0.0
        %1859 = vadd.xlane.f32.xlu0 %v1858
        %v1860 = vpop.xlane.xlu0 %1859
        %v1861 = vrcp.pop %v1857
        %v1862 = vrcp.pop %v1860
        %v1863 = vmul.f32 %v1852, %v1861
        %v1864 = vmul.f32 %v1854, %v1862
        %v1865 = vpack.c.bf16 %v1863, %v1863
        %v1866 = vpack.c.bf16 %v1864, %v1864
        %1867 = vrot.lane.b32.xlu0 %v1293, 32
        %v1868 = vpop.permute.xlu0 %1867
        %v1870 = vsel %vm1143, %v1865, 0
        %v1873 = vsel %vm1171, %v1868, 0
        %1875 = vmatpush.bf16.msra.mxu0 0
        %1876 = vmatpush.bf16.msra.mxu0 0
        %1877 = vmatpush.bf16.msra.mxu0 0
        %1878 = vmatpush.bf16.msra.mxu0 0
        %1879 = vmatpush.bf16.msra.mxu0 0
        %1880 = vmatpush.bf16.msra.mxu0 0
        %1881 = vmatpush.bf16.msra.mxu0 0
        %1882 = vmatpush.bf16.msra.mxu0 %v1873
        %1883 = vmatmul.bf16.gmra.mxu0 %v1870
        %v1884 = vpop.f32.mrf.mxu0
        %v1885 = vadd.f32 0.0, %v1884
        %v1886 = vpop.f32.mrf.mxu0
        %1887 = vdwg.mxu0
        %1888 = vrot.lane.b32.xlu0 %v1317, 32
        %v1889 = vpop.permute.xlu0 %1888
        %v1891 = vsel %vm1143, %v1866, 0
        %v1894 = vsel %vm1171, %v1889, 0
        %1896 = vmatpush.bf16.msra.mxu0 0
        %1897 = vmatpush.bf16.msra.mxu0 0
        %1898 = vmatpush.bf16.msra.mxu0 0
        %1899 = vmatpush.bf16.msra.mxu0 0
        %1900 = vmatpush.bf16.msra.mxu0 0
        %1901 = vmatpush.bf16.msra.mxu0 0
        %1902 = vmatpush.bf16.msra.mxu0 0
        %1903 = vmatpush.bf16.msra.mxu0 %v1894
        %1904 = vmatmul.bf16.gmra.mxu0 %v1891
        %v1905 = vpop.f32.mrf.mxu0
        %v1906 = vadd.f32 0.0, %v1905
        %v1907 = vpop.f32.mrf.mxu0
        %1908 = vdwg.mxu0
        %1909 = vrot.lane.b32.xlu0 %v1209, 16
        %v1910 = vpop.permute.xlu0 %1909
        %1911 = vrot.lane.b32.xlu0 %v1214, 16
        %v1912 = vpop.permute.xlu0 %1911
        %v1914 = vsel %vm1102, %v1910, 0
        %v1917 = vsel %vm1102, %v1912, 0
        %1919 = vmatpush.bf16.xpose.msra.mxu0 0
        %1920 = vmatpush.bf16.xpose.msra.mxu0 0
        %1921 = vmatpush.bf16.xpose.msra.mxu0 0
        %1922 = vmatpush.bf16.xpose.msra.mxu0 0
        %1923 = vmatpush.bf16.xpose.msra.mxu0 0
        %1924 = vmatpush.bf16.xpose.msra.mxu0 0
        %1925 = vmatpush.bf16.xpose.msra.mxu0 0
        %1926 = vmatpush.bf16.xpose.msra.mxu0 %v1917
        %1927 = vmatmul.bf16.gmra.mxu0 %v1914
        %v1928 = vpop.f32.mrf.mxu0
        %v1929 = vadd.f32 0.0, %v1928
        %v1930 = vpop.f32.mrf.mxu0
        %1931 = vdwg.mxu0
        %1932 = vrot.lane.b32.xlu0 %v1238, 16
        %v1933 = vpop.permute.xlu0 %1932
        %1934 = vrot.lane.b32.xlu0 %v1243, 16
        %v1935 = vpop.permute.xlu0 %1934
        %v1937 = vsel %vm1102, %v1933, 0
        %v1940 = vsel %vm1102, %v1935, 0
        %1942 = vmatpush.bf16.xpose.msra.mxu0 0
        %1943 = vmatpush.bf16.xpose.msra.mxu0 0
        %1944 = vmatpush.bf16.xpose.msra.mxu0 0
        %1945 = vmatpush.bf16.xpose.msra.mxu0 0
        %1946 = vmatpush.bf16.xpose.msra.mxu0 0
        %1947 = vmatpush.bf16.xpose.msra.mxu0 0
        %1948 = vmatpush.bf16.xpose.msra.mxu0 0
        %1949 = vmatpush.bf16.xpose.msra.mxu0 %v1940
        %1950 = vmatmul.bf16.gmra.mxu0 %v1937
        %v1951 = vpop.f32.mrf.mxu0
        %v1952 = vadd.f32 0.0, %v1951
        %v1953 = vpop.f32.mrf.mxu0
        %1954 = vdwg.mxu0
        %v1955 = vmul.f32 %v1929, 0.25
        %v1956 = vmul.f32 %v1952, 0.25
        %v1957 = vsel %vm1143, %v1955, -inf
        %1958 = vmax.xlane.f32.xlu0 %v1957
        %v1959 = vpop.xlane.xlu0 %1958
        %v1960 = vsel %vm1143, %v1956, -inf
        %1961 = vmax.xlane.f32.xlu0 %v1960
        %v1962 = vpop.xlane.xlu0 %1961
        %v1963 = vsub.f32 %v1955, %v1959
        %v1964 = vsub.f32 %v1956, %v1962
        %v1965 = vmul.f32 %v1963, 1.442695
        %v1966 = vpow.pop %v1965
        %v1967 = vmul.f32 %v1964, 1.442695
        %v1968 = vpow.pop %v1967
        %v1969 = vsel %vm1143, %v1966, 0.0
        %1970 = vadd.xlane.f32.xlu0 %v1969
        %v1971 = vpop.xlane.xlu0 %1970
        %v1972 = vsel %vm1143, %v1968, 0.0
        %1973 = vadd.xlane.f32.xlu0 %v1972
        %v1974 = vpop.xlane.xlu0 %1973
        %v1975 = vrcp.pop %v1971
        %v1976 = vrcp.pop %v1974
        %v1977 = vmul.f32 %v1966, %v1975
        %v1978 = vmul.f32 %v1968, %v1976
        %v1979 = vpack.c.bf16 %v1977, %v1977
        %v1980 = vpack.c.bf16 %v1978, %v1978
        %1981 = vrot.lane.b32.xlu0 %v1293, 16
        %v1982 = vpop.permute.xlu0 %1981
        %v1984 = vsel %vm1143, %v1979, 0
        %v1987 = vsel %vm1171, %v1982, 0
        %1989 = vmatpush.bf16.msra.mxu0 0
        %1990 = vmatpush.bf16.msra.mxu0 0
        %1991 = vmatpush.bf16.msra.mxu0 0
        %1992 = vmatpush.bf16.msra.mxu0 0
        %1993 = vmatpush.bf16.msra.mxu0 0
        %1994 = vmatpush.bf16.msra.mxu0 0
        %1995 = vmatpush.bf16.msra.mxu0 0
        %1996 = vmatpush.bf16.msra.mxu0 %v1987
        %1997 = vmatmul.bf16.gmra.mxu0 %v1984
        %v1998 = vpop.f32.mrf.mxu0
        %v1999 = vadd.f32 0.0, %v1998
        %v2000 = vpop.f32.mrf.mxu0
        %2001 = vdwg.mxu0
        %2002 = vrot.lane.b32.xlu0 %v1317, 16
        %v2003 = vpop.permute.xlu0 %2002
        %v2005 = vsel %vm1143, %v1980, 0
        %v2008 = vsel %vm1171, %v2003, 0
        %2010 = vmatpush.bf16.msra.mxu0 0
        %2011 = vmatpush.bf16.msra.mxu0 0
        %2012 = vmatpush.bf16.msra.mxu0 0
        %2013 = vmatpush.bf16.msra.mxu0 0
        %2014 = vmatpush.bf16.msra.mxu0 0
        %2015 = vmatpush.bf16.msra.mxu0 0
        %2016 = vmatpush.bf16.msra.mxu0 0
        %2017 = vmatpush.bf16.msra.mxu0 %v2008
        %2018 = vmatmul.bf16.gmra.mxu0 %v2005
        %v2019 = vpop.f32.mrf.mxu0
        %v2020 = vadd.f32 0.0, %v2019
        %v2021 = vpop.f32.mrf.mxu0
        %2022 = vdwg.mxu0
        %2025 = vrot.lane.b32.xlu0 %v1312, 16
        %v2026 = vpop.permute.xlu0 %2025
        %2027 = vrot.lane.b32.xlu0 %v1336, 16
        %v2028 = vpop.permute.xlu0 %2027
        %2033 = vrot.lane.b32.xlu0 %v1429, 32
        %v2034 = vpop.permute.xlu0 %2033
        %2035 = vrot.lane.b32.xlu0 %v1450, 32
        %v2036 = vpop.permute.xlu0 %2035
        %2041 = vrot.lane.b32.xlu0 %v1543, 48
        %v2042 = vpop.permute.xlu0 %2041
        %2043 = vrot.lane.b32.xlu0 %v1564, 48
        %v2044 = vpop.permute.xlu0 %2043
        %2049 = vrot.lane.b32.xlu0 %v1657, 64
        %v2050 = vpop.permute.xlu0 %2049
        %2051 = vrot.lane.b32.xlu0 %v1678, 64
        %v2052 = vpop.permute.xlu0 %2051
        %2057 = vrot.lane.b32.xlu0 %v1771, 80
        %v2058 = vpop.permute.xlu0 %2057
        %2059 = vrot.lane.b32.xlu0 %v1792, 80
        %v2060 = vpop.permute.xlu0 %2059
        %2065 = vrot.lane.b32.xlu0 %v1885, 96
        %v2066 = vpop.permute.xlu0 %2065
        %2067 = vrot.lane.b32.xlu0 %v1906, 96
        %v2068 = vpop.permute.xlu0 %2067
        %2073 = vrot.lane.b32.xlu0 %v1999, 112
        %v2074 = vpop.permute.xlu0 %2073
        %2075 = vrot.lane.b32.xlu0 %v2020, 112
        %v2076 = vpop.permute.xlu0 %2075
        %v2079 = vsel %vm1102, %v1185, %v2026
        %v2080 = vsel %vm1102, %v1204, %v2028
        %vm2081 = vcmask 261120
        %v2082 = vsel %vm2081, %v2079, %v2034
        %v2083 = vsel %vm2081, %v2080, %v2036
        %vm2084 = vcmask 392192
        %v2085 = vsel %vm2084, %v2082, %v2042
        %v2086 = vsel %vm2084, %v2083, %v2044
        %vm2087 = vcmask 523264
        %v2088 = vsel %vm2087, %v2085, %v2050
        %v2089 = vsel %vm2087, %v2086, %v2052
        %vm2090 = vcmask 654336
        %v2091 = vsel %vm2090, %v2088, %v2058
        %v2092 = vsel %vm2090, %v2089, %v2060
        %vm2093 = vcmask 785408
        %v2094 = vsel %vm2093, %v2091, %v2066
        %v2095 = vsel %vm2093, %v2092, %v2068
        %vm2096 = vcmask 916480
        %v2097 = vsel %vm2096, %v2094, %v2074
        %v2098 = vsel %vm2096, %v2095, %v2076
        %v2099 = vpack.c.bf16 %v2098, %v2097
        %v2100 = vld [vmem:[%s689] sm:$0xf]
        %v2101 = vld [vmem:[%s689 + $0x4] sm:$0xf]
        %v2102 = vld [vmem:[%s689 + $0x8] sm:$0xf]
        %v2103 = vld [vmem:[%s689 + $0xc] sm:$0xf]
        %v2104 = vld [vmem:[%s689 + $0x10] sm:$0xf]
        %v2105 = vld [vmem:[%s689 + $0x14] sm:$0xf]
        %v2106 = vld [vmem:[%s689 + $0x18] sm:$0xf]
        %v2107 = vld [vmem:[%s689 + $0x1c] sm:$0xf]
        %v2108 = vld [vmem:[%s689 + $0x20] sm:$0xf]
        %v2109 = vld [vmem:[%s689 + $0x24] sm:$0xf]
        %v2110 = vld [vmem:[%s689 + $0x28] sm:$0xf]
        %v2111 = vld [vmem:[%s689 + $0x2c] sm:$0xf]
        %v2112 = vld [vmem:[%s689 + $0x30] sm:$0xf]
        %v2113 = vld [vmem:[%s689 + $0x34] sm:$0xf]
        %v2114 = vld [vmem:[%s689 + $0x38] sm:$0xf]
        %v2115 = vld [vmem:[%s689 + $0x3c] sm:$0xf]
        %v2116 = vld [vmem:[%s868] sm:$0x1]
        %v2118 = vperm.slane %v2116, 0
        %v2136 = vunpack.c.l.b16 %v2100
        %v2137 = vunpack.c.l.b16 %v2101
        %v2138 = vunpack.c.l.b16 %v2102
        %v2139 = vunpack.c.l.b16 %v2103
        %v2140 = vunpack.c.l.b16 %v2104
        %v2141 = vunpack.c.l.b16 %v2105
        %v2142 = vunpack.c.l.b16 %v2106
        %v2143 = vunpack.c.l.b16 %v2107
        %v2144 = vunpack.c.l.b16 %v2108
        %v2145 = vunpack.c.l.b16 %v2109
        %v2146 = vunpack.c.l.b16 %v2110
        %v2147 = vunpack.c.l.b16 %v2111
        %v2148 = vunpack.c.l.b16 %v2112
        %v2149 = vunpack.c.l.b16 %v2113
        %v2150 = vunpack.c.l.b16 %v2114
        %v2151 = vunpack.c.l.b16 %v2115
        %v2152 = vpack.c.b16 %v2137, %v2136
        %v2153 = vpack.c.b16 %v2139, %v2138
        %v2154 = vpack.c.b16 %v2141, %v2140
        %v2155 = vpack.c.b16 %v2143, %v2142
        %v2156 = vpack.c.b16 %v2145, %v2144
        %v2157 = vpack.c.b16 %v2147, %v2146
        %v2158 = vpack.c.b16 %v2149, %v2148
        %v2159 = vpack.c.b16 %v2151, %v2150
        %2168 = vmatpush.bf16.msra.mxu0 %v2159
        %2169 = vmatpush.bf16.msra.mxu0 %v2158
        %2170 = vmatpush.bf16.msra.mxu0 %v2157
        %2171 = vmatpush.bf16.msra.mxu0 %v2156
        %2172 = vmatpush.bf16.msra.mxu0 %v2155
        %2173 = vmatpush.bf16.msra.mxu0 %v2154
        %2174 = vmatpush.bf16.msra.mxu0 %v2153
        %2175 = vmatpush.bf16.msra.mxu0 %v2152
        %2176 = vmatmul.bf16.gmra.mxu0 %v2099
        %v2177 = vpop.f32.mrf.mxu0
        %v2178 = vadd.f32 %v2118, %v2177
        %v2179 = vpop.f32.mrf.mxu0
        %v2180 = vadd.f32 %v2118, %v2179
        %2181 = vdwg.mxu0
        %v2182 = vadd.f32 %v883, %v2178
        %v2183 = vadd.f32 %v884, %v2180
        %v2184 = vld [vmem:[%s698] sm:$0x1]
        %v2185 = vld [vmem:[%s707] sm:$0x1]
        %2186 = vadd.xlane.f32.xlu0 %v2182
        %v2187 = vpop.xlane.xlu0 %2186
        %2188 = vadd.xlane.f32.xlu0 %v2183
        %v2189 = vpop.xlane.xlu0 %2188
        %v2190 = vrcp.pop 128.0
        %v2191 = vmul.f32 128.0, %v2190
        %v2192 = vsub.f32 1.0, %v2191
        %v2193 = vmul.f32 %v2190, %v2192
        %v2194 = vadd.f32 %v2190, %v2193
        %vm2195 = vweird.f32 %v2190
        %v2196 = vsel %vm2195, %v2190, %v2194
        %v2197 = vmul.f32 %v2187, %v2196
        %v2198 = vmul.f32 %v2189, %v2196
        %v2199 = vsub.f32 %v2182, %v2197
        %v2200 = vsub.f32 %v2183, %v2198
        %v2201 = vmul.f32 %v2199, %v2199
        %v2202 = vmul.f32 %v2200, %v2200
        %2203 = vadd.xlane.f32.xlu0 %v2201
        %v2204 = vpop.xlane.xlu0 %2203
        %2205 = vadd.xlane.f32.xlu0 %v2202
        %v2206 = vpop.xlane.xlu0 %2205
        %v2207 = vmul.f32 %v2204, %v2196
        %v2208 = vmul.f32 %v2206, %v2196
        %v2209 = vadd.f32 %v2207, 1e-05
        %v2210 = vadd.f32 %v2208, 1e-05
        %v2211 = vrsqrt.pop %v2209
        %v2212 = vmul.f32 %v2211, %v2209
        %v2213 = vmul.f32 %v2212, %v2211
        %v2214 = vmul.f32 0.5, %v2213
        %v2215 = vsub.f32 1.5, %v2214
        %v2216 = vmul.f32 %v2211, %v2215
        %vm2217 = vweird.f32 %v2209
        %vm2218 = vweird.f32 %v2211
        %vm2219 = vmor %vm2217, %vm2218
        %v2220 = vsel %vm2219, %v2211, %v2216
        %v2221 = vrsqrt.pop %v2210
        %v2222 = vmul.f32 %v2221, %v2210
        %v2223 = vmul.f32 %v2222, %v2221
        %v2224 = vmul.f32 0.5, %v2223
        %v2225 = vsub.f32 1.5, %v2224
        %v2226 = vmul.f32 %v2221, %v2225
        %vm2227 = vweird.f32 %v2210
        %vm2228 = vweird.f32 %v2221
        %vm2229 = vmor %vm2227, %vm2228
        %v2230 = vsel %vm2229, %v2221, %v2226
        %v2231 = vmul.f32 %v2199, %v2220
        %v2232 = vmul.f32 %v2200, %v2230
        %v2234 = vperm.slane %v2184, 0
        %v2236 = vmul.f32 %v2231, %v2234
        %v2237 = vmul.f32 %v2232, %v2234
        %v2239 = vperm.slane %v2185, 0
        %v2241 = vadd.f32 %v2236, %v2239
        %v2242 = vadd.f32 %v2237, %v2239
        %v2243 = vpack.c.bf16 %v2242, %v2241
        %v2244 = vld [vmem:[%s717] sm:$0xff]
        %v2245 = vld [vmem:[%s717 + $0x8] sm:$0xff]
        %v2246 = vld [vmem:[%s717 + $0x10] sm:$0xff]
        %v2247 = vld [vmem:[%s717 + $0x18] sm:$0xff]
        %v2248 = vld [vmem:[%s717 + $0x20] sm:$0xff]
        %v2249 = vld [vmem:[%s717 + $0x28] sm:$0xff]
        %v2250 = vld [vmem:[%s717 + $0x30] sm:$0xff]
        %v2251 = vld [vmem:[%s717 + $0x38] sm:$0xff]
        %v2252 = vld [vmem:[%s717 + $0x40] sm:$0xff]
        %v2253 = vld [vmem:[%s717 + $0x48] sm:$0xff]
        %v2254 = vld [vmem:[%s717 + $0x50] sm:$0xff]
        %v2255 = vld [vmem:[%s717 + $0x58] sm:$0xff]
        %v2256 = vld [vmem:[%s717 + $0x60] sm:$0xff]
        %v2257 = vld [vmem:[%s717 + $0x68] sm:$0xff]
        %v2258 = vld [vmem:[%s717 + $0x70] sm:$0xff]
        %v2259 = vld [vmem:[%s717 + $0x78] sm:$0xff]
        %v2260 = vld [vmem:[%s717 + $0x80] sm:$0xff]
        %v2261 = vld [vmem:[%s717 + $0x88] sm:$0xff]
        %v2262 = vld [vmem:[%s717 + $0x90] sm:$0xff]
        %v2263 = vld [vmem:[%s717 + $0x98] sm:$0xff]
        %v2264 = vld [vmem:[%s717 + $0xa0] sm:$0xff]
        %v2265 = vld [vmem:[%s717 + $0xa8] sm:$0xff]
        %v2266 = vld [vmem:[%s717 + $0xb0] sm:$0xff]
        %v2267 = vld [vmem:[%s717 + $0xb8] sm:$0xff]
        %v2268 = vld [vmem:[%s717 + $0xc0] sm:$0xff]
        %v2269 = vld [vmem:[%s717 + $0xc8] sm:$0xff]
        %v2270 = vld [vmem:[%s717 + $0xd0] sm:$0xff]
        %v2271 = vld [vmem:[%s717 + $0xd8] sm:$0xff]
        %v2272 = vld [vmem:[%s717 + $0xe0] sm:$0xff]
        %v2273 = vld [vmem:[%s717 + $0xe8] sm:$0xff]
        %v2274 = vld [vmem:[%s717 + $0xf0] sm:$0xff]
        %v2275 = vld [vmem:[%s717 + $0xf8] sm:$0xff]
        %v2276 = vld [vmem:[%s717 + $0x100] sm:$0xff]
        %v2277 = vld [vmem:[%s717 + $0x108] sm:$0xff]
        %v2278 = vld [vmem:[%s717 + $0x110] sm:$0xff]
        %v2279 = vld [vmem:[%s717 + $0x118] sm:$0xff]
        %v2280 = vld [vmem:[%s717 + $0x120] sm:$0xff]
        %v2281 = vld [vmem:[%s717 + $0x128] sm:$0xff]
        %v2282 = vld [vmem:[%s717 + $0x130] sm:$0xff]
        %v2283 = vld [vmem:[%s717 + $0x138] sm:$0xff]
        %v2284 = vld [vmem:[%s717 + $0x140] sm:$0xff]
        %v2285 = vld [vmem:[%s717 + $0x148] sm:$0xff]
        %v2286 = vld [vmem:[%s717 + $0x150] sm:$0xff]
        %v2287 = vld [vmem:[%s717 + $0x158] sm:$0xff]
        %v2288 = vld [vmem:[%s717 + $0x160] sm:$0xff]
        %v2289 = vld [vmem:[%s717 + $0x168] sm:$0xff]
        %v2290 = vld [vmem:[%s717 + $0x170] sm:$0xff]
        %v2291 = vld [vmem:[%s717 + $0x178] sm:$0xff]
        %v2292 = vld [vmem:[%s717 + $0x180] sm:$0xff]
        %v2293 = vld [vmem:[%s717 + $0x188] sm:$0xff]
        %v2294 = vld [vmem:[%s717 + $0x190] sm:$0xff]
        %v2295 = vld [vmem:[%s717 + $0x198] sm:$0xff]
        %v2296 = vld [vmem:[%s717 + $0x1a0] sm:$0xff]
        %v2297 = vld [vmem:[%s717 + $0x1a8] sm:$0xff]
        %v2298 = vld [vmem:[%s717 + $0x1b0] sm:$0xff]
        %v2299 = vld [vmem:[%s717 + $0x1b8] sm:$0xff]
        %v2300 = vld [vmem:[%s717 + $0x1c0] sm:$0xff]
        %v2301 = vld [vmem:[%s717 + $0x1c8] sm:$0xff]
        %v2302 = vld [vmem:[%s717 + $0x1d0] sm:$0xff]
        %v2303 = vld [vmem:[%s717 + $0x1d8] sm:$0xff]
        %v2304 = vld [vmem:[%s717 + $0x1e0] sm:$0xff]
        %v2305 = vld [vmem:[%s717 + $0x1e8] sm:$0xff]
        %v2306 = vld [vmem:[%s717 + $0x1f0] sm:$0xff]
        %v2307 = vld [vmem:[%s717 + $0x1f8] sm:$0xff]
        %v2308 = vld [vmem:[%s717 + $0x200] sm:$0xff]
        %v2309 = vld [vmem:[%s717 + $0x208] sm:$0xff]
        %v2310 = vld [vmem:[%s717 + $0x210] sm:$0xff]
        %v2311 = vld [vmem:[%s717 + $0x218] sm:$0xff]
        %v2312 = vld [vmem:[%s717 + $0x220] sm:$0xff]
        %v2313 = vld [vmem:[%s717 + $0x228] sm:$0xff]
        %v2314 = vld [vmem:[%s717 + $0x230] sm:$0xff]
        %v2315 = vld [vmem:[%s717 + $0x238] sm:$0xff]
        %v2316 = vld [vmem:[%s717 + $0x240] sm:$0xff]
        %v2317 = vld [vmem:[%s717 + $0x248] sm:$0xff]
        %v2318 = vld [vmem:[%s717 + $0x250] sm:$0xff]
        %v2319 = vld [vmem:[%s717 + $0x258] sm:$0xff]
        %v2320 = vld [vmem:[%s717 + $0x260] sm:$0xff]
        %v2321 = vld [vmem:[%s717 + $0x268] sm:$0xff]
        %v2322 = vld [vmem:[%s717 + $0x270] sm:$0xff]
        %v2323 = vld [vmem:[%s717 + $0x278] sm:$0xff]
        %v2324 = vld [vmem:[%s717 + $0x280] sm:$0xff]
        %v2325 = vld [vmem:[%s717 + $0x288] sm:$0xff]
        %v2326 = vld [vmem:[%s717 + $0x290] sm:$0xff]
        %v2327 = vld [vmem:[%s717 + $0x298] sm:$0xff]
        %v2328 = vld [vmem:[%s717 + $0x2a0] sm:$0xff]
        %v2329 = vld [vmem:[%s717 + $0x2a8] sm:$0xff]
        %v2330 = vld [vmem:[%s717 + $0x2b0] sm:$0xff]
        %v2331 = vld [vmem:[%s717 + $0x2b8] sm:$0xff]
        %v2332 = vld [vmem:[%s717 + $0x2c0] sm:$0xff]
        %v2333 = vld [vmem:[%s717 + $0x2c8] sm:$0xff]
        %v2334 = vld [vmem:[%s717 + $0x2d0] sm:$0xff]
        %v2335 = vld [vmem:[%s717 + $0x2d8] sm:$0xff]
        %v2336 = vld [vmem:[%s717 + $0x2e0] sm:$0xff]
        %v2337 = vld [vmem:[%s717 + $0x2e8] sm:$0xff]
        %v2338 = vld [vmem:[%s717 + $0x2f0] sm:$0xff]
        %v2339 = vld [vmem:[%s717 + $0x2f8] sm:$0xff]
        %v2340 = vld [vmem:[%s717 + $0x300] sm:$0xff]
        %v2341 = vld [vmem:[%s717 + $0x308] sm:$0xff]
        %v2342 = vld [vmem:[%s717 + $0x310] sm:$0xff]
        %v2343 = vld [vmem:[%s717 + $0x318] sm:$0xff]
        %v2344 = vld [vmem:[%s717 + $0x320] sm:$0xff]
        %v2345 = vld [vmem:[%s717 + $0x328] sm:$0xff]
        %v2346 = vld [vmem:[%s717 + $0x330] sm:$0xff]
        %v2347 = vld [vmem:[%s717 + $0x338] sm:$0xff]
        %v2348 = vld [vmem:[%s717 + $0x340] sm:$0xff]
        %v2349 = vld [vmem:[%s717 + $0x348] sm:$0xff]
        %v2350 = vld [vmem:[%s717 + $0x350] sm:$0xff]
        %v2351 = vld [vmem:[%s717 + $0x358] sm:$0xff]
        %v2352 = vld [vmem:[%s717 + $0x360] sm:$0xff]
        %v2353 = vld [vmem:[%s717 + $0x368] sm:$0xff]
        %v2354 = vld [vmem:[%s717 + $0x370] sm:$0xff]
        %v2355 = vld [vmem:[%s717 + $0x378] sm:$0xff]
        %v2356 = vld [vmem:[%s717 + $0x380] sm:$0xff]
        %v2357 = vld [vmem:[%s717 + $0x388] sm:$0xff]
        %v2358 = vld [vmem:[%s717 + $0x390] sm:$0xff]
        %v2359 = vld [vmem:[%s717 + $0x398] sm:$0xff]
        %v2360 = vld [vmem:[%s717 + $0x3a0] sm:$0xff]
        %v2361 = vld [vmem:[%s717 + $0x3a8] sm:$0xff]
        %v2362 = vld [vmem:[%s717 + $0x3b0] sm:$0xff]
        %v2363 = vld [vmem:[%s717 + $0x3b8] sm:$0xff]
        %v2364 = vld [vmem:[%s717 + $0x3c0] sm:$0xff]
        %v2365 = vld [vmem:[%s717 + $0x3c8] sm:$0xff]
        %v2366 = vld [vmem:[%s717 + $0x3d0] sm:$0xff]
        %v2367 = vld [vmem:[%s717 + $0x3d8] sm:$0xff]
        %v2368 = vld [vmem:[%s717 + $0x3e0] sm:$0xff]
        %v2369 = vld [vmem:[%s717 + $0x3e8] sm:$0xff]
        %v2370 = vld [vmem:[%s717 + $0x3f0] sm:$0xff]
        %v2371 = vld [vmem:[%s717 + $0x3f8] sm:$0xff]
        %v2372 = vld [vmem:[%s727] sm:$0xff]
        %v2373 = vld [vmem:[%s727 + $0x8] sm:$0xff]
        %v2376 = vperm.slane %v2372, 0
        %v2377 = vperm.slane %v2372, 1
        %v2378 = vperm.slane %v2372, 2
        %v2379 = vperm.slane %v2372, 3
        %v2380 = vperm.slane %v2372, 4
        %v2381 = vperm.slane %v2372, 5
        %v2382 = vperm.slane %v2372, 6
        %v2383 = vperm.slane %v2372, 7
        %v2384 = vperm.slane %v2373, 0
        %v2385 = vperm.slane %v2373, 1
        %v2386 = vperm.slane %v2373, 2
        %v2387 = vperm.slane %v2373, 3
        %v2388 = vperm.slane %v2373, 4
        %v2389 = vperm.slane %v2373, 5
        %v2390 = vperm.slane %v2373, 6
        %v2391 = vperm.slane %v2373, 7
        %v2536 = vunpack.c.l.b16 %v2244
        %v2537 = vunpack.c.h.b16 %v2244
        %v2538 = vunpack.c.l.b16 %v2245
        %v2539 = vunpack.c.h.b16 %v2245
        %v2540 = vunpack.c.l.b16 %v2246
        %v2541 = vunpack.c.h.b16 %v2246
        %v2542 = vunpack.c.l.b16 %v2247
        %v2543 = vunpack.c.h.b16 %v2247
        %v2544 = vunpack.c.l.b16 %v2248
        %v2545 = vunpack.c.h.b16 %v2248
        %v2546 = vunpack.c.l.b16 %v2249
        %v2547 = vunpack.c.h.b16 %v2249
        %v2548 = vunpack.c.l.b16 %v2250
        %v2549 = vunpack.c.h.b16 %v2250
        %v2550 = vunpack.c.l.b16 %v2251
        %v2551 = vunpack.c.h.b16 %v2251
        %v2552 = vunpack.c.l.b16 %v2252
        %v2553 = vunpack.c.h.b16 %v2252
        %v2554 = vunpack.c.l.b16 %v2253
        %v2555 = vunpack.c.h.b16 %v2253
        %v2556 = vunpack.c.l.b16 %v2254
        %v2557 = vunpack.c.h.b16 %v2254
        %v2558 = vunpack.c.l.b16 %v2255
        %v2559 = vunpack.c.h.b16 %v2255
        %v2560 = vunpack.c.l.b16 %v2256
        %v2561 = vunpack.c.h.b16 %v2256
        %v2562 = vunpack.c.l.b16 %v2257
        %v2563 = vunpack.c.h.b16 %v2257
        %v2564 = vunpack.c.l.b16 %v2258
        %v2565 = vunpack.c.h.b16 %v2258
        %v2566 = vunpack.c.l.b16 %v2259
        %v2567 = vunpack.c.h.b16 %v2259
        %v2568 = vunpack.c.l.b16 %v2260
        %v2569 = vunpack.c.h.b16 %v2260
        %v2570 = vunpack.c.l.b16 %v2261
        %v2571 = vunpack.c.h.b16 %v2261
        %v2572 = vunpack.c.l.b16 %v2262
        %v2573 = vunpack.c.h.b16 %v2262
        %v2574 = vunpack.c.l.b16 %v2263
        %v2575 = vunpack.c.h.b16 %v2263
        %v2576 = vunpack.c.l.b16 %v2264
        %v2577 = vunpack.c.h.b16 %v2264
        %v2578 = vunpack.c.l.b16 %v2265
        %v2579 = vunpack.c.h.b16 %v2265
        %v2580 = vunpack.c.l.b16 %v2266
        %v2581 = vunpack.c.h.b16 %v2266
        %v2582 = vunpack.c.l.b16 %v2267
        %v2583 = vunpack.c.h.b16 %v2267
        %v2584 = vunpack.c.l.b16 %v2268
        %v2585 = vunpack.c.h.b16 %v2268
        %v2586 = vunpack.c.l.b16 %v2269
        %v2587 = vunpack.c.h.b16 %v2269
        %v2588 = vunpack.c.l.b16 %v2270
        %v2589 = vunpack.c.h.b16 %v2270
        %v2590 = vunpack.c.l.b16 %v2271
        %v2591 = vunpack.c.h.b16 %v2271
        %v2592 = vunpack.c.l.b16 %v2272
        %v2593 = vunpack.c.h.b16 %v2272
        %v2594 = vunpack.c.l.b16 %v2273
        %v2595 = vunpack.c.h.b16 %v2273
        %v2596 = vunpack.c.l.b16 %v2274
        %v2597 = vunpack.c.h.b16 %v2274
        %v2598 = vunpack.c.l.b16 %v2275
        %v2599 = vunpack.c.h.b16 %v2275
        %v2600 = vunpack.c.l.b16 %v2276
        %v2601 = vunpack.c.h.b16 %v2276
        %v2602 = vunpack.c.l.b16 %v2277
        %v2603 = vunpack.c.h.b16 %v2277
        %v2604 = vunpack.c.l.b16 %v2278
        %v2605 = vunpack.c.h.b16 %v2278
        %v2606 = vunpack.c.l.b16 %v2279
        %v2607 = vunpack.c.h.b16 %v2279
        %v2608 = vunpack.c.l.b16 %v2280
        %v2609 = vunpack.c.h.b16 %v2280
        %v2610 = vunpack.c.l.b16 %v2281
        %v2611 = vunpack.c.h.b16 %v2281
        %v2612 = vunpack.c.l.b16 %v2282
        %v2613 = vunpack.c.h.b16 %v2282
        %v2614 = vunpack.c.l.b16 %v2283
        %v2615 = vunpack.c.h.b16 %v2283
        %v2616 = vunpack.c.l.b16 %v2284
        %v2617 = vunpack.c.h.b16 %v2284
        %v2618 = vunpack.c.l.b16 %v2285
        %v2619 = vunpack.c.h.b16 %v2285
        %v2620 = vunpack.c.l.b16 %v2286
        %v2621 = vunpack.c.h.b16 %v2286
        %v2622 = vunpack.c.l.b16 %v2287
        %v2623 = vunpack.c.h.b16 %v2287
        %v2624 = vunpack.c.l.b16 %v2288
        %v2625 = vunpack.c.h.b16 %v2288
        %v2626 = vunpack.c.l.b16 %v2289
        %v2627 = vunpack.c.h.b16 %v2289
        %v2628 = vunpack.c.l.b16 %v2290
        %v2629 = vunpack.c.h.b16 %v2290
        %v2630 = vunpack.c.l.b16 %v2291
        %v2631 = vunpack.c.h.b16 %v2291
        %v2632 = vunpack.c.l.b16 %v2292
        %v2633 = vunpack.c.h.b16 %v2292
        %v2634 = vunpack.c.l.b16 %v2293
        %v2635 = vunpack.c.h.b16 %v2293
        %v2636 = vunpack.c.l.b16 %v2294
        %v2637 = vunpack.c.h.b16 %v2294
        %v2638 = vunpack.c.l.b16 %v2295
        %v2639 = vunpack.c.h.b16 %v2295
        %v2640 = vunpack.c.l.b16 %v2296
        %v2641 = vunpack.c.h.b16 %v2296
        %v2642 = vunpack.c.l.b16 %v2297
        %v2643 = vunpack.c.h.b16 %v2297
        %v2644 = vunpack.c.l.b16 %v2298
        %v2645 = vunpack.c.h.b16 %v2298
        %v2646 = vunpack.c.l.b16 %v2299
        %v2647 = vunpack.c.h.b16 %v2299
        %v2648 = vunpack.c.l.b16 %v2300
        %v2649 = vunpack.c.h.b16 %v2300
        %v2650 = vunpack.c.l.b16 %v2301
        %v2651 = vunpack.c.h.b16 %v2301
        %v2652 = vunpack.c.l.b16 %v2302
        %v2653 = vunpack.c.h.b16 %v2302
        %v2654 = vunpack.c.l.b16 %v2303
        %v2655 = vunpack.c.h.b16 %v2303
        %v2656 = vunpack.c.l.b16 %v2304
        %v2657 = vunpack.c.h.b16 %v2304
        %v2658 = vunpack.c.l.b16 %v2305
        %v2659 = vunpack.c.h.b16 %v2305
        %v2660 = vunpack.c.l.b16 %v2306
        %v2661 = vunpack.c.h.b16 %v2306
        %v2662 = vunpack.c.l.b16 %v2307
        %v2663 = vunpack.c.h.b16 %v2307
        %v2664 = vunpack.c.l.b16 %v2308
        %v2665 = vunpack.c.h.b16 %v2308
        %v2666 = vunpack.c.l.b16 %v2309
        %v2667 = vunpack.c.h.b16 %v2309
        %v2668 = vunpack.c.l.b16 %v2310
        %v2669 = vunpack.c.h.b16 %v2310
        %v2670 = vunpack.c.l.b16 %v2311
        %v2671 = vunpack.c.h.b16 %v2311
        %v2672 = vunpack.c.l.b16 %v2312
        %v2673 = vunpack.c.h.b16 %v2312
        %v2674 = vunpack.c.l.b16 %v2313
        %v2675 = vunpack.c.h.b16 %v2313
        %v2676 = vunpack.c.l.b16 %v2314
        %v2677 = vunpack.c.h.b16 %v2314
        %v2678 = vunpack.c.l.b16 %v2315
        %v2679 = vunpack.c.h.b16 %v2315
        %v2680 = vunpack.c.l.b16 %v2316
        %v2681 = vunpack.c.h.b16 %v2316
        %v2682 = vunpack.c.l.b16 %v2317
        %v2683 = vunpack.c.h.b16 %v2317
        %v2684 = vunpack.c.l.b16 %v2318
        %v2685 = vunpack.c.h.b16 %v2318
        %v2686 = vunpack.c.l.b16 %v2319
        %v2687 = vunpack.c.h.b16 %v2319
        %v2688 = vunpack.c.l.b16 %v2320
        %v2689 = vunpack.c.h.b16 %v2320
        %v2690 = vunpack.c.l.b16 %v2321
        %v2691 = vunpack.c.h.b16 %v2321
        %v2692 = vunpack.c.l.b16 %v2322
        %v2693 = vunpack.c.h.b16 %v2322
        %v2694 = vunpack.c.l.b16 %v2323
        %v2695 = vunpack.c.h.b16 %v2323
        %v2696 = vunpack.c.l.b16 %v2324
        %v2697 = vunpack.c.h.b16 %v2324
        %v2698 = vunpack.c.l.b16 %v2325
        %v2699 = vunpack.c.h.b16 %v2325
        %v2700 = vunpack.c.l.b16 %v2326
        %v2701 = vunpack.c.h.b16 %v2326
        %v2702 = vunpack.c.l.b16 %v2327
        %v2703 = vunpack.c.h.b16 %v2327
        %v2704 = vunpack.c.l.b16 %v2328
        %v2705 = vunpack.c.h.b16 %v2328
        %v2706 = vunpack.c.l.b16 %v2329
        %v2707 = vunpack.c.h.b16 %v2329
        %v2708 = vunpack.c.l.b16 %v2330
        %v2709 = vunpack.c.h.b16 %v2330
        %v2710 = vunpack.c.l.b16 %v2331
        %v2711 = vunpack.c.h.b16 %v2331
        %v2712 = vunpack.c.l.b16 %v2332
        %v2713 = vunpack.c.h.b16 %v2332
        %v2714 = vunpack.c.l.b16 %v2333
        %v2715 = vunpack.c.h.b16 %v2333
        %v2716 = vunpack.c.l.b16 %v2334
        %v2717 = vunpack.c.h.b16 %v2334
        %v2718 = vunpack.c.l.b16 %v2335
        %v2719 = vunpack.c.h.b16 %v2335
        %v2720 = vunpack.c.l.b16 %v2336
        %v2721 = vunpack.c.h.b16 %v2336
        %v2722 = vunpack.c.l.b16 %v2337
        %v2723 = vunpack.c.h.b16 %v2337
        %v2724 = vunpack.c.l.b16 %v2338
        %v2725 = vunpack.c.h.b16 %v2338
        %v2726 = vunpack.c.l.b16 %v2339
        %v2727 = vunpack.c.h.b16 %v2339
        %v2728 = vunpack.c.l.b16 %v2340
        %v2729 = vunpack.c.h.b16 %v2340
        %v2730 = vunpack.c.l.b16 %v2341
        %v2731 = vunpack.c.h.b16 %v2341
        %v2732 = vunpack.c.l.b16 %v2342
        %v2733 = vunpack.c.h.b16 %v2342
        %v2734 = vunpack.c.l.b16 %v2343
        %v2735 = vunpack.c.h.b16 %v2343
        %v2736 = vunpack.c.l.b16 %v2344
        %v2737 = vunpack.c.h.b16 %v2344
        %v2738 = vunpack.c.l.b16 %v2345
        %v2739 = vunpack.c.h.b16 %v2345
        %v2740 = vunpack.c.l.b16 %v2346
        %v2741 = vunpack.c.h.b16 %v2346
        %v2742 = vunpack.c.l.b16 %v2347
        %v2743 = vunpack.c.h.b16 %v2347
        %v2744 = vunpack.c.l.b16 %v2348
        %v2745 = vunpack.c.h.b16 %v2348
        %v2746 = vunpack.c.l.b16 %v2349
        %v2747 = vunpack.c.h.b16 %v2349
        %v2748 = vunpack.c.l.b16 %v2350
        %v2749 = vunpack.c.h.b16 %v2350
        %v2750 = vunpack.c.l.b16 %v2351
        %v2751 = vunpack.c.h.b16 %v2351
        %v2752 = vunpack.c.l.b16 %v2352
        %v2753 = vunpack.c.h.b16 %v2352
        %v2754 = vunpack.c.l.b16 %v2353
        %v2755 = vunpack.c.h.b16 %v2353
        %v2756 = vunpack.c.l.b16 %v2354
        %v2757 = vunpack.c.h.b16 %v2354
        %v2758 = vunpack.c.l.b16 %v2355
        %v2759 = vunpack.c.h.b16 %v2355
        %v2760 = vunpack.c.l.b16 %v2356
        %v2761 = vunpack.c.h.b16 %v2356
        %v2762 = vunpack.c.l.b16 %v2357
        %v2763 = vunpack.c.h.b16 %v2357
        %v2764 = vunpack.c.l.b16 %v2358
        %v2765 = vunpack.c.h.b16 %v2358
        %v2766 = vunpack.c.l.b16 %v2359
        %v2767 = vunpack.c.h.b16 %v2359
        %v2768 = vunpack.c.l.b16 %v2360
        %v2769 = vunpack.c.h.b16 %v2360
        %v2770 = vunpack.c.l.b16 %v2361
        %v2771 = vunpack.c.h.b16 %v2361
        %v2772 = vunpack.c.l.b16 %v2362
        %v2773 = vunpack.c.h.b16 %v2362
        %v2774 = vunpack.c.l.b16 %v2363
        %v2775 = vunpack.c.h.b16 %v2363
        %v2776 = vunpack.c.l.b16 %v2364
        %v2777 = vunpack.c.h.b16 %v2364
        %v2778 = vunpack.c.l.b16 %v2365
        %v2779 = vunpack.c.h.b16 %v2365
        %v2780 = vunpack.c.l.b16 %v2366
        %v2781 = vunpack.c.h.b16 %v2366
        %v2782 = vunpack.c.l.b16 %v2367
        %v2783 = vunpack.c.h.b16 %v2367
        %v2784 = vunpack.c.l.b16 %v2368
        %v2785 = vunpack.c.h.b16 %v2368
        %v2786 = vunpack.c.l.b16 %v2369
        %v2787 = vunpack.c.h.b16 %v2369
        %v2788 = vunpack.c.l.b16 %v2370
        %v2789 = vunpack.c.h.b16 %v2370
        %v2790 = vunpack.c.l.b16 %v2371
        %v2791 = vunpack.c.h.b16 %v2371
        %v2792 = vpack.c.b16 %v2552, %v2536
        %v2793 = vpack.c.b16 %v2553, %v2537
        %v2794 = vpack.c.b16 %v2554, %v2538
        %v2795 = vpack.c.b16 %v2555, %v2539
        %v2796 = vpack.c.b16 %v2556, %v2540
        %v2797 = vpack.c.b16 %v2557, %v2541
        %v2798 = vpack.c.b16 %v2558, %v2542
        %v2799 = vpack.c.b16 %v2559, %v2543
        %v2800 = vpack.c.b16 %v2560, %v2544
        %v2801 = vpack.c.b16 %v2561, %v2545
        %v2802 = vpack.c.b16 %v2562, %v2546
        %v2803 = vpack.c.b16 %v2563, %v2547
        %v2804 = vpack.c.b16 %v2564, %v2548
        %v2805 = vpack.c.b16 %v2565, %v2549
        %v2806 = vpack.c.b16 %v2566, %v2550
        %v2807 = vpack.c.b16 %v2567, %v2551
        %v2808 = vpack.c.b16 %v2584, %v2568
        %v2809 = vpack.c.b16 %v2585, %v2569
        %v2810 = vpack.c.b16 %v2586, %v2570
        %v2811 = vpack.c.b16 %v2587, %v2571
        %v2812 = vpack.c.b16 %v2588, %v2572
        %v2813 = vpack.c.b16 %v2589, %v2573
        %v2814 = vpack.c.b16 %v2590, %v2574
        %v2815 = vpack.c.b16 %v2591, %v2575
        %v2816 = vpack.c.b16 %v2592, %v2576
        %v2817 = vpack.c.b16 %v2593, %v2577
        %v2818 = vpack.c.b16 %v2594, %v2578
        %v2819 = vpack.c.b16 %v2595, %v2579
        %v2820 = vpack.c.b16 %v2596, %v2580
        %v2821 = vpack.c.b16 %v2597, %v2581
        %v2822 = vpack.c.b16 %v2598, %v2582
        %v2823 = vpack.c.b16 %v2599, %v2583
        %v2824 = vpack.c.b16 %v2616, %v2600
        %v2825 = vpack.c.b16 %v2617, %v2601
        %v2826 = vpack.c.b16 %v2618, %v2602
        %v2827 = vpack.c.b16 %v2619, %v2603
        %v2828 = vpack.c.b16 %v2620, %v2604
        %v2829 = vpack.c.b16 %v2621, %v2605
        %v2830 = vpack.c.b16 %v2622, %v2606
        %v2831 = vpack.c.b16 %v2623, %v2607
        %v2832 = vpack.c.b16 %v2624, %v2608
        %v2833 = vpack.c.b16 %v2625, %v2609
        %v2834 = vpack.c.b16 %v2626, %v2610
        %v2835 = vpack.c.b16 %v2627, %v2611
        %v2836 = vpack.c.b16 %v2628, %v2612
        %v2837 = vpack.c.b16 %v2629, %v2613
        %v2838 = vpack.c.b16 %v2630, %v2614
        %v2839 = vpack.c.b16 %v2631, %v2615
        %v2840 = vpack.c.b16 %v2648, %v2632
        %v2841 = vpack.c.b16 %v2649, %v2633
        %v2842 = vpack.c.b16 %v2650, %v2634
        %v2843 = vpack.c.b16 %v2651, %v2635
        %v2844 = vpack.c.b16 %v2652, %v2636
        %v2845 = vpack.c.b16 %v2653, %v2637
        %v2846 = vpack.c.b16 %v2654, %v2638
        %v2847 = vpack.c.b16 %v2655, %v2639
        %v2848 = vpack.c.b16 %v2656, %v2640
        %v2849 = vpack.c.b16 %v2657, %v2641
        %v2850 = vpack.c.b16 %v2658, %v2642
        %v2851 = vpack.c.b16 %v2659, %v2643
        %v2852 = vpack.c.b16 %v2660, %v2644
        %v2853 = vpack.c.b16 %v2661, %v2645
        %v2854 = vpack.c.b16 %v2662, %v2646
        %v2855 = vpack.c.b16 %v2663, %v2647
        %v2856 = vpack.c.b16 %v2680, %v2664
        %v2857 = vpack.c.b16 %v2681, %v2665
        %v2858 = vpack.c.b16 %v2682, %v2666
        %v2859 = vpack.c.b16 %v2683, %v2667
        %v2860 = vpack.c.b16 %v2684, %v2668
        %v2861 = vpack.c.b16 %v2685, %v2669
        %v2862 = vpack.c.b16 %v2686, %v2670
        %v2863 = vpack.c.b16 %v2687, %v2671
        %v2864 = vpack.c.b16 %v2688, %v2672
        %v2865 = vpack.c.b16 %v2689, %v2673
        %v2866 = vpack.c.b16 %v2690, %v2674
        %v2867 = vpack.c.b16 %v2691, %v2675
        %v2868 = vpack.c.b16 %v2692, %v2676
        %v2869 = vpack.c.b16 %v2693, %v2677
        %v2870 = vpack.c.b16 %v2694, %v2678
        %v2871 = vpack.c.b16 %v2695, %v2679
        %v2872 = vpack.c.b16 %v2712, %v2696
        %v2873 = vpack.c.b16 %v2713, %v2697
        %v2874 = vpack.c.b16 %v2714, %v2698
        %v2875 = vpack.c.b16 %v2715, %v2699
        %v2876 = vpack.c.b16 %v2716, %v2700
        %v2877 = vpack.c.b16 %v2717, %v2701
        %v2878 = vpack.c.b16 %v2718, %v2702
        %v2879 = vpack.c.b16 %v2719, %v2703
        %v2880 = vpack.c.b16 %v2720, %v2704
        %v2881 = vpack.c.b16 %v2721, %v2705
        %v2882 = vpack.c.b16 %v2722, %v2706
        %v2883 = vpack.c.b16 %v2723, %v2707
        %v2884 = vpack.c.b16 %v2724, %v2708
        %v2885 = vpack.c.b16 %v2725, %v2709
        %v2886 = vpack.c.b16 %v2726, %v2710
        %v2887 = vpack.c.b16 %v2727, %v2711
        %v2888 = vpack.c.b16 %v2744, %v2728
        %v2889 = vpack.c.b16 %v2745, %v2729
        %v2890 = vpack.c.b16 %v2746, %v2730
        %v2891 = vpack.c.b16 %v2747, %v2731
        %v2892 = vpack.c.b16 %v2748, %v2732
        %v2893 = vpack.c.b16 %v2749, %v2733
        %v2894 = vpack.c.b16 %v2750, %v2734
        %v2895 = vpack.c.b16 %v2751, %v2735
        %v2896 = vpack.c.b16 %v2752, %v2736
        %v2897 = vpack.c.b16 %v2753, %v2737
        %v2898 = vpack.c.b16 %v2754, %v2738
        %v2899 = vpack.c.b16 %v2755, %v2739
        %v2900 = vpack.c.b16 %v2756, %v2740
        %v2901 = vpack.c.b16 %v2757, %v2741
        %v2902 = vpack.c.b16 %v2758, %v2742
        %v2903 = vpack.c.b16 %v2759, %v2743
        %v2904 = vpack.c.b16 %v2776, %v2760
        %v2905 = vpack.c.b16 %v2777, %v2761
        %v2906 = vpack.c.b16 %v2778, %v2762
        %v2907 = vpack.c.b16 %v2779, %v2763
        %v2908 = vpack.c.b16 %v2780, %v2764
        %v2909 = vpack.c.b16 %v2781, %v2765
        %v2910 = vpack.c.b16 %v2782, %v2766
        %v2911 = vpack.c.b16 %v2783, %v2767
        %v2912 = vpack.c.b16 %v2784, %v2768
        %v2913 = vpack.c.b16 %v2785, %v2769
        %v2914 = vpack.c.b16 %v2786, %v2770
        %v2915 = vpack.c.b16 %v2787, %v2771
        %v2916 = vpack.c.b16 %v2788, %v2772
        %v2917 = vpack.c.b16 %v2789, %v2773
        %v2918 = vpack.c.b16 %v2790, %v2774
        %v2919 = vpack.c.b16 %v2791, %v2775
        %3048 = vmatpush.bf16.msra.mxu0 %v2904
        %3049 = vmatpush.bf16.msra.mxu0 %v2888
        %3050 = vmatpush.bf16.msra.mxu0 %v2872
        %3051 = vmatpush.bf16.msra.mxu0 %v2856
        %3052 = vmatpush.bf16.msra.mxu0 %v2840
        %3053 = vmatpush.bf16.msra.mxu0 %v2824
        %3054 = vmatpush.bf16.msra.mxu0 %v2808
        %3055 = vmatpush.bf16.msra.mxu0 %v2792
        %3056 = vmatmul.bf16.gmra.mxu0 %v2243
        %v3057 = vpop.f32.mrf.mxu0
        %v3058 = vadd.f32 %v2376, %v3057
        %v3059 = vpop.f32.mrf.mxu0
        %v3060 = vadd.f32 %v2376, %v3059
        %3061 = vdwg.mxu0
        %3062 = vmatpush.bf16.msra.mxu0 %v2905
        %3063 = vmatpush.bf16.msra.mxu0 %v2889
        %3064 = vmatpush.bf16.msra.mxu0 %v2873
        %3065 = vmatpush.bf16.msra.mxu0 %v2857
        %3066 = vmatpush.bf16.msra.mxu0 %v2841
        %3067 = vmatpush.bf16.msra.mxu0 %v2825
        %3068 = vmatpush.bf16.msra.mxu0 %v2809
        %3069 = vmatpush.bf16.msra.mxu0 %v2793
        %3070 = vmatmul.bf16.gmra.mxu0 %v2243
        %v3071 = vpop.f32.mrf.mxu0
        %v3072 = vadd.f32 %v2377, %v3071
        %v3073 = vpop.f32.mrf.mxu0
        %v3074 = vadd.f32 %v2377, %v3073
        %3075 = vdwg.mxu0
        %3076 = vmatpush.bf16.msra.mxu0 %v2906
        %3077 = vmatpush.bf16.msra.mxu0 %v2890
        %3078 = vmatpush.bf16.msra.mxu0 %v2874
        %3079 = vmatpush.bf16.msra.mxu0 %v2858
        %3080 = vmatpush.bf16.msra.mxu0 %v2842
        %3081 = vmatpush.bf16.msra.mxu0 %v2826
        %3082 = vmatpush.bf16.msra.mxu0 %v2810
        %3083 = vmatpush.bf16.msra.mxu0 %v2794
        %3084 = vmatmul.bf16.gmra.mxu0 %v2243
        %v3085 = vpop.f32.mrf.mxu0
        %v3086 = vadd.f32 %v2378, %v3085
        %v3087 = vpop.f32.mrf.mxu0
        %v3088 = vadd.f32 %v2378, %v3087
        %3089 = vdwg.mxu0
        %3090 = vmatpush.bf16.msra.mxu0 %v2907
        %3091 = vmatpush.bf16.msra.mxu0 %v2891
        %3092 = vmatpush.bf16.msra.mxu0 %v2875
        %3093 = vmatpush.bf16.msra.mxu0 %v2859
        %3094 = vmatpush.bf16.msra.mxu0 %v2843
        %3095 = vmatpush.bf16.msra.mxu0 %v2827
        %3096 = vmatpush.bf16.msra.mxu0 %v2811
        %3097 = vmatpush.bf16.msra.mxu0 %v2795
        %3098 = vmatmul.bf16.gmra.mxu0 %v2243
        %v3099 = vpop.f32.mrf.mxu0
        %v3100 = vadd.f32 %v2379, %v3099
        %v3101 = vpop.f32.mrf.mxu0
        %v3102 = vadd.f32 %v2379, %v3101
        %3103 = vdwg.mxu0
        %3104 = vmatpush.bf16.msra.mxu0 %v2908
        %3105 = vmatpush.bf16.msra.mxu0 %v2892
        %3106 = vmatpush.bf16.msra.mxu0 %v2876
        %3107 = vmatpush.bf16.msra.mxu0 %v2860
        %3108 = vmatpush.bf16.msra.mxu0 %v2844
        %3109 = vmatpush.bf16.msra.mxu0 %v2828
        %3110 = vmatpush.bf16.msra.mxu0 %v2812
        %3111 = vmatpush.bf16.msra.mxu0 %v2796
        %3112 = vmatmul.bf16.gmra.mxu0 %v2243
        %v3113 = vpop.f32.mrf.mxu0
        %v3114 = vadd.f32 %v2380, %v3113
        %v3115 = vpop.f32.mrf.mxu0
        %v3116 = vadd.f32 %v2380, %v3115
        %3117 = vdwg.mxu0
        %3118 = vmatpush.bf16.msra.mxu0 %v2909
        %3119 = vmatpush.bf16.msra.mxu0 %v2893
        %3120 = vmatpush.bf16.msra.mxu0 %v2877
        %3121 = vmatpush.bf16.msra.mxu0 %v2861
        %3122 = vmatpush.bf16.msra.mxu0 %v2845
        %3123 = vmatpush.bf16.msra.mxu0 %v2829
        %3124 = vmatpush.bf16.msra.mxu0 %v2813
        %3125 = vmatpush.bf16.msra.mxu0 %v2797
        %3126 = vmatmul.bf16.gmra.mxu0 %v2243
        %v3127 = vpop.f32.mrf.mxu0
        %v3128 = vadd.f32 %v2381, %v3127
        %v3129 = vpop.f32.mrf.mxu0
        %v3130 = vadd.f32 %v2381, %v3129
        %3131 = vdwg.mxu0
        %3132 = vmatpush.bf16.msra.mxu0 %v2910
        %3133 = vmatpush.bf16.msra.mxu0 %v2894
        %3134 = vmatpush.bf16.msra.mxu0 %v2878
        %3135 = vmatpush.bf16.msra.mxu0 %v2862
        %3136 = vmatpush.bf16.msra.mxu0 %v2846
        %3137 = vmatpush.bf16.msra.mxu0 %v2830
        %3138 = vmatpush.bf16.msra.mxu0 %v2814
        %3139 = vmatpush.bf16.msra.mxu0 %v2798
        %3140 = vmatmul.bf16.gmra.mxu0 %v2243
        %v3141 = vpop.f32.mrf.mxu0
        %v3142 = vadd.f32 %v2382, %v3141
        %v3143 = vpop.f32.mrf.mxu0
        %v3144 = vadd.f32 %v2382, %v3143
        %3145 = vdwg.mxu0
        %3146 = vmatpush.bf16.msra.mxu0 %v2911
        %3147 = vmatpush.bf16.msra.mxu0 %v2895
        %3148 = vmatpush.bf16.msra.mxu0 %v2879
        %3149 = vmatpush.bf16.msra.mxu0 %v2863
        %3150 = vmatpush.bf16.msra.mxu0 %v2847
        %3151 = vmatpush.bf16.msra.mxu0 %v2831
        %3152 = vmatpush.bf16.msra.mxu0 %v2815
        %3153 = vmatpush.bf16.msra.mxu0 %v2799
        %3154 = vmatmul.bf16.gmra.mxu0 %v2243
        %v3155 = vpop.f32.mrf.mxu0
        %v3156 = vadd.f32 %v2383, %v3155
        %v3157 = vpop.f32.mrf.mxu0
        %v3158 = vadd.f32 %v2383, %v3157
        %3159 = vdwg.mxu0
        %3160 = vmatpush.bf16.msra.mxu0 %v2912
        %3161 = vmatpush.bf16.msra.mxu0 %v2896
        %3162 = vmatpush.bf16.msra.mxu0 %v2880
        %3163 = vmatpush.bf16.msra.mxu0 %v2864
        %3164 = vmatpush.bf16.msra.mxu0 %v2848
        %3165 = vmatpush.bf16.msra.mxu0 %v2832
        %3166 = vmatpush.bf16.msra.mxu0 %v2816
        %3167 = vmatpush.bf16.msra.mxu0 %v2800
        %3168 = vmatmul.bf16.gmra.mxu0 %v2243
        %v3169 = vpop.f32.mrf.mxu0
        %v3170 = vadd.f32 %v2384, %v3169
        %v3171 = vpop.f32.mrf.mxu0
        %v3172 = vadd.f32 %v2384, %v3171
        %3173 = vdwg.mxu0
        %3174 = vmatpush.bf16.msra.mxu0 %v2913
        %3175 = vmatpush.bf16.msra.mxu0 %v2897
        %3176 = vmatpush.bf16.msra.mxu0 %v2881
        %3177 = vmatpush.bf16.msra.mxu0 %v2865
        %3178 = vmatpush.bf16.msra.mxu0 %v2849
        %3179 = vmatpush.bf16.msra.mxu0 %v2833
        %3180 = vmatpush.bf16.msra.mxu0 %v2817
        %3181 = vmatpush.bf16.msra.mxu0 %v2801
        %3182 = vmatmul.bf16.gmra.mxu0 %v2243
        %v3183 = vpop.f32.mrf.mxu0
        %v3184 = vadd.f32 %v2385, %v3183
        %v3185 = vpop.f32.mrf.mxu0
        %v3186 = vadd.f32 %v2385, %v3185
        %3187 = vdwg.mxu0
        %3188 = vmatpush.bf16.msra.mxu0 %v2914
        %3189 = vmatpush.bf16.msra.mxu0 %v2898
        %3190 = vmatpush.bf16.msra.mxu0 %v2882
        %3191 = vmatpush.bf16.msra.mxu0 %v2866
        %3192 = vmatpush.bf16.msra.mxu0 %v2850
        %3193 = vmatpush.bf16.msra.mxu0 %v2834
        %3194 = vmatpush.bf16.msra.mxu0 %v2818
        %3195 = vmatpush.bf16.msra.mxu0 %v2802
        %3196 = vmatmul.bf16.gmra.mxu0 %v2243
        %v3197 = vpop.f32.mrf.mxu0
        %v3198 = vadd.f32 %v2386, %v3197
        %v3199 = vpop.f32.mrf.mxu0
        %v3200 = vadd.f32 %v2386, %v3199
        %3201 = vdwg.mxu0
        %3202 = vmatpush.bf16.msra.mxu0 %v2915
        %3203 = vmatpush.bf16.msra.mxu0 %v2899
        %3204 = vmatpush.bf16.msra.mxu0 %v2883
        %3205 = vmatpush.bf16.msra.mxu0 %v2867
        %3206 = vmatpush.bf16.msra.mxu0 %v2851
        %3207 = vmatpush.bf16.msra.mxu0 %v2835
        %3208 = vmatpush.bf16.msra.mxu0 %v2819
        %3209 = vmatpush.bf16.msra.mxu0 %v2803
        %3210 = vmatmul.bf16.gmra.mxu0 %v2243
        %v3211 = vpop.f32.mrf.mxu0
        %v3212 = vadd.f32 %v2387, %v3211
        %v3213 = vpop.f32.mrf.mxu0
        %v3214 = vadd.f32 %v2387, %v3213
        %3215 = vdwg.mxu0
        %3216 = vmatpush.bf16.msra.mxu0 %v2916
        %3217 = vmatpush.bf16.msra.mxu0 %v2900
        %3218 = vmatpush.bf16.msra.mxu0 %v2884
        %3219 = vmatpush.bf16.msra.mxu0 %v2868
        %3220 = vmatpush.bf16.msra.mxu0 %v2852
        %3221 = vmatpush.bf16.msra.mxu0 %v2836
        %3222 = vmatpush.bf16.msra.mxu0 %v2820
        %3223 = vmatpush.bf16.msra.mxu0 %v2804
        %3224 = vmatmul.bf16.gmra.mxu0 %v2243
        %v3225 = vpop.f32.mrf.mxu0
        %v3226 = vadd.f32 %v2388, %v3225
        %v3227 = vpop.f32.mrf.mxu0
        %v3228 = vadd.f32 %v2388, %v3227
        %3229 = vdwg.mxu0
        %3230 = vmatpush.bf16.msra.mxu0 %v2917
        %3231 = vmatpush.bf16.msra.mxu0 %v2901
        %3232 = vmatpush.bf16.msra.mxu0 %v2885
        %3233 = vmatpush.bf16.msra.mxu0 %v2869
        %3234 = vmatpush.bf16.msra.mxu0 %v2853
        %3235 = vmatpush.bf16.msra.mxu0 %v2837
        %3236 = vmatpush.bf16.msra.mxu0 %v2821
        %3237 = vmatpush.bf16.msra.mxu0 %v2805
        %3238 = vmatmul.bf16.gmra.mxu0 %v2243
        %v3239 = vpop.f32.mrf.mxu0
        %v3240 = vadd.f32 %v2389, %v3239
        %v3241 = vpop.f32.mrf.mxu0
        %v3242 = vadd.f32 %v2389, %v3241
        %3243 = vdwg.mxu0
        %3244 = vmatpush.bf16.msra.mxu0 %v2918
        %3245 = vmatpush.bf16.msra.mxu0 %v2902
        %3246 = vmatpush.bf16.msra.mxu0 %v2886
        %3247 = vmatpush.bf16.msra.mxu0 %v2870
        %3248 = vmatpush.bf16.msra.mxu0 %v2854
        %3249 = vmatpush.bf16.msra.mxu0 %v2838
        %3250 = vmatpush.bf16.msra.mxu0 %v2822
        %3251 = vmatpush.bf16.msra.mxu0 %v2806
        %3252 = vmatmul.bf16.gmra.mxu0 %v2243
        %v3253 = vpop.f32.mrf.mxu0
        %v3254 = vadd.f32 %v2390, %v3253
        %v3255 = vpop.f32.mrf.mxu0
        %v3256 = vadd.f32 %v2390, %v3255
        %3257 = vdwg.mxu0
        %3258 = vmatpush.bf16.msra.mxu0 %v2919
        %3259 = vmatpush.bf16.msra.mxu0 %v2903
        %3260 = vmatpush.bf16.msra.mxu0 %v2887
        %3261 = vmatpush.bf16.msra.mxu0 %v2871
        %3262 = vmatpush.bf16.msra.mxu0 %v2855
        %3263 = vmatpush.bf16.msra.mxu0 %v2839
        %3264 = vmatpush.bf16.msra.mxu0 %v2823
        %3265 = vmatpush.bf16.msra.mxu0 %v2807
        %3266 = vmatmul.bf16.gmra.mxu0 %v2243
        %v3267 = vpop.f32.mrf.mxu0
        %v3268 = vadd.f32 %v2391, %v3267
        %v3269 = vpop.f32.mrf.mxu0
        %v3270 = vadd.f32 %v2391, %v3269
        %3271 = vdwg.mxu0
        %v3272 = vmax.f32 %v3058, 0.0
        %v3273 = vmax.f32 %v3072, 0.0
        %v3274 = vmax.f32 %v3086, 0.0
        %v3275 = vmax.f32 %v3100, 0.0
        %v3276 = vmax.f32 %v3114, 0.0
        %v3277 = vmax.f32 %v3128, 0.0
        %v3278 = vmax.f32 %v3142, 0.0
        %v3279 = vmax.f32 %v3156, 0.0
        %v3280 = vmax.f32 %v3170, 0.0
        %v3281 = vmax.f32 %v3184, 0.0
        %v3282 = vmax.f32 %v3198, 0.0
        %v3283 = vmax.f32 %v3212, 0.0
        %v3284 = vmax.f32 %v3226, 0.0
        %v3285 = vmax.f32 %v3240, 0.0
        %v3286 = vmax.f32 %v3254, 0.0
        %v3287 = vmax.f32 %v3268, 0.0
        %v3288 = vmax.f32 %v3060, 0.0
        %v3289 = vmax.f32 %v3074, 0.0
        %v3290 = vmax.f32 %v3088, 0.0
        %v3291 = vmax.f32 %v3102, 0.0
        %v3292 = vmax.f32 %v3116, 0.0
        %v3293 = vmax.f32 %v3130, 0.0
        %v3294 = vmax.f32 %v3144, 0.0
        %v3295 = vmax.f32 %v3158, 0.0
        %v3296 = vmax.f32 %v3172, 0.0
        %v3297 = vmax.f32 %v3186, 0.0
        %v3298 = vmax.f32 %v3200, 0.0
        %v3299 = vmax.f32 %v3214, 0.0
        %v3300 = vmax.f32 %v3228, 0.0
        %v3301 = vmax.f32 %v3242, 0.0
        %v3302 = vmax.f32 %v3256, 0.0
        %v3303 = vmax.f32 %v3270, 0.0
        %v3304 = vpack.c.bf16 %v3288, %v3272
        %v3305 = vpack.c.bf16 %v3289, %v3273
        %v3306 = vpack.c.bf16 %v3290, %v3274
        %v3307 = vpack.c.bf16 %v3291, %v3275
        %v3308 = vpack.c.bf16 %v3292, %v3276
        %v3309 = vpack.c.bf16 %v3293, %v3277
        %v3310 = vpack.c.bf16 %v3294, %v3278
        %v3311 = vpack.c.bf16 %v3295, %v3279
        %v3312 = vpack.c.bf16 %v3296, %v3280
        %v3313 = vpack.c.bf16 %v3297, %v3281
        %v3314 = vpack.c.bf16 %v3298, %v3282
        %v3315 = vpack.c.bf16 %v3299, %v3283
        %v3316 = vpack.c.bf16 %v3300, %v3284
        %v3317 = vpack.c.bf16 %v3301, %v3285
        %v3318 = vpack.c.bf16 %v3302, %v3286
        %v3319 = vpack.c.bf16 %v3303, %v3287
        %v3320 = vld [vmem:[%s737] sm:$0xf]
        %v3321 = vld [vmem:[%s737 + $0x4] sm:$0xf]
        %v3322 = vld [vmem:[%s737 + $0x8] sm:$0xf]
        %v3323 = vld [vmem:[%s737 + $0xc] sm:$0xf]
        %v3324 = vld [vmem:[%s737 + $0x10] sm:$0xf]
        %v3325 = vld [vmem:[%s737 + $0x14] sm:$0xf]
        %v3326 = vld [vmem:[%s737 + $0x18] sm:$0xf]
        %v3327 = vld [vmem:[%s737 + $0x1c] sm:$0xf]
        %v3328 = vld [vmem:[%s737 + $0x20] sm:$0xf]
        %v3329 = vld [vmem:[%s737 + $0x24] sm:$0xf]
        %v3330 = vld [vmem:[%s737 + $0x28] sm:$0xf]
        %v3331 = vld [vmem:[%s737 + $0x2c] sm:$0xf]
        %v3332 = vld [vmem:[%s737 + $0x30] sm:$0xf]
        %v3333 = vld [vmem:[%s737 + $0x34] sm:$0xf]
        %v3334 = vld [vmem:[%s737 + $0x38] sm:$0xf]
        %v3335 = vld [vmem:[%s737 + $0x3c] sm:$0xf]
        %v3336 = vld [vmem:[%s737 + $0x40] sm:$0xf]
        %v3337 = vld [vmem:[%s737 + $0x44] sm:$0xf]
        %v3338 = vld [vmem:[%s737 + $0x48] sm:$0xf]
        %v3339 = vld [vmem:[%s737 + $0x4c] sm:$0xf]
        %v3340 = vld [vmem:[%s737 + $0x50] sm:$0xf]
        %v3341 = vld [vmem:[%s737 + $0x54] sm:$0xf]
        %v3342 = vld [vmem:[%s737 + $0x58] sm:$0xf]
        %v3343 = vld [vmem:[%s737 + $0x5c] sm:$0xf]
        %v3344 = vld [vmem:[%s737 + $0x60] sm:$0xf]
        %v3345 = vld [vmem:[%s737 + $0x64] sm:$0xf]
        %v3346 = vld [vmem:[%s737 + $0x68] sm:$0xf]
        %v3347 = vld [vmem:[%s737 + $0x6c] sm:$0xf]
        %v3348 = vld [vmem:[%s737 + $0x70] sm:$0xf]
        %v3349 = vld [vmem:[%s737 + $0x74] sm:$0xf]
        %v3350 = vld [vmem:[%s737 + $0x78] sm:$0xf]
        %v3351 = vld [vmem:[%s737 + $0x7c] sm:$0xf]
        %v3352 = vld [vmem:[%s737 + $0x80] sm:$0xf]
        %v3353 = vld [vmem:[%s737 + $0x84] sm:$0xf]
        %v3354 = vld [vmem:[%s737 + $0x88] sm:$0xf]
        %v3355 = vld [vmem:[%s737 + $0x8c] sm:$0xf]
        %v3356 = vld [vmem:[%s737 + $0x90] sm:$0xf]
        %v3357 = vld [vmem:[%s737 + $0x94] sm:$0xf]
        %v3358 = vld [vmem:[%s737 + $0x98] sm:$0xf]
        %v3359 = vld [vmem:[%s737 + $0x9c] sm:$0xf]
        %v3360 = vld [vmem:[%s737 + $0xa0] sm:$0xf]
        %v3361 = vld [vmem:[%s737 + $0xa4] sm:$0xf]
        %v3362 = vld [vmem:[%s737 + $0xa8] sm:$0xf]
        %v3363 = vld [vmem:[%s737 + $0xac] sm:$0xf]
        %v3364 = vld [vmem:[%s737 + $0xb0] sm:$0xf]
        %v3365 = vld [vmem:[%s737 + $0xb4] sm:$0xf]
        %v3366 = vld [vmem:[%s737 + $0xb8] sm:$0xf]
        %v3367 = vld [vmem:[%s737 + $0xbc] sm:$0xf]
        %v3368 = vld [vmem:[%s737 + $0xc0] sm:$0xf]
        %v3369 = vld [vmem:[%s737 + $0xc4] sm:$0xf]
        %v3370 = vld [vmem:[%s737 + $0xc8] sm:$0xf]
        %v3371 = vld [vmem:[%s737 + $0xcc] sm:$0xf]
        %v3372 = vld [vmem:[%s737 + $0xd0] sm:$0xf]
        %v3373 = vld [vmem:[%s737 + $0xd4] sm:$0xf]
        %v3374 = vld [vmem:[%s737 + $0xd8] sm:$0xf]
        %v3375 = vld [vmem:[%s737 + $0xdc] sm:$0xf]
        %v3376 = vld [vmem:[%s737 + $0xe0] sm:$0xf]
        %v3377 = vld [vmem:[%s737 + $0xe4] sm:$0xf]
        %v3378 = vld [vmem:[%s737 + $0xe8] sm:$0xf]
        %v3379 = vld [vmem:[%s737 + $0xec] sm:$0xf]
        %v3380 = vld [vmem:[%s737 + $0xf0] sm:$0xf]
        %v3381 = vld [vmem:[%s737 + $0xf4] sm:$0xf]
        %v3382 = vld [vmem:[%s737 + $0xf8] sm:$0xf]
        %v3383 = vld [vmem:[%s737 + $0xfc] sm:$0xf]
        %v3384 = vld [vmem:[%s737 + $0x100] sm:$0xf]
        %v3385 = vld [vmem:[%s737 + $0x104] sm:$0xf]
        %v3386 = vld [vmem:[%s737 + $0x108] sm:$0xf]
        %v3387 = vld [vmem:[%s737 + $0x10c] sm:$0xf]
        %v3388 = vld [vmem:[%s737 + $0x110] sm:$0xf]
        %v3389 = vld [vmem:[%s737 + $0x114] sm:$0xf]
        %v3390 = vld [vmem:[%s737 + $0x118] sm:$0xf]
        %v3391 = vld [vmem:[%s737 + $0x11c] sm:$0xf]
        %v3392 = vld [vmem:[%s737 + $0x120] sm:$0xf]
        %v3393 = vld [vmem:[%s737 + $0x124] sm:$0xf]
        %v3394 = vld [vmem:[%s737 + $0x128] sm:$0xf]
        %v3395 = vld [vmem:[%s737 + $0x12c] sm:$0xf]
        %v3396 = vld [vmem:[%s737 + $0x130] sm:$0xf]
        %v3397 = vld [vmem:[%s737 + $0x134] sm:$0xf]
        %v3398 = vld [vmem:[%s737 + $0x138] sm:$0xf]
        %v3399 = vld [vmem:[%s737 + $0x13c] sm:$0xf]
        %v3400 = vld [vmem:[%s737 + $0x140] sm:$0xf]
        %v3401 = vld [vmem:[%s737 + $0x144] sm:$0xf]
        %v3402 = vld [vmem:[%s737 + $0x148] sm:$0xf]
        %v3403 = vld [vmem:[%s737 + $0x14c] sm:$0xf]
        %v3404 = vld [vmem:[%s737 + $0x150] sm:$0xf]
        %v3405 = vld [vmem:[%s737 + $0x154] sm:$0xf]
        %v3406 = vld [vmem:[%s737 + $0x158] sm:$0xf]
        %v3407 = vld [vmem:[%s737 + $0x15c] sm:$0xf]
        %v3408 = vld [vmem:[%s737 + $0x160] sm:$0xf]
        %v3409 = vld [vmem:[%s737 + $0x164] sm:$0xf]
        %v3410 = vld [vmem:[%s737 + $0x168] sm:$0xf]
        %v3411 = vld [vmem:[%s737 + $0x16c] sm:$0xf]
        %v3412 = vld [vmem:[%s737 + $0x170] sm:$0xf]
        %v3413 = vld [vmem:[%s737 + $0x174] sm:$0xf]
        %v3414 = vld [vmem:[%s737 + $0x178] sm:$0xf]
        %v3415 = vld [vmem:[%s737 + $0x17c] sm:$0xf]
        %v3416 = vld [vmem:[%s737 + $0x180] sm:$0xf]
        %v3417 = vld [vmem:[%s737 + $0x184] sm:$0xf]
        %v3418 = vld [vmem:[%s737 + $0x188] sm:$0xf]
        %v3419 = vld [vmem:[%s737 + $0x18c] sm:$0xf]
        %v3420 = vld [vmem:[%s737 + $0x190] sm:$0xf]
        %v3421 = vld [vmem:[%s737 + $0x194] sm:$0xf]
        %v3422 = vld [vmem:[%s737 + $0x198] sm:$0xf]
        %v3423 = vld [vmem:[%s737 + $0x19c] sm:$0xf]
        %v3424 = vld [vmem:[%s737 + $0x1a0] sm:$0xf]
        %v3425 = vld [vmem:[%s737 + $0x1a4] sm:$0xf]
        %v3426 = vld [vmem:[%s737 + $0x1a8] sm:$0xf]
        %v3427 = vld [vmem:[%s737 + $0x1ac] sm:$0xf]
        %v3428 = vld [vmem:[%s737 + $0x1b0] sm:$0xf]
        %v3429 = vld [vmem:[%s737 + $0x1b4] sm:$0xf]
        %v3430 = vld [vmem:[%s737 + $0x1b8] sm:$0xf]
        %v3431 = vld [vmem:[%s737 + $0x1bc] sm:$0xf]
        %v3432 = vld [vmem:[%s737 + $0x1c0] sm:$0xf]
        %v3433 = vld [vmem:[%s737 + $0x1c4] sm:$0xf]
        %v3434 = vld [vmem:[%s737 + $0x1c8] sm:$0xf]
        %v3435 = vld [vmem:[%s737 + $0x1cc] sm:$0xf]
        %v3436 = vld [vmem:[%s737 + $0x1d0] sm:$0xf]
        %v3437 = vld [vmem:[%s737 + $0x1d4] sm:$0xf]
        %v3438 = vld [vmem:[%s737 + $0x1d8] sm:$0xf]
        %v3439 = vld [vmem:[%s737 + $0x1dc] sm:$0xf]
        %v3440 = vld [vmem:[%s737 + $0x1e0] sm:$0xf]
        %v3441 = vld [vmem:[%s737 + $0x1e4] sm:$0xf]
        %v3442 = vld [vmem:[%s737 + $0x1e8] sm:$0xf]
        %v3443 = vld [vmem:[%s737 + $0x1ec] sm:$0xf]
        %v3444 = vld [vmem:[%s737 + $0x1f0] sm:$0xf]
        %v3445 = vld [vmem:[%s737 + $0x1f4] sm:$0xf]
        %v3446 = vld [vmem:[%s737 + $0x1f8] sm:$0xf]
        %v3447 = vld [vmem:[%s737 + $0x1fc] sm:$0xf]
        %v3448 = vld [vmem:[%s737 + $0x200] sm:$0xf]
        %v3449 = vld [vmem:[%s737 + $0x204] sm:$0xf]
        %v3450 = vld [vmem:[%s737 + $0x208] sm:$0xf]
        %v3451 = vld [vmem:[%s737 + $0x20c] sm:$0xf]
        %v3452 = vld [vmem:[%s737 + $0x210] sm:$0xf]
        %v3453 = vld [vmem:[%s737 + $0x214] sm:$0xf]
        %v3454 = vld [vmem:[%s737 + $0x218] sm:$0xf]
        %v3455 = vld [vmem:[%s737 + $0x21c] sm:$0xf]
        %v3456 = vld [vmem:[%s737 + $0x220] sm:$0xf]
        %v3457 = vld [vmem:[%s737 + $0x224] sm:$0xf]
        %v3458 = vld [vmem:[%s737 + $0x228] sm:$0xf]
        %v3459 = vld [vmem:[%s737 + $0x22c] sm:$0xf]
        %v3460 = vld [vmem:[%s737 + $0x230] sm:$0xf]
        %v3461 = vld [vmem:[%s737 + $0x234] sm:$0xf]
        %v3462 = vld [vmem:[%s737 + $0x238] sm:$0xf]
        %v3463 = vld [vmem:[%s737 + $0x23c] sm:$0xf]
        %v3464 = vld [vmem:[%s737 + $0x240] sm:$0xf]
        %v3465 = vld [vmem:[%s737 + $0x244] sm:$0xf]
        %v3466 = vld [vmem:[%s737 + $0x248] sm:$0xf]
        %v3467 = vld [vmem:[%s737 + $0x24c] sm:$0xf]
        %v3468 = vld [vmem:[%s737 + $0x250] sm:$0xf]
        %v3469 = vld [vmem:[%s737 + $0x254] sm:$0xf]
        %v3470 = vld [vmem:[%s737 + $0x258] sm:$0xf]
        %v3471 = vld [vmem:[%s737 + $0x25c] sm:$0xf]
        %v3472 = vld [vmem:[%s737 + $0x260] sm:$0xf]
        %v3473 = vld [vmem:[%s737 + $0x264] sm:$0xf]
        %v3474 = vld [vmem:[%s737 + $0x268] sm:$0xf]
        %v3475 = vld [vmem:[%s737 + $0x26c] sm:$0xf]
        %v3476 = vld [vmem:[%s737 + $0x270] sm:$0xf]
        %v3477 = vld [vmem:[%s737 + $0x274] sm:$0xf]
        %v3478 = vld [vmem:[%s737 + $0x278] sm:$0xf]
        %v3479 = vld [vmem:[%s737 + $0x27c] sm:$0xf]
        %v3480 = vld [vmem:[%s737 + $0x280] sm:$0xf]
        %v3481 = vld [vmem:[%s737 + $0x284] sm:$0xf]
        %v3482 = vld [vmem:[%s737 + $0x288] sm:$0xf]
        %v3483 = vld [vmem:[%s737 + $0x28c] sm:$0xf]
        %v3484 = vld [vmem:[%s737 + $0x290] sm:$0xf]
        %v3485 = vld [vmem:[%s737 + $0x294] sm:$0xf]
        %v3486 = vld [vmem:[%s737 + $0x298] sm:$0xf]
        %v3487 = vld [vmem:[%s737 + $0x29c] sm:$0xf]
        %v3488 = vld [vmem:[%s737 + $0x2a0] sm:$0xf]
        %v3489 = vld [vmem:[%s737 + $0x2a4] sm:$0xf]
        %v3490 = vld [vmem:[%s737 + $0x2a8] sm:$0xf]
        %v3491 = vld [vmem:[%s737 + $0x2ac] sm:$0xf]
        %v3492 = vld [vmem:[%s737 + $0x2b0] sm:$0xf]
        %v3493 = vld [vmem:[%s737 + $0x2b4] sm:$0xf]
        %v3494 = vld [vmem:[%s737 + $0x2b8] sm:$0xf]
        %v3495 = vld [vmem:[%s737 + $0x2bc] sm:$0xf]
        %v3496 = vld [vmem:[%s737 + $0x2c0] sm:$0xf]
        %v3497 = vld [vmem:[%s737 + $0x2c4] sm:$0xf]
        %v3498 = vld [vmem:[%s737 + $0x2c8] sm:$0xf]
        %v3499 = vld [vmem:[%s737 + $0x2cc] sm:$0xf]
        %v3500 = vld [vmem:[%s737 + $0x2d0] sm:$0xf]
        %v3501 = vld [vmem:[%s737 + $0x2d4] sm:$0xf]
        %v3502 = vld [vmem:[%s737 + $0x2d8] sm:$0xf]
        %v3503 = vld [vmem:[%s737 + $0x2dc] sm:$0xf]
        %v3504 = vld [vmem:[%s737 + $0x2e0] sm:$0xf]
        %v3505 = vld [vmem:[%s737 + $0x2e4] sm:$0xf]
        %v3506 = vld [vmem:[%s737 + $0x2e8] sm:$0xf]
        %v3507 = vld [vmem:[%s737 + $0x2ec] sm:$0xf]
        %v3508 = vld [vmem:[%s737 + $0x2f0] sm:$0xf]
        %v3509 = vld [vmem:[%s737 + $0x2f4] sm:$0xf]
        %v3510 = vld [vmem:[%s737 + $0x2f8] sm:$0xf]
        %v3511 = vld [vmem:[%s737 + $0x2fc] sm:$0xf]
        %v3512 = vld [vmem:[%s737 + $0x300] sm:$0xf]
        %v3513 = vld [vmem:[%s737 + $0x304] sm:$0xf]
        %v3514 = vld [vmem:[%s737 + $0x308] sm:$0xf]
        %v3515 = vld [vmem:[%s737 + $0x30c] sm:$0xf]
        %v3516 = vld [vmem:[%s737 + $0x310] sm:$0xf]
        %v3517 = vld [vmem:[%s737 + $0x314] sm:$0xf]
        %v3518 = vld [vmem:[%s737 + $0x318] sm:$0xf]
        %v3519 = vld [vmem:[%s737 + $0x31c] sm:$0xf]
        %v3520 = vld [vmem:[%s737 + $0x320] sm:$0xf]
        %v3521 = vld [vmem:[%s737 + $0x324] sm:$0xf]
        %v3522 = vld [vmem:[%s737 + $0x328] sm:$0xf]
        %v3523 = vld [vmem:[%s737 + $0x32c] sm:$0xf]
        %v3524 = vld [vmem:[%s737 + $0x330] sm:$0xf]
        %v3525 = vld [vmem:[%s737 + $0x334] sm:$0xf]
        %v3526 = vld [vmem:[%s737 + $0x338] sm:$0xf]
        %v3527 = vld [vmem:[%s737 + $0x33c] sm:$0xf]
        %v3528 = vld [vmem:[%s737 + $0x340] sm:$0xf]
        %v3529 = vld [vmem:[%s737 + $0x344] sm:$0xf]
        %v3530 = vld [vmem:[%s737 + $0x348] sm:$0xf]
        %v3531 = vld [vmem:[%s737 + $0x34c] sm:$0xf]
        %v3532 = vld [vmem:[%s737 + $0x350] sm:$0xf]
        %v3533 = vld [vmem:[%s737 + $0x354] sm:$0xf]
        %v3534 = vld [vmem:[%s737 + $0x358] sm:$0xf]
        %v3535 = vld [vmem:[%s737 + $0x35c] sm:$0xf]
        %v3536 = vld [vmem:[%s737 + $0x360] sm:$0xf]
        %v3537 = vld [vmem:[%s737 + $0x364] sm:$0xf]
        %v3538 = vld [vmem:[%s737 + $0x368] sm:$0xf]
        %v3539 = vld [vmem:[%s737 + $0x36c] sm:$0xf]
        %v3540 = vld [vmem:[%s737 + $0x370] sm:$0xf]
        %v3541 = vld [vmem:[%s737 + $0x374] sm:$0xf]
        %v3542 = vld [vmem:[%s737 + $0x378] sm:$0xf]
        %v3543 = vld [vmem:[%s737 + $0x37c] sm:$0xf]
        %v3544 = vld [vmem:[%s737 + $0x380] sm:$0xf]
        %v3545 = vld [vmem:[%s737 + $0x384] sm:$0xf]
        %v3546 = vld [vmem:[%s737 + $0x388] sm:$0xf]
        %v3547 = vld [vmem:[%s737 + $0x38c] sm:$0xf]
        %v3548 = vld [vmem:[%s737 + $0x390] sm:$0xf]
        %v3549 = vld [vmem:[%s737 + $0x394] sm:$0xf]
        %v3550 = vld [vmem:[%s737 + $0x398] sm:$0xf]
        %v3551 = vld [vmem:[%s737 + $0x39c] sm:$0xf]
        %v3552 = vld [vmem:[%s737 + $0x3a0] sm:$0xf]
        %v3553 = vld [vmem:[%s737 + $0x3a4] sm:$0xf]
        %v3554 = vld [vmem:[%s737 + $0x3a8] sm:$0xf]
        %v3555 = vld [vmem:[%s737 + $0x3ac] sm:$0xf]
        %v3556 = vld [vmem:[%s737 + $0x3b0] sm:$0xf]
        %v3557 = vld [vmem:[%s737 + $0x3b4] sm:$0xf]
        %v3558 = vld [vmem:[%s737 + $0x3b8] sm:$0xf]
        %v3559 = vld [vmem:[%s737 + $0x3bc] sm:$0xf]
        %v3560 = vld [vmem:[%s737 + $0x3c0] sm:$0xf]
        %v3561 = vld [vmem:[%s737 + $0x3c4] sm:$0xf]
        %v3562 = vld [vmem:[%s737 + $0x3c8] sm:$0xf]
        %v3563 = vld [vmem:[%s737 + $0x3cc] sm:$0xf]
        %v3564 = vld [vmem:[%s737 + $0x3d0] sm:$0xf]
        %v3565 = vld [vmem:[%s737 + $0x3d4] sm:$0xf]
        %v3566 = vld [vmem:[%s737 + $0x3d8] sm:$0xf]
        %v3567 = vld [vmem:[%s737 + $0x3dc] sm:$0xf]
        %v3568 = vld [vmem:[%s737 + $0x3e0] sm:$0xf]
        %v3569 = vld [vmem:[%s737 + $0x3e4] sm:$0xf]
        %v3570 = vld [vmem:[%s737 + $0x3e8] sm:$0xf]
        %v3571 = vld [vmem:[%s737 + $0x3ec] sm:$0xf]
        %v3572 = vld [vmem:[%s737 + $0x3f0] sm:$0xf]
        %v3573 = vld [vmem:[%s737 + $0x3f4] sm:$0xf]
        %v3574 = vld [vmem:[%s737 + $0x3f8] sm:$0xf]
        %v3575 = vld [vmem:[%s737 + $0x3fc] sm:$0xf]
        %v3576 = vld [vmem:[%s746] sm:$0x1]
        %v3578 = vperm.slane %v3576, 0
        %v3836 = vunpack.c.l.b16 %v3320
        %v3837 = vunpack.c.l.b16 %v3321
        %v3838 = vunpack.c.l.b16 %v3322
        %v3839 = vunpack.c.l.b16 %v3323
        %v3840 = vunpack.c.l.b16 %v3324
        %v3841 = vunpack.c.l.b16 %v3325
        %v3842 = vunpack.c.l.b16 %v3326
        %v3843 = vunpack.c.l.b16 %v3327
        %v3844 = vunpack.c.l.b16 %v3328
        %v3845 = vunpack.c.l.b16 %v3329
        %v3846 = vunpack.c.l.b16 %v3330
        %v3847 = vunpack.c.l.b16 %v3331
        %v3848 = vunpack.c.l.b16 %v3332
        %v3849 = vunpack.c.l.b16 %v3333
        %v3850 = vunpack.c.l.b16 %v3334
        %v3851 = vunpack.c.l.b16 %v3335
        %v3852 = vunpack.c.l.b16 %v3336
        %v3853 = vunpack.c.l.b16 %v3337
        %v3854 = vunpack.c.l.b16 %v3338
        %v3855 = vunpack.c.l.b16 %v3339
        %v3856 = vunpack.c.l.b16 %v3340
        %v3857 = vunpack.c.l.b16 %v3341
        %v3858 = vunpack.c.l.b16 %v3342
        %v3859 = vunpack.c.l.b16 %v3343
        %v3860 = vunpack.c.l.b16 %v3344
        %v3861 = vunpack.c.l.b16 %v3345
        %v3862 = vunpack.c.l.b16 %v3346
        %v3863 = vunpack.c.l.b16 %v3347
        %v3864 = vunpack.c.l.b16 %v3348
        %v3865 = vunpack.c.l.b16 %v3349
        %v3866 = vunpack.c.l.b16 %v3350
        %v3867 = vunpack.c.l.b16 %v3351
        %v3868 = vunpack.c.l.b16 %v3352
        %v3869 = vunpack.c.l.b16 %v3353
        %v3870 = vunpack.c.l.b16 %v3354
        %v3871 = vunpack.c.l.b16 %v3355
        %v3872 = vunpack.c.l.b16 %v3356
        %v3873 = vunpack.c.l.b16 %v3357
        %v3874 = vunpack.c.l.b16 %v3358
        %v3875 = vunpack.c.l.b16 %v3359
        %v3876 = vunpack.c.l.b16 %v3360
        %v3877 = vunpack.c.l.b16 %v3361
        %v3878 = vunpack.c.l.b16 %v3362
        %v3879 = vunpack.c.l.b16 %v3363
        %v3880 = vunpack.c.l.b16 %v3364
        %v3881 = vunpack.c.l.b16 %v3365
        %v3882 = vunpack.c.l.b16 %v3366
        %v3883 = vunpack.c.l.b16 %v3367
        %v3884 = vunpack.c.l.b16 %v3368
        %v3885 = vunpack.c.l.b16 %v3369
        %v3886 = vunpack.c.l.b16 %v3370
        %v3887 = vunpack.c.l.b16 %v3371
        %v3888 = vunpack.c.l.b16 %v3372
        %v3889 = vunpack.c.l.b16 %v3373
        %v3890 = vunpack.c.l.b16 %v3374
        %v3891 = vunpack.c.l.b16 %v3375
        %v3892 = vunpack.c.l.b16 %v3376
        %v3893 = vunpack.c.l.b16 %v3377
        %v3894 = vunpack.c.l.b16 %v3378
        %v3895 = vunpack.c.l.b16 %v3379
        %v3896 = vunpack.c.l.b16 %v3380
        %v3897 = vunpack.c.l.b16 %v3381
        %v3898 = vunpack.c.l.b16 %v3382
        %v3899 = vunpack.c.l.b16 %v3383
        %v3900 = vunpack.c.l.b16 %v3384
        %v3901 = vunpack.c.l.b16 %v3385
        %v3902 = vunpack.c.l.b16 %v3386
        %v3903 = vunpack.c.l.b16 %v3387
        %v3904 = vunpack.c.l.b16 %v3388
        %v3905 = vunpack.c.l.b16 %v3389
        %v3906 = vunpack.c.l.b16 %v3390
        %v3907 = vunpack.c.l.b16 %v3391
        %v3908 = vunpack.c.l.b16 %v3392
        %v3909 = vunpack.c.l.b16 %v3393
        %v3910 = vunpack.c.l.b16 %v3394
        %v3911 = vunpack.c.l.b16 %v3395
        %v3912 = vunpack.c.l.b16 %v3396
        %v3913 = vunpack.c.l.b16 %v3397
        %v3914 = vunpack.c.l.b16 %v3398
        %v3915 = vunpack.c.l.b16 %v3399
        %v3916 = vunpack.c.l.b16 %v3400
        %v3917 = vunpack.c.l.b16 %v3401
        %v3918 = vunpack.c.l.b16 %v3402
        %v3919 = vunpack.c.l.b16 %v3403
        %v3920 = vunpack.c.l.b16 %v3404
        %v3921 = vunpack.c.l.b16 %v3405
        %v3922 = vunpack.c.l.b16 %v3406
        %v3923 = vunpack.c.l.b16 %v3407
        %v3924 = vunpack.c.l.b16 %v3408
        %v3925 = vunpack.c.l.b16 %v3409
        %v3926 = vunpack.c.l.b16 %v3410
        %v3927 = vunpack.c.l.b16 %v3411
        %v3928 = vunpack.c.l.b16 %v3412
        %v3929 = vunpack.c.l.b16 %v3413
        %v3930 = vunpack.c.l.b16 %v3414
        %v3931 = vunpack.c.l.b16 %v3415
        %v3932 = vunpack.c.l.b16 %v3416
        %v3933 = vunpack.c.l.b16 %v3417
        %v3934 = vunpack.c.l.b16 %v3418
        %v3935 = vunpack.c.l.b16 %v3419
        %v3936 = vunpack.c.l.b16 %v3420
        %v3937 = vunpack.c.l.b16 %v3421
        %v3938 = vunpack.c.l.b16 %v3422
        %v3939 = vunpack.c.l.b16 %v3423
        %v3940 = vunpack.c.l.b16 %v3424
        %v3941 = vunpack.c.l.b16 %v3425
        %v3942 = vunpack.c.l.b16 %v3426
        %v3943 = vunpack.c.l.b16 %v3427
        %v3944 = vunpack.c.l.b16 %v3428
        %v3945 = vunpack.c.l.b16 %v3429
        %v3946 = vunpack.c.l.b16 %v3430
        %v3947 = vunpack.c.l.b16 %v3431
        %v3948 = vunpack.c.l.b16 %v3432
        %v3949 = vunpack.c.l.b16 %v3433
        %v3950 = vunpack.c.l.b16 %v3434
        %v3951 = vunpack.c.l.b16 %v3435
        %v3952 = vunpack.c.l.b16 %v3436
        %v3953 = vunpack.c.l.b16 %v3437
        %v3954 = vunpack.c.l.b16 %v3438
        %v3955 = vunpack.c.l.b16 %v3439
        %v3956 = vunpack.c.l.b16 %v3440
        %v3957 = vunpack.c.l.b16 %v3441
        %v3958 = vunpack.c.l.b16 %v3442
        %v3959 = vunpack.c.l.b16 %v3443
        %v3960 = vunpack.c.l.b16 %v3444
        %v3961 = vunpack.c.l.b16 %v3445
        %v3962 = vunpack.c.l.b16 %v3446
        %v3963 = vunpack.c.l.b16 %v3447
        %v3964 = vunpack.c.l.b16 %v3448
        %v3965 = vunpack.c.l.b16 %v3449
        %v3966 = vunpack.c.l.b16 %v3450
        %v3967 = vunpack.c.l.b16 %v3451
        %v3968 = vunpack.c.l.b16 %v3452
        %v3969 = vunpack.c.l.b16 %v3453
        %v3970 = vunpack.c.l.b16 %v3454
        %v3971 = vunpack.c.l.b16 %v3455
        %v3972 = vunpack.c.l.b16 %v3456
        %v3973 = vunpack.c.l.b16 %v3457
        %v3974 = vunpack.c.l.b16 %v3458
        %v3975 = vunpack.c.l.b16 %v3459
        %v3976 = vunpack.c.l.b16 %v3460
        %v3977 = vunpack.c.l.b16 %v3461
        %v3978 = vunpack.c.l.b16 %v3462
        %v3979 = vunpack.c.l.b16 %v3463
        %v3980 = vunpack.c.l.b16 %v3464
        %v3981 = vunpack.c.l.b16 %v3465
        %v3982 = vunpack.c.l.b16 %v3466
        %v3983 = vunpack.c.l.b16 %v3467
        %v3984 = vunpack.c.l.b16 %v3468
        %v3985 = vunpack.c.l.b16 %v3469
        %v3986 = vunpack.c.l.b16 %v3470
        %v3987 = vunpack.c.l.b16 %v3471
        %v3988 = vunpack.c.l.b16 %v3472
        %v3989 = vunpack.c.l.b16 %v3473
        %v3990 = vunpack.c.l.b16 %v3474
        %v3991 = vunpack.c.l.b16 %v3475
        %v3992 = vunpack.c.l.b16 %v3476
        %v3993 = vunpack.c.l.b16 %v3477
        %v3994 = vunpack.c.l.b16 %v3478
        %v3995 = vunpack.c.l.b16 %v3479
        %v3996 = vunpack.c.l.b16 %v3480
        %v3997 = vunpack.c.l.b16 %v3481
        %v3998 = vunpack.c.l.b16 %v3482
        %v3999 = vunpack.c.l.b16 %v3483
        %v4000 = vunpack.c.l.b16 %v3484
        %v4001 = vunpack.c.l.b16 %v3485
        %v4002 = vunpack.c.l.b16 %v3486
        %v4003 = vunpack.c.l.b16 %v3487
        %v4004 = vunpack.c.l.b16 %v3488
        %v4005 = vunpack.c.l.b16 %v3489
        %v4006 = vunpack.c.l.b16 %v3490
        %v4007 = vunpack.c.l.b16 %v3491
        %v4008 = vunpack.c.l.b16 %v3492
        %v4009 = vunpack.c.l.b16 %v3493
        %v4010 = vunpack.c.l.b16 %v3494
        %v4011 = vunpack.c.l.b16 %v3495
        %v4012 = vunpack.c.l.b16 %v3496
        %v4013 = vunpack.c.l.b16 %v3497
        %v4014 = vunpack.c.l.b16 %v3498
        %v4015 = vunpack.c.l.b16 %v3499
        %v4016 = vunpack.c.l.b16 %v3500
        %v4017 = vunpack.c.l.b16 %v3501
        %v4018 = vunpack.c.l.b16 %v3502
        %v4019 = vunpack.c.l.b16 %v3503
        %v4020 = vunpack.c.l.b16 %v3504
        %v4021 = vunpack.c.l.b16 %v3505
        %v4022 = vunpack.c.l.b16 %v3506
        %v4023 = vunpack.c.l.b16 %v3507
        %v4024 = vunpack.c.l.b16 %v3508
        %v4025 = vunpack.c.l.b16 %v3509
        %v4026 = vunpack.c.l.b16 %v3510
        %v4027 = vunpack.c.l.b16 %v3511
        %v4028 = vunpack.c.l.b16 %v3512
        %v4029 = vunpack.c.l.b16 %v3513
        %v4030 = vunpack.c.l.b16 %v3514
        %v4031 = vunpack.c.l.b16 %v3515
        %v4032 = vunpack.c.l.b16 %v3516
        %v4033 = vunpack.c.l.b16 %v3517
        %v4034 = vunpack.c.l.b16 %v3518
        %v4035 = vunpack.c.l.b16 %v3519
        %v4036 = vunpack.c.l.b16 %v3520
        %v4037 = vunpack.c.l.b16 %v3521
        %v4038 = vunpack.c.l.b16 %v3522
        %v4039 = vunpack.c.l.b16 %v3523
        %v4040 = vunpack.c.l.b16 %v3524
        %v4041 = vunpack.c.l.b16 %v3525
        %v4042 = vunpack.c.l.b16 %v3526
        %v4043 = vunpack.c.l.b16 %v3527
        %v4044 = vunpack.c.l.b16 %v3528
        %v4045 = vunpack.c.l.b16 %v3529
        %v4046 = vunpack.c.l.b16 %v3530
        %v4047 = vunpack.c.l.b16 %v3531
        %v4048 = vunpack.c.l.b16 %v3532
        %v4049 = vunpack.c.l.b16 %v3533
        %v4050 = vunpack.c.l.b16 %v3534
        %v4051 = vunpack.c.l.b16 %v3535
        %v4052 = vunpack.c.l.b16 %v3536
        %v4053 = vunpack.c.l.b16 %v3537
        %v4054 = vunpack.c.l.b16 %v3538
        %v4055 = vunpack.c.l.b16 %v3539
        %v4056 = vunpack.c.l.b16 %v3540
        %v4057 = vunpack.c.l.b16 %v3541
        %v4058 = vunpack.c.l.b16 %v3542
        %v4059 = vunpack.c.l.b16 %v3543
        %v4060 = vunpack.c.l.b16 %v3544
        %v4061 = vunpack.c.l.b16 %v3545
        %v4062 = vunpack.c.l.b16 %v3546
        %v4063 = vunpack.c.l.b16 %v3547
        %v4064 = vunpack.c.l.b16 %v3548
        %v4065 = vunpack.c.l.b16 %v3549
        %v4066 = vunpack.c.l.b16 %v3550
        %v4067 = vunpack.c.l.b16 %v3551
        %v4068 = vunpack.c.l.b16 %v3552
        %v4069 = vunpack.c.l.b16 %v3553
        %v4070 = vunpack.c.l.b16 %v3554
        %v4071 = vunpack.c.l.b16 %v3555
        %v4072 = vunpack.c.l.b16 %v3556
        %v4073 = vunpack.c.l.b16 %v3557
        %v4074 = vunpack.c.l.b16 %v3558
        %v4075 = vunpack.c.l.b16 %v3559
        %v4076 = vunpack.c.l.b16 %v3560
        %v4077 = vunpack.c.l.b16 %v3561
        %v4078 = vunpack.c.l.b16 %v3562
        %v4079 = vunpack.c.l.b16 %v3563
        %v4080 = vunpack.c.l.b16 %v3564
        %v4081 = vunpack.c.l.b16 %v3565
        %v4082 = vunpack.c.l.b16 %v3566
        %v4083 = vunpack.c.l.b16 %v3567
        %v4084 = vunpack.c.l.b16 %v3568
        %v4085 = vunpack.c.l.b16 %v3569
        %v4086 = vunpack.c.l.b16 %v3570
        %v4087 = vunpack.c.l.b16 %v3571
        %v4088 = vunpack.c.l.b16 %v3572
        %v4089 = vunpack.c.l.b16 %v3573
        %v4090 = vunpack.c.l.b16 %v3574
        %v4091 = vunpack.c.l.b16 %v3575
        %v4092 = vpack.c.b16 %v3837, %v3836
        %v4093 = vpack.c.b16 %v3839, %v3838
        %v4094 = vpack.c.b16 %v3841, %v3840
        %v4095 = vpack.c.b16 %v3843, %v3842
        %v4096 = vpack.c.b16 %v3845, %v3844
        %v4097 = vpack.c.b16 %v3847, %v3846
        %v4098 = vpack.c.b16 %v3849, %v3848
        %v4099 = vpack.c.b16 %v3851, %v3850
        %v4100 = vpack.c.b16 %v3853, %v3852
        %v4101 = vpack.c.b16 %v3855, %v3854
        %v4102 = vpack.c.b16 %v3857, %v3856
        %v4103 = vpack.c.b16 %v3859, %v3858
        %v4104 = vpack.c.b16 %v3861, %v3860
        %v4105 = vpack.c.b16 %v3863, %v3862
        %v4106 = vpack.c.b16 %v3865, %v3864
        %v4107 = vpack.c.b16 %v3867, %v3866
        %v4108 = vpack.c.b16 %v3869, %v3868
        %v4109 = vpack.c.b16 %v3871, %v3870
        %v4110 = vpack.c.b16 %v3873, %v3872
        %v4111 = vpack.c.b16 %v3875, %v3874
        %v4112 = vpack.c.b16 %v3877, %v3876
        %v4113 = vpack.c.b16 %v3879, %v3878
        %v4114 = vpack.c.b16 %v3881, %v3880
        %v4115 = vpack.c.b16 %v3883, %v3882
        %v4116 = vpack.c.b16 %v3885, %v3884
        %v4117 = vpack.c.b16 %v3887, %v3886
        %v4118 = vpack.c.b16 %v3889, %v3888
        %v4119 = vpack.c.b16 %v3891, %v3890
        %v4120 = vpack.c.b16 %v3893, %v3892
        %v4121 = vpack.c.b16 %v3895, %v3894
        %v4122 = vpack.c.b16 %v3897, %v3896
        %v4123 = vpack.c.b16 %v3899, %v3898
        %v4124 = vpack.c.b16 %v3901, %v3900
        %v4125 = vpack.c.b16 %v3903, %v3902
        %v4126 = vpack.c.b16 %v3905, %v3904
        %v4127 = vpack.c.b16 %v3907, %v3906
        %v4128 = vpack.c.b16 %v3909, %v3908
        %v4129 = vpack.c.b16 %v3911, %v3910
        %v4130 = vpack.c.b16 %v3913, %v3912
        %v4131 = vpack.c.b16 %v3915, %v3914
        %v4132 = vpack.c.b16 %v3917, %v3916
        %v4133 = vpack.c.b16 %v3919, %v3918
        %v4134 = vpack.c.b16 %v3921, %v3920
        %v4135 = vpack.c.b16 %v3923, %v3922
        %v4136 = vpack.c.b16 %v3925, %v3924
        %v4137 = vpack.c.b16 %v3927, %v3926
        %v4138 = vpack.c.b16 %v3929, %v3928
        %v4139 = vpack.c.b16 %v3931, %v3930
        %v4140 = vpack.c.b16 %v3933, %v3932
        %v4141 = vpack.c.b16 %v3935, %v3934
        %v4142 = vpack.c.b16 %v3937, %v3936
        %v4143 = vpack.c.b16 %v3939, %v3938
        %v4144 = vpack.c.b16 %v3941, %v3940
        %v4145 = vpack.c.b16 %v3943, %v3942
        %v4146 = vpack.c.b16 %v3945, %v3944
        %v4147 = vpack.c.b16 %v3947, %v3946
        %v4148 = vpack.c.b16 %v3949, %v3948
        %v4149 = vpack.c.b16 %v3951, %v3950
        %v4150 = vpack.c.b16 %v3953, %v3952
        %v4151 = vpack.c.b16 %v3955, %v3954
        %v4152 = vpack.c.b16 %v3957, %v3956
        %v4153 = vpack.c.b16 %v3959, %v3958
        %v4154 = vpack.c.b16 %v3961, %v3960
        %v4155 = vpack.c.b16 %v3963, %v3962
        %v4156 = vpack.c.b16 %v3965, %v3964
        %v4157 = vpack.c.b16 %v3967, %v3966
        %v4158 = vpack.c.b16 %v3969, %v3968
        %v4159 = vpack.c.b16 %v3971, %v3970
        %v4160 = vpack.c.b16 %v3973, %v3972
        %v4161 = vpack.c.b16 %v3975, %v3974
        %v4162 = vpack.c.b16 %v3977, %v3976
        %v4163 = vpack.c.b16 %v3979, %v3978
        %v4164 = vpack.c.b16 %v3981, %v3980
        %v4165 = vpack.c.b16 %v3983, %v3982
        %v4166 = vpack.c.b16 %v3985, %v3984
        %v4167 = vpack.c.b16 %v3987, %v3986
        %v4168 = vpack.c.b16 %v3989, %v3988
        %v4169 = vpack.c.b16 %v3991, %v3990
        %v4170 = vpack.c.b16 %v3993, %v3992
        %v4171 = vpack.c.b16 %v3995, %v3994
        %v4172 = vpack.c.b16 %v3997, %v3996
        %v4173 = vpack.c.b16 %v3999, %v3998
        %v4174 = vpack.c.b16 %v4001, %v4000
        %v4175 = vpack.c.b16 %v4003, %v4002
        %v4176 = vpack.c.b16 %v4005, %v4004
        %v4177 = vpack.c.b16 %v4007, %v4006
        %v4178 = vpack.c.b16 %v4009, %v4008
        %v4179 = vpack.c.b16 %v4011, %v4010
        %v4180 = vpack.c.b16 %v4013, %v4012
        %v4181 = vpack.c.b16 %v4015, %v4014
        %v4182 = vpack.c.b16 %v4017, %v4016
        %v4183 = vpack.c.b16 %v4019, %v4018
        %v4184 = vpack.c.b16 %v4021, %v4020
        %v4185 = vpack.c.b16 %v4023, %v4022
        %v4186 = vpack.c.b16 %v4025, %v4024
        %v4187 = vpack.c.b16 %v4027, %v4026
        %v4188 = vpack.c.b16 %v4029, %v4028
        %v4189 = vpack.c.b16 %v4031, %v4030
        %v4190 = vpack.c.b16 %v4033, %v4032
        %v4191 = vpack.c.b16 %v4035, %v4034
        %v4192 = vpack.c.b16 %v4037, %v4036
        %v4193 = vpack.c.b16 %v4039, %v4038
        %v4194 = vpack.c.b16 %v4041, %v4040
        %v4195 = vpack.c.b16 %v4043, %v4042
        %v4196 = vpack.c.b16 %v4045, %v4044
        %v4197 = vpack.c.b16 %v4047, %v4046
        %v4198 = vpack.c.b16 %v4049, %v4048
        %v4199 = vpack.c.b16 %v4051, %v4050
        %v4200 = vpack.c.b16 %v4053, %v4052
        %v4201 = vpack.c.b16 %v4055, %v4054
        %v4202 = vpack.c.b16 %v4057, %v4056
        %v4203 = vpack.c.b16 %v4059, %v4058
        %v4204 = vpack.c.b16 %v4061, %v4060
        %v4205 = vpack.c.b16 %v4063, %v4062
        %v4206 = vpack.c.b16 %v4065, %v4064
        %v4207 = vpack.c.b16 %v4067, %v4066
        %v4208 = vpack.c.b16 %v4069, %v4068
        %v4209 = vpack.c.b16 %v4071, %v4070
        %v4210 = vpack.c.b16 %v4073, %v4072
        %v4211 = vpack.c.b16 %v4075, %v4074
        %v4212 = vpack.c.b16 %v4077, %v4076
        %v4213 = vpack.c.b16 %v4079, %v4078
        %v4214 = vpack.c.b16 %v4081, %v4080
        %v4215 = vpack.c.b16 %v4083, %v4082
        %v4216 = vpack.c.b16 %v4085, %v4084
        %v4217 = vpack.c.b16 %v4087, %v4086
        %v4218 = vpack.c.b16 %v4089, %v4088
        %v4219 = vpack.c.b16 %v4091, %v4090
        %4348 = vmatpush.bf16.msra.mxu0 %v4099
        %4349 = vmatpush.bf16.msra.mxu0 %v4098
        %4350 = vmatpush.bf16.msra.mxu0 %v4097
        %4351 = vmatpush.bf16.msra.mxu0 %v4096
        %4352 = vmatpush.bf16.msra.mxu0 %v4095
        %4353 = vmatpush.bf16.msra.mxu0 %v4094
        %4354 = vmatpush.bf16.msra.mxu0 %v4093
        %4355 = vmatpush.bf16.msra.mxu0 %v4092
        %4356 = vmatmul.bf16.gmra.mxu0 %v3304
        %v4357 = vpop.f32.mrf.mxu0
        %v4358 = vadd.f32 %v3578, %v4357
        %v4359 = vpop.f32.mrf.mxu0
        %v4360 = vadd.f32 %v3578, %v4359
        %4361 = vdwg.mxu0
        %4362 = vmatpush.bf16.msra.mxu0 %v4107
        %4363 = vmatpush.bf16.msra.mxu0 %v4106
        %4364 = vmatpush.bf16.msra.mxu0 %v4105
        %4365 = vmatpush.bf16.msra.mxu0 %v4104
        %4366 = vmatpush.bf16.msra.mxu0 %v4103
        %4367 = vmatpush.bf16.msra.mxu0 %v4102
        %4368 = vmatpush.bf16.msra.mxu0 %v4101
        %4369 = vmatpush.bf16.msra.mxu0 %v4100
        %4370 = vmatmul.bf16.gmra.mxu0 %v3305
        %v4371 = vpop.f32.mrf.mxu0
        %v4372 = vadd.f32 %v4358, %v4371
        %v4373 = vpop.f32.mrf.mxu0
        %v4374 = vadd.f32 %v4360, %v4373
        %4375 = vdwg.mxu0
        %4376 = vmatpush.bf16.msra.mxu0 %v4115
        %4377 = vmatpush.bf16.msra.mxu0 %v4114
        %4378 = vmatpush.bf16.msra.mxu0 %v4113
        %4379 = vmatpush.bf16.msra.mxu0 %v4112
        %4380 = vmatpush.bf16.msra.mxu0 %v4111
        %4381 = vmatpush.bf16.msra.mxu0 %v4110
        %4382 = vmatpush.bf16.msra.mxu0 %v4109
        %4383 = vmatpush.bf16.msra.mxu0 %v4108
        %4384 = vmatmul.bf16.gmra.mxu0 %v3306
        %v4385 = vpop.f32.mrf.mxu0
        %v4386 = vadd.f32 %v4372, %v4385
        %v4387 = vpop.f32.mrf.mxu0
        %v4388 = vadd.f32 %v4374, %v4387
        %4389 = vdwg.mxu0
        %4390 = vmatpush.bf16.msra.mxu0 %v4123
        %4391 = vmatpush.bf16.msra.mxu0 %v4122
        %4392 = vmatpush.bf16.msra.mxu0 %v4121
        %4393 = vmatpush.bf16.msra.mxu0 %v4120
        %4394 = vmatpush.bf16.msra.mxu0 %v4119
        %4395 = vmatpush.bf16.msra.mxu0 %v4118
        %4396 = vmatpush.bf16.msra.mxu0 %v4117
        %4397 = vmatpush.bf16.msra.mxu0 %v4116
        %4398 = vmatmul.bf16.gmra.mxu0 %v3307
        %v4399 = vpop.f32.mrf.mxu0
        %v4400 = vadd.f32 %v4386, %v4399
        %v4401 = vpop.f32.mrf.mxu0
        %v4402 = vadd.f32 %v4388, %v4401
        %4403 = vdwg.mxu0
        %4404 = vmatpush.bf16.msra.mxu0 %v4131
        %4405 = vmatpush.bf16.msra.mxu0 %v4130
        %4406 = vmatpush.bf16.msra.mxu0 %v4129
        %4407 = vmatpush.bf16.msra.mxu0 %v4128
        %4408 = vmatpush.bf16.msra.mxu0 %v4127
        %4409 = vmatpush.bf16.msra.mxu0 %v4126
        %4410 = vmatpush.bf16.msra.mxu0 %v4125
        %4411 = vmatpush.bf16.msra.mxu0 %v4124
        %4412 = vmatmul.bf16.gmra.mxu0 %v3308
        %v4413 = vpop.f32.mrf.mxu0
        %v4414 = vadd.f32 %v4400, %v4413
        %v4415 = vpop.f32.mrf.mxu0
        %v4416 = vadd.f32 %v4402, %v4415
        %4417 = vdwg.mxu0
        %4418 = vmatpush.bf16.msra.mxu0 %v4139
        %4419 = vmatpush.bf16.msra.mxu0 %v4138
        %4420 = vmatpush.bf16.msra.mxu0 %v4137
        %4421 = vmatpush.bf16.msra.mxu0 %v4136
        %4422 = vmatpush.bf16.msra.mxu0 %v4135
        %4423 = vmatpush.bf16.msra.mxu0 %v4134
        %4424 = vmatpush.bf16.msra.mxu0 %v4133
        %4425 = vmatpush.bf16.msra.mxu0 %v4132
        %4426 = vmatmul.bf16.gmra.mxu0 %v3309
        %v4427 = vpop.f32.mrf.mxu0
        %v4428 = vadd.f32 %v4414, %v4427
        %v4429 = vpop.f32.mrf.mxu0
        %v4430 = vadd.f32 %v4416, %v4429
        %4431 = vdwg.mxu0
        %4432 = vmatpush.bf16.msra.mxu0 %v4147
        %4433 = vmatpush.bf16.msra.mxu0 %v4146
        %4434 = vmatpush.bf16.msra.mxu0 %v4145
        %4435 = vmatpush.bf16.msra.mxu0 %v4144
        %4436 = vmatpush.bf16.msra.mxu0 %v4143
        %4437 = vmatpush.bf16.msra.mxu0 %v4142
        %4438 = vmatpush.bf16.msra.mxu0 %v4141
        %4439 = vmatpush.bf16.msra.mxu0 %v4140
        %4440 = vmatmul.bf16.gmra.mxu0 %v3310
        %v4441 = vpop.f32.mrf.mxu0
        %v4442 = vadd.f32 %v4428, %v4441
        %v4443 = vpop.f32.mrf.mxu0
        %v4444 = vadd.f32 %v4430, %v4443
        %4445 = vdwg.mxu0
        %4446 = vmatpush.bf16.msra.mxu0 %v4155
        %4447 = vmatpush.bf16.msra.mxu0 %v4154
        %4448 = vmatpush.bf16.msra.mxu0 %v4153
        %4449 = vmatpush.bf16.msra.mxu0 %v4152
        %4450 = vmatpush.bf16.msra.mxu0 %v4151
        %4451 = vmatpush.bf16.msra.mxu0 %v4150
        %4452 = vmatpush.bf16.msra.mxu0 %v4149
        %4453 = vmatpush.bf16.msra.mxu0 %v4148
        %4454 = vmatmul.bf16.gmra.mxu0 %v3311
        %v4455 = vpop.f32.mrf.mxu0
        %v4456 = vadd.f32 %v4442, %v4455
        %v4457 = vpop.f32.mrf.mxu0
        %v4458 = vadd.f32 %v4444, %v4457
        %4459 = vdwg.mxu0
        %4460 = vmatpush.bf16.msra.mxu0 %v4163
        %4461 = vmatpush.bf16.msra.mxu0 %v4162
        %4462 = vmatpush.bf16.msra.mxu0 %v4161
        %4463 = vmatpush.bf16.msra.mxu0 %v4160
        %4464 = vmatpush.bf16.msra.mxu0 %v4159
        %4465 = vmatpush.bf16.msra.mxu0 %v4158
        %4466 = vmatpush.bf16.msra.mxu0 %v4157
        %4467 = vmatpush.bf16.msra.mxu0 %v4156
        %4468 = vmatmul.bf16.gmra.mxu0 %v3312
        %v4469 = vpop.f32.mrf.mxu0
        %v4470 = vadd.f32 %v4456, %v4469
        %v4471 = vpop.f32.mrf.mxu0
        %v4472 = vadd.f32 %v4458, %v4471
        %4473 = vdwg.mxu0
        %4474 = vmatpush.bf16.msra.mxu0 %v4171
        %4475 = vmatpush.bf16.msra.mxu0 %v4170
        %4476 = vmatpush.bf16.msra.mxu0 %v4169
        %4477 = vmatpush.bf16.msra.mxu0 %v4168
        %4478 = vmatpush.bf16.msra.mxu0 %v4167
        %4479 = vmatpush.bf16.msra.mxu0 %v4166
        %4480 = vmatpush.bf16.msra.mxu0 %v4165
        %4481 = vmatpush.bf16.msra.mxu0 %v4164
        %4482 = vmatmul.bf16.gmra.mxu0 %v3313
        %v4483 = vpop.f32.mrf.mxu0
        %v4484 = vadd.f32 %v4470, %v4483
        %v4485 = vpop.f32.mrf.mxu0
        %v4486 = vadd.f32 %v4472, %v4485
        %4487 = vdwg.mxu0
        %4488 = vmatpush.bf16.msra.mxu0 %v4179
        %4489 = vmatpush.bf16.msra.mxu0 %v4178
        %4490 = vmatpush.bf16.msra.mxu0 %v4177
        %4491 = vmatpush.bf16.msra.mxu0 %v4176
        %4492 = vmatpush.bf16.msra.mxu0 %v4175
        %4493 = vmatpush.bf16.msra.mxu0 %v4174
        %4494 = vmatpush.bf16.msra.mxu0 %v4173
        %4495 = vmatpush.bf16.msra.mxu0 %v4172
        %4496 = vmatmul.bf16.gmra.mxu0 %v3314
        %v4497 = vpop.f32.mrf.mxu0
        %v4498 = vadd.f32 %v4484, %v4497
        %v4499 = vpop.f32.mrf.mxu0
        %v4500 = vadd.f32 %v4486, %v4499
        %4501 = vdwg.mxu0
        %4502 = vmatpush.bf16.msra.mxu0 %v4187
        %4503 = vmatpush.bf16.msra.mxu0 %v4186
        %4504 = vmatpush.bf16.msra.mxu0 %v4185
        %4505 = vmatpush.bf16.msra.mxu0 %v4184
        %4506 = vmatpush.bf16.msra.mxu0 %v4183
        %4507 = vmatpush.bf16.msra.mxu0 %v4182
        %4508 = vmatpush.bf16.msra.mxu0 %v4181
        %4509 = vmatpush.bf16.msra.mxu0 %v4180
        %4510 = vmatmul.bf16.gmra.mxu0 %v3315
        %v4511 = vpop.f32.mrf.mxu0
        %v4512 = vadd.f32 %v4498, %v4511
        %v4513 = vpop.f32.mrf.mxu0
        %v4514 = vadd.f32 %v4500, %v4513
        %4515 = vdwg.mxu0
        %4516 = vmatpush.bf16.msra.mxu0 %v4195
        %4517 = vmatpush.bf16.msra.mxu0 %v4194
        %4518 = vmatpush.bf16.msra.mxu0 %v4193
        %4519 = vmatpush.bf16.msra.mxu0 %v4192
        %4520 = vmatpush.bf16.msra.mxu0 %v4191
        %4521 = vmatpush.bf16.msra.mxu0 %v4190
        %4522 = vmatpush.bf16.msra.mxu0 %v4189
        %4523 = vmatpush.bf16.msra.mxu0 %v4188
        %4524 = vmatmul.bf16.gmra.mxu0 %v3316
        %v4525 = vpop.f32.mrf.mxu0
        %v4526 = vadd.f32 %v4512, %v4525
        %v4527 = vpop.f32.mrf.mxu0
        %v4528 = vadd.f32 %v4514, %v4527
        %4529 = vdwg.mxu0
        %4530 = vmatpush.bf16.msra.mxu0 %v4203
        %4531 = vmatpush.bf16.msra.mxu0 %v4202
        %4532 = vmatpush.bf16.msra.mxu0 %v4201
        %4533 = vmatpush.bf16.msra.mxu0 %v4200
        %4534 = vmatpush.bf16.msra.mxu0 %v4199
        %4535 = vmatpush.bf16.msra.mxu0 %v4198
        %4536 = vmatpush.bf16.msra.mxu0 %v4197
        %4537 = vmatpush.bf16.msra.mxu0 %v4196
        %4538 = vmatmul.bf16.gmra.mxu0 %v3317
        %v4539 = vpop.f32.mrf.mxu0
        %v4540 = vadd.f32 %v4526, %v4539
        %v4541 = vpop.f32.mrf.mxu0
        %v4542 = vadd.f32 %v4528, %v4541
        %4543 = vdwg.mxu0
        %4544 = vmatpush.bf16.msra.mxu0 %v4211
        %4545 = vmatpush.bf16.msra.mxu0 %v4210
        %4546 = vmatpush.bf16.msra.mxu0 %v4209
        %4547 = vmatpush.bf16.msra.mxu0 %v4208
        %4548 = vmatpush.bf16.msra.mxu0 %v4207
        %4549 = vmatpush.bf16.msra.mxu0 %v4206
        %4550 = vmatpush.bf16.msra.mxu0 %v4205
        %4551 = vmatpush.bf16.msra.mxu0 %v4204
        %4552 = vmatmul.bf16.gmra.mxu0 %v3318
        %v4553 = vpop.f32.mrf.mxu0
        %v4554 = vadd.f32 %v4540, %v4553
        %v4555 = vpop.f32.mrf.mxu0
        %v4556 = vadd.f32 %v4542, %v4555
        %4557 = vdwg.mxu0
        %4558 = vmatpush.bf16.msra.mxu0 %v4219
        %4559 = vmatpush.bf16.msra.mxu0 %v4218
        %4560 = vmatpush.bf16.msra.mxu0 %v4217
        %4561 = vmatpush.bf16.msra.mxu0 %v4216
        %4562 = vmatpush.bf16.msra.mxu0 %v4215
        %4563 = vmatpush.bf16.msra.mxu0 %v4214
        %4564 = vmatpush.bf16.msra.mxu0 %v4213
        %4565 = vmatpush.bf16.msra.mxu0 %v4212
        %4566 = vmatmul.bf16.gmra.mxu0 %v3319
        %v4567 = vpop.f32.mrf.mxu0
        %v4568 = vadd.f32 %v4554, %v4567
        %v4569 = vpop.f32.mrf.mxu0
        %v4570 = vadd.f32 %v4556, %v4569
        %4571 = vdwg.mxu0
        %v4572 = vadd.f32 %v2241, %v4568
        %v4573 = vadd.f32 %v2242, %v4570
        %v4574 = vld [vmem:[%s755] sm:$0x1]
        %v4575 = vld [vmem:[%s764] sm:$0x1]
        %4576 = vadd.xlane.f32.xlu0 %v4572
        %v4577 = vpop.xlane.xlu0 %4576
        %4578 = vadd.xlane.f32.xlu0 %v4573
        %v4579 = vpop.xlane.xlu0 %4578
        %v4580 = vmul.f32 %v4577, %v2196
        %v4581 = vmul.f32 %v4579, %v2196
        %v4582 = vsub.f32 %v4572, %v4580
        %v4583 = vsub.f32 %v4573, %v4581
        %v4584 = vmul.f32 %v4582, %v4582
        %v4585 = vmul.f32 %v4583, %v4583
        %4586 = vadd.xlane.f32.xlu0 %v4584
        %v4587 = vpop.xlane.xlu0 %4586
        %4588 = vadd.xlane.f32.xlu0 %v4585
        %v4589 = vpop.xlane.xlu0 %4588
        %v4590 = vmul.f32 %v4587, %v2196
        %v4591 = vmul.f32 %v4589, %v2196
        %v4592 = vadd.f32 %v4590, 1e-05
        %v4593 = vadd.f32 %v4591, 1e-05
        %v4594 = vrsqrt.pop %v4592
        %v4595 = vmul.f32 %v4594, %v4592
        %v4596 = vmul.f32 %v4595, %v4594
        %v4597 = vmul.f32 0.5, %v4596
        %v4598 = vsub.f32 1.5, %v4597
        %v4599 = vmul.f32 %v4594, %v4598
        %vm4600 = vweird.f32 %v4592
        %vm4601 = vweird.f32 %v4594
        %vm4602 = vmor %vm4600, %vm4601
        %v4603 = vsel %vm4602, %v4594, %v4599
        %v4604 = vrsqrt.pop %v4593
        %v4605 = vmul.f32 %v4604, %v4593
        %v4606 = vmul.f32 %v4605, %v4604
        %v4607 = vmul.f32 0.5, %v4606
        %v4608 = vsub.f32 1.5, %v4607
        %v4609 = vmul.f32 %v4604, %v4608
        %vm4610 = vweird.f32 %v4593
        %vm4611 = vweird.f32 %v4604
        %vm4612 = vmor %vm4610, %vm4611
        %v4613 = vsel %vm4612, %v4604, %v4609
        %v4614 = vmul.f32 %v4582, %v4603
        %v4615 = vmul.f32 %v4583, %v4613
        %v4617 = vperm.slane %v4574, 0
        %v4619 = vmul.f32 %v4614, %v4617
        %v4620 = vmul.f32 %v4615, %v4617
        %v4622 = vperm.slane %v4575, 0
        %v4624 = vadd.f32 %v4619, %v4622
        %v4625 = vadd.f32 %v4620, %v4622
        %4626 = vst [vmem:[#allocation2] sm:$0xff] %v4624
        %4627 = vst [vmem:[#allocation2 + $0x8] sm:$0xff] %v4625
        %p4628 = scmp.eq.s32.totalorder %s47, 1
        // Predicated region
        $region121: #{forward.4} parent=71 // pred_check
          %p4629 = pneg %p4628
        $region122: #{forward.4} parent=71 // pred_check_branch
          %4631 = sbr.rel (%p4629) target = $region124
        $region123: #{forward.4} parent=71 // pred_region
          %v4632 = vrot.slane %v4624, 4
          %v4633 = vadd.f32 %v4624, %v4632
          %v4634 = vrot.slane %v4633, 2
          %v4635 = vadd.f32 %v4633, %v4634
          %v4636 = vrot.slane %v4635, 1
          %v4637 = vadd.f32 %v4635, %v4636
          %v4638 = vrot.slane %v4625, 4
          %v4639 = vadd.f32 %v4625, %v4638
          %v4640 = vrot.slane %v4639, 2
          %v4641 = vadd.f32 %v4639, %v4640
          %v4642 = vrot.slane %v4641, 1
          %v4643 = vadd.f32 %v4641, %v4642
          %v4644 = vrcp.pop 8.0
          %v4645 = vmul.f32 8.0, %v4644
          %v4646 = vsub.f32 1.0, %v4645
          %v4647 = vmul.f32 %v4644, %v4646
          %v4648 = vadd.f32 %v4644, %v4647
          %vm4649 = vweird.f32 %v4644
          %v4650 = vsel %vm4649, %v4644, %v4648
          %v4651 = vmul.f32 %v4637, %v4650
          %v4652 = vmul.f32 %v4643, %v4650
          %4653 = vst [vmem:[%s872] sm:$0x1] %v4651
          %4654 = vst [vmem:[%s872 + $0x1] sm:$0x1] %v4652
        $region124: #{forward.4} parent=71 // pred_fallthru
          _
        %s4655 = smul.u32 2, %s46
        %p4656 = scmp.lt.s32.totalorder %s4655, 3
        %s4657 = scalar_select %p4656, %s4655, 3
        %s4658 = scalar_lea.vmem %s13, %s4657
        // Predicated region
        $region125: #{forward.4} parent=71 // pred_check
          %p4659 = pneg %p410
        $region126: #{forward.4} parent=71 // pred_check_branch
          %4661 = sbr.rel (%p4659) target = $region128
        $region127: #{forward.4} parent=71 // pred_region
          %s4662 = smul.u32 2, %s46
        $region128: #{forward.4} parent=71 // pred_fallthru
          _
      $region72: #{forward.4} parent=5 // pred_fallthru
        _
      %p4663 = scmp.le.s32.totalorder 2, %s37
      // Predicated region
      $region129: #{forward.4} parent=5 // pred_check
        %p4664 = pneg %p4663
      $region130: #{forward.4} parent=5 // pred_check_branch
        %4666 = sbr.rel (%p4664) target = $region132
      $region131: #{forward.4} parent=5 // pred_region
        %s4667 = ssub.s32 %s37, 2
        // Predicated region
        $region133: #{forward.4} parent=131 // pred_check
          %p4668 = pneg %p416
        $region134: #{forward.4} parent=131 // pred_check_branch
          %4670 = sbr.rel (%p4668) target = $region136
        $region135: #{forward.4} parent=131 // pred_region
          %s4671 = smul.u32 2, %s48
          %p4672 = scmp.lt.s32.totalorder %s4671, 3
          %s4673 = scalar_select %p4672, %s4671, 3
          %s4674 = scalar_lea.vmem %s13, %s4673
        $region136: #{forward.4} parent=131 // pred_fallthru
          _
      $region132: #{forward.4} parent=5 // pred_fallthru
        _
    $region6: #{forward.4} parent=1 // loop_footer
      %s41 = sadd.s32 1, %s37
    $region7: #{forward.4} parent=1 // loop_footer_branch
      %36 = sbr.rel target = $region3
    $region8: #{forward.4} parent=1 // loop_exit
      _
    %4675 = vsyncpa [#allocation4], 1
    %s4676 = scalar_lea.sflag [#allocation4], 1
    %4677 = vsyncpa %s4676, 1
    %4678 = vsyncpa [#allocation6], 1
    %s4679 = scalar_lea.sflag [#allocation6], 1
    %4680 = vsyncpa %s4679, 1
    %4681 = vsyncpa [#allocation9], 1
    %s4682 = scalar_lea.sflag [#allocation9], 1
    %4683 = vsyncpa %s4682, 1
    %4684 = vsyncpa [#allocation12], 1
    %s4685 = scalar_lea.sflag [#allocation12], 1
    %4686 = vsyncpa %s4685, 1
    %4687 = vsyncpa [#allocation15], 1
    %s4688 = scalar_lea.sflag [#allocation15], 1
    %4689 = vsyncpa %s4688, 1
    %4690 = vsyncpa [#allocation18], 1
    %s4691 = scalar_lea.sflag [#allocation18], 1
    %4692 = vsyncpa %s4691, 1

</llo_original>
